<compile_context>
chip_gen: v7x
topology: tpu7x:2x2x1
jax: 0.10.0
libtpu: 0.0.40
codegen_flags: <defaults>
</compile_context>

<pallas_src>
import functools

import jax
import jax.numpy as jnp
from jax.experimental import pallas as pl
from jax.experimental.pallas import tpu as pltpu

SOS_token = 1

B_BLK = 8        # batch rows per grid block (sublane-dense, megacore split unit)
TC_DEC = 8       # decoder timesteps per grid step
TILE_BW = 64     # (batch*width) rows per conv grid step


def _largest_divisor(n, cap):
    for d in range(min(cap, n), 0, -1):
        if n % d == 0:
            return d
    return 1


# ----------------------------- Pallas kernels -----------------------------

def _conv_pool_kernel(hh, x_ref, w_ref, b_ref, o_ref):
    # x: [TILE_BW*Hh, 9C] bf16 patches, w: [9C, Fp] bf16, b: [1, Fp] f32.
    # Fused conv-as-matmul + ReLU + mean-pool over the image height.
    m, _ = x_ref.shape
    acc = jnp.dot(x_ref[...], w_ref[...], preferred_element_type=jnp.float32)
    acc = jnp.maximum(acc + b_ref[...], 0.0)
    tbw = m // hh
    o_ref[...] = jnp.mean(acc.reshape(tbw, hh, -1), axis=1)


def conv3x3_relu_pool(patches_flat, w, b, hh, tile_bw=TILE_BW):
    # patches_flat: [(B*Ww)*Hh, 9C], rows grouped per (b, w) column.
    M, K = patches_flat.shape
    BW = M // hh
    Fp = w.shape[1]
    BWp = pl.cdiv(BW, tile_bw) * tile_bw
    if BWp != BW:
        patches_flat = jnp.pad(patches_flat, ((0, (BWp - BW) * hh), (0, 0)))
    out = pl.pallas_call(
        functools.partial(_conv_pool_kernel, hh),
        out_shape=jax.ShapeDtypeStruct((BWp, Fp), jnp.float32),
        grid=(BWp // tile_bw,),
        in_specs=[
            pl.BlockSpec((tile_bw * hh, K), lambda i: (i, 0)),
            pl.BlockSpec((K, Fp), lambda i: (0, 0)),
            pl.BlockSpec((1, Fp), lambda i: (0, 0)),
        ],
        out_specs=pl.BlockSpec((tile_bw, Fp), lambda i: (i, 0)),
        compiler_params=pltpu.CompilerParams(
            dimension_semantics=("parallel",)),
    )(patches_flat, w, b)
    return out[:BW]


def _encoder_gru_kernel(x_ref, wi_ref, wh_ref, bi_ref, bh_ref,
                        enc_out_ref, h_last_ref, h_scratch):
    c = pl.program_id(1)

    @pl.when(c == 0)
    def _():
        h_scratch[...] = jnp.zeros_like(h_scratch)

    tc, bb, e = x_ref.shape
    H = wh_ref.shape[0]
    wh = wh_ref[...]
    bh = bh_ref[...]

    # Hoisted input-gate matmul: one [tc*bb, E]@[E,3H] dot for the whole chunk.
    gi_all = (jnp.dot(x_ref[...].reshape(tc * bb, e), wi_ref[...],
                      preferred_element_type=jnp.float32)
              + bi_ref[...]).reshape(tc, bb, 3 * H)

    h = h_scratch[...]
    for i in range(tc):                              # bounded static unroll
        gi = gi_all[i]
        gh = jnp.dot(h.astype(jnp.bfloat16), wh,
                     preferred_element_type=jnp.float32) + bh
        r = jax.nn.sigmoid(gi[:, :H] + gh[:, :H])
        z = jax.nn.sigmoid(gi[:, H:2 * H] + gh[:, H:2 * H])
        n = jnp.tanh(gi[:, 2 * H:] + r * gh[:, 2 * H:])
        h = (1.0 - z) * n + z * h
        enc_out_ref[i] = h.astype(enc_out_ref.dtype)   # full [bb, H] tile store
    h_scratch[...] = h

    @pl.when(c == pl.num_programs(1) - 1)
    def _():
        h_last_ref[...] = h


def encoder_gru(x_seq, wi, wh, bi, bh, b_blk, tc):
    T, Bp, E = x_seq.shape
    H = wh.shape[0]
    enc_out, h_last = pl.pallas_call(
        _encoder_gru_kernel,
        out_shape=(jax.ShapeDtypeStruct((T, Bp, H), jnp.bfloat16),
                   jax.ShapeDtypeStruct((Bp, H), jnp.float32)),
        grid=(Bp // b_blk, T // tc),
        in_specs=[
            pl.BlockSpec((tc, b_blk, E), lambda b, c: (c, b, 0)),
            pl.BlockSpec((E, 3 * H), lambda b, c: (0, 0)),
            pl.BlockSpec((H, 3 * H), lambda b, c: (0, 0)),
            pl.BlockSpec((1, 3 * H), lambda b, c: (0, 0)),
            pl.BlockSpec((1, 3 * H), lambda b, c: (0, 0)),
        ],
        out_specs=(
            pl.BlockSpec((tc, b_blk, H), lambda b, c: (c, b, 0)),
            pl.BlockSpec((b_blk, H), lambda b, c: (b, 0)),
        ),
        scratch_shapes=[pltpu.VMEM((b_blk, H), jnp.float32)],
        compiler_params=pltpu.CompilerParams(
            dimension_semantics=("parallel", "arbitrary")),
    )(x_seq, wi, wh, bi, bh)
    return enc_out, h_last


def _decoder_kernel(emb_ref, tgt_ref, msk_ref, h0_ref, enc_ref,
                    wi_ref, wh_ref, bi_ref, bh_ref,
                    wc1_ref, wc2_ref, bc_ref, wo_ref, bo_ref,
                    nll_ref, h_scratch):
    c = pl.program_id(1)

    @pl.when(c == 0)
    def _():
        h_scratch[...] = h0_ref[...]

    tc, bb, H = emb_ref.shape
    V = wo_ref.shape[1]
    wh = wh_ref[...]
    bh = bh_ref[...]
    wc1 = wc1_ref[...]
    wc2 = wc2_ref[...]
    bc = bc_ref[...]
    wo = wo_ref[...]
    bo = bo_ref[...]
    # Hoisted per chunk: f32 copy of the (bf16, VMEM-resident) encoder states.
    # NOTE: no time-step masking; fixed-width images produce fixed-length T.
    enc = enc_ref[...].astype(jnp.float32)                      # [T, bb, H]

    # Hoisted input-gate matmul for the whole chunk (off the serial chain).
    gi_all = (jnp.dot(emb_ref[...].reshape(tc * bb, H), wi_ref[...],
                      preferred_element_type=jnp.float32)
              + bi_ref[...]).reshape(tc, bb, 3 * H)

    col = jax.lax.broadcasted_iota(jnp.int32, (bb, V), 1)

    h = h_scratch[...]
    nll_cols = []
    for i in range(tc):                              # static unroll, tc = 8
        gi = gi_all[i]
        gh = jnp.dot(h.astype(jnp.bfloat16), wh,
                     preferred_element_type=jnp.float32) + bh
        r = jax.nn.sigmoid(gi[:, :H] + gh[:, :H])
        z = jax.nn.sigmoid(gi[:, H:2 * H] + gh[:, H:2 * H])
        n = jnp.tanh(gi[:, 2 * H:] + r * gh[:, 2 * H:])
        h = (1.0 - z) * n + z * h

        # Luong (dot) attention, VPU/XLU formulation (q=1 would waste the MXU).
        scores = jnp.sum(enc * h[None, :, :], axis=-1, keepdims=True)  # [T,bb,1]
        smax = jnp.max(scores, axis=0, keepdims=True)
        e = jnp.exp(scores - smax)
        attn = e * pl.reciprocal(jnp.sum(e, axis=0, keepdims=True),
                                 approx=True)
        context = jnp.sum(attn * enc, axis=0)                          # [bb, H]

        concat = jnp.tanh(
            jnp.dot(h.astype(jnp.bfloat16), wc1,
                    preferred_element_type=jnp.float32)
            + jnp.dot(context.astype(jnp.bfloat16), wc2,
                      preferred_element_type=jnp.float32)
            + bc)

        # Generator: Linear + log_softmax combined with NLL via int targets
        # (no [B, V] one-hot materialization).
        logits = jnp.dot(concat.astype(jnp.bfloat16), wo,
                         preferred_element_type=jnp.float32) + bo      # [bb, V]
        lmax = jnp.max(logits, axis=1, keepdims=True)
        lse = jnp.log(jnp.sum(jnp.exp(logits - lmax), axis=1,
                              keepdims=True)) + lmax
        tgt = tgt_ref[:, pl.ds(i, 1)]                                  # [bb, 1]
        tgt_logit = jnp.sum(jnp.where(col == tgt, logits, 0.0),
                            axis=1, keepdims=True)
        nll_cols.append((lse - tgt_logit) * msk_ref[:, pl.ds(i, 1)])

    h_scratch[...] = h
    nll_ref[...] = jnp.concatenate(nll_cols, axis=1)                   # [bb, tc]


def decoder_teacher_forced(emb_seq, tgt, msk, h0, enc, p, b_blk, tc):
    Lp, Bp, H = emb_seq.shape
    T = enc.shape[0]
    V = p["wo"].shape[-1]
    nll = pl.pallas_call(
        _decoder_kernel,
        out_shape=jax.ShapeDtypeStruct((Bp, Lp), jnp.float32),
        grid=(Bp // b_blk, Lp // tc),
        in_specs=[
            pl.BlockSpec((tc, b_blk, H), lambda b, c: (c, b, 0)),   # emb (bf16)
            pl.BlockSpec((b_blk, tc), lambda b, c: (b, c)),         # targets
            pl.BlockSpec((b_blk, tc), lambda b, c: (b, c)),         # mask
            pl.BlockSpec((b_blk, H), lambda b, c: (b, 0)),          # h0
            pl.BlockSpec((T, b_blk, H), lambda b, c: (0, b, 0)),    # enc (resident)
            pl.BlockSpec((H, 3 * H), lambda b, c: (0, 0)),          # wi_d
            pl.BlockSpec((H, 3 * H), lambda b, c: (0, 0)),          # wh_d
            pl.BlockSpec((1, 3 * H), lambda b, c: (0, 0)),          # bi_d
            pl.BlockSpec((1, 3 * H), lambda b, c: (0, 0)),          # bh_d
            pl.BlockSpec((H, H), lambda b, c: (0, 0)),              # wc1
            pl.BlockSpec((H, H), lambda b, c: (0, 0)),              # wc2
            pl.BlockSpec((1, H), lambda b, c: (0, 0)),              # bc
            pl.BlockSpec((H, V), lambda b, c: (0, 0)),              # wo
            pl.BlockSpec((1, V), lambda b, c: (0, 0)),              # bo
        ],
        out_specs=pl.BlockSpec((b_blk, tc), lambda b, c: (b, c)),
        scratch_shapes=[pltpu.VMEM((b_blk, H), jnp.float32)],
        compiler_params=pltpu.CompilerParams(
            dimension_semantics=("parallel", "arbitrary")),
    )(emb_seq, tgt, msk, h0, enc,
      p["wi_d"], p["wh_d"], p["bi_d"], p["bh_d"],
      p["wc1"], p["wc2"], p["bc"], p["wo"], p["bo"])
    return nll


# --------------------------------- glue -----------------------------------

def im2col_3x3(x_nchw):
    # TODO(synk): for large images, extract the 3x3 windows inside the conv
    # kernel (shifted loads / pltpu.roll) to avoid the 9x im2col HBM blow-up.
    B, C, H, W = x_nchw.shape
    xp = jnp.pad(x_nchw, ((0, 0), (0, 0), (1, 1), (1, 1)))
    cols = []
    for dh in range(3):
        for dw in range(3):
            cols.append(xp[:, :, dh:dh + H, dw:dw + W])
    patches = jnp.stack(cols, axis=2)                     # [B, C, 9, H, W]
    # -> [B, W, H, 9C] so the fused conv kernel can mean-pool over H per (b, w)
    patches = patches.transpose(0, 4, 3, 1, 2).reshape(B, W, H, C * 9)
    return patches


def init_params(key, C, F, H, V):
    ks = jax.random.split(key, 10)

    def rnd(k, shape, fan_in):
        return jax.random.normal(k, shape, dtype=jnp.float32) / (fan_in ** 0.5)

    Fp = ((F + 127) // 128) * 128          # lane-dense conv output channels
    w_conv = jnp.pad(rnd(ks[0], (C * 9, F), C * 9), ((0, 0), (0, Fp - F)))

    return dict(
        w_conv=w_conv.astype(jnp.bfloat16),
        b_conv=jnp.zeros((1, Fp), jnp.float32),
        wi_e=rnd(ks[1], (F, 3 * H), F).astype(jnp.bfloat16),
        wh_e=rnd(ks[2], (H, 3 * H), H).astype(jnp.bfloat16),
        bi_e=jnp.zeros((1, 3 * H), jnp.float32),
        bh_e=jnp.zeros((1, 3 * H), jnp.float32),
        emb=rnd(ks[3], (V, H), 1).astype(jnp.bfloat16),
        wi_d=rnd(ks[4], (H, 3 * H), H).astype(jnp.bfloat16),
        wh_d=rnd(ks[5], (H, 3 * H), H).astype(jnp.bfloat16),
        bi_d=jnp.zeros((1, 3 * H), jnp.float32),
        bh_d=jnp.zeros((1, 3 * H), jnp.float32),
        wc1=rnd(ks[6], (H, H), H).astype(jnp.bfloat16),
        wc2=rnd(ks[7], (H, H), H).astype(jnp.bfloat16),
        bc=jnp.zeros((1, H), jnp.float32),
        wo=rnd(ks[8], (H, V), H).astype(jnp.bfloat16),
        bo=jnp.zeros((1, V), jnp.float32),
    )


@functools.partial(jax.jit, static_argnames=("max_len",))
def _forward_device(params, images, labels, labels_len, *, max_len):
    B0, C, Hh, Ww = images.shape
    H = params["wh_e"].shape[0]
    F = params["wi_e"].shape[0]

    # Pad batch to a multiple of B_BLK for sublane density / megacore split;
    # padded rows carry mask=0 so they do not affect the loss.
    Bp = ((B0 + B_BLK - 1) // B_BLK) * B_BLK
    pad_b = Bp - B0
    if pad_b:
        images = jnp.pad(images, ((0, pad_b), (0, 0), (0, 0), (0, 0)))
        labels = jnp.pad(labels, ((0, pad_b), (0, 0)))
        labels_len = jnp.pad(labels_len, ((0, pad_b),))

    # ---- Encoder: fused conv3x3+ReLU+height-meanpool, then chunked GRU ----
    patches = im2col_3x3(images)                                  # [Bp,Ww,Hh,9C]
    K = patches.shape[-1]
    feat = conv3x3_relu_pool(
        patches.reshape(Bp * Ww * Hh, K).astype(jnp.bfloat16),
        params["w_conv"], params["b_conv"], Hh)                   # [Bp*Ww, Fp]
    feat = feat[:, :F].reshape(Bp, Ww, F)                         # drop F pad
    x_seq = jnp.transpose(feat, (1, 0, 2)).astype(jnp.bfloat16)   # [T, Bp, F]
    T = x_seq.shape[0]
    tc_enc = _largest_divisor(T, 16)                              # bounded unroll
    enc_out, dec_hidden = encoder_gru(
        x_seq, params["wi_e"], params["wh_e"],
        params["bi_e"], params["bh_e"], B_BLK, tc_enc)            # [T,Bp,H],[Bp,H]

    # ---- Decoder: teacher forcing, chunked loop in one pallas_call ----
    L = max_len
    Lp = ((L + TC_DEC - 1) // TC_DEC) * TC_DEC
    labels_i = labels[:, :L].astype(jnp.int32)
    if Lp != L:                                  # padded steps are fully masked
        labels_i = jnp.pad(labels_i, ((0, 0), (0, Lp - L)))
    sos = jnp.full((Bp, 1), SOS_token, dtype=jnp.int32)
    dec_in = jnp.concatenate([sos, labels_i[:, :Lp - 1]], axis=1)  # [Bp, Lp]
    emb_seq = jnp.take(params["emb"], dec_in.T, axis=0)            # [Lp, Bp, H]

    # TODO(synk): reference sets mask = None then indexes mask[:, t] (bug);
    # the mask is derived from labels_len instead.
    steps = jnp.arange(Lp, dtype=jnp.int32)[None, :]
    mask = ((steps < labels_len[:, None]) & (steps < L)).astype(jnp.float32)

    nll = decoder_teacher_forced(emb_seq, labels_i, mask, dec_hidden,
                                 enc_out, params, B_BLK, TC_DEC)   # [Bp, Lp]

    per_step_sum = jnp.sum(nll, axis=0)[:L]                        # [L]
    n_per_step = jnp.sum(mask, axis=0)[:L]                         # [L]
    # TODO(synk): reference maskNLLLoss divides by nTotal even when 0 (nan);
    # we clamp the denominator to 1 so fully-masked steps contribute 0.
    step_mean = per_step_sum / jnp.maximum(n_per_step, 1.0)
    loss = jnp.sum(step_mean)
    return loss, step_mean, n_per_step


def nn_model_forward(params, images, labels, labels_len, max_len):
    """Mirrors NNModel.forward: teacher-forced decode, masked-NLL per step."""
    loss, step_mean, n_per_step = _forward_device(
        params, images, labels, labels_len, max_len=max_len)
    # Single device->host transfer (no per-step sync inside the decode loop).
    step_mean_h, n_per_step_h = jax.device_get((step_mean, n_per_step))
    print_losses = [float(m) * float(n) for m, n in zip(step_mean_h, n_per_step_h)]
    n_totals = int(n_per_step_h.sum())
    return loss, print_losses, n_totals


# --------------------------------- main ------------------------------------

if __name__ == "__main__":
    key = jax.random.PRNGKey(0)
    k_img, k_lab, k_par = jax.random.split(key, 3)

    B, C, Hh, Ww = 2, 4, 16, 16
    Hd, V = 32, 16
    MAX_LEN = 8   # module default is 150; shortened for the small test

    images = jax.random.normal(k_img, (B, C, Hh, Ww), dtype=jnp.float32)
    labels = jax.random.randint(k_lab, (B, MAX_LEN), 2, V).astype(jnp.int32)
    labels_len = jnp.array([MAX_LEN, MAX_LEN - 3], dtype=jnp.int32)

    params = init_params(k_par, C, Hd, Hd, V)

    loss, print_losses, n_totals = nn_model_forward(
        params, images, labels, labels_len, MAX_LEN)
    jax.block_until_ready(loss)
    print("KERNEL_OK")
</pallas_src>

<mosaic_0001>
module attributes {stable_mosaic.version = 11 : i64} {
  func.func @_conv_pool_kernel(%arg0: i32, %arg1: memref<1024x36xbf16, #tpu.memory_space<vmem>>, %arg2: memref<36x128xbf16, #tpu.memory_space<vmem>>, %arg3: memref<1x128xf32, #tpu.memory_space<vmem>>, %arg4: memref<64x128xf32, #tpu.memory_space<vmem>>) attributes {dimension_semantics = [#tpu.dimension_semantics<parallel>], iteration_bounds = array<i64: 2>, scalar_prefetch = 0 : i64, scratch_operands = 0 : i64, tpu.core_type = #tpu.core_type<tc>, window_params = [{transform_indices = @transform_0, window_bounds = array<i64: 1024, 36>}, {pipeline_mode = #tpu.pipeline_mode<synchronous>, transform_indices = @transform_1, window_bounds = array<i64: 36, 128>}, {pipeline_mode = #tpu.pipeline_mode<synchronous>, transform_indices = @transform_2, window_bounds = array<i64: 1, 128>}, {transform_indices = @transform_3, window_bounds = array<i64: 64, 128>}]} {
    %c0 = arith.constant 0 : index
    %c0_0 = arith.constant 0 : index
    %0 = vector.load %arg1[%c0, %c0_0] : memref<1024x36xbf16, #tpu.memory_space<vmem>>, vector<1024x36xbf16>
    %c0_1 = arith.constant 0 : index
    %c0_2 = arith.constant 0 : index
    %1 = vector.load %arg2[%c0_1, %c0_2] : memref<36x128xbf16, #tpu.memory_space<vmem>>, vector<36x128xbf16>
    %cst = arith.constant dense<0.000000e+00> : vector<1024x128xf32>
    %2 = tpu.matmul %0, %1, %cst {dimension_numbers = #tpu.dot_dimension_numbers<[1], [0], [0], [1], [0, 0, 1, 1], [], []>} : vector<1024x36xbf16>, vector<36x128xbf16>, vector<1024x128xf32> -> vector<1024x128xf32>
    %c0_3 = arith.constant 0 : index
    %c0_4 = arith.constant 0 : index
    %3 = vector.load %arg3[%c0_3, %c0_4] : memref<1x128xf32, #tpu.memory_space<vmem>>, vector<1x128xf32>
    %4 = vector.broadcast %3 : vector<1x128xf32> to vector<1024x128xf32>
    %5 = arith.addf %2, %4 : vector<1024x128xf32>
    %cst_5 = arith.constant 0.000000e+00 : f32
    %6 = vector.broadcast %cst_5 : f32 to vector<1024x128xf32>
    %7 = arith.maximumf %5, %6 : vector<1024x128xf32>
    %8 = vector.shape_cast %7 : vector<1024x128xf32> to vector<64x16x128xf32>
    %cst_6 = arith.constant dense<0.000000e+00> : vector<64x128xf32>
    %9 = vector.multi_reduction <add>, %8, %cst_6 [1] : vector<64x16x128xf32> to vector<64x128xf32>
    %cst_7 = arith.constant 1.600000e+01 : f32
    %10 = vector.broadcast %cst_7 : f32 to vector<64x128xf32>
    %11 = arith.divf %9, %10 : vector<64x128xf32>
    %c0_8 = arith.constant 0 : index
    %c0_9 = arith.constant 0 : index
    %12 = vector.load %arg4[%c0_8, %c0_9] : memref<64x128xf32, #tpu.memory_space<vmem>>, vector<64x128xf32>
    tpu.vector_store %arg4[%c0_8, %c0_9], %11 {strides = array<i32>} : memref<64x128xf32, #tpu.memory_space<vmem>>, vector<64x128xf32>,
    return
  }
  func.func @transform_0(%arg0: i32) -> (i32, i32) {
    %c0_i32 = arith.constant 0 : i32
    %c0_i32_0 = arith.constant 0 : i32
    return %arg0, %c0_i32 : i32, i32
  }
  func.func @transform_1(%arg0: i32) -> (i32, i32) {
    %c0_i32 = arith.constant 0 : i32
    %c0_i32_0 = arith.constant 0 : i32
    %c0_i32_1 = arith.constant 0 : i32
    return %c0_i32, %c0_i32_0 : i32, i32
  }
  func.func @transform_2(%arg0: i32) -> (i32, i32) {
    %c0_i32 = arith.constant 0 : i32
    %c0_i32_0 = arith.constant 0 : i32
    %c0_i32_1 = arith.constant 0 : i32
    return %c0_i32, %c0_i32_0 : i32, i32
  }
  func.func @transform_3(%arg0: i32) -> (i32, i32) {
    %c0_i32 = arith.constant 0 : i32
    %c0_i32_0 = arith.constant 0 : i32
    return %arg0, %c0_i32 : i32, i32
  }
}

module attributes {stable_mosaic.version = 11 : i64} {
  func.func @_encoder_gru_kernel(%arg0: i32, %arg1: i32, %arg2: memref<16x8x32xbf16, #tpu.memory_space<vmem>>, %arg3: memref<32x96xbf16, #tpu.memory_space<vmem>>, %arg4: memref<32x96xbf16, #tpu.memory_space<vmem>>, %arg5: memref<1x96xf32, #tpu.memory_space<vmem>>, %arg6: memref<1x96xf32, #tpu.memory_space<vmem>>, %arg7: memref<16x8x32xbf16, #tpu.memory_space<vmem>>, %arg8: memref<8x32xf32, #tpu.memory_space<vmem>>, %arg9: memref<8x32xf32, #tpu.memory_space<vmem>>) attributes {dimension_semantics = [#tpu.dimension_semantics<parallel>, #tpu.dimension_semantics<arbitrary>], iteration_bounds = array<i64: 1, 1>, scalar_prefetch = 0 : i64, scratch_operands = 1 : i64, tpu.core_type = #tpu.core_type<tc>, window_params = [{transform_indices = @transform_0, window_bounds = array<i64: 16, 8, 32>}, {pipeline_mode = #tpu.pipeline_mode<synchronous>, transform_indices = @transform_1, window_bounds = array<i64: 32, 96>}, {pipeline_mode = #tpu.pipeline_mode<synchronous>, transform_indices = @transform_2, window_bounds = array<i64: 32, 96>}, {pipeline_mode = #tpu.pipeline_mode<synchronous>, transform_indices = @transform_3, window_bounds = array<i64: 1, 96>}, {pipeline_mode = #tpu.pipeline_mode<synchronous>, transform_indices = @transform_4, window_bounds = array<i64: 1, 96>}, {transform_indices = @transform_5, window_bounds = array<i64: 16, 8, 32>}, {transform_indices = @transform_6, window_bounds = array<i64: 8, 32>}]} {
    %c0_i32 = arith.constant 0 : i32
    %0 = arith.cmpi eq, %arg1, %c0_i32 : i32
    %1 = arith.extui %0 : i1 to i32
    %c0_i32_0 = arith.constant 0 : i32
    %2 = arith.cmpi ne, %1, %c0_i32_0 : i32
    scf.if %2 {
      %cst_114 = arith.constant 0.000000e+00 : f32
      %594 = vector.broadcast %cst_114 : f32 to vector<8x32xf32>
      %c0_115 = arith.constant 0 : index
      %c0_116 = arith.constant 0 : index
      %595 = vector.load %arg9[%c0_115, %c0_116] : memref<8x32xf32, #tpu.memory_space<vmem>>, vector<8x32xf32>
      tpu.vector_store %arg9[%c0_115, %c0_116], %594 {strides = array<i32>} : memref<8x32xf32, #tpu.memory_space<vmem>>, vector<8x32xf32>,
    } else {
    }
    %c0 = arith.constant 0 : index
    %c0_1 = arith.constant 0 : index
    %3 = vector.load %arg4[%c0, %c0_1] : memref<32x96xbf16, #tpu.memory_space<vmem>>, vector<32x96xbf16>
    %c0_2 = arith.constant 0 : index
    %c0_3 = arith.constant 0 : index
    %4 = vector.load %arg6[%c0_2, %c0_3] : memref<1x96xf32, #tpu.memory_space<vmem>>, vector<1x96xf32>
    %c0_4 = arith.constant 0 : index
    %c0_5 = arith.constant 0 : index
    %c0_6 = arith.constant 0 : index
    %5 = vector.load %arg2[%c0_4, %c0_5, %c0_6] : memref<16x8x32xbf16, #tpu.memory_space<vmem>>, vector<16x8x32xbf16>
    %6 = vector.shape_cast %5 : vector<16x8x32xbf16> to vector<128x32xbf16>
    %c0_7 = arith.constant 0 : index
    %c0_8 = arith.constant 0 : index
    %7 = vector.load %arg3[%c0_7, %c0_8] : memref<32x96xbf16, #tpu.memory_space<vmem>>, vector<32x96xbf16>
    %cst = arith.constant dense<0.000000e+00> : vector<128x96xf32>
    %8 = tpu.matmul %6, %7, %cst {dimension_numbers = #tpu.dot_dimension_numbers<[1], [0], [0], [1], [0, 0, 1, 1], [], []>} : vector<128x32xbf16>, vector<32x96xbf16>, vector<128x96xf32> -> vector<128x96xf32>
    %c0_9 = arith.constant 0 : index
    %c0_10 = arith.constant 0 : index
    %9 = vector.load %arg5[%c0_9, %c0_10] : memref<1x96xf32, #tpu.memory_space<vmem>>, vector<1x96xf32>
    %10 = vector.broadcast %9 : vector<1x96xf32> to vector<128x96xf32>
    %11 = arith.addf %8, %10 : vector<128x96xf32>
    %12 = vector.shape_cast %11 : vector<128x96xf32> to vector<16x8x96xf32>
    %c0_11 = arith.constant 0 : index
    %c0_12 = arith.constant 0 : index
    %13 = vector.load %arg9[%c0_11, %c0_12] : memref<8x32xf32, #tpu.memory_space<vmem>>, vector<8x32xf32>
    %14 = vector.extract_strided_slice %12 {offsets = [0, 0, 0], sizes = [1, 8, 96], strides = [1, 1, 1]} : vector<16x8x96xf32> to vector<1x8x96xf32>
    %15 = vector.shape_cast %14 : vector<1x8x96xf32> to vector<8x96xf32>
    %16 = arith.truncf %13 : vector<8x32xf32> to vector<8x32xbf16>
    %cst_13 = arith.constant dense<0.000000e+00> : vector<8x96xf32>
    %17 = tpu.matmul %16, %3, %cst_13 {dimension_numbers = #tpu.dot_dimension_numbers<[1], [0], [0], [1], [0, 0, 1, 1], [], []>} : vector<8x32xbf16>, vector<32x96xbf16>, vector<8x96xf32> -> vector<8x96xf32>
    %18 = vector.broadcast %4 : vector<1x96xf32> to vector<8x96xf32>
    %19 = arith.addf %17, %18 : vector<8x96xf32>
    %20 = vector.extract_strided_slice %15 {offsets = [0, 0], sizes = [8, 32], strides = [1, 1]} : vector<8x96xf32> to vector<8x32xf32>
    %21 = vector.extract_strided_slice %19 {offsets = [0, 0], sizes = [8, 32], strides = [1, 1]} : vector<8x96xf32> to vector<8x32xf32>
    %22 = arith.addf %20, %21 : vector<8x32xf32>
    %23 = arith.negf %22 : vector<8x32xf32>
    %24 = math.exp %23 : vector<8x32xf32>
    %cst_14 = arith.constant 1.000000e+00 : f32
    %25 = vector.broadcast %cst_14 : f32 to vector<8x32xf32>
    %26 = arith.addf %25, %24 : vector<8x32xf32>
    %27 = arith.divf %25, %26 : vector<8x32xf32>
    %28 = vector.extract_strided_slice %15 {offsets = [0, 32], sizes = [8, 32], strides = [1, 1]} : vector<8x96xf32> to vector<8x32xf32>
    %29 = vector.extract_strided_slice %19 {offsets = [0, 32], sizes = [8, 32], strides = [1, 1]} : vector<8x96xf32> to vector<8x32xf32>
    %30 = arith.addf %28, %29 : vector<8x32xf32>
    %31 = arith.negf %30 : vector<8x32xf32>
    %32 = math.exp %31 : vector<8x32xf32>
    %cst_15 = arith.constant 1.000000e+00 : f32
    %33 = vector.broadcast %cst_15 : f32 to vector<8x32xf32>
    %34 = arith.addf %33, %32 : vector<8x32xf32>
    %35 = arith.divf %33, %34 : vector<8x32xf32>
    %36 = vector.extract_strided_slice %15 {offsets = [0, 64], sizes = [8, 32], strides = [1, 1]} : vector<8x96xf32> to vector<8x32xf32>
    %37 = vector.extract_strided_slice %19 {offsets = [0, 64], sizes = [8, 32], strides = [1, 1]} : vector<8x96xf32> to vector<8x32xf32>
    %38 = arith.mulf %27, %37 : vector<8x32xf32>
    %39 = arith.addf %36, %38 : vector<8x32xf32>
    %40 = math.tanh %39 : vector<8x32xf32>
    %cst_16 = arith.constant 1.000000e+00 : f32
    %41 = vector.broadcast %cst_16 : f32 to vector<8x32xf32>
    %42 = arith.subf %41, %35 : vector<8x32xf32>
    %43 = arith.mulf %42, %40 : vector<8x32xf32>
    %44 = arith.mulf %35, %13 : vector<8x32xf32>
    %45 = arith.addf %43, %44 : vector<8x32xf32>
    %46 = arith.truncf %45 : vector<8x32xf32> to vector<8x32xbf16>
    %c0_17 = arith.constant 0 : index
    %c0_18 = arith.constant 0 : index
    %c0_19 = arith.constant 0 : index
    %47 = vector.load %arg7[%c0_17, %c0_18, %c0_19] : memref<16x8x32xbf16, #tpu.memory_space<vmem>>, vector<1x8x32xbf16>
    %48 = vector.shape_cast %47 : vector<1x8x32xbf16> to vector<8x32xbf16>
    %49 = vector.shape_cast %46 : vector<8x32xbf16> to vector<1x8x32xbf16>
    tpu.vector_store %arg7[%c0_17, %c0_18, %c0_19], %49 {strides = array<i32>} : memref<16x8x32xbf16, #tpu.memory_space<vmem>>, vector<1x8x32xbf16>,
    %50 = vector.extract_strided_slice %12 {offsets = [1, 0, 0], sizes = [1, 8, 96], strides = [1, 1, 1]} : vector<16x8x96xf32> to vector<1x8x96xf32>
    %51 = vector.shape_cast %50 : vector<1x8x96xf32> to vector<8x96xf32>
    %52 = arith.truncf %45 : vector<8x32xf32> to vector<8x32xbf16>
    %cst_20 = arith.constant dense<0.000000e+00> : vector<8x96xf32>
    %53 = tpu.matmul %52, %3, %cst_20 {dimension_numbers = #tpu.dot_dimension_numbers<[1], [0], [0], [1], [0, 0, 1, 1], [], []>} : vector<8x32xbf16>, vector<32x96xbf16>, vector<8x96xf32> -> vector<8x96xf32>
    %54 = vector.broadcast %4 : vector<1x96xf32> to vector<8x96xf32>
    %55 = arith.addf %53, %54 : vector<8x96xf32>
    %56 = vector.extract_strided_slice %51 {offsets = [0, 0], sizes = [8, 32], strides = [1, 1]} : vector<8x96xf32> to vector<8x32xf32>
    %57 = vector.extract_strided_slice %55 {offsets = [0, 0], sizes = [8, 32], strides = [1, 1]} : vector<8x96xf32> to vector<8x32xf32>
    %58 = arith.addf %56, %57 : vector<8x32xf32>
    %59 = arith.negf %58 : vector<8x32xf32>
    %60 = math.exp %59 : vector<8x32xf32>
    %cst_21 = arith.constant 1.000000e+00 : f32
    %61 = vector.broadcast %cst_21 : f32 to vector<8x32xf32>
    %62 = arith.addf %61, %60 : vector<8x32xf32>
    %63 = arith.divf %61, %62 : vector<8x32xf32>
    %64 = vector.extract_strided_slice %51 {offsets = [0, 32], sizes = [8, 32], strides = [1, 1]} : vector<8x96xf32> to vector<8x32xf32>
    %65 = vector.extract_strided_slice %55 {offsets = [0, 32], sizes = [8, 32], strides = [1, 1]} : vector<8x96xf32> to vector<8x32xf32>
    %66 = arith.addf %64, %65 : vector<8x32xf32>
    %67 = arith.negf %66 : vector<8x32xf32>
    %68 = math.exp %67 : vector<8x32xf32>
    %cst_22 = arith.constant 1.000000e+00 : f32
    %69 = vector.broadcast %cst_22 : f32 to vector<8x32xf32>
    %70 = arith.addf %69, %68 : vector<8x32xf32>
    %71 = arith.divf %69, %70 : vector<8x32xf32>
    %72 = vector.extract_strided_slice %51 {offsets = [0, 64], sizes = [8, 32], strides = [1, 1]} : vector<8x96xf32> to vector<8x32xf32>
    %73 = vector.extract_strided_slice %55 {offsets = [0, 64], sizes = [8, 32], strides = [1, 1]} : vector<8x96xf32> to vector<8x32xf32>
    %74 = arith.mulf %63, %73 : vector<8x32xf32>
    %75 = arith.addf %72, %74 : vector<8x32xf32>
    %76 = math.tanh %75 : vector<8x32xf32>
    %cst_23 = arith.constant 1.000000e+00 : f32
    %77 = vector.broadcast %cst_23 : f32 to vector<8x32xf32>
    %78 = arith.subf %77, %71 : vector<8x32xf32>
    %79 = arith.mulf %78, %76 : vector<8x32xf32>
    %80 = arith.mulf %71, %45 : vector<8x32xf32>
    %81 = arith.addf %79, %80 : vector<8x32xf32>
    %82 = arith.truncf %81 : vector<8x32xf32> to vector<8x32xbf16>
    %c1 = arith.constant 1 : index
    %c0_24 = arith.constant 0 : index
    %c0_25 = arith.constant 0 : index
    %83 = vector.load %arg7[%c1, %c0_24, %c0_25] : memref<16x8x32xbf16, #tpu.memory_space<vmem>>, vector<1x8x32xbf16>
    %84 = vector.shape_cast %83 : vector<1x8x32xbf16> to vector<8x32xbf16>
    %85 = vector.shape_cast %82 : vector<8x32xbf16> to vector<1x8x32xbf16>
    tpu.vector_store %arg7[%c1, %c0_24, %c0_25], %85 {strides = array<i32>} : memref<16x8x32xbf16, #tpu.memory_space<vmem>>, vector<1x8x32xbf16>,
    %86 = vector.extract_strided_slice %12 {offsets = [2, 0, 0], sizes = [1, 8, 96], strides = [1, 1, 1]} : vector<16x8x96xf32> to vector<1x8x96xf32>
    %87 = vector.shape_cast %86 : vector<1x8x96xf32> to vector<8x96xf32>
    %88 = arith.truncf %81 : vector<8x32xf32> to vector<8x32xbf16>
    %cst_26 = arith.constant dense<0.000000e+00> : vector<8x96xf32>
    %89 = tpu.matmul %88, %3, %cst_26 {dimension_numbers = #tpu.dot_dimension_numbers<[1], [0], [0], [1], [0, 0, 1, 1], [], []>} : vector<8x32xbf16>, vector<32x96xbf16>, vector<8x96xf32> -> vector<8x96xf32>
    %90 = vector.broadcast %4 : vector<1x96xf32> to vector<8x96xf32>
    %91 = arith.addf %89, %90 : vector<8x96xf32>
    %92 = vector.extract_strided_slice %87 {offsets = [0, 0], sizes = [8, 32], strides = [1, 1]} : vector<8x96xf32> to vector<8x32xf32>
    %93 = vector.extract_strided_slice %91 {offsets = [0, 0], sizes = [8, 32], strides = [1, 1]} : vector<8x96xf32> to vector<8x32xf32>
    %94 = arith.addf %92, %93 : vector<8x32xf32>
    %95 = arith.negf %94 : vector<8x32xf32>
    %96 = math.exp %95 : vector<8x32xf32>
    %cst_27 = arith.constant 1.000000e+00 : f32
    %97 = vector.broadcast %cst_27 : f32 to vector<8x32xf32>
    %98 = arith.addf %97, %96 : vector<8x32xf32>
    %99 = arith.divf %97, %98 : vector<8x32xf32>
    %100 = vector.extract_strided_slice %87 {offsets = [0, 32], sizes = [8, 32], strides = [1, 1]} : vector<8x96xf32> to vector<8x32xf32>
    %101 = vector.extract_strided_slice %91 {offsets = [0, 32], sizes = [8, 32], strides = [1, 1]} : vector<8x96xf32> to vector<8x32xf32>
    %102 = arith.addf %100, %101 : vector<8x32xf32>
    %103 = arith.negf %102 : vector<8x32xf32>
    %104 = math.exp %103 : vector<8x32xf32>
    %cst_28 = arith.constant 1.000000e+00 : f32
    %105 = vector.broadcast %cst_28 : f32 to vector<8x32xf32>
    %106 = arith.addf %105, %104 : vector<8x32xf32>
    %107 = arith.divf %105, %106 : vector<8x32xf32>
    %108 = vector.extract_strided_slice %87 {offsets = [0, 64], sizes = [8, 32], strides = [1, 1]} : vector<8x96xf32> to vector<8x32xf32>
    %109 = vector.extract_strided_slice %91 {offsets = [0, 64], sizes = [8, 32], strides = [1, 1]} : vector<8x96xf32> to vector<8x32xf32>
    %110 = arith.mulf %99, %109 : vector<8x32xf32>
    %111 = arith.addf %108, %110 : vector<8x32xf32>
    %112 = math.tanh %111 : vector<8x32xf32>
    %cst_29 = arith.constant 1.000000e+00 : f32
    %113 = vector.broadcast %cst_29 : f32 to vector<8x32xf32>
    %114 = arith.subf %113, %107 : vector<8x32xf32>
    %115 = arith.mulf %114, %112 : vector<8x32xf32>
    %116 = arith.mulf %107, %81 : vector<8x32xf32>
    %117 = arith.addf %115, %116 : vector<8x32xf32>
    %118 = arith.truncf %117 : vector<8x32xf32> to vector<8x32xbf16>
    %c2 = arith.constant 2 : index
    %c0_30 = arith.constant 0 : index
    %c0_31 = arith.constant 0 : index
    %119 = vector.load %arg7[%c2, %c0_30, %c0_31] : memref<16x8x32xbf16, #tpu.memory_space<vmem>>, vector<1x8x32xbf16>
    %120 = vector.shape_cast %119 : vector<1x8x32xbf16> to vector<8x32xbf16>
    %121 = vector.shape_cast %118 : vector<8x32xbf16> to vector<1x8x32xbf16>
    tpu.vector_store %arg7[%c2, %c0_30, %c0_31], %121 {strides = array<i32>} : memref<16x8x32xbf16, #tpu.memory_space<vmem>>, vector<1x8x32xbf16>,
    %122 = vector.extract_strided_slice %12 {offsets = [3, 0, 0], sizes = [1, 8, 96], strides = [1, 1, 1]} : vector<16x8x96xf32> to vector<1x8x96xf32>
    %123 = vector.shape_cast %122 : vector<1x8x96xf32> to vector<8x96xf32>
    %124 = arith.truncf %117 : vector<8x32xf32> to vector<8x32xbf16>
    %cst_32 = arith.constant dense<0.000000e+00> : vector<8x96xf32>
    %125 = tpu.matmul %124, %3, %cst_32 {dimension_numbers = #tpu.dot_dimension_numbers<[1], [0], [0], [1], [0, 0, 1, 1], [], []>} : vector<8x32xbf16>, vector<32x96xbf16>, vector<8x96xf32> -> vector<8x96xf32>
    %126 = vector.broadcast %4 : vector<1x96xf32> to vector<8x96xf32>
    %127 = arith.addf %125, %126 : vector<8x96xf32>
    %128 = vector.extract_strided_slice %123 {offsets = [0, 0], sizes = [8, 32], strides = [1, 1]} : vector<8x96xf32> to vector<8x32xf32>
    %129 = vector.extract_strided_slice %127 {offsets = [0, 0], sizes = [8, 32], strides = [1, 1]} : vector<8x96xf32> to vector<8x32xf32>
    %130 = arith.addf %128, %129 : vector<8x32xf32>
    %131 = arith.negf %130 : vector<8x32xf32>
    %132 = math.exp %131 : vector<8x32xf32>
    %cst_33 = arith.constant 1.000000e+00 : f32
    %133 = vector.broadcast %cst_33 : f32 to vector<8x32xf32>
    %134 = arith.addf %133, %132 : vector<8x32xf32>
    %135 = arith.divf %133, %134 : vector<8x32xf32>
    %136 = vector.extract_strided_slice %123 {offsets = [0, 32], sizes = [8, 32], strides = [1, 1]} : vector<8x96xf32> to vector<8x32xf32>
    %137 = vector.extract_strided_slice %127 {offsets = [0, 32], sizes = [8, 32], strides = [1, 1]} : vector<8x96xf32> to vector<8x32xf32>
    %138 = arith.addf %136, %137 : vector<8x32xf32>
    %139 = arith.negf %138 : vector<8x32xf32>
    %140 = math.exp %139 : vector<8x32xf32>
    %cst_34 = arith.constant 1.000000e+00 : f32
    %141 = vector.broadcast %cst_34 : f32 to vector<8x32xf32>
    %142 = arith.addf %141, %140 : vector<8x32xf32>
    %143 = arith.divf %141, %142 : vector<8x32xf32>
    %144 = vector.extract_strided_slice %123 {offsets = [0, 64], sizes = [8, 32], strides = [1, 1]} : vector<8x96xf32> to vector<8x32xf32>
    %145 = vector.extract_strided_slice %127 {offsets = [0, 64], sizes = [8, 32], strides = [1, 1]} : vector<8x96xf32> to vector<8x32xf32>
    %146 = arith.mulf %135, %145 : vector<8x32xf32>
    %147 = arith.addf %144, %146 : vector<8x32xf32>
    %148 = math.tanh %147 : vector<8x32xf32>
    %cst_35 = arith.constant 1.000000e+00 : f32
    %149 = vector.broadcast %cst_35 : f32 to vector<8x32xf32>
    %150 = arith.subf %149, %143 : vector<8x32xf32>
    %151 = arith.mulf %150, %148 : vector<8x32xf32>
    %152 = arith.mulf %143, %117 : vector<8x32xf32>
    %153 = arith.addf %151, %152 : vector<8x32xf32>
    %154 = arith.truncf %153 : vector<8x32xf32> to vector<8x32xbf16>
    %c3 = arith.constant 3 : index
    %c0_36 = arith.constant 0 : index
    %c0_37 = arith.constant 0 : index
    %155 = vector.load %arg7[%c3, %c0_36, %c0_37] : memref<16x8x32xbf16, #tpu.memory_space<vmem>>, vector<1x8x32xbf16>
    %156 = vector.shape_cast %155 : vector<1x8x32xbf16> to vector<8x32xbf16>
    %157 = vector.shape_cast %154 : vector<8x32xbf16> to vector<1x8x32xbf16>
    tpu.vector_store %arg7[%c3, %c0_36, %c0_37], %157 {strides = array<i32>} : memref<16x8x32xbf16, #tpu.memory_space<vmem>>, vector<1x8x32xbf16>,
    %158 = vector.extract_strided_slice %12 {offsets = [4, 0, 0], sizes = [1, 8, 96], strides = [1, 1, 1]} : vector<16x8x96xf32> to vector<1x8x96xf32>
    %159 = vector.shape_cast %158 : vector<1x8x96xf32> to vector<8x96xf32>
    %160 = arith.truncf %153 : vector<8x32xf32> to vector<8x32xbf16>
    %cst_38 = arith.constant dense<0.000000e+00> : vector<8x96xf32>
    %161 = tpu.matmul %160, %3, %cst_38 {dimension_numbers = #tpu.dot_dimension_numbers<[1], [0], [0], [1], [0, 0, 1, 1], [], []>} : vector<8x32xbf16>, vector<32x96xbf16>, vector<8x96xf32> -> vector<8x96xf32>
    %162 = vector.broadcast %4 : vector<1x96xf32> to vector<8x96xf32>
    %163 = arith.addf %161, %162 : vector<8x96xf32>
    %164 = vector.extract_strided_slice %159 {offsets = [0, 0], sizes = [8, 32], strides = [1, 1]} : vector<8x96xf32> to vector<8x32xf32>
    %165 = vector.extract_strided_slice %163 {offsets = [0, 0], sizes = [8, 32], strides = [1, 1]} : vector<8x96xf32> to vector<8x32xf32>
    %166 = arith.addf %164, %165 : vector<8x32xf32>
    %167 = arith.negf %166 : vector<8x32xf32>
    %168 = math.exp %167 : vector<8x32xf32>
    %cst_39 = arith.constant 1.000000e+00 : f32
    %169 = vector.broadcast %cst_39 : f32 to vector<8x32xf32>
    %170 = arith.addf %169, %168 : vector<8x32xf32>
    %171 = arith.divf %169, %170 : vector<8x32xf32>
    %172 = vector.extract_strided_slice %159 {offsets = [0, 32], sizes = [8, 32], strides = [1, 1]} : vector<8x96xf32> to vector<8x32xf32>
    %173 = vector.extract_strided_slice %163 {offsets = [0, 32], sizes = [8, 32], strides = [1, 1]} : vector<8x96xf32> to vector<8x32xf32>
    %174 = arith.addf %172, %173 : vector<8x32xf32>
    %175 = arith.negf %174 : vector<8x32xf32>
    %176 = math.exp %175 : vector<8x32xf32>
    %cst_40 = arith.constant 1.000000e+00 : f32
    %177 = vector.broadcast %cst_40 : f32 to vector<8x32xf32>
    %178 = arith.addf %177, %176 : vector<8x32xf32>
    %179 = arith.divf %177, %178 : vector<8x32xf32>
    %180 = vector.extract_strided_slice %159 {offsets = [0, 64], sizes = [8, 32], strides = [1, 1]} : vector<8x96xf32> to vector<8x32xf32>
    %181 = vector.extract_strided_slice %163 {offsets = [0, 64], sizes = [8, 32], strides = [1, 1]} : vector<8x96xf32> to vector<8x32xf32>
    %182 = arith.mulf %171, %181 : vector<8x32xf32>
    %183 = arith.addf %180, %182 : vector<8x32xf32>
    %184 = math.tanh %183 : vector<8x32xf32>
    %cst_41 = arith.constant 1.000000e+00 : f32
    %185 = vector.broadcast %cst_41 : f32 to vector<8x32xf32>
    %186 = arith.subf %185, %179 : vector<8x32xf32>
    %187 = arith.mulf %186, %184 : vector<8x32xf32>
    %188 = arith.mulf %179, %153 : vector<8x32xf32>
    %189 = arith.addf %187, %188 : vector<8x32xf32>
    %190 = arith.truncf %189 : vector<8x32xf32> to vector<8x32xbf16>
    %c4 = arith.constant 4 : index
    %c0_42 = arith.constant 0 : index
    %c0_43 = arith.constant 0 : index
    %191 = vector.load %arg7[%c4, %c0_42, %c0_43] : memref<16x8x32xbf16, #tpu.memory_space<vmem>>, vector<1x8x32xbf16>
    %192 = vector.shape_cast %191 : vector<1x8x32xbf16> to vector<8x32xbf16>
    %193 = vector.shape_cast %190 : vector<8x32xbf16> to vector<1x8x32xbf16>
    tpu.vector_store %arg7[%c4, %c0_42, %c0_43], %193 {strides = array<i32>} : memref<16x8x32xbf16, #tpu.memory_space<vmem>>, vector<1x8x32xbf16>,
    %194 = vector.extract_strided_slice %12 {offsets = [5, 0, 0], sizes = [1, 8, 96], strides = [1, 1, 1]} : vector<16x8x96xf32> to vector<1x8x96xf32>
    %195 = vector.shape_cast %194 : vector<1x8x96xf32> to vector<8x96xf32>
    %196 = arith.truncf %189 : vector<8x32xf32> to vector<8x32xbf16>
    %cst_44 = arith.constant dense<0.000000e+00> : vector<8x96xf32>
    %197 = tpu.matmul %196, %3, %cst_44 {dimension_numbers = #tpu.dot_dimension_numbers<[1], [0], [0], [1], [0, 0, 1, 1], [], []>} : vector<8x32xbf16>, vector<32x96xbf16>, vector<8x96xf32> -> vector<8x96xf32>
    %198 = vector.broadcast %4 : vector<1x96xf32> to vector<8x96xf32>
    %199 = arith.addf %197, %198 : vector<8x96xf32>
    %200 = vector.extract_strided_slice %195 {offsets = [0, 0], sizes = [8, 32], strides = [1, 1]} : vector<8x96xf32> to vector<8x32xf32>
    %201 = vector.extract_strided_slice %199 {offsets = [0, 0], sizes = [8, 32], strides = [1, 1]} : vector<8x96xf32> to vector<8x32xf32>
    %202 = arith.addf %200, %201 : vector<8x32xf32>
    %203 = arith.negf %202 : vector<8x32xf32>
    %204 = math.exp %203 : vector<8x32xf32>
    %cst_45 = arith.constant 1.000000e+00 : f32
    %205 = vector.broadcast %cst_45 : f32 to vector<8x32xf32>
    %206 = arith.addf %205, %204 : vector<8x32xf32>
    %207 = arith.divf %205, %206 : vector<8x32xf32>
    %208 = vector.extract_strided_slice %195 {offsets = [0, 32], sizes = [8, 32], strides = [1, 1]} : vector<8x96xf32> to vector<8x32xf32>
    %209 = vector.extract_strided_slice %199 {offsets = [0, 32], sizes = [8, 32], strides = [1, 1]} : vector<8x96xf32> to vector<8x32xf32>
    %210 = arith.addf %208, %209 : vector<8x32xf32>
    %211 = arith.negf %210 : vector<8x32xf32>
    %212 = math.exp %211 : vector<8x32xf32>
    %cst_46 = arith.constant 1.000000e+00 : f32
    %213 = vector.broadcast %cst_46 : f32 to vector<8x32xf32>
    %214 = arith.addf %213, %212 : vector<8x32xf32>
    %215 = arith.divf %213, %214 : vector<8x32xf32>
    %216 = vector.extract_strided_slice %195 {offsets = [0, 64], sizes = [8, 32], strides = [1, 1]} : vector<8x96xf32> to vector<8x32xf32>
    %217 = vector.extract_strided_slice %199 {offsets = [0, 64], sizes = [8, 32], strides = [1, 1]} : vector<8x96xf32> to vector<8x32xf32>
    %218 = arith.mulf %207, %217 : vector<8x32xf32>
    %219 = arith.addf %216, %218 : vector<8x32xf32>
    %220 = math.tanh %219 : vector<8x32xf32>
    %cst_47 = arith.constant 1.000000e+00 : f32
    %221 = vector.broadcast %cst_47 : f32 to vector<8x32xf32>
    %222 = arith.subf %221, %215 : vector<8x32xf32>
    %223 = arith.mulf %222, %220 : vector<8x32xf32>
    %224 = arith.mulf %215, %189 : vector<8x32xf32>
    %225 = arith.addf %223, %224 : vector<8x32xf32>
    %226 = arith.truncf %225 : vector<8x32xf32> to vector<8x32xbf16>
    %c5 = arith.constant 5 : index
    %c0_48 = arith.constant 0 : index
    %c0_49 = arith.constant 0 : index
    %227 = vector.load %arg7[%c5, %c0_48, %c0_49] : memref<16x8x32xbf16, #tpu.memory_space<vmem>>, vector<1x8x32xbf16>
    %228 = vector.shape_cast %227 : vector<1x8x32xbf16> to vector<8x32xbf16>
    %229 = vector.shape_cast %226 : vector<8x32xbf16> to vector<1x8x32xbf16>
    tpu.vector_store %arg7[%c5, %c0_48, %c0_49], %229 {strides = array<i32>} : memref<16x8x32xbf16, #tpu.memory_space<vmem>>, vector<1x8x32xbf16>,
    %230 = vector.extract_strided_slice %12 {offsets = [6, 0, 0], sizes = [1, 8, 96], strides = [1, 1, 1]} : vector<16x8x96xf32> to vector<1x8x96xf32>
    %231 = vector.shape_cast %230 : vector<1x8x96xf32> to vector<8x96xf32>
    %232 = arith.truncf %225 : vector<8x32xf32> to vector<8x32xbf16>
    %cst_50 = arith.constant dense<0.000000e+00> : vector<8x96xf32>
    %233 = tpu.matmul %232, %3, %cst_50 {dimension_numbers = #tpu.dot_dimension_numbers<[1], [0], [0], [1], [0, 0, 1, 1], [], []>} : vector<8x32xbf16>, vector<32x96xbf16>, vector<8x96xf32> -> vector<8x96xf32>
    %234 = vector.broadcast %4 : vector<1x96xf32> to vector<8x96xf32>
    %235 = arith.addf %233, %234 : vector<8x96xf32>
    %236 = vector.extract_strided_slice %231 {offsets = [0, 0], sizes = [8, 32], strides = [1, 1]} : vector<8x96xf32> to vector<8x32xf32>
    %237 = vector.extract_strided_slice %235 {offsets = [0, 0], sizes = [8, 32], strides = [1, 1]} : vector<8x96xf32> to vector<8x32xf32>
    %238 = arith.addf %236, %237 : vector<8x32xf32>
    %239 = arith.negf %238 : vector<8x32xf32>
    %240 = math.exp %239 : vector<8x32xf32>
    %cst_51 = arith.constant 1.000000e+00 : f32
    %241 = vector.broadcast %cst_51 : f32 to vector<8x32xf32>
    %242 = arith.addf %241, %240 : vector<8x32xf32>
    %243 = arith.divf %241, %242 : vector<8x32xf32>
    %244 = vector.extract_strided_slice %231 {offsets = [0, 32], sizes = [8, 32], strides = [1, 1]} : vector<8x96xf32> to vector<8x32xf32>
    %245 = vector.extract_strided_slice %235 {offsets = [0, 32], sizes = [8, 32], strides = [1, 1]} : vector<8x96xf32> to vector<8x32xf32>
    %246 = arith.addf %244, %245 : vector<8x32xf32>
    %247 = arith.negf %246 : vector<8x32xf32>
    %248 = math.exp %247 : vector<8x32xf32>
    %cst_52 = arith.constant 1.000000e+00 : f32
    %249 = vector.broadcast %cst_52 : f32 to vector<8x32xf32>
    %250 = arith.addf %249, %248 : vector<8x32xf32>
    %251 = arith.divf %249, %250 : vector<8x32xf32>
    %252 = vector.extract_strided_slice %231 {offsets = [0, 64], sizes = [8, 32], strides = [1, 1]} : vector<8x96xf32> to vector<8x32xf32>
    %253 = vector.extract_strided_slice %235 {offsets = [0, 64], sizes = [8, 32], strides = [1, 1]} : vector<8x96xf32> to vector<8x32xf32>
    %254 = arith.mulf %243, %253 : vector<8x32xf32>
    %255 = arith.addf %252, %254 : vector<8x32xf32>
    %256 = math.tanh %255 : vector<8x32xf32>
    %cst_53 = arith.constant 1.000000e+00 : f32
    %257 = vector.broadcast %cst_53 : f32 to vector<8x32xf32>
    %258 = arith.subf %257, %251 : vector<8x32xf32>
    %259 = arith.mulf %258, %256 : vector<8x32xf32>
    %260 = arith.mulf %251, %225 : vector<8x32xf32>
    %261 = arith.addf %259, %260 : vector<8x32xf32>
    %262 = arith.truncf %261 : vector<8x32xf32> to vector<8x32xbf16>
    %c6 = arith.constant 6 : index
    %c0_54 = arith.constant 0 : index
    %c0_55 = arith.constant 0 : index
    %263 = vector.load %arg7[%c6, %c0_54, %c0_55] : memref<16x8x32xbf16, #tpu.memory_space<vmem>>, vector<1x8x32xbf16>
    %264 = vector.shape_cast %263 : vector<1x8x32xbf16> to vector<8x32xbf16>
    %265 = vector.shape_cast %262 : vector<8x32xbf16> to vector<1x8x32xbf16>
    tpu.vector_store %arg7[%c6, %c0_54, %c0_55], %265 {strides = array<i32>} : memref<16x8x32xbf16, #tpu.memory_space<vmem>>, vector<1x8x32xbf16>,
    %266 = vector.extract_strided_slice %12 {offsets = [7, 0, 0], sizes = [1, 8, 96], strides = [1, 1, 1]} : vector<16x8x96xf32> to vector<1x8x96xf32>
    %267 = vector.shape_cast %266 : vector<1x8x96xf32> to vector<8x96xf32>
    %268 = arith.truncf %261 : vector<8x32xf32> to vector<8x32xbf16>
    %cst_56 = arith.constant dense<0.000000e+00> : vector<8x96xf32>
    %269 = tpu.matmul %268, %3, %cst_56 {dimension_numbers = #tpu.dot_dimension_numbers<[1], [0], [0], [1], [0, 0, 1, 1], [], []>} : vector<8x32xbf16>, vector<32x96xbf16>, vector<8x96xf32> -> vector<8x96xf32>
    %270 = vector.broadcast %4 : vector<1x96xf32> to vector<8x96xf32>
    %271 = arith.addf %269, %270 : vector<8x96xf32>
    %272 = vector.extract_strided_slice %267 {offsets = [0, 0], sizes = [8, 32], strides = [1, 1]} : vector<8x96xf32> to vector<8x32xf32>
    %273 = vector.extract_strided_slice %271 {offsets = [0, 0], sizes = [8, 32], strides = [1, 1]} : vector<8x96xf32> to vector<8x32xf32>
    %274 = arith.addf %272, %273 : vector<8x32xf32>
    %275 = arith.negf %274 : vector<8x32xf32>
    %276 = math.exp %275 : vector<8x32xf32>
    %cst_57 = arith.constant 1.000000e+00 : f32
    %277 = vector.broadcast %cst_57 : f32 to vector<8x32xf32>
    %278 = arith.addf %277, %276 : vector<8x32xf32>
    %279 = arith.divf %277, %278 : vector<8x32xf32>
    %280 = vector.extract_strided_slice %267 {offsets = [0, 32], sizes = [8, 32], strides = [1, 1]} : vector<8x96xf32> to vector<8x32xf32>
    %281 = vector.extract_strided_slice %271 {offsets = [0, 32], sizes = [8, 32], strides = [1, 1]} : vector<8x96xf32> to vector<8x32xf32>
    %282 = arith.addf %280, %281 : vector<8x32xf32>
    %283 = arith.negf %282 : vector<8x32xf32>
    %284 = math.exp %283 : vector<8x32xf32>
    %cst_58 = arith.constant 1.000000e+00 : f32
    %285 = vector.broadcast %cst_58 : f32 to vector<8x32xf32>
    %286 = arith.addf %285, %284 : vector<8x32xf32>
    %287 = arith.divf %285, %286 : vector<8x32xf32>
    %288 = vector.extract_strided_slice %267 {offsets = [0, 64], sizes = [8, 32], strides = [1, 1]} : vector<8x96xf32> to vector<8x32xf32>
    %289 = vector.extract_strided_slice %271 {offsets = [0, 64], sizes = [8, 32], strides = [1, 1]} : vector<8x96xf32> to vector<8x32xf32>
    %290 = arith.mulf %279, %289 : vector<8x32xf32>
    %291 = arith.addf %288, %290 : vector<8x32xf32>
    %292 = math.tanh %291 : vector<8x32xf32>
    %cst_59 = arith.constant 1.000000e+00 : f32
    %293 = vector.broadcast %cst_59 : f32 to vector<8x32xf32>
    %294 = arith.subf %293, %287 : vector<8x32xf32>
    %295 = arith.mulf %294, %292 : vector<8x32xf32>
    %296 = arith.mulf %287, %261 : vector<8x32xf32>
    %297 = arith.addf %295, %296 : vector<8x32xf32>
    %298 = arith.truncf %297 : vector<8x32xf32> to vector<8x32xbf16>
    %c7 = arith.constant 7 : index
    %c0_60 = arith.constant 0 : index
    %c0_61 = arith.constant 0 : index
    %299 = vector.load %arg7[%c7, %c0_60, %c0_61] : memref<16x8x32xbf16, #tpu.memory_space<vmem>>, vector<1x8x32xbf16>
    %300 = vector.shape_cast %299 : vector<1x8x32xbf16> to vector<8x32xbf16>
    %301 = vector.shape_cast %298 : vector<8x32xbf16> to vector<1x8x32xbf16>
    tpu.vector_store %arg7[%c7, %c0_60, %c0_61], %301 {strides = array<i32>} : memref<16x8x32xbf16, #tpu.memory_space<vmem>>, vector<1x8x32xbf16>,
    %302 = vector.extract_strided_slice %12 {offsets = [8, 0, 0], sizes = [1, 8, 96], strides = [1, 1, 1]} : vector<16x8x96xf32> to vector<1x8x96xf32>
    %303 = vector.shape_cast %302 : vector<1x8x96xf32> to vector<8x96xf32>
    %304 = arith.truncf %297 : vector<8x32xf32> to vector<8x32xbf16>
    %cst_62 = arith.constant dense<0.000000e+00> : vector<8x96xf32>
    %305 = tpu.matmul %304, %3, %cst_62 {dimension_numbers = #tpu.dot_dimension_numbers<[1], [0], [0], [1], [0, 0, 1, 1], [], []>} : vector<8x32xbf16>, vector<32x96xbf16>, vector<8x96xf32> -> vector<8x96xf32>
    %306 = vector.broadcast %4 : vector<1x96xf32> to vector<8x96xf32>
    %307 = arith.addf %305, %306 : vector<8x96xf32>
    %308 = vector.extract_strided_slice %303 {offsets = [0, 0], sizes = [8, 32], strides = [1, 1]} : vector<8x96xf32> to vector<8x32xf32>
    %309 = vector.extract_strided_slice %307 {offsets = [0, 0], sizes = [8, 32], strides = [1, 1]} : vector<8x96xf32> to vector<8x32xf32>
    %310 = arith.addf %308, %309 : vector<8x32xf32>
    %311 = arith.negf %310 : vector<8x32xf32>
    %312 = math.exp %311 : vector<8x32xf32>
    %cst_63 = arith.constant 1.000000e+00 : f32
    %313 = vector.broadcast %cst_63 : f32 to vector<8x32xf32>
    %314 = arith.addf %313, %312 : vector<8x32xf32>
    %315 = arith.divf %313, %314 : vector<8x32xf32>
    %316 = vector.extract_strided_slice %303 {offsets = [0, 32], sizes = [8, 32], strides = [1, 1]} : vector<8x96xf32> to vector<8x32xf32>
    %317 = vector.extract_strided_slice %307 {offsets = [0, 32], sizes = [8, 32], strides = [1, 1]} : vector<8x96xf32> to vector<8x32xf32>
    %318 = arith.addf %316, %317 : vector<8x32xf32>
    %319 = arith.negf %318 : vector<8x32xf32>
    %320 = math.exp %319 : vector<8x32xf32>
    %cst_64 = arith.constant 1.000000e+00 : f32
    %321 = vector.broadcast %cst_64 : f32 to vector<8x32xf32>
    %322 = arith.addf %321, %320 : vector<8x32xf32>
    %323 = arith.divf %321, %322 : vector<8x32xf32>
    %324 = vector.extract_strided_slice %303 {offsets = [0, 64], sizes = [8, 32], strides = [1, 1]} : vector<8x96xf32> to vector<8x32xf32>
    %325 = vector.extract_strided_slice %307 {offsets = [0, 64], sizes = [8, 32], strides = [1, 1]} : vector<8x96xf32> to vector<8x32xf32>
    %326 = arith.mulf %315, %325 : vector<8x32xf32>
    %327 = arith.addf %324, %326 : vector<8x32xf32>
    %328 = math.tanh %327 : vector<8x32xf32>
    %cst_65 = arith.constant 1.000000e+00 : f32
    %329 = vector.broadcast %cst_65 : f32 to vector<8x32xf32>
    %330 = arith.subf %329, %323 : vector<8x32xf32>
    %331 = arith.mulf %330, %328 : vector<8x32xf32>
    %332 = arith.mulf %323, %297 : vector<8x32xf32>
    %333 = arith.addf %331, %332 : vector<8x32xf32>
    %334 = arith.truncf %333 : vector<8x32xf32> to vector<8x32xbf16>
    %c8 = arith.constant 8 : index
    %c0_66 = arith.constant 0 : index
    %c0_67 = arith.constant 0 : index
    %335 = vector.load %arg7[%c8, %c0_66, %c0_67] : memref<16x8x32xbf16, #tpu.memory_space<vmem>>, vector<1x8x32xbf16>
    %336 = vector.shape_cast %335 : vector<1x8x32xbf16> to vector<8x32xbf16>
    %337 = vector.shape_cast %334 : vector<8x32xbf16> to vector<1x8x32xbf16>
    tpu.vector_store %arg7[%c8, %c0_66, %c0_67], %337 {strides = array<i32>} : memref<16x8x32xbf16, #tpu.memory_space<vmem>>, vector<1x8x32xbf16>,
    %338 = vector.extract_strided_slice %12 {offsets = [9, 0, 0], sizes = [1, 8, 96], strides = [1, 1, 1]} : vector<16x8x96xf32> to vector<1x8x96xf32>
    %339 = vector.shape_cast %338 : vector<1x8x96xf32> to vector<8x96xf32>
    %340 = arith.truncf %333 : vector<8x32xf32> to vector<8x32xbf16>
    %cst_68 = arith.constant dense<0.000000e+00> : vector<8x96xf32>
    %341 = tpu.matmul %340, %3, %cst_68 {dimension_numbers = #tpu.dot_dimension_numbers<[1], [0], [0], [1], [0, 0, 1, 1], [], []>} : vector<8x32xbf16>, vector<32x96xbf16>, vector<8x96xf32> -> vector<8x96xf32>
    %342 = vector.broadcast %4 : vector<1x96xf32> to vector<8x96xf32>
    %343 = arith.addf %341, %342 : vector<8x96xf32>
    %344 = vector.extract_strided_slice %339 {offsets = [0, 0], sizes = [8, 32], strides = [1, 1]} : vector<8x96xf32> to vector<8x32xf32>
    %345 = vector.extract_strided_slice %343 {offsets = [0, 0], sizes = [8, 32], strides = [1, 1]} : vector<8x96xf32> to vector<8x32xf32>
    %346 = arith.addf %344, %345 : vector<8x32xf32>
    %347 = arith.negf %346 : vector<8x32xf32>
    %348 = math.exp %347 : vector<8x32xf32>
    %cst_69 = arith.constant 1.000000e+00 : f32
    %349 = vector.broadcast %cst_69 : f32 to vector<8x32xf32>
    %350 = arith.addf %349, %348 : vector<8x32xf32>
    %351 = arith.divf %349, %350 : vector<8x32xf32>
    %352 = vector.extract_strided_slice %339 {offsets = [0, 32], sizes = [8, 32], strides = [1, 1]} : vector<8x96xf32> to vector<8x32xf32>
    %353 = vector.extract_strided_slice %343 {offsets = [0, 32], sizes = [8, 32], strides = [1, 1]} : vector<8x96xf32> to vector<8x32xf32>
    %354 = arith.addf %352, %353 : vector<8x32xf32>
    %355 = arith.negf %354 : vector<8x32xf32>
    %356 = math.exp %355 : vector<8x32xf32>
    %cst_70 = arith.constant 1.000000e+00 : f32
    %357 = vector.broadcast %cst_70 : f32 to vector<8x32xf32>
    %358 = arith.addf %357, %356 : vector<8x32xf32>
    %359 = arith.divf %357, %358 : vector<8x32xf32>
    %360 = vector.extract_strided_slice %339 {offsets = [0, 64], sizes = [8, 32], strides = [1, 1]} : vector<8x96xf32> to vector<8x32xf32>
    %361 = vector.extract_strided_slice %343 {offsets = [0, 64], sizes = [8, 32], strides = [1, 1]} : vector<8x96xf32> to vector<8x32xf32>
    %362 = arith.mulf %351, %361 : vector<8x32xf32>
    %363 = arith.addf %360, %362 : vector<8x32xf32>
    %364 = math.tanh %363 : vector<8x32xf32>
    %cst_71 = arith.constant 1.000000e+00 : f32
    %365 = vector.broadcast %cst_71 : f32 to vector<8x32xf32>
    %366 = arith.subf %365, %359 : vector<8x32xf32>
    %367 = arith.mulf %366, %364 : vector<8x32xf32>
    %368 = arith.mulf %359, %333 : vector<8x32xf32>
    %369 = arith.addf %367, %368 : vector<8x32xf32>
    %370 = arith.truncf %369 : vector<8x32xf32> to vector<8x32xbf16>
    %c9 = arith.constant 9 : index
    %c0_72 = arith.constant 0 : index
    %c0_73 = arith.constant 0 : index
    %371 = vector.load %arg7[%c9, %c0_72, %c0_73] : memref<16x8x32xbf16, #tpu.memory_space<vmem>>, vector<1x8x32xbf16>
    %372 = vector.shape_cast %371 : vector<1x8x32xbf16> to vector<8x32xbf16>
    %373 = vector.shape_cast %370 : vector<8x32xbf16> to vector<1x8x32xbf16>
    tpu.vector_store %arg7[%c9, %c0_72, %c0_73], %373 {strides = array<i32>} : memref<16x8x32xbf16, #tpu.memory_space<vmem>>, vector<1x8x32xbf16>,
    %374 = vector.extract_strided_slice %12 {offsets = [10, 0, 0], sizes = [1, 8, 96], strides = [1, 1, 1]} : vector<16x8x96xf32> to vector<1x8x96xf32>
    %375 = vector.shape_cast %374 : vector<1x8x96xf32> to vector<8x96xf32>
    %376 = arith.truncf %369 : vector<8x32xf32> to vector<8x32xbf16>
    %cst_74 = arith.constant dense<0.000000e+00> : vector<8x96xf32>
    %377 = tpu.matmul %376, %3, %cst_74 {dimension_numbers = #tpu.dot_dimension_numbers<[1], [0], [0], [1], [0, 0, 1, 1], [], []>} : vector<8x32xbf16>, vector<32x96xbf16>, vector<8x96xf32> -> vector<8x96xf32>
    %378 = vector.broadcast %4 : vector<1x96xf32> to vector<8x96xf32>
    %379 = arith.addf %377, %378 : vector<8x96xf32>
    %380 = vector.extract_strided_slice %375 {offsets = [0, 0], sizes = [8, 32], strides = [1, 1]} : vector<8x96xf32> to vector<8x32xf32>
    %381 = vector.extract_strided_slice %379 {offsets = [0, 0], sizes = [8, 32], strides = [1, 1]} : vector<8x96xf32> to vector<8x32xf32>
    %382 = arith.addf %380, %381 : vector<8x32xf32>
    %383 = arith.negf %382 : vector<8x32xf32>
    %384 = math.exp %383 : vector<8x32xf32>
    %cst_75 = arith.constant 1.000000e+00 : f32
    %385 = vector.broadcast %cst_75 : f32 to vector<8x32xf32>
    %386 = arith.addf %385, %384 : vector<8x32xf32>
    %387 = arith.divf %385, %386 : vector<8x32xf32>
    %388 = vector.extract_strided_slice %375 {offsets = [0, 32], sizes = [8, 32], strides = [1, 1]} : vector<8x96xf32> to vector<8x32xf32>
    %389 = vector.extract_strided_slice %379 {offsets = [0, 32], sizes = [8, 32], strides = [1, 1]} : vector<8x96xf32> to vector<8x32xf32>
    %390 = arith.addf %388, %389 : vector<8x32xf32>
    %391 = arith.negf %390 : vector<8x32xf32>
    %392 = math.exp %391 : vector<8x32xf32>
    %cst_76 = arith.constant 1.000000e+00 : f32
    %393 = vector.broadcast %cst_76 : f32 to vector<8x32xf32>
    %394 = arith.addf %393, %392 : vector<8x32xf32>
    %395 = arith.divf %393, %394 : vector<8x32xf32>
    %396 = vector.extract_strided_slice %375 {offsets = [0, 64], sizes = [8, 32], strides = [1, 1]} : vector<8x96xf32> to vector<8x32xf32>
    %397 = vector.extract_strided_slice %379 {offsets = [0, 64], sizes = [8, 32], strides = [1, 1]} : vector<8x96xf32> to vector<8x32xf32>
    %398 = arith.mulf %387, %397 : vector<8x32xf32>
    %399 = arith.addf %396, %398 : vector<8x32xf32>
    %400 = math.tanh %399 : vector<8x32xf32>
    %cst_77 = arith.constant 1.000000e+00 : f32
    %401 = vector.broadcast %cst_77 : f32 to vector<8x32xf32>
    %402 = arith.subf %401, %395 : vector<8x32xf32>
    %403 = arith.mulf %402, %400 : vector<8x32xf32>
    %404 = arith.mulf %395, %369 : vector<8x32xf32>
    %405 = arith.addf %403, %404 : vector<8x32xf32>
    %406 = arith.truncf %405 : vector<8x32xf32> to vector<8x32xbf16>
    %c10 = arith.constant 10 : index
    %c0_78 = arith.constant 0 : index
    %c0_79 = arith.constant 0 : index
    %407 = vector.load %arg7[%c10, %c0_78, %c0_79] : memref<16x8x32xbf16, #tpu.memory_space<vmem>>, vector<1x8x32xbf16>
    %408 = vector.shape_cast %407 : vector<1x8x32xbf16> to vector<8x32xbf16>
    %409 = vector.shape_cast %406 : vector<8x32xbf16> to vector<1x8x32xbf16>
    tpu.vector_store %arg7[%c10, %c0_78, %c0_79], %409 {strides = array<i32>} : memref<16x8x32xbf16, #tpu.memory_space<vmem>>, vector<1x8x32xbf16>,
    %410 = vector.extract_strided_slice %12 {offsets = [11, 0, 0], sizes = [1, 8, 96], strides = [1, 1, 1]} : vector<16x8x96xf32> to vector<1x8x96xf32>
    %411 = vector.shape_cast %410 : vector<1x8x96xf32> to vector<8x96xf32>
    %412 = arith.truncf %405 : vector<8x32xf32> to vector<8x32xbf16>
    %cst_80 = arith.constant dense<0.000000e+00> : vector<8x96xf32>
    %413 = tpu.matmul %412, %3, %cst_80 {dimension_numbers = #tpu.dot_dimension_numbers<[1], [0], [0], [1], [0, 0, 1, 1], [], []>} : vector<8x32xbf16>, vector<32x96xbf16>, vector<8x96xf32> -> vector<8x96xf32>
    %414 = vector.broadcast %4 : vector<1x96xf32> to vector<8x96xf32>
    %415 = arith.addf %413, %414 : vector<8x96xf32>
    %416 = vector.extract_strided_slice %411 {offsets = [0, 0], sizes = [8, 32], strides = [1, 1]} : vector<8x96xf32> to vector<8x32xf32>
    %417 = vector.extract_strided_slice %415 {offsets = [0, 0], sizes = [8, 32], strides = [1, 1]} : vector<8x96xf32> to vector<8x32xf32>
    %418 = arith.addf %416, %417 : vector<8x32xf32>
    %419 = arith.negf %418 : vector<8x32xf32>
    %420 = math.exp %419 : vector<8x32xf32>
    %cst_81 = arith.constant 1.000000e+00 : f32
    %421 = vector.broadcast %cst_81 : f32 to vector<8x32xf32>
    %422 = arith.addf %421, %420 : vector<8x32xf32>
    %423 = arith.divf %421, %422 : vector<8x32xf32>
    %424 = vector.extract_strided_slice %411 {offsets = [0, 32], sizes = [8, 32], strides = [1, 1]} : vector<8x96xf32> to vector<8x32xf32>
    %425 = vector.extract_strided_slice %415 {offsets = [0, 32], sizes = [8, 32], strides = [1, 1]} : vector<8x96xf32> to vector<8x32xf32>
    %426 = arith.addf %424, %425 : vector<8x32xf32>
    %427 = arith.negf %426 : vector<8x32xf32>
    %428 = math.exp %427 : vector<8x32xf32>
    %cst_82 = arith.constant 1.000000e+00 : f32
    %429 = vector.broadcast %cst_82 : f32 to vector<8x32xf32>
    %430 = arith.addf %429, %428 : vector<8x32xf32>
    %431 = arith.divf %429, %430 : vector<8x32xf32>
    %432 = vector.extract_strided_slice %411 {offsets = [0, 64], sizes = [8, 32], strides = [1, 1]} : vector<8x96xf32> to vector<8x32xf32>
    %433 = vector.extract_strided_slice %415 {offsets = [0, 64], sizes = [8, 32], strides = [1, 1]} : vector<8x96xf32> to vector<8x32xf32>
    %434 = arith.mulf %423, %433 : vector<8x32xf32>
    %435 = arith.addf %432, %434 : vector<8x32xf32>
    %436 = math.tanh %435 : vector<8x32xf32>
    %cst_83 = arith.constant 1.000000e+00 : f32
    %437 = vector.broadcast %cst_83 : f32 to vector<8x32xf32>
    %438 = arith.subf %437, %431 : vector<8x32xf32>
    %439 = arith.mulf %438, %436 : vector<8x32xf32>
    %440 = arith.mulf %431, %405 : vector<8x32xf32>
    %441 = arith.addf %439, %440 : vector<8x32xf32>
    %442 = arith.truncf %441 : vector<8x32xf32> to vector<8x32xbf16>
    %c11 = arith.constant 11 : index
    %c0_84 = arith.constant 0 : index
    %c0_85 = arith.constant 0 : index
    %443 = vector.load %arg7[%c11, %c0_84, %c0_85] : memref<16x8x32xbf16, #tpu.memory_space<vmem>>, vector<1x8x32xbf16>
    %444 = vector.shape_cast %443 : vector<1x8x32xbf16> to vector<8x32xbf16>
    %445 = vector.shape_cast %442 : vector<8x32xbf16> to vector<1x8x32xbf16>
    tpu.vector_store %arg7[%c11, %c0_84, %c0_85], %445 {strides = array<i32>} : memref<16x8x32xbf16, #tpu.memory_space<vmem>>, vector<1x8x32xbf16>,
    %446 = vector.extract_strided_slice %12 {offsets = [12, 0, 0], sizes = [1, 8, 96], strides = [1, 1, 1]} : vector<16x8x96xf32> to vector<1x8x96xf32>
    %447 = vector.shape_cast %446 : vector<1x8x96xf32> to vector<8x96xf32>
    %448 = arith.truncf %441 : vector<8x32xf32> to vector<8x32xbf16>
    %cst_86 = arith.constant dense<0.000000e+00> : vector<8x96xf32>
    %449 = tpu.matmul %448, %3, %cst_86 {dimension_numbers = #tpu.dot_dimension_numbers<[1], [0], [0], [1], [0, 0, 1, 1], [], []>} : vector<8x32xbf16>, vector<32x96xbf16>, vector<8x96xf32> -> vector<8x96xf32>
    %450 = vector.broadcast %4 : vector<1x96xf32> to vector<8x96xf32>
    %451 = arith.addf %449, %450 : vector<8x96xf32>
    %452 = vector.extract_strided_slice %447 {offsets = [0, 0], sizes = [8, 32], strides = [1, 1]} : vector<8x96xf32> to vector<8x32xf32>
    %453 = vector.extract_strided_slice %451 {offsets = [0, 0], sizes = [8, 32], strides = [1, 1]} : vector<8x96xf32> to vector<8x32xf32>
    %454 = arith.addf %452, %453 : vector<8x32xf32>
    %455 = arith.negf %454 : vector<8x32xf32>
    %456 = math.exp %455 : vector<8x32xf32>
    %cst_87 = arith.constant 1.000000e+00 : f32
    %457 = vector.broadcast %cst_87 : f32 to vector<8x32xf32>
    %458 = arith.addf %457, %456 : vector<8x32xf32>
    %459 = arith.divf %457, %458 : vector<8x32xf32>
    %460 = vector.extract_strided_slice %447 {offsets = [0, 32], sizes = [8, 32], strides = [1, 1]} : vector<8x96xf32> to vector<8x32xf32>
    %461 = vector.extract_strided_slice %451 {offsets = [0, 32], sizes = [8, 32], strides = [1, 1]} : vector<8x96xf32> to vector<8x32xf32>
    %462 = arith.addf %460, %461 : vector<8x32xf32>
    %463 = arith.negf %462 : vector<8x32xf32>
    %464 = math.exp %463 : vector<8x32xf32>
    %cst_88 = arith.constant 1.000000e+00 : f32
    %465 = vector.broadcast %cst_88 : f32 to vector<8x32xf32>
    %466 = arith.addf %465, %464 : vector<8x32xf32>
    %467 = arith.divf %465, %466 : vector<8x32xf32>
    %468 = vector.extract_strided_slice %447 {offsets = [0, 64], sizes = [8, 32], strides = [1, 1]} : vector<8x96xf32> to vector<8x32xf32>
    %469 = vector.extract_strided_slice %451 {offsets = [0, 64], sizes = [8, 32], strides = [1, 1]} : vector<8x96xf32> to vector<8x32xf32>
    %470 = arith.mulf %459, %469 : vector<8x32xf32>
    %471 = arith.addf %468, %470 : vector<8x32xf32>
    %472 = math.tanh %471 : vector<8x32xf32>
    %cst_89 = arith.constant 1.000000e+00 : f32
    %473 = vector.broadcast %cst_89 : f32 to vector<8x32xf32>
    %474 = arith.subf %473, %467 : vector<8x32xf32>
    %475 = arith.mulf %474, %472 : vector<8x32xf32>
    %476 = arith.mulf %467, %441 : vector<8x32xf32>
    %477 = arith.addf %475, %476 : vector<8x32xf32>
    %478 = arith.truncf %477 : vector<8x32xf32> to vector<8x32xbf16>
    %c12 = arith.constant 12 : index
    %c0_90 = arith.constant 0 : index
    %c0_91 = arith.constant 0 : index
    %479 = vector.load %arg7[%c12, %c0_90, %c0_91] : memref<16x8x32xbf16, #tpu.memory_space<vmem>>, vector<1x8x32xbf16>
    %480 = vector.shape_cast %479 : vector<1x8x32xbf16> to vector<8x32xbf16>
    %481 = vector.shape_cast %478 : vector<8x32xbf16> to vector<1x8x32xbf16>
    tpu.vector_store %arg7[%c12, %c0_90, %c0_91], %481 {strides = array<i32>} : memref<16x8x32xbf16, #tpu.memory_space<vmem>>, vector<1x8x32xbf16>,
    %482 = vector.extract_strided_slice %12 {offsets = [13, 0, 0], sizes = [1, 8, 96], strides = [1, 1, 1]} : vector<16x8x96xf32> to vector<1x8x96xf32>
    %483 = vector.shape_cast %482 : vector<1x8x96xf32> to vector<8x96xf32>
    %484 = arith.truncf %477 : vector<8x32xf32> to vector<8x32xbf16>
    %cst_92 = arith.constant dense<0.000000e+00> : vector<8x96xf32>
    %485 = tpu.matmul %484, %3, %cst_92 {dimension_numbers = #tpu.dot_dimension_numbers<[1], [0], [0], [1], [0, 0, 1, 1], [], []>} : vector<8x32xbf16>, vector<32x96xbf16>, vector<8x96xf32> -> vector<8x96xf32>
    %486 = vector.broadcast %4 : vector<1x96xf32> to vector<8x96xf32>
    %487 = arith.addf %485, %486 : vector<8x96xf32>
    %488 = vector.extract_strided_slice %483 {offsets = [0, 0], sizes = [8, 32], strides = [1, 1]} : vector<8x96xf32> to vector<8x32xf32>
    %489 = vector.extract_strided_slice %487 {offsets = [0, 0], sizes = [8, 32], strides = [1, 1]} : vector<8x96xf32> to vector<8x32xf32>
    %490 = arith.addf %488, %489 : vector<8x32xf32>
    %491 = arith.negf %490 : vector<8x32xf32>
    %492 = math.exp %491 : vector<8x32xf32>
    %cst_93 = arith.constant 1.000000e+00 : f32
    %493 = vector.broadcast %cst_93 : f32 to vector<8x32xf32>
    %494 = arith.addf %493, %492 : vector<8x32xf32>
    %495 = arith.divf %493, %494 : vector<8x32xf32>
    %496 = vector.extract_strided_slice %483 {offsets = [0, 32], sizes = [8, 32], strides = [1, 1]} : vector<8x96xf32> to vector<8x32xf32>
    %497 = vector.extract_strided_slice %487 {offsets = [0, 32], sizes = [8, 32], strides = [1, 1]} : vector<8x96xf32> to vector<8x32xf32>
    %498 = arith.addf %496, %497 : vector<8x32xf32>
    %499 = arith.negf %498 : vector<8x32xf32>
    %500 = math.exp %499 : vector<8x32xf32>
    %cst_94 = arith.constant 1.000000e+00 : f32
    %501 = vector.broadcast %cst_94 : f32 to vector<8x32xf32>
    %502 = arith.addf %501, %500 : vector<8x32xf32>
    %503 = arith.divf %501, %502 : vector<8x32xf32>
    %504 = vector.extract_strided_slice %483 {offsets = [0, 64], sizes = [8, 32], strides = [1, 1]} : vector<8x96xf32> to vector<8x32xf32>
    %505 = vector.extract_strided_slice %487 {offsets = [0, 64], sizes = [8, 32], strides = [1, 1]} : vector<8x96xf32> to vector<8x32xf32>
    %506 = arith.mulf %495, %505 : vector<8x32xf32>
    %507 = arith.addf %504, %506 : vector<8x32xf32>
    %508 = math.tanh %507 : vector<8x32xf32>
    %cst_95 = arith.constant 1.000000e+00 : f32
    %509 = vector.broadcast %cst_95 : f32 to vector<8x32xf32>
    %510 = arith.subf %509, %503 : vector<8x32xf32>
    %511 = arith.mulf %510, %508 : vector<8x32xf32>
    %512 = arith.mulf %503, %477 : vector<8x32xf32>
    %513 = arith.addf %511, %512 : vector<8x32xf32>
    %514 = arith.truncf %513 : vector<8x32xf32> to vector<8x32xbf16>
    %c13 = arith.constant 13 : index
    %c0_96 = arith.constant 0 : index
    %c0_97 = arith.constant 0 : index
    %515 = vector.load %arg7[%c13, %c0_96, %c0_97] : memref<16x8x32xbf16, #tpu.memory_space<vmem>>, vector<1x8x32xbf16>
    %516 = vector.shape_cast %515 : vector<1x8x32xbf16> to vector<8x32xbf16>
    %517 = vector.shape_cast %514 : vector<8x32xbf16> to vector<1x8x32xbf16>
    tpu.vector_store %arg7[%c13, %c0_96, %c0_97], %517 {strides = array<i32>} : memref<16x8x32xbf16, #tpu.memory_space<vmem>>, vector<1x8x32xbf16>,
    %518 = vector.extract_strided_slice %12 {offsets = [14, 0, 0], sizes = [1, 8, 96], strides = [1, 1, 1]} : vector<16x8x96xf32> to vector<1x8x96xf32>
    %519 = vector.shape_cast %518 : vector<1x8x96xf32> to vector<8x96xf32>
    %520 = arith.truncf %513 : vector<8x32xf32> to vector<8x32xbf16>
    %cst_98 = arith.constant dense<0.000000e+00> : vector<8x96xf32>
    %521 = tpu.matmul %520, %3, %cst_98 {dimension_numbers = #tpu.dot_dimension_numbers<[1], [0], [0], [1], [0, 0, 1, 1], [], []>} : vector<8x32xbf16>, vector<32x96xbf16>, vector<8x96xf32> -> vector<8x96xf32>
    %522 = vector.broadcast %4 : vector<1x96xf32> to vector<8x96xf32>
    %523 = arith.addf %521, %522 : vector<8x96xf32>
    %524 = vector.extract_strided_slice %519 {offsets = [0, 0], sizes = [8, 32], strides = [1, 1]} : vector<8x96xf32> to vector<8x32xf32>
    %525 = vector.extract_strided_slice %523 {offsets = [0, 0], sizes = [8, 32], strides = [1, 1]} : vector<8x96xf32> to vector<8x32xf32>
    %526 = arith.addf %524, %525 : vector<8x32xf32>
    %527 = arith.negf %526 : vector<8x32xf32>
    %528 = math.exp %527 : vector<8x32xf32>
    %cst_99 = arith.constant 1.000000e+00 : f32
    %529 = vector.broadcast %cst_99 : f32 to vector<8x32xf32>
    %530 = arith.addf %529, %528 : vector<8x32xf32>
    %531 = arith.divf %529, %530 : vector<8x32xf32>
    %532 = vector.extract_strided_slice %519 {offsets = [0, 32], sizes = [8, 32], strides = [1, 1]} : vector<8x96xf32> to vector<8x32xf32>
    %533 = vector.extract_strided_slice %523 {offsets = [0, 32], sizes = [8, 32], strides = [1, 1]} : vector<8x96xf32> to vector<8x32xf32>
    %534 = arith.addf %532, %533 : vector<8x32xf32>
    %535 = arith.negf %534 : vector<8x32xf32>
    %536 = math.exp %535 : vector<8x32xf32>
    %cst_100 = arith.constant 1.000000e+00 : f32
    %537 = vector.broadcast %cst_100 : f32 to vector<8x32xf32>
    %538 = arith.addf %537, %536 : vector<8x32xf32>
    %539 = arith.divf %537, %538 : vector<8x32xf32>
    %540 = vector.extract_strided_slice %519 {offsets = [0, 64], sizes = [8, 32], strides = [1, 1]} : vector<8x96xf32> to vector<8x32xf32>
    %541 = vector.extract_strided_slice %523 {offsets = [0, 64], sizes = [8, 32], strides = [1, 1]} : vector<8x96xf32> to vector<8x32xf32>
    %542 = arith.mulf %531, %541 : vector<8x32xf32>
    %543 = arith.addf %540, %542 : vector<8x32xf32>
    %544 = math.tanh %543 : vector<8x32xf32>
    %cst_101 = arith.constant 1.000000e+00 : f32
    %545 = vector.broadcast %cst_101 : f32 to vector<8x32xf32>
    %546 = arith.subf %545, %539 : vector<8x32xf32>
    %547 = arith.mulf %546, %544 : vector<8x32xf32>
    %548 = arith.mulf %539, %513 : vector<8x32xf32>
    %549 = arith.addf %547, %548 : vector<8x32xf32>
    %550 = arith.truncf %549 : vector<8x32xf32> to vector<8x32xbf16>
    %c14 = arith.constant 14 : index
    %c0_102 = arith.constant 0 : index
    %c0_103 = arith.constant 0 : index
    %551 = vector.load %arg7[%c14, %c0_102, %c0_103] : memref<16x8x32xbf16, #tpu.memory_space<vmem>>, vector<1x8x32xbf16>
    %552 = vector.shape_cast %551 : vector<1x8x32xbf16> to vector<8x32xbf16>
    %553 = vector.shape_cast %550 : vector<8x32xbf16> to vector<1x8x32xbf16>
    tpu.vector_store %arg7[%c14, %c0_102, %c0_103], %553 {strides = array<i32>} : memref<16x8x32xbf16, #tpu.memory_space<vmem>>, vector<1x8x32xbf16>,
    %554 = vector.extract_strided_slice %12 {offsets = [15, 0, 0], sizes = [1, 8, 96], strides = [1, 1, 1]} : vector<16x8x96xf32> to vector<1x8x96xf32>
    %555 = vector.shape_cast %554 : vector<1x8x96xf32> to vector<8x96xf32>
    %556 = arith.truncf %549 : vector<8x32xf32> to vector<8x32xbf16>
    %cst_104 = arith.constant dense<0.000000e+00> : vector<8x96xf32>
    %557 = tpu.matmul %556, %3, %cst_104 {dimension_numbers = #tpu.dot_dimension_numbers<[1], [0], [0], [1], [0, 0, 1, 1], [], []>} : vector<8x32xbf16>, vector<32x96xbf16>, vector<8x96xf32> -> vector<8x96xf32>
    %558 = vector.broadcast %4 : vector<1x96xf32> to vector<8x96xf32>
    %559 = arith.addf %557, %558 : vector<8x96xf32>
    %560 = vector.extract_strided_slice %555 {offsets = [0, 0], sizes = [8, 32], strides = [1, 1]} : vector<8x96xf32> to vector<8x32xf32>
    %561 = vector.extract_strided_slice %559 {offsets = [0, 0], sizes = [8, 32], strides = [1, 1]} : vector<8x96xf32> to vector<8x32xf32>
    %562 = arith.addf %560, %561 : vector<8x32xf32>
    %563 = arith.negf %562 : vector<8x32xf32>
    %564 = math.exp %563 : vector<8x32xf32>
    %cst_105 = arith.constant 1.000000e+00 : f32
    %565 = vector.broadcast %cst_105 : f32 to vector<8x32xf32>
    %566 = arith.addf %565, %564 : vector<8x32xf32>
    %567 = arith.divf %565, %566 : vector<8x32xf32>
    %568 = vector.extract_strided_slice %555 {offsets = [0, 32], sizes = [8, 32], strides = [1, 1]} : vector<8x96xf32> to vector<8x32xf32>
    %569 = vector.extract_strided_slice %559 {offsets = [0, 32], sizes = [8, 32], strides = [1, 1]} : vector<8x96xf32> to vector<8x32xf32>
    %570 = arith.addf %568, %569 : vector<8x32xf32>
    %571 = arith.negf %570 : vector<8x32xf32>
    %572 = math.exp %571 : vector<8x32xf32>
    %cst_106 = arith.constant 1.000000e+00 : f32
    %573 = vector.broadcast %cst_106 : f32 to vector<8x32xf32>
    %574 = arith.addf %573, %572 : vector<8x32xf32>
    %575 = arith.divf %573, %574 : vector<8x32xf32>
    %576 = vector.extract_strided_slice %555 {offsets = [0, 64], sizes = [8, 32], strides = [1, 1]} : vector<8x96xf32> to vector<8x32xf32>
    %577 = vector.extract_strided_slice %559 {offsets = [0, 64], sizes = [8, 32], strides = [1, 1]} : vector<8x96xf32> to vector<8x32xf32>
    %578 = arith.mulf %567, %577 : vector<8x32xf32>
    %579 = arith.addf %576, %578 : vector<8x32xf32>
    %580 = math.tanh %579 : vector<8x32xf32>
    %cst_107 = arith.constant 1.000000e+00 : f32
    %581 = vector.broadcast %cst_107 : f32 to vector<8x32xf32>
    %582 = arith.subf %581, %575 : vector<8x32xf32>
    %583 = arith.mulf %582, %580 : vector<8x32xf32>
    %584 = arith.mulf %575, %549 : vector<8x32xf32>
    %585 = arith.addf %583, %584 : vector<8x32xf32>
    %586 = arith.truncf %585 : vector<8x32xf32> to vector<8x32xbf16>
    %c15 = arith.constant 15 : index
    %c0_108 = arith.constant 0 : index
    %c0_109 = arith.constant 0 : index
    %587 = vector.load %arg7[%c15, %c0_108, %c0_109] : memref<16x8x32xbf16, #tpu.memory_space<vmem>>, vector<1x8x32xbf16>
    %588 = vector.shape_cast %587 : vector<1x8x32xbf16> to vector<8x32xbf16>
    %589 = vector.shape_cast %586 : vector<8x32xbf16> to vector<1x8x32xbf16>
    tpu.vector_store %arg7[%c15, %c0_108, %c0_109], %589 {strides = array<i32>} : memref<16x8x32xbf16, #tpu.memory_space<vmem>>, vector<1x8x32xbf16>,
    %c0_110 = arith.constant 0 : index
    %c0_111 = arith.constant 0 : index
    %590 = vector.load %arg9[%c0_110, %c0_111] : memref<8x32xf32, #tpu.memory_space<vmem>>, vector<8x32xf32>
    tpu.vector_store %arg9[%c0_110, %c0_111], %585 {strides = array<i32>} : memref<8x32xf32, #tpu.memory_space<vmem>>, vector<8x32xf32>,
    %c0_i32_112 = arith.constant 0 : i32
    %591 = arith.cmpi eq, %arg1, %c0_i32_112 : i32
    %592 = arith.extui %591 : i1 to i32
    %c0_i32_113 = arith.constant 0 : i32
    %593 = arith.cmpi ne, %592, %c0_i32_113 : i32
    scf.if %593 {
      %c0_114 = arith.constant 0 : index
      %c0_115 = arith.constant 0 : index
      %594 = vector.load %arg8[%c0_114, %c0_115] : memref<8x32xf32, #tpu.memory_space<vmem>>, vector<8x32xf32>
      tpu.vector_store %arg8[%c0_114, %c0_115], %585 {strides = array<i32>} : memref<8x32xf32, #tpu.memory_space<vmem>>, vector<8x32xf32>,
    } else {
    }
    return
  }
  func.func @transform_0(%arg0: i32, %arg1: i32) -> (i32, i32, i32) {
    %c0_i32 = arith.constant 0 : i32
    %c0_i32_0 = arith.constant 0 : i32
    return %arg1, %arg0, %c0_i32 : i32, i32, i32
  }
  func.func @transform_1(%arg0: i32, %arg1: i32) -> (i32, i32) {
    %c0_i32 = arith.constant 0 : i32
    %c0_i32_0 = arith.constant 0 : i32
    %c0_i32_1 = arith.constant 0 : i32
    return %c0_i32, %c0_i32_0 : i32, i32
  }
  func.func @transform_2(%arg0: i32, %arg1: i32) -> (i32, i32) {
    %c0_i32 = arith.constant 0 : i32
    %c0_i32_0 = arith.constant 0 : i32
    %c0_i32_1 = arith.constant 0 : i32
    return %c0_i32, %c0_i32_0 : i32, i32
  }
  func.func @transform_3(%arg0: i32, %arg1: i32) -> (i32, i32) {
    %c0_i32 = arith.constant 0 : i32
    %c0_i32_0 = arith.constant 0 : i32
    %c0_i32_1 = arith.constant 0 : i32
    return %c0_i32, %c0_i32_0 : i32, i32
  }
  func.func @transform_4(%arg0: i32, %arg1: i32) -> (i32, i32) {
    %c0_i32 = arith.constant 0 : i32
    %c0_i32_0 = arith.constant 0 : i32
    %c0_i32_1 = arith.constant 0 : i32
    return %c0_i32, %c0_i32_0 : i32, i32
  }
  func.func @transform_5(%arg0: i32, %arg1: i32) -> (i32, i32, i32) {
    %c0_i32 = arith.constant 0 : i32
    %c0_i32_0 = arith.constant 0 : i32
    return %arg1, %arg0, %c0_i32 : i32, i32, i32
  }
  func.func @transform_6(%arg0: i32, %arg1: i32) -> (i32, i32) {
    %c0_i32 = arith.constant 0 : i32
    %c0_i32_0 = arith.constant 0 : i32
    return %arg0, %c0_i32 : i32, i32
  }
}

module attributes {stable_mosaic.version = 11 : i64} {
  func.func @_decoder_kernel(%arg0: i32, %arg1: i32, %arg2: memref<8x8x32xbf16, #tpu.memory_space<vmem>>, %arg3: memref<8x8xi32, #tpu.memory_space<vmem>>, %arg4: memref<8x8xf32, #tpu.memory_space<vmem>>, %arg5: memref<8x32xf32, #tpu.memory_space<vmem>>, %arg6: memref<16x8x32xbf16, #tpu.memory_space<vmem>>, %arg7: memref<32x96xbf16, #tpu.memory_space<vmem>>, %arg8: memref<32x96xbf16, #tpu.memory_space<vmem>>, %arg9: memref<1x96xf32, #tpu.memory_space<vmem>>, %arg10: memref<1x96xf32, #tpu.memory_space<vmem>>, %arg11: memref<32x32xbf16, #tpu.memory_space<vmem>>, %arg12: memref<32x32xbf16, #tpu.memory_space<vmem>>, %arg13: memref<1x32xf32, #tpu.memory_space<vmem>>, %arg14: memref<32x16xbf16, #tpu.memory_space<vmem>>, %arg15: memref<1x16xf32, #tpu.memory_space<vmem>>, %arg16: memref<8x8xf32, #tpu.memory_space<vmem>>, %arg17: memref<8x32xf32, #tpu.memory_space<vmem>>) attributes {dimension_semantics = [#tpu.dimension_semantics<parallel>, #tpu.dimension_semantics<arbitrary>], iteration_bounds = array<i64: 1, 1>, scalar_prefetch = 0 : i64, scratch_operands = 1 : i64, tpu.core_type = #tpu.core_type<tc>, window_params = [{transform_indices = @transform_0, window_bounds = array<i64: 8, 8, 32>}, {transform_indices = @transform_1, window_bounds = array<i64: 8, 8>}, {transform_indices = @transform_2, window_bounds = array<i64: 8, 8>}, {transform_indices = @transform_3, window_bounds = array<i64: 8, 32>}, {transform_indices = @transform_4, window_bounds = array<i64: 16, 8, 32>}, {pipeline_mode = #tpu.pipeline_mode<synchronous>, transform_indices = @transform_5, window_bounds = array<i64: 32, 96>}, {pipeline_mode = #tpu.pipeline_mode<synchronous>, transform_indices = @transform_6, window_bounds = array<i64: 32, 96>}, {pipeline_mode = #tpu.pipeline_mode<synchronous>, transform_indices = @transform_7, window_bounds = array<i64: 1, 96>}, {pipeline_mode = #tpu.pipeline_mode<synchronous>, transform_indices = @transform_8, window_bounds = array<i64: 1, 96>}, {pipeline_mode = #tpu.pipeline_mode<synchronous>, transform_indices = @transform_9, window_bounds = array<i64: 32, 32>}, {pipeline_mode = #tpu.pipeline_mode<synchronous>, transform_indices = @transform_10, window_bounds = array<i64: 32, 32>}, {pipeline_mode = #tpu.pipeline_mode<synchronous>, transform_indices = @transform_11, window_bounds = array<i64: 1, 32>}, {pipeline_mode = #tpu.pipeline_mode<synchronous>, transform_indices = @transform_12, window_bounds = array<i64: 32, 16>}, {pipeline_mode = #tpu.pipeline_mode<synchronous>, transform_indices = @transform_13, window_bounds = array<i64: 1, 16>}, {transform_indices = @transform_14, window_bounds = array<i64: 8, 8>}]} {
    %c0_i32 = arith.constant 0 : i32
    %0 = arith.cmpi eq, %arg1, %c0_i32 : i32
    %1 = arith.extui %0 : i1 to i32
    %c0_i32_0 = arith.constant 0 : i32
    %2 = arith.cmpi ne, %1, %c0_i32_0 : i32
    scf.if %2 {
      %c0_175 = arith.constant 0 : index
      %c0_176 = arith.constant 0 : index
      %673 = vector.load %arg5[%c0_175, %c0_176] : memref<8x32xf32, #tpu.memory_space<vmem>>, vector<8x32xf32>
      %c0_177 = arith.constant 0 : index
      %c0_178 = arith.constant 0 : index
      %674 = vector.load %arg17[%c0_177, %c0_178] : memref<8x32xf32, #tpu.memory_space<vmem>>, vector<8x32xf32>
      tpu.vector_store %arg17[%c0_177, %c0_178], %673 {strides = array<i32>} : memref<8x32xf32, #tpu.memory_space<vmem>>, vector<8x32xf32>,
    } else {
    }
    %c0 = arith.constant 0 : index
    %c0_1 = arith.constant 0 : index
    %3 = vector.load %arg8[%c0, %c0_1] : memref<32x96xbf16, #tpu.memory_space<vmem>>, vector<32x96xbf16>
    %c0_2 = arith.constant 0 : index
    %c0_3 = arith.constant 0 : index
    %4 = vector.load %arg10[%c0_2, %c0_3] : memref<1x96xf32, #tpu.memory_space<vmem>>, vector<1x96xf32>
    %c0_4 = arith.constant 0 : index
    %c0_5 = arith.constant 0 : index
    %5 = vector.load %arg11[%c0_4, %c0_5] : memref<32x32xbf16, #tpu.memory_space<vmem>>, vector<32x32xbf16>
    %c0_6 = arith.constant 0 : index
    %c0_7 = arith.constant 0 : index
    %6 = vector.load %arg12[%c0_6, %c0_7] : memref<32x32xbf16, #tpu.memory_space<vmem>>, vector<32x32xbf16>
    %c0_8 = arith.constant 0 : index
    %c0_9 = arith.constant 0 : index
    %7 = vector.load %arg13[%c0_8, %c0_9] : memref<1x32xf32, #tpu.memory_space<vmem>>, vector<1x32xf32>
    %c0_10 = arith.constant 0 : index
    %c0_11 = arith.constant 0 : index
    %8 = vector.load %arg14[%c0_10, %c0_11] : memref<32x16xbf16, #tpu.memory_space<vmem>>, vector<32x16xbf16>
    %c0_12 = arith.constant 0 : index
    %c0_13 = arith.constant 0 : index
    %9 = vector.load %arg15[%c0_12, %c0_13] : memref<1x16xf32, #tpu.memory_space<vmem>>, vector<1x16xf32>
    %c0_14 = arith.constant 0 : index
    %c0_15 = arith.constant 0 : index
    %c0_16 = arith.constant 0 : index
    %10 = vector.load %arg6[%c0_14, %c0_15, %c0_16] : memref<16x8x32xbf16, #tpu.memory_space<vmem>>, vector<16x8x32xbf16>
    %11 = arith.extf %10 : vector<16x8x32xbf16> to vector<16x8x32xf32>
    %c0_17 = arith.constant 0 : index
    %c0_18 = arith.constant 0 : index
    %c0_19 = arith.constant 0 : index
    %12 = vector.load %arg2[%c0_17, %c0_18, %c0_19] : memref<8x8x32xbf16, #tpu.memory_space<vmem>>, vector<8x8x32xbf16>
    %13 = vector.shape_cast %12 : vector<8x8x32xbf16> to vector<64x32xbf16>
    %c0_20 = arith.constant 0 : index
    %c0_21 = arith.constant 0 : index
    %14 = vector.load %arg7[%c0_20, %c0_21] : memref<32x96xbf16, #tpu.memory_space<vmem>>, vector<32x96xbf16>
    %cst = arith.constant dense<0.000000e+00> : vector<64x96xf32>
    %15 = tpu.matmul %13, %14, %cst {dimension_numbers = #tpu.dot_dimension_numbers<[1], [0], [0], [1], [0, 0, 1, 1], [], []>} : vector<64x32xbf16>, vector<32x96xbf16>, vector<64x96xf32> -> vector<64x96xf32>
    %c0_22 = arith.constant 0 : index
    %c0_23 = arith.constant 0 : index
    %16 = vector.load %arg9[%c0_22, %c0_23] : memref<1x96xf32, #tpu.memory_space<vmem>>, vector<1x96xf32>
    %17 = vector.broadcast %16 : vector<1x96xf32> to vector<64x96xf32>
    %18 = arith.addf %15, %17 : vector<64x96xf32>
    %19 = vector.shape_cast %18 : vector<64x96xf32> to vector<8x8x96xf32>
    %20 = tpu.iota {dimensions = array<i32: 1>} : vector<8x16xi32>
    %c0_24 = arith.constant 0 : index
    %c0_25 = arith.constant 0 : index
    %21 = vector.load %arg17[%c0_24, %c0_25] : memref<8x32xf32, #tpu.memory_space<vmem>>, vector<8x32xf32>
    %22 = vector.extract_strided_slice %19 {offsets = [0, 0, 0], sizes = [1, 8, 96], strides = [1, 1, 1]} : vector<8x8x96xf32> to vector<1x8x96xf32>
    %23 = vector.shape_cast %22 : vector<1x8x96xf32> to vector<8x96xf32>
    %24 = arith.truncf %21 : vector<8x32xf32> to vector<8x32xbf16>
    %cst_26 = arith.constant dense<0.000000e+00> : vector<8x96xf32>
    %25 = tpu.matmul %24, %3, %cst_26 {dimension_numbers = #tpu.dot_dimension_numbers<[1], [0], [0], [1], [0, 0, 1, 1], [], []>} : vector<8x32xbf16>, vector<32x96xbf16>, vector<8x96xf32> -> vector<8x96xf32>
    %26 = vector.broadcast %4 : vector<1x96xf32> to vector<8x96xf32>
    %27 = arith.addf %25, %26 : vector<8x96xf32>
    %28 = vector.extract_strided_slice %23 {offsets = [0, 0], sizes = [8, 32], strides = [1, 1]} : vector<8x96xf32> to vector<8x32xf32>
    %29 = vector.extract_strided_slice %27 {offsets = [0, 0], sizes = [8, 32], strides = [1, 1]} : vector<8x96xf32> to vector<8x32xf32>
    %30 = arith.addf %28, %29 : vector<8x32xf32>
    %31 = arith.negf %30 : vector<8x32xf32>
    %32 = math.exp %31 : vector<8x32xf32>
    %cst_27 = arith.constant 1.000000e+00 : f32
    %33 = vector.broadcast %cst_27 : f32 to vector<8x32xf32>
    %34 = arith.addf %33, %32 : vector<8x32xf32>
    %35 = arith.divf %33, %34 : vector<8x32xf32>
    %36 = vector.extract_strided_slice %23 {offsets = [0, 32], sizes = [8, 32], strides = [1, 1]} : vector<8x96xf32> to vector<8x32xf32>
    %37 = vector.extract_strided_slice %27 {offsets = [0, 32], sizes = [8, 32], strides = [1, 1]} : vector<8x96xf32> to vector<8x32xf32>
    %38 = arith.addf %36, %37 : vector<8x32xf32>
    %39 = arith.negf %38 : vector<8x32xf32>
    %40 = math.exp %39 : vector<8x32xf32>
    %cst_28 = arith.constant 1.000000e+00 : f32
    %41 = vector.broadcast %cst_28 : f32 to vector<8x32xf32>
    %42 = arith.addf %41, %40 : vector<8x32xf32>
    %43 = arith.divf %41, %42 : vector<8x32xf32>
    %44 = vector.extract_strided_slice %23 {offsets = [0, 64], sizes = [8, 32], strides = [1, 1]} : vector<8x96xf32> to vector<8x32xf32>
    %45 = vector.extract_strided_slice %27 {offsets = [0, 64], sizes = [8, 32], strides = [1, 1]} : vector<8x96xf32> to vector<8x32xf32>
    %46 = arith.mulf %35, %45 : vector<8x32xf32>
    %47 = arith.addf %44, %46 : vector<8x32xf32>
    %48 = math.tanh %47 : vector<8x32xf32>
    %cst_29 = arith.constant 1.000000e+00 : f32
    %49 = vector.broadcast %cst_29 : f32 to vector<8x32xf32>
    %50 = arith.subf %49, %43 : vector<8x32xf32>
    %51 = arith.mulf %50, %48 : vector<8x32xf32>
    %52 = arith.mulf %43, %21 : vector<8x32xf32>
    %53 = arith.addf %51, %52 : vector<8x32xf32>
    %54 = vector.shape_cast %53 : vector<8x32xf32> to vector<1x8x32xf32>
    %55 = vector.broadcast %54 : vector<1x8x32xf32> to vector<16x8x32xf32>
    %56 = arith.mulf %11, %55 : vector<16x8x32xf32>
    %cst_30 = arith.constant dense<0.000000e+00> : vector<16x8xf32>
    %57 = vector.multi_reduction <add>, %56, %cst_30 [2] : vector<16x8x32xf32> to vector<16x8xf32>
    %58 = vector.shape_cast %57 : vector<16x8xf32> to vector<16x8x1xf32>
    %cst_31 = arith.constant dense<0xFF800000> : vector<8x1xf32>
    %59 = vector.multi_reduction <maximumf>, %58, %cst_31 [0] : vector<16x8x1xf32> to vector<8x1xf32>
    %60 = vector.shape_cast %59 : vector<8x1xf32> to vector<1x8x1xf32>
    %61 = vector.broadcast %60 : vector<1x8x1xf32> to vector<16x8x1xf32>
    %62 = arith.subf %58, %61 : vector<16x8x1xf32>
    %63 = math.exp %62 : vector<16x8x1xf32>
    %cst_32 = arith.constant dense<0.000000e+00> : vector<8x1xf32>
    %64 = vector.multi_reduction <add>, %63, %cst_32 [0] : vector<16x8x1xf32> to vector<8x1xf32>
    %65 = vector.shape_cast %64 : vector<8x1xf32> to vector<1x8x1xf32>
    %66 = tpu.reciprocal %65 {approx = true} : vector<1x8x1xf32> -> vector<1x8x1xf32>
    %67 = vector.broadcast %66 : vector<1x8x1xf32> to vector<16x8x1xf32>
    %68 = arith.mulf %63, %67 : vector<16x8x1xf32>
    %69 = vector.broadcast %68 : vector<16x8x1xf32> to vector<16x8x32xf32>
    %70 = arith.mulf %69, %11 : vector<16x8x32xf32>
    %cst_33 = arith.constant dense<0.000000e+00> : vector<8x32xf32>
    %71 = vector.multi_reduction <add>, %70, %cst_33 [0] : vector<16x8x32xf32> to vector<8x32xf32>
    %72 = arith.truncf %53 : vector<8x32xf32> to vector<8x32xbf16>
    %cst_34 = arith.constant dense<0.000000e+00> : vector<8x32xf32>
    %73 = tpu.matmul %72, %5, %cst_34 {dimension_numbers = #tpu.dot_dimension_numbers<[1], [0], [0], [1], [0, 0, 1, 1], [], []>} : vector<8x32xbf16>, vector<32x32xbf16>, vector<8x32xf32> -> vector<8x32xf32>
    %74 = arith.truncf %71 : vector<8x32xf32> to vector<8x32xbf16>
    %cst_35 = arith.constant dense<0.000000e+00> : vector<8x32xf32>
    %75 = tpu.matmul %74, %6, %cst_35 {dimension_numbers = #tpu.dot_dimension_numbers<[1], [0], [0], [1], [0, 0, 1, 1], [], []>} : vector<8x32xbf16>, vector<32x32xbf16>, vector<8x32xf32> -> vector<8x32xf32>
    %76 = arith.addf %73, %75 : vector<8x32xf32>
    %77 = vector.broadcast %7 : vector<1x32xf32> to vector<8x32xf32>
    %78 = arith.addf %76, %77 : vector<8x32xf32>
    %79 = math.tanh %78 : vector<8x32xf32>
    %80 = arith.truncf %79 : vector<8x32xf32> to vector<8x32xbf16>
    %cst_36 = arith.constant dense<0.000000e+00> : vector<8x16xf32>
    %81 = tpu.matmul %80, %8, %cst_36 {dimension_numbers = #tpu.dot_dimension_numbers<[1], [0], [0], [1], [0, 0, 1, 1], [], []>} : vector<8x32xbf16>, vector<32x16xbf16>, vector<8x16xf32> -> vector<8x16xf32>
    %82 = vector.broadcast %9 : vector<1x16xf32> to vector<8x16xf32>
    %83 = arith.addf %81, %82 : vector<8x16xf32>
    %cst_37 = arith.constant dense<0xFF800000> : vector<8xf32>
    %84 = vector.multi_reduction <maximumf>, %83, %cst_37 [1] : vector<8x16xf32> to vector<8xf32>
    %85 = vector.shape_cast %84 : vector<8xf32> to vector<8x1xf32>
    %86 = vector.broadcast %85 : vector<8x1xf32> to vector<8x16xf32>
    %87 = arith.subf %83, %86 : vector<8x16xf32>
    %88 = math.exp %87 : vector<8x16xf32>
    %cst_38 = arith.constant dense<0.000000e+00> : vector<8xf32>
    %89 = vector.multi_reduction <add>, %88, %cst_38 [1] : vector<8x16xf32> to vector<8xf32>
    %90 = vector.shape_cast %89 : vector<8xf32> to vector<8x1xf32>
    %91 = math.log %90 : vector<8x1xf32>
    %92 = arith.addf %91, %85 : vector<8x1xf32>
    %c0_39 = arith.constant 0 : index
    %c0_40 = arith.constant 0 : index
    %93 = vector.load %arg3[%c0_39, %c0_40] : memref<8x8xi32, #tpu.memory_space<vmem>>, vector<8x1xi32>
    %94 = vector.broadcast %93 : vector<8x1xi32> to vector<8x16xi32>
    %95 = arith.cmpi eq, %20, %94 : vector<8x16xi32>
    %cst_41 = arith.constant 0.000000e+00 : f32
    %96 = vector.broadcast %cst_41 : f32 to vector<8x16xf32>
    %97 = arith.select %95, %83, %96 : vector<8x16xi1>, vector<8x16xf32>
    %cst_42 = arith.constant dense<0.000000e+00> : vector<8xf32>
    %98 = vector.multi_reduction <add>, %97, %cst_42 [1] : vector<8x16xf32> to vector<8xf32>
    %99 = vector.shape_cast %98 : vector<8xf32> to vector<8x1xf32>
    %100 = arith.subf %92, %99 : vector<8x1xf32>
    %c0_43 = arith.constant 0 : index
    %c0_44 = arith.constant 0 : index
    %101 = vector.load %arg4[%c0_43, %c0_44] : memref<8x8xf32, #tpu.memory_space<vmem>>, vector<8x1xf32>
    %102 = arith.mulf %100, %101 : vector<8x1xf32>
    %103 = vector.extract_strided_slice %19 {offsets = [1, 0, 0], sizes = [1, 8, 96], strides = [1, 1, 1]} : vector<8x8x96xf32> to vector<1x8x96xf32>
    %104 = vector.shape_cast %103 : vector<1x8x96xf32> to vector<8x96xf32>
    %105 = arith.truncf %53 : vector<8x32xf32> to vector<8x32xbf16>
    %cst_45 = arith.constant dense<0.000000e+00> : vector<8x96xf32>
    %106 = tpu.matmul %105, %3, %cst_45 {dimension_numbers = #tpu.dot_dimension_numbers<[1], [0], [0], [1], [0, 0, 1, 1], [], []>} : vector<8x32xbf16>, vector<32x96xbf16>, vector<8x96xf32> -> vector<8x96xf32>
    %107 = vector.broadcast %4 : vector<1x96xf32> to vector<8x96xf32>
    %108 = arith.addf %106, %107 : vector<8x96xf32>
    %109 = vector.extract_strided_slice %104 {offsets = [0, 0], sizes = [8, 32], strides = [1, 1]} : vector<8x96xf32> to vector<8x32xf32>
    %110 = vector.extract_strided_slice %108 {offsets = [0, 0], sizes = [8, 32], strides = [1, 1]} : vector<8x96xf32> to vector<8x32xf32>
    %111 = arith.addf %109, %110 : vector<8x32xf32>
    %112 = arith.negf %111 : vector<8x32xf32>
    %113 = math.exp %112 : vector<8x32xf32>
    %cst_46 = arith.constant 1.000000e+00 : f32
    %114 = vector.broadcast %cst_46 : f32 to vector<8x32xf32>
    %115 = arith.addf %114, %113 : vector<8x32xf32>
    %116 = arith.divf %114, %115 : vector<8x32xf32>
    %117 = vector.extract_strided_slice %104 {offsets = [0, 32], sizes = [8, 32], strides = [1, 1]} : vector<8x96xf32> to vector<8x32xf32>
    %118 = vector.extract_strided_slice %108 {offsets = [0, 32], sizes = [8, 32], strides = [1, 1]} : vector<8x96xf32> to vector<8x32xf32>
    %119 = arith.addf %117, %118 : vector<8x32xf32>
    %120 = arith.negf %119 : vector<8x32xf32>
    %121 = math.exp %120 : vector<8x32xf32>
    %cst_47 = arith.constant 1.000000e+00 : f32
    %122 = vector.broadcast %cst_47 : f32 to vector<8x32xf32>
    %123 = arith.addf %122, %121 : vector<8x32xf32>
    %124 = arith.divf %122, %123 : vector<8x32xf32>
    %125 = vector.extract_strided_slice %104 {offsets = [0, 64], sizes = [8, 32], strides = [1, 1]} : vector<8x96xf32> to vector<8x32xf32>
    %126 = vector.extract_strided_slice %108 {offsets = [0, 64], sizes = [8, 32], strides = [1, 1]} : vector<8x96xf32> to vector<8x32xf32>
    %127 = arith.mulf %116, %126 : vector<8x32xf32>
    %128 = arith.addf %125, %127 : vector<8x32xf32>
    %129 = math.tanh %128 : vector<8x32xf32>
    %cst_48 = arith.constant 1.000000e+00 : f32
    %130 = vector.broadcast %cst_48 : f32 to vector<8x32xf32>
    %131 = arith.subf %130, %124 : vector<8x32xf32>
    %132 = arith.mulf %131, %129 : vector<8x32xf32>
    %133 = arith.mulf %124, %53 : vector<8x32xf32>
    %134 = arith.addf %132, %133 : vector<8x32xf32>
    %135 = vector.shape_cast %134 : vector<8x32xf32> to vector<1x8x32xf32>
    %136 = vector.broadcast %135 : vector<1x8x32xf32> to vector<16x8x32xf32>
    %137 = arith.mulf %11, %136 : vector<16x8x32xf32>
    %cst_49 = arith.constant dense<0.000000e+00> : vector<16x8xf32>
    %138 = vector.multi_reduction <add>, %137, %cst_49 [2] : vector<16x8x32xf32> to vector<16x8xf32>
    %139 = vector.shape_cast %138 : vector<16x8xf32> to vector<16x8x1xf32>
    %cst_50 = arith.constant dense<0xFF800000> : vector<8x1xf32>
    %140 = vector.multi_reduction <maximumf>, %139, %cst_50 [0] : vector<16x8x1xf32> to vector<8x1xf32>
    %141 = vector.shape_cast %140 : vector<8x1xf32> to vector<1x8x1xf32>
    %142 = vector.broadcast %141 : vector<1x8x1xf32> to vector<16x8x1xf32>
    %143 = arith.subf %139, %142 : vector<16x8x1xf32>
    %144 = math.exp %143 : vector<16x8x1xf32>
    %cst_51 = arith.constant dense<0.000000e+00> : vector<8x1xf32>
    %145 = vector.multi_reduction <add>, %144, %cst_51 [0] : vector<16x8x1xf32> to vector<8x1xf32>
    %146 = vector.shape_cast %145 : vector<8x1xf32> to vector<1x8x1xf32>
    %147 = tpu.reciprocal %146 {approx = true} : vector<1x8x1xf32> -> vector<1x8x1xf32>
    %148 = vector.broadcast %147 : vector<1x8x1xf32> to vector<16x8x1xf32>
    %149 = arith.mulf %144, %148 : vector<16x8x1xf32>
    %150 = vector.broadcast %149 : vector<16x8x1xf32> to vector<16x8x32xf32>
    %151 = arith.mulf %150, %11 : vector<16x8x32xf32>
    %cst_52 = arith.constant dense<0.000000e+00> : vector<8x32xf32>
    %152 = vector.multi_reduction <add>, %151, %cst_52 [0] : vector<16x8x32xf32> to vector<8x32xf32>
    %153 = arith.truncf %134 : vector<8x32xf32> to vector<8x32xbf16>
    %cst_53 = arith.constant dense<0.000000e+00> : vector<8x32xf32>
    %154 = tpu.matmul %153, %5, %cst_53 {dimension_numbers = #tpu.dot_dimension_numbers<[1], [0], [0], [1], [0, 0, 1, 1], [], []>} : vector<8x32xbf16>, vector<32x32xbf16>, vector<8x32xf32> -> vector<8x32xf32>
    %155 = arith.truncf %152 : vector<8x32xf32> to vector<8x32xbf16>
    %cst_54 = arith.constant dense<0.000000e+00> : vector<8x32xf32>
    %156 = tpu.matmul %155, %6, %cst_54 {dimension_numbers = #tpu.dot_dimension_numbers<[1], [0], [0], [1], [0, 0, 1, 1], [], []>} : vector<8x32xbf16>, vector<32x32xbf16>, vector<8x32xf32> -> vector<8x32xf32>
    %157 = arith.addf %154, %156 : vector<8x32xf32>
    %158 = vector.broadcast %7 : vector<1x32xf32> to vector<8x32xf32>
    %159 = arith.addf %157, %158 : vector<8x32xf32>
    %160 = math.tanh %159 : vector<8x32xf32>
    %161 = arith.truncf %160 : vector<8x32xf32> to vector<8x32xbf16>
    %cst_55 = arith.constant dense<0.000000e+00> : vector<8x16xf32>
    %162 = tpu.matmul %161, %8, %cst_55 {dimension_numbers = #tpu.dot_dimension_numbers<[1], [0], [0], [1], [0, 0, 1, 1], [], []>} : vector<8x32xbf16>, vector<32x16xbf16>, vector<8x16xf32> -> vector<8x16xf32>
    %163 = vector.broadcast %9 : vector<1x16xf32> to vector<8x16xf32>
    %164 = arith.addf %162, %163 : vector<8x16xf32>
    %cst_56 = arith.constant dense<0xFF800000> : vector<8xf32>
    %165 = vector.multi_reduction <maximumf>, %164, %cst_56 [1] : vector<8x16xf32> to vector<8xf32>
    %166 = vector.shape_cast %165 : vector<8xf32> to vector<8x1xf32>
    %167 = vector.broadcast %166 : vector<8x1xf32> to vector<8x16xf32>
    %168 = arith.subf %164, %167 : vector<8x16xf32>
    %169 = math.exp %168 : vector<8x16xf32>
    %cst_57 = arith.constant dense<0.000000e+00> : vector<8xf32>
    %170 = vector.multi_reduction <add>, %169, %cst_57 [1] : vector<8x16xf32> to vector<8xf32>
    %171 = vector.shape_cast %170 : vector<8xf32> to vector<8x1xf32>
    %172 = math.log %171 : vector<8x1xf32>
    %173 = arith.addf %172, %166 : vector<8x1xf32>
    %c0_58 = arith.constant 0 : index
    %c1 = arith.constant 1 : index
    %174 = vector.load %arg3[%c0_58, %c1] : memref<8x8xi32, #tpu.memory_space<vmem>>, vector<8x1xi32>
    %175 = vector.broadcast %174 : vector<8x1xi32> to vector<8x16xi32>
    %176 = arith.cmpi eq, %20, %175 : vector<8x16xi32>
    %cst_59 = arith.constant 0.000000e+00 : f32
    %177 = vector.broadcast %cst_59 : f32 to vector<8x16xf32>
    %178 = arith.select %176, %164, %177 : vector<8x16xi1>, vector<8x16xf32>
    %cst_60 = arith.constant dense<0.000000e+00> : vector<8xf32>
    %179 = vector.multi_reduction <add>, %178, %cst_60 [1] : vector<8x16xf32> to vector<8xf32>
    %180 = vector.shape_cast %179 : vector<8xf32> to vector<8x1xf32>
    %181 = arith.subf %173, %180 : vector<8x1xf32>
    %c0_61 = arith.constant 0 : index
    %c1_62 = arith.constant 1 : index
    %182 = vector.load %arg4[%c0_61, %c1_62] : memref<8x8xf32, #tpu.memory_space<vmem>>, vector<8x1xf32>
    %183 = arith.mulf %181, %182 : vector<8x1xf32>
    %184 = vector.extract_strided_slice %19 {offsets = [2, 0, 0], sizes = [1, 8, 96], strides = [1, 1, 1]} : vector<8x8x96xf32> to vector<1x8x96xf32>
    %185 = vector.shape_cast %184 : vector<1x8x96xf32> to vector<8x96xf32>
    %186 = arith.truncf %134 : vector<8x32xf32> to vector<8x32xbf16>
    %cst_63 = arith.constant dense<0.000000e+00> : vector<8x96xf32>
    %187 = tpu.matmul %186, %3, %cst_63 {dimension_numbers = #tpu.dot_dimension_numbers<[1], [0], [0], [1], [0, 0, 1, 1], [], []>} : vector<8x32xbf16>, vector<32x96xbf16>, vector<8x96xf32> -> vector<8x96xf32>
    %188 = vector.broadcast %4 : vector<1x96xf32> to vector<8x96xf32>
    %189 = arith.addf %187, %188 : vector<8x96xf32>
    %190 = vector.extract_strided_slice %185 {offsets = [0, 0], sizes = [8, 32], strides = [1, 1]} : vector<8x96xf32> to vector<8x32xf32>
    %191 = vector.extract_strided_slice %189 {offsets = [0, 0], sizes = [8, 32], strides = [1, 1]} : vector<8x96xf32> to vector<8x32xf32>
    %192 = arith.addf %190, %191 : vector<8x32xf32>
    %193 = arith.negf %192 : vector<8x32xf32>
    %194 = math.exp %193 : vector<8x32xf32>
    %cst_64 = arith.constant 1.000000e+00 : f32
    %195 = vector.broadcast %cst_64 : f32 to vector<8x32xf32>
    %196 = arith.addf %195, %194 : vector<8x32xf32>
    %197 = arith.divf %195, %196 : vector<8x32xf32>
    %198 = vector.extract_strided_slice %185 {offsets = [0, 32], sizes = [8, 32], strides = [1, 1]} : vector<8x96xf32> to vector<8x32xf32>
    %199 = vector.extract_strided_slice %189 {offsets = [0, 32], sizes = [8, 32], strides = [1, 1]} : vector<8x96xf32> to vector<8x32xf32>
    %200 = arith.addf %198, %199 : vector<8x32xf32>
    %201 = arith.negf %200 : vector<8x32xf32>
    %202 = math.exp %201 : vector<8x32xf32>
    %cst_65 = arith.constant 1.000000e+00 : f32
    %203 = vector.broadcast %cst_65 : f32 to vector<8x32xf32>
    %204 = arith.addf %203, %202 : vector<8x32xf32>
    %205 = arith.divf %203, %204 : vector<8x32xf32>
    %206 = vector.extract_strided_slice %185 {offsets = [0, 64], sizes = [8, 32], strides = [1, 1]} : vector<8x96xf32> to vector<8x32xf32>
    %207 = vector.extract_strided_slice %189 {offsets = [0, 64], sizes = [8, 32], strides = [1, 1]} : vector<8x96xf32> to vector<8x32xf32>
    %208 = arith.mulf %197, %207 : vector<8x32xf32>
    %209 = arith.addf %206, %208 : vector<8x32xf32>
    %210 = math.tanh %209 : vector<8x32xf32>
    %cst_66 = arith.constant 1.000000e+00 : f32
    %211 = vector.broadcast %cst_66 : f32 to vector<8x32xf32>
    %212 = arith.subf %211, %205 : vector<8x32xf32>
    %213 = arith.mulf %212, %210 : vector<8x32xf32>
    %214 = arith.mulf %205, %134 : vector<8x32xf32>
    %215 = arith.addf %213, %214 : vector<8x32xf32>
    %216 = vector.shape_cast %215 : vector<8x32xf32> to vector<1x8x32xf32>
    %217 = vector.broadcast %216 : vector<1x8x32xf32> to vector<16x8x32xf32>
    %218 = arith.mulf %11, %217 : vector<16x8x32xf32>
    %cst_67 = arith.constant dense<0.000000e+00> : vector<16x8xf32>
    %219 = vector.multi_reduction <add>, %218, %cst_67 [2] : vector<16x8x32xf32> to vector<16x8xf32>
    %220 = vector.shape_cast %219 : vector<16x8xf32> to vector<16x8x1xf32>
    %cst_68 = arith.constant dense<0xFF800000> : vector<8x1xf32>
    %221 = vector.multi_reduction <maximumf>, %220, %cst_68 [0] : vector<16x8x1xf32> to vector<8x1xf32>
    %222 = vector.shape_cast %221 : vector<8x1xf32> to vector<1x8x1xf32>
    %223 = vector.broadcast %222 : vector<1x8x1xf32> to vector<16x8x1xf32>
    %224 = arith.subf %220, %223 : vector<16x8x1xf32>
    %225 = math.exp %224 : vector<16x8x1xf32>
    %cst_69 = arith.constant dense<0.000000e+00> : vector<8x1xf32>
    %226 = vector.multi_reduction <add>, %225, %cst_69 [0] : vector<16x8x1xf32> to vector<8x1xf32>
    %227 = vector.shape_cast %226 : vector<8x1xf32> to vector<1x8x1xf32>
    %228 = tpu.reciprocal %227 {approx = true} : vector<1x8x1xf32> -> vector<1x8x1xf32>
    %229 = vector.broadcast %228 : vector<1x8x1xf32> to vector<16x8x1xf32>
    %230 = arith.mulf %225, %229 : vector<16x8x1xf32>
    %231 = vector.broadcast %230 : vector<16x8x1xf32> to vector<16x8x32xf32>
    %232 = arith.mulf %231, %11 : vector<16x8x32xf32>
    %cst_70 = arith.constant dense<0.000000e+00> : vector<8x32xf32>
    %233 = vector.multi_reduction <add>, %232, %cst_70 [0] : vector<16x8x32xf32> to vector<8x32xf32>
    %234 = arith.truncf %215 : vector<8x32xf32> to vector<8x32xbf16>
    %cst_71 = arith.constant dense<0.000000e+00> : vector<8x32xf32>
    %235 = tpu.matmul %234, %5, %cst_71 {dimension_numbers = #tpu.dot_dimension_numbers<[1], [0], [0], [1], [0, 0, 1, 1], [], []>} : vector<8x32xbf16>, vector<32x32xbf16>, vector<8x32xf32> -> vector<8x32xf32>
    %236 = arith.truncf %233 : vector<8x32xf32> to vector<8x32xbf16>
    %cst_72 = arith.constant dense<0.000000e+00> : vector<8x32xf32>
    %237 = tpu.matmul %236, %6, %cst_72 {dimension_numbers = #tpu.dot_dimension_numbers<[1], [0], [0], [1], [0, 0, 1, 1], [], []>} : vector<8x32xbf16>, vector<32x32xbf16>, vector<8x32xf32> -> vector<8x32xf32>
    %238 = arith.addf %235, %237 : vector<8x32xf32>
    %239 = vector.broadcast %7 : vector<1x32xf32> to vector<8x32xf32>
    %240 = arith.addf %238, %239 : vector<8x32xf32>
    %241 = math.tanh %240 : vector<8x32xf32>
    %242 = arith.truncf %241 : vector<8x32xf32> to vector<8x32xbf16>
    %cst_73 = arith.constant dense<0.000000e+00> : vector<8x16xf32>
    %243 = tpu.matmul %242, %8, %cst_73 {dimension_numbers = #tpu.dot_dimension_numbers<[1], [0], [0], [1], [0, 0, 1, 1], [], []>} : vector<8x32xbf16>, vector<32x16xbf16>, vector<8x16xf32> -> vector<8x16xf32>
    %244 = vector.broadcast %9 : vector<1x16xf32> to vector<8x16xf32>
    %245 = arith.addf %243, %244 : vector<8x16xf32>
    %cst_74 = arith.constant dense<0xFF800000> : vector<8xf32>
    %246 = vector.multi_reduction <maximumf>, %245, %cst_74 [1] : vector<8x16xf32> to vector<8xf32>
    %247 = vector.shape_cast %246 : vector<8xf32> to vector<8x1xf32>
    %248 = vector.broadcast %247 : vector<8x1xf32> to vector<8x16xf32>
    %249 = arith.subf %245, %248 : vector<8x16xf32>
    %250 = math.exp %249 : vector<8x16xf32>
    %cst_75 = arith.constant dense<0.000000e+00> : vector<8xf32>
    %251 = vector.multi_reduction <add>, %250, %cst_75 [1] : vector<8x16xf32> to vector<8xf32>
    %252 = vector.shape_cast %251 : vector<8xf32> to vector<8x1xf32>
    %253 = math.log %252 : vector<8x1xf32>
    %254 = arith.addf %253, %247 : vector<8x1xf32>
    %c0_76 = arith.constant 0 : index
    %c2 = arith.constant 2 : index
    %255 = vector.load %arg3[%c0_76, %c2] : memref<8x8xi32, #tpu.memory_space<vmem>>, vector<8x1xi32>
    %256 = vector.broadcast %255 : vector<8x1xi32> to vector<8x16xi32>
    %257 = arith.cmpi eq, %20, %256 : vector<8x16xi32>
    %cst_77 = arith.constant 0.000000e+00 : f32
    %258 = vector.broadcast %cst_77 : f32 to vector<8x16xf32>
    %259 = arith.select %257, %245, %258 : vector<8x16xi1>, vector<8x16xf32>
    %cst_78 = arith.constant dense<0.000000e+00> : vector<8xf32>
    %260 = vector.multi_reduction <add>, %259, %cst_78 [1] : vector<8x16xf32> to vector<8xf32>
    %261 = vector.shape_cast %260 : vector<8xf32> to vector<8x1xf32>
    %262 = arith.subf %254, %261 : vector<8x1xf32>
    %c0_79 = arith.constant 0 : index
    %c2_80 = arith.constant 2 : index
    %263 = vector.load %arg4[%c0_79, %c2_80] : memref<8x8xf32, #tpu.memory_space<vmem>>, vector<8x1xf32>
    %264 = arith.mulf %262, %263 : vector<8x1xf32>
    %265 = vector.extract_strided_slice %19 {offsets = [3, 0, 0], sizes = [1, 8, 96], strides = [1, 1, 1]} : vector<8x8x96xf32> to vector<1x8x96xf32>
    %266 = vector.shape_cast %265 : vector<1x8x96xf32> to vector<8x96xf32>
    %267 = arith.truncf %215 : vector<8x32xf32> to vector<8x32xbf16>
    %cst_81 = arith.constant dense<0.000000e+00> : vector<8x96xf32>
    %268 = tpu.matmul %267, %3, %cst_81 {dimension_numbers = #tpu.dot_dimension_numbers<[1], [0], [0], [1], [0, 0, 1, 1], [], []>} : vector<8x32xbf16>, vector<32x96xbf16>, vector<8x96xf32> -> vector<8x96xf32>
    %269 = vector.broadcast %4 : vector<1x96xf32> to vector<8x96xf32>
    %270 = arith.addf %268, %269 : vector<8x96xf32>
    %271 = vector.extract_strided_slice %266 {offsets = [0, 0], sizes = [8, 32], strides = [1, 1]} : vector<8x96xf32> to vector<8x32xf32>
    %272 = vector.extract_strided_slice %270 {offsets = [0, 0], sizes = [8, 32], strides = [1, 1]} : vector<8x96xf32> to vector<8x32xf32>
    %273 = arith.addf %271, %272 : vector<8x32xf32>
    %274 = arith.negf %273 : vector<8x32xf32>
    %275 = math.exp %274 : vector<8x32xf32>
    %cst_82 = arith.constant 1.000000e+00 : f32
    %276 = vector.broadcast %cst_82 : f32 to vector<8x32xf32>
    %277 = arith.addf %276, %275 : vector<8x32xf32>
    %278 = arith.divf %276, %277 : vector<8x32xf32>
    %279 = vector.extract_strided_slice %266 {offsets = [0, 32], sizes = [8, 32], strides = [1, 1]} : vector<8x96xf32> to vector<8x32xf32>
    %280 = vector.extract_strided_slice %270 {offsets = [0, 32], sizes = [8, 32], strides = [1, 1]} : vector<8x96xf32> to vector<8x32xf32>
    %281 = arith.addf %279, %280 : vector<8x32xf32>
    %282 = arith.negf %281 : vector<8x32xf32>
    %283 = math.exp %282 : vector<8x32xf32>
    %cst_83 = arith.constant 1.000000e+00 : f32
    %284 = vector.broadcast %cst_83 : f32 to vector<8x32xf32>
    %285 = arith.addf %284, %283 : vector<8x32xf32>
    %286 = arith.divf %284, %285 : vector<8x32xf32>
    %287 = vector.extract_strided_slice %266 {offsets = [0, 64], sizes = [8, 32], strides = [1, 1]} : vector<8x96xf32> to vector<8x32xf32>
    %288 = vector.extract_strided_slice %270 {offsets = [0, 64], sizes = [8, 32], strides = [1, 1]} : vector<8x96xf32> to vector<8x32xf32>
    %289 = arith.mulf %278, %288 : vector<8x32xf32>
    %290 = arith.addf %287, %289 : vector<8x32xf32>
    %291 = math.tanh %290 : vector<8x32xf32>
    %cst_84 = arith.constant 1.000000e+00 : f32
    %292 = vector.broadcast %cst_84 : f32 to vector<8x32xf32>
    %293 = arith.subf %292, %286 : vector<8x32xf32>
    %294 = arith.mulf %293, %291 : vector<8x32xf32>
    %295 = arith.mulf %286, %215 : vector<8x32xf32>
    %296 = arith.addf %294, %295 : vector<8x32xf32>
    %297 = vector.shape_cast %296 : vector<8x32xf32> to vector<1x8x32xf32>
    %298 = vector.broadcast %297 : vector<1x8x32xf32> to vector<16x8x32xf32>
    %299 = arith.mulf %11, %298 : vector<16x8x32xf32>
    %cst_85 = arith.constant dense<0.000000e+00> : vector<16x8xf32>
    %300 = vector.multi_reduction <add>, %299, %cst_85 [2] : vector<16x8x32xf32> to vector<16x8xf32>
    %301 = vector.shape_cast %300 : vector<16x8xf32> to vector<16x8x1xf32>
    %cst_86 = arith.constant dense<0xFF800000> : vector<8x1xf32>
    %302 = vector.multi_reduction <maximumf>, %301, %cst_86 [0] : vector<16x8x1xf32> to vector<8x1xf32>
    %303 = vector.shape_cast %302 : vector<8x1xf32> to vector<1x8x1xf32>
    %304 = vector.broadcast %303 : vector<1x8x1xf32> to vector<16x8x1xf32>
    %305 = arith.subf %301, %304 : vector<16x8x1xf32>
    %306 = math.exp %305 : vector<16x8x1xf32>
    %cst_87 = arith.constant dense<0.000000e+00> : vector<8x1xf32>
    %307 = vector.multi_reduction <add>, %306, %cst_87 [0] : vector<16x8x1xf32> to vector<8x1xf32>
    %308 = vector.shape_cast %307 : vector<8x1xf32> to vector<1x8x1xf32>
    %309 = tpu.reciprocal %308 {approx = true} : vector<1x8x1xf32> -> vector<1x8x1xf32>
    %310 = vector.broadcast %309 : vector<1x8x1xf32> to vector<16x8x1xf32>
    %311 = arith.mulf %306, %310 : vector<16x8x1xf32>
    %312 = vector.broadcast %311 : vector<16x8x1xf32> to vector<16x8x32xf32>
    %313 = arith.mulf %312, %11 : vector<16x8x32xf32>
    %cst_88 = arith.constant dense<0.000000e+00> : vector<8x32xf32>
    %314 = vector.multi_reduction <add>, %313, %cst_88 [0] : vector<16x8x32xf32> to vector<8x32xf32>
    %315 = arith.truncf %296 : vector<8x32xf32> to vector<8x32xbf16>
    %cst_89 = arith.constant dense<0.000000e+00> : vector<8x32xf32>
    %316 = tpu.matmul %315, %5, %cst_89 {dimension_numbers = #tpu.dot_dimension_numbers<[1], [0], [0], [1], [0, 0, 1, 1], [], []>} : vector<8x32xbf16>, vector<32x32xbf16>, vector<8x32xf32> -> vector<8x32xf32>
    %317 = arith.truncf %314 : vector<8x32xf32> to vector<8x32xbf16>
    %cst_90 = arith.constant dense<0.000000e+00> : vector<8x32xf32>
    %318 = tpu.matmul %317, %6, %cst_90 {dimension_numbers = #tpu.dot_dimension_numbers<[1], [0], [0], [1], [0, 0, 1, 1], [], []>} : vector<8x32xbf16>, vector<32x32xbf16>, vector<8x32xf32> -> vector<8x32xf32>
    %319 = arith.addf %316, %318 : vector<8x32xf32>
    %320 = vector.broadcast %7 : vector<1x32xf32> to vector<8x32xf32>
    %321 = arith.addf %319, %320 : vector<8x32xf32>
    %322 = math.tanh %321 : vector<8x32xf32>
    %323 = arith.truncf %322 : vector<8x32xf32> to vector<8x32xbf16>
    %cst_91 = arith.constant dense<0.000000e+00> : vector<8x16xf32>
    %324 = tpu.matmul %323, %8, %cst_91 {dimension_numbers = #tpu.dot_dimension_numbers<[1], [0], [0], [1], [0, 0, 1, 1], [], []>} : vector<8x32xbf16>, vector<32x16xbf16>, vector<8x16xf32> -> vector<8x16xf32>
    %325 = vector.broadcast %9 : vector<1x16xf32> to vector<8x16xf32>
    %326 = arith.addf %324, %325 : vector<8x16xf32>
    %cst_92 = arith.constant dense<0xFF800000> : vector<8xf32>
    %327 = vector.multi_reduction <maximumf>, %326, %cst_92 [1] : vector<8x16xf32> to vector<8xf32>
    %328 = vector.shape_cast %327 : vector<8xf32> to vector<8x1xf32>
    %329 = vector.broadcast %328 : vector<8x1xf32> to vector<8x16xf32>
    %330 = arith.subf %326, %329 : vector<8x16xf32>
    %331 = math.exp %330 : vector<8x16xf32>
    %cst_93 = arith.constant dense<0.000000e+00> : vector<8xf32>
    %332 = vector.multi_reduction <add>, %331, %cst_93 [1] : vector<8x16xf32> to vector<8xf32>
    %333 = vector.shape_cast %332 : vector<8xf32> to vector<8x1xf32>
    %334 = math.log %333 : vector<8x1xf32>
    %335 = arith.addf %334, %328 : vector<8x1xf32>
    %c0_94 = arith.constant 0 : index
    %c3 = arith.constant 3 : index
    %336 = vector.load %arg3[%c0_94, %c3] : memref<8x8xi32, #tpu.memory_space<vmem>>, vector<8x1xi32>
    %337 = vector.broadcast %336 : vector<8x1xi32> to vector<8x16xi32>
    %338 = arith.cmpi eq, %20, %337 : vector<8x16xi32>
    %cst_95 = arith.constant 0.000000e+00 : f32
    %339 = vector.broadcast %cst_95 : f32 to vector<8x16xf32>
    %340 = arith.select %338, %326, %339 : vector<8x16xi1>, vector<8x16xf32>
    %cst_96 = arith.constant dense<0.000000e+00> : vector<8xf32>
    %341 = vector.multi_reduction <add>, %340, %cst_96 [1] : vector<8x16xf32> to vector<8xf32>
    %342 = vector.shape_cast %341 : vector<8xf32> to vector<8x1xf32>
    %343 = arith.subf %335, %342 : vector<8x1xf32>
    %c0_97 = arith.constant 0 : index
    %c3_98 = arith.constant 3 : index
    %344 = vector.load %arg4[%c0_97, %c3_98] : memref<8x8xf32, #tpu.memory_space<vmem>>, vector<8x1xf32>
    %345 = arith.mulf %343, %344 : vector<8x1xf32>
    %346 = vector.extract_strided_slice %19 {offsets = [4, 0, 0], sizes = [1, 8, 96], strides = [1, 1, 1]} : vector<8x8x96xf32> to vector<1x8x96xf32>
    %347 = vector.shape_cast %346 : vector<1x8x96xf32> to vector<8x96xf32>
    %348 = arith.truncf %296 : vector<8x32xf32> to vector<8x32xbf16>
    %cst_99 = arith.constant dense<0.000000e+00> : vector<8x96xf32>
    %349 = tpu.matmul %348, %3, %cst_99 {dimension_numbers = #tpu.dot_dimension_numbers<[1], [0], [0], [1], [0, 0, 1, 1], [], []>} : vector<8x32xbf16>, vector<32x96xbf16>, vector<8x96xf32> -> vector<8x96xf32>
    %350 = vector.broadcast %4 : vector<1x96xf32> to vector<8x96xf32>
    %351 = arith.addf %349, %350 : vector<8x96xf32>
    %352 = vector.extract_strided_slice %347 {offsets = [0, 0], sizes = [8, 32], strides = [1, 1]} : vector<8x96xf32> to vector<8x32xf32>
    %353 = vector.extract_strided_slice %351 {offsets = [0, 0], sizes = [8, 32], strides = [1, 1]} : vector<8x96xf32> to vector<8x32xf32>
    %354 = arith.addf %352, %353 : vector<8x32xf32>
    %355 = arith.negf %354 : vector<8x32xf32>
    %356 = math.exp %355 : vector<8x32xf32>
    %cst_100 = arith.constant 1.000000e+00 : f32
    %357 = vector.broadcast %cst_100 : f32 to vector<8x32xf32>
    %358 = arith.addf %357, %356 : vector<8x32xf32>
    %359 = arith.divf %357, %358 : vector<8x32xf32>
    %360 = vector.extract_strided_slice %347 {offsets = [0, 32], sizes = [8, 32], strides = [1, 1]} : vector<8x96xf32> to vector<8x32xf32>
    %361 = vector.extract_strided_slice %351 {offsets = [0, 32], sizes = [8, 32], strides = [1, 1]} : vector<8x96xf32> to vector<8x32xf32>
    %362 = arith.addf %360, %361 : vector<8x32xf32>
    %363 = arith.negf %362 : vector<8x32xf32>
    %364 = math.exp %363 : vector<8x32xf32>
    %cst_101 = arith.constant 1.000000e+00 : f32
    %365 = vector.broadcast %cst_101 : f32 to vector<8x32xf32>
    %366 = arith.addf %365, %364 : vector<8x32xf32>
    %367 = arith.divf %365, %366 : vector<8x32xf32>
    %368 = vector.extract_strided_slice %347 {offsets = [0, 64], sizes = [8, 32], strides = [1, 1]} : vector<8x96xf32> to vector<8x32xf32>
    %369 = vector.extract_strided_slice %351 {offsets = [0, 64], sizes = [8, 32], strides = [1, 1]} : vector<8x96xf32> to vector<8x32xf32>
    %370 = arith.mulf %359, %369 : vector<8x32xf32>
    %371 = arith.addf %368, %370 : vector<8x32xf32>
    %372 = math.tanh %371 : vector<8x32xf32>
    %cst_102 = arith.constant 1.000000e+00 : f32
    %373 = vector.broadcast %cst_102 : f32 to vector<8x32xf32>
    %374 = arith.subf %373, %367 : vector<8x32xf32>
    %375 = arith.mulf %374, %372 : vector<8x32xf32>
    %376 = arith.mulf %367, %296 : vector<8x32xf32>
    %377 = arith.addf %375, %376 : vector<8x32xf32>
    %378 = vector.shape_cast %377 : vector<8x32xf32> to vector<1x8x32xf32>
    %379 = vector.broadcast %378 : vector<1x8x32xf32> to vector<16x8x32xf32>
    %380 = arith.mulf %11, %379 : vector<16x8x32xf32>
    %cst_103 = arith.constant dense<0.000000e+00> : vector<16x8xf32>
    %381 = vector.multi_reduction <add>, %380, %cst_103 [2] : vector<16x8x32xf32> to vector<16x8xf32>
    %382 = vector.shape_cast %381 : vector<16x8xf32> to vector<16x8x1xf32>
    %cst_104 = arith.constant dense<0xFF800000> : vector<8x1xf32>
    %383 = vector.multi_reduction <maximumf>, %382, %cst_104 [0] : vector<16x8x1xf32> to vector<8x1xf32>
    %384 = vector.shape_cast %383 : vector<8x1xf32> to vector<1x8x1xf32>
    %385 = vector.broadcast %384 : vector<1x8x1xf32> to vector<16x8x1xf32>
    %386 = arith.subf %382, %385 : vector<16x8x1xf32>
    %387 = math.exp %386 : vector<16x8x1xf32>
    %cst_105 = arith.constant dense<0.000000e+00> : vector<8x1xf32>
    %388 = vector.multi_reduction <add>, %387, %cst_105 [0] : vector<16x8x1xf32> to vector<8x1xf32>
    %389 = vector.shape_cast %388 : vector<8x1xf32> to vector<1x8x1xf32>
    %390 = tpu.reciprocal %389 {approx = true} : vector<1x8x1xf32> -> vector<1x8x1xf32>
    %391 = vector.broadcast %390 : vector<1x8x1xf32> to vector<16x8x1xf32>
    %392 = arith.mulf %387, %391 : vector<16x8x1xf32>
    %393 = vector.broadcast %392 : vector<16x8x1xf32> to vector<16x8x32xf32>
    %394 = arith.mulf %393, %11 : vector<16x8x32xf32>
    %cst_106 = arith.constant dense<0.000000e+00> : vector<8x32xf32>
    %395 = vector.multi_reduction <add>, %394, %cst_106 [0] : vector<16x8x32xf32> to vector<8x32xf32>
    %396 = arith.truncf %377 : vector<8x32xf32> to vector<8x32xbf16>
    %cst_107 = arith.constant dense<0.000000e+00> : vector<8x32xf32>
    %397 = tpu.matmul %396, %5, %cst_107 {dimension_numbers = #tpu.dot_dimension_numbers<[1], [0], [0], [1], [0, 0, 1, 1], [], []>} : vector<8x32xbf16>, vector<32x32xbf16>, vector<8x32xf32> -> vector<8x32xf32>
    %398 = arith.truncf %395 : vector<8x32xf32> to vector<8x32xbf16>
    %cst_108 = arith.constant dense<0.000000e+00> : vector<8x32xf32>
    %399 = tpu.matmul %398, %6, %cst_108 {dimension_numbers = #tpu.dot_dimension_numbers<[1], [0], [0], [1], [0, 0, 1, 1], [], []>} : vector<8x32xbf16>, vector<32x32xbf16>, vector<8x32xf32> -> vector<8x32xf32>
    %400 = arith.addf %397, %399 : vector<8x32xf32>
    %401 = vector.broadcast %7 : vector<1x32xf32> to vector<8x32xf32>
    %402 = arith.addf %400, %401 : vector<8x32xf32>
    %403 = math.tanh %402 : vector<8x32xf32>
    %404 = arith.truncf %403 : vector<8x32xf32> to vector<8x32xbf16>
    %cst_109 = arith.constant dense<0.000000e+00> : vector<8x16xf32>
    %405 = tpu.matmul %404, %8, %cst_109 {dimension_numbers = #tpu.dot_dimension_numbers<[1], [0], [0], [1], [0, 0, 1, 1], [], []>} : vector<8x32xbf16>, vector<32x16xbf16>, vector<8x16xf32> -> vector<8x16xf32>
    %406 = vector.broadcast %9 : vector<1x16xf32> to vector<8x16xf32>
    %407 = arith.addf %405, %406 : vector<8x16xf32>
    %cst_110 = arith.constant dense<0xFF800000> : vector<8xf32>
    %408 = vector.multi_reduction <maximumf>, %407, %cst_110 [1] : vector<8x16xf32> to vector<8xf32>
    %409 = vector.shape_cast %408 : vector<8xf32> to vector<8x1xf32>
    %410 = vector.broadcast %409 : vector<8x1xf32> to vector<8x16xf32>
    %411 = arith.subf %407, %410 : vector<8x16xf32>
    %412 = math.exp %411 : vector<8x16xf32>
    %cst_111 = arith.constant dense<0.000000e+00> : vector<8xf32>
    %413 = vector.multi_reduction <add>, %412, %cst_111 [1] : vector<8x16xf32> to vector<8xf32>
    %414 = vector.shape_cast %413 : vector<8xf32> to vector<8x1xf32>
    %415 = math.log %414 : vector<8x1xf32>
    %416 = arith.addf %415, %409 : vector<8x1xf32>
    %c0_112 = arith.constant 0 : index
    %c4 = arith.constant 4 : index
    %417 = vector.load %arg3[%c0_112, %c4] : memref<8x8xi32, #tpu.memory_space<vmem>>, vector<8x1xi32>
    %418 = vector.broadcast %417 : vector<8x1xi32> to vector<8x16xi32>
    %419 = arith.cmpi eq, %20, %418 : vector<8x16xi32>
    %cst_113 = arith.constant 0.000000e+00 : f32
    %420 = vector.broadcast %cst_113 : f32 to vector<8x16xf32>
    %421 = arith.select %419, %407, %420 : vector<8x16xi1>, vector<8x16xf32>
    %cst_114 = arith.constant dense<0.000000e+00> : vector<8xf32>
    %422 = vector.multi_reduction <add>, %421, %cst_114 [1] : vector<8x16xf32> to vector<8xf32>
    %423 = vector.shape_cast %422 : vector<8xf32> to vector<8x1xf32>
    %424 = arith.subf %416, %423 : vector<8x1xf32>
    %c0_115 = arith.constant 0 : index
    %c4_116 = arith.constant 4 : index
    %425 = vector.load %arg4[%c0_115, %c4_116] : memref<8x8xf32, #tpu.memory_space<vmem>>, vector<8x1xf32>
    %426 = arith.mulf %424, %425 : vector<8x1xf32>
    %427 = vector.extract_strided_slice %19 {offsets = [5, 0, 0], sizes = [1, 8, 96], strides = [1, 1, 1]} : vector<8x8x96xf32> to vector<1x8x96xf32>
    %428 = vector.shape_cast %427 : vector<1x8x96xf32> to vector<8x96xf32>
    %429 = arith.truncf %377 : vector<8x32xf32> to vector<8x32xbf16>
    %cst_117 = arith.constant dense<0.000000e+00> : vector<8x96xf32>
    %430 = tpu.matmul %429, %3, %cst_117 {dimension_numbers = #tpu.dot_dimension_numbers<[1], [0], [0], [1], [0, 0, 1, 1], [], []>} : vector<8x32xbf16>, vector<32x96xbf16>, vector<8x96xf32> -> vector<8x96xf32>
    %431 = vector.broadcast %4 : vector<1x96xf32> to vector<8x96xf32>
    %432 = arith.addf %430, %431 : vector<8x96xf32>
    %433 = vector.extract_strided_slice %428 {offsets = [0, 0], sizes = [8, 32], strides = [1, 1]} : vector<8x96xf32> to vector<8x32xf32>
    %434 = vector.extract_strided_slice %432 {offsets = [0, 0], sizes = [8, 32], strides = [1, 1]} : vector<8x96xf32> to vector<8x32xf32>
    %435 = arith.addf %433, %434 : vector<8x32xf32>
    %436 = arith.negf %435 : vector<8x32xf32>
    %437 = math.exp %436 : vector<8x32xf32>
    %cst_118 = arith.constant 1.000000e+00 : f32
    %438 = vector.broadcast %cst_118 : f32 to vector<8x32xf32>
    %439 = arith.addf %438, %437 : vector<8x32xf32>
    %440 = arith.divf %438, %439 : vector<8x32xf32>
    %441 = vector.extract_strided_slice %428 {offsets = [0, 32], sizes = [8, 32], strides = [1, 1]} : vector<8x96xf32> to vector<8x32xf32>
    %442 = vector.extract_strided_slice %432 {offsets = [0, 32], sizes = [8, 32], strides = [1, 1]} : vector<8x96xf32> to vector<8x32xf32>
    %443 = arith.addf %441, %442 : vector<8x32xf32>
    %444 = arith.negf %443 : vector<8x32xf32>
    %445 = math.exp %444 : vector<8x32xf32>
    %cst_119 = arith.constant 1.000000e+00 : f32
    %446 = vector.broadcast %cst_119 : f32 to vector<8x32xf32>
    %447 = arith.addf %446, %445 : vector<8x32xf32>
    %448 = arith.divf %446, %447 : vector<8x32xf32>
    %449 = vector.extract_strided_slice %428 {offsets = [0, 64], sizes = [8, 32], strides = [1, 1]} : vector<8x96xf32> to vector<8x32xf32>
    %450 = vector.extract_strided_slice %432 {offsets = [0, 64], sizes = [8, 32], strides = [1, 1]} : vector<8x96xf32> to vector<8x32xf32>
    %451 = arith.mulf %440, %450 : vector<8x32xf32>
    %452 = arith.addf %449, %451 : vector<8x32xf32>
    %453 = math.tanh %452 : vector<8x32xf32>
    %cst_120 = arith.constant 1.000000e+00 : f32
    %454 = vector.broadcast %cst_120 : f32 to vector<8x32xf32>
    %455 = arith.subf %454, %448 : vector<8x32xf32>
    %456 = arith.mulf %455, %453 : vector<8x32xf32>
    %457 = arith.mulf %448, %377 : vector<8x32xf32>
    %458 = arith.addf %456, %457 : vector<8x32xf32>
    %459 = vector.shape_cast %458 : vector<8x32xf32> to vector<1x8x32xf32>
    %460 = vector.broadcast %459 : vector<1x8x32xf32> to vector<16x8x32xf32>
    %461 = arith.mulf %11, %460 : vector<16x8x32xf32>
    %cst_121 = arith.constant dense<0.000000e+00> : vector<16x8xf32>
    %462 = vector.multi_reduction <add>, %461, %cst_121 [2] : vector<16x8x32xf32> to vector<16x8xf32>
    %463 = vector.shape_cast %462 : vector<16x8xf32> to vector<16x8x1xf32>
    %cst_122 = arith.constant dense<0xFF800000> : vector<8x1xf32>
    %464 = vector.multi_reduction <maximumf>, %463, %cst_122 [0] : vector<16x8x1xf32> to vector<8x1xf32>
    %465 = vector.shape_cast %464 : vector<8x1xf32> to vector<1x8x1xf32>
    %466 = vector.broadcast %465 : vector<1x8x1xf32> to vector<16x8x1xf32>
    %467 = arith.subf %463, %466 : vector<16x8x1xf32>
    %468 = math.exp %467 : vector<16x8x1xf32>
    %cst_123 = arith.constant dense<0.000000e+00> : vector<8x1xf32>
    %469 = vector.multi_reduction <add>, %468, %cst_123 [0] : vector<16x8x1xf32> to vector<8x1xf32>
    %470 = vector.shape_cast %469 : vector<8x1xf32> to vector<1x8x1xf32>
    %471 = tpu.reciprocal %470 {approx = true} : vector<1x8x1xf32> -> vector<1x8x1xf32>
    %472 = vector.broadcast %471 : vector<1x8x1xf32> to vector<16x8x1xf32>
    %473 = arith.mulf %468, %472 : vector<16x8x1xf32>
    %474 = vector.broadcast %473 : vector<16x8x1xf32> to vector<16x8x32xf32>
    %475 = arith.mulf %474, %11 : vector<16x8x32xf32>
    %cst_124 = arith.constant dense<0.000000e+00> : vector<8x32xf32>
    %476 = vector.multi_reduction <add>, %475, %cst_124 [0] : vector<16x8x32xf32> to vector<8x32xf32>
    %477 = arith.truncf %458 : vector<8x32xf32> to vector<8x32xbf16>
    %cst_125 = arith.constant dense<0.000000e+00> : vector<8x32xf32>
    %478 = tpu.matmul %477, %5, %cst_125 {dimension_numbers = #tpu.dot_dimension_numbers<[1], [0], [0], [1], [0, 0, 1, 1], [], []>} : vector<8x32xbf16>, vector<32x32xbf16>, vector<8x32xf32> -> vector<8x32xf32>
    %479 = arith.truncf %476 : vector<8x32xf32> to vector<8x32xbf16>
    %cst_126 = arith.constant dense<0.000000e+00> : vector<8x32xf32>
    %480 = tpu.matmul %479, %6, %cst_126 {dimension_numbers = #tpu.dot_dimension_numbers<[1], [0], [0], [1], [0, 0, 1, 1], [], []>} : vector<8x32xbf16>, vector<32x32xbf16>, vector<8x32xf32> -> vector<8x32xf32>
    %481 = arith.addf %478, %480 : vector<8x32xf32>
    %482 = vector.broadcast %7 : vector<1x32xf32> to vector<8x32xf32>
    %483 = arith.addf %481, %482 : vector<8x32xf32>
    %484 = math.tanh %483 : vector<8x32xf32>
    %485 = arith.truncf %484 : vector<8x32xf32> to vector<8x32xbf16>
    %cst_127 = arith.constant dense<0.000000e+00> : vector<8x16xf32>
    %486 = tpu.matmul %485, %8, %cst_127 {dimension_numbers = #tpu.dot_dimension_numbers<[1], [0], [0], [1], [0, 0, 1, 1], [], []>} : vector<8x32xbf16>, vector<32x16xbf16>, vector<8x16xf32> -> vector<8x16xf32>
    %487 = vector.broadcast %9 : vector<1x16xf32> to vector<8x16xf32>
    %488 = arith.addf %486, %487 : vector<8x16xf32>
    %cst_128 = arith.constant dense<0xFF800000> : vector<8xf32>
    %489 = vector.multi_reduction <maximumf>, %488, %cst_128 [1] : vector<8x16xf32> to vector<8xf32>
    %490 = vector.shape_cast %489 : vector<8xf32> to vector<8x1xf32>
    %491 = vector.broadcast %490 : vector<8x1xf32> to vector<8x16xf32>
    %492 = arith.subf %488, %491 : vector<8x16xf32>
    %493 = math.exp %492 : vector<8x16xf32>
    %cst_129 = arith.constant dense<0.000000e+00> : vector<8xf32>
    %494 = vector.multi_reduction <add>, %493, %cst_129 [1] : vector<8x16xf32> to vector<8xf32>
    %495 = vector.shape_cast %494 : vector<8xf32> to vector<8x1xf32>
    %496 = math.log %495 : vector<8x1xf32>
    %497 = arith.addf %496, %490 : vector<8x1xf32>
    %c0_130 = arith.constant 0 : index
    %c5 = arith.constant 5 : index
    %498 = vector.load %arg3[%c0_130, %c5] : memref<8x8xi32, #tpu.memory_space<vmem>>, vector<8x1xi32>
    %499 = vector.broadcast %498 : vector<8x1xi32> to vector<8x16xi32>
    %500 = arith.cmpi eq, %20, %499 : vector<8x16xi32>
    %cst_131 = arith.constant 0.000000e+00 : f32
    %501 = vector.broadcast %cst_131 : f32 to vector<8x16xf32>
    %502 = arith.select %500, %488, %501 : vector<8x16xi1>, vector<8x16xf32>
    %cst_132 = arith.constant dense<0.000000e+00> : vector<8xf32>
    %503 = vector.multi_reduction <add>, %502, %cst_132 [1] : vector<8x16xf32> to vector<8xf32>
    %504 = vector.shape_cast %503 : vector<8xf32> to vector<8x1xf32>
    %505 = arith.subf %497, %504 : vector<8x1xf32>
    %c0_133 = arith.constant 0 : index
    %c5_134 = arith.constant 5 : index
    %506 = vector.load %arg4[%c0_133, %c5_134] : memref<8x8xf32, #tpu.memory_space<vmem>>, vector<8x1xf32>
    %507 = arith.mulf %505, %506 : vector<8x1xf32>
    %508 = vector.extract_strided_slice %19 {offsets = [6, 0, 0], sizes = [1, 8, 96], strides = [1, 1, 1]} : vector<8x8x96xf32> to vector<1x8x96xf32>
    %509 = vector.shape_cast %508 : vector<1x8x96xf32> to vector<8x96xf32>
    %510 = arith.truncf %458 : vector<8x32xf32> to vector<8x32xbf16>
    %cst_135 = arith.constant dense<0.000000e+00> : vector<8x96xf32>
    %511 = tpu.matmul %510, %3, %cst_135 {dimension_numbers = #tpu.dot_dimension_numbers<[1], [0], [0], [1], [0, 0, 1, 1], [], []>} : vector<8x32xbf16>, vector<32x96xbf16>, vector<8x96xf32> -> vector<8x96xf32>
    %512 = vector.broadcast %4 : vector<1x96xf32> to vector<8x96xf32>
    %513 = arith.addf %511, %512 : vector<8x96xf32>
    %514 = vector.extract_strided_slice %509 {offsets = [0, 0], sizes = [8, 32], strides = [1, 1]} : vector<8x96xf32> to vector<8x32xf32>
    %515 = vector.extract_strided_slice %513 {offsets = [0, 0], sizes = [8, 32], strides = [1, 1]} : vector<8x96xf32> to vector<8x32xf32>
    %516 = arith.addf %514, %515 : vector<8x32xf32>
    %517 = arith.negf %516 : vector<8x32xf32>
    %518 = math.exp %517 : vector<8x32xf32>
    %cst_136 = arith.constant 1.000000e+00 : f32
    %519 = vector.broadcast %cst_136 : f32 to vector<8x32xf32>
    %520 = arith.addf %519, %518 : vector<8x32xf32>
    %521 = arith.divf %519, %520 : vector<8x32xf32>
    %522 = vector.extract_strided_slice %509 {offsets = [0, 32], sizes = [8, 32], strides = [1, 1]} : vector<8x96xf32> to vector<8x32xf32>
    %523 = vector.extract_strided_slice %513 {offsets = [0, 32], sizes = [8, 32], strides = [1, 1]} : vector<8x96xf32> to vector<8x32xf32>
    %524 = arith.addf %522, %523 : vector<8x32xf32>
    %525 = arith.negf %524 : vector<8x32xf32>
    %526 = math.exp %525 : vector<8x32xf32>
    %cst_137 = arith.constant 1.000000e+00 : f32
    %527 = vector.broadcast %cst_137 : f32 to vector<8x32xf32>
    %528 = arith.addf %527, %526 : vector<8x32xf32>
    %529 = arith.divf %527, %528 : vector<8x32xf32>
    %530 = vector.extract_strided_slice %509 {offsets = [0, 64], sizes = [8, 32], strides = [1, 1]} : vector<8x96xf32> to vector<8x32xf32>
    %531 = vector.extract_strided_slice %513 {offsets = [0, 64], sizes = [8, 32], strides = [1, 1]} : vector<8x96xf32> to vector<8x32xf32>
    %532 = arith.mulf %521, %531 : vector<8x32xf32>
    %533 = arith.addf %530, %532 : vector<8x32xf32>
    %534 = math.tanh %533 : vector<8x32xf32>
    %cst_138 = arith.constant 1.000000e+00 : f32
    %535 = vector.broadcast %cst_138 : f32 to vector<8x32xf32>
    %536 = arith.subf %535, %529 : vector<8x32xf32>
    %537 = arith.mulf %536, %534 : vector<8x32xf32>
    %538 = arith.mulf %529, %458 : vector<8x32xf32>
    %539 = arith.addf %537, %538 : vector<8x32xf32>
    %540 = vector.shape_cast %539 : vector<8x32xf32> to vector<1x8x32xf32>
    %541 = vector.broadcast %540 : vector<1x8x32xf32> to vector<16x8x32xf32>
    %542 = arith.mulf %11, %541 : vector<16x8x32xf32>
    %cst_139 = arith.constant dense<0.000000e+00> : vector<16x8xf32>
    %543 = vector.multi_reduction <add>, %542, %cst_139 [2] : vector<16x8x32xf32> to vector<16x8xf32>
    %544 = vector.shape_cast %543 : vector<16x8xf32> to vector<16x8x1xf32>
    %cst_140 = arith.constant dense<0xFF800000> : vector<8x1xf32>
    %545 = vector.multi_reduction <maximumf>, %544, %cst_140 [0] : vector<16x8x1xf32> to vector<8x1xf32>
    %546 = vector.shape_cast %545 : vector<8x1xf32> to vector<1x8x1xf32>
    %547 = vector.broadcast %546 : vector<1x8x1xf32> to vector<16x8x1xf32>
    %548 = arith.subf %544, %547 : vector<16x8x1xf32>
    %549 = math.exp %548 : vector<16x8x1xf32>
    %cst_141 = arith.constant dense<0.000000e+00> : vector<8x1xf32>
    %550 = vector.multi_reduction <add>, %549, %cst_141 [0] : vector<16x8x1xf32> to vector<8x1xf32>
    %551 = vector.shape_cast %550 : vector<8x1xf32> to vector<1x8x1xf32>
    %552 = tpu.reciprocal %551 {approx = true} : vector<1x8x1xf32> -> vector<1x8x1xf32>
    %553 = vector.broadcast %552 : vector<1x8x1xf32> to vector<16x8x1xf32>
    %554 = arith.mulf %549, %553 : vector<16x8x1xf32>
    %555 = vector.broadcast %554 : vector<16x8x1xf32> to vector<16x8x32xf32>
    %556 = arith.mulf %555, %11 : vector<16x8x32xf32>
    %cst_142 = arith.constant dense<0.000000e+00> : vector<8x32xf32>
    %557 = vector.multi_reduction <add>, %556, %cst_142 [0] : vector<16x8x32xf32> to vector<8x32xf32>
    %558 = arith.truncf %539 : vector<8x32xf32> to vector<8x32xbf16>
    %cst_143 = arith.constant dense<0.000000e+00> : vector<8x32xf32>
    %559 = tpu.matmul %558, %5, %cst_143 {dimension_numbers = #tpu.dot_dimension_numbers<[1], [0], [0], [1], [0, 0, 1, 1], [], []>} : vector<8x32xbf16>, vector<32x32xbf16>, vector<8x32xf32> -> vector<8x32xf32>
    %560 = arith.truncf %557 : vector<8x32xf32> to vector<8x32xbf16>
    %cst_144 = arith.constant dense<0.000000e+00> : vector<8x32xf32>
    %561 = tpu.matmul %560, %6, %cst_144 {dimension_numbers = #tpu.dot_dimension_numbers<[1], [0], [0], [1], [0, 0, 1, 1], [], []>} : vector<8x32xbf16>, vector<32x32xbf16>, vector<8x32xf32> -> vector<8x32xf32>
    %562 = arith.addf %559, %561 : vector<8x32xf32>
    %563 = vector.broadcast %7 : vector<1x32xf32> to vector<8x32xf32>
    %564 = arith.addf %562, %563 : vector<8x32xf32>
    %565 = math.tanh %564 : vector<8x32xf32>
    %566 = arith.truncf %565 : vector<8x32xf32> to vector<8x32xbf16>
    %cst_145 = arith.constant dense<0.000000e+00> : vector<8x16xf32>
    %567 = tpu.matmul %566, %8, %cst_145 {dimension_numbers = #tpu.dot_dimension_numbers<[1], [0], [0], [1], [0, 0, 1, 1], [], []>} : vector<8x32xbf16>, vector<32x16xbf16>, vector<8x16xf32> -> vector<8x16xf32>
    %568 = vector.broadcast %9 : vector<1x16xf32> to vector<8x16xf32>
    %569 = arith.addf %567, %568 : vector<8x16xf32>
    %cst_146 = arith.constant dense<0xFF800000> : vector<8xf32>
    %570 = vector.multi_reduction <maximumf>, %569, %cst_146 [1] : vector<8x16xf32> to vector<8xf32>
    %571 = vector.shape_cast %570 : vector<8xf32> to vector<8x1xf32>
    %572 = vector.broadcast %571 : vector<8x1xf32> to vector<8x16xf32>
    %573 = arith.subf %569, %572 : vector<8x16xf32>
    %574 = math.exp %573 : vector<8x16xf32>
    %cst_147 = arith.constant dense<0.000000e+00> : vector<8xf32>
    %575 = vector.multi_reduction <add>, %574, %cst_147 [1] : vector<8x16xf32> to vector<8xf32>
    %576 = vector.shape_cast %575 : vector<8xf32> to vector<8x1xf32>
    %577 = math.log %576 : vector<8x1xf32>
    %578 = arith.addf %577, %571 : vector<8x1xf32>
    %c0_148 = arith.constant 0 : index
    %c6 = arith.constant 6 : index
    %579 = vector.load %arg3[%c0_148, %c6] : memref<8x8xi32, #tpu.memory_space<vmem>>, vector<8x1xi32>
    %580 = vector.broadcast %579 : vector<8x1xi32> to vector<8x16xi32>
    %581 = arith.cmpi eq, %20, %580 : vector<8x16xi32>
    %cst_149 = arith.constant 0.000000e+00 : f32
    %582 = vector.broadcast %cst_149 : f32 to vector<8x16xf32>
    %583 = arith.select %581, %569, %582 : vector<8x16xi1>, vector<8x16xf32>
    %cst_150 = arith.constant dense<0.000000e+00> : vector<8xf32>
    %584 = vector.multi_reduction <add>, %583, %cst_150 [1] : vector<8x16xf32> to vector<8xf32>
    %585 = vector.shape_cast %584 : vector<8xf32> to vector<8x1xf32>
    %586 = arith.subf %578, %585 : vector<8x1xf32>
    %c0_151 = arith.constant 0 : index
    %c6_152 = arith.constant 6 : index
    %587 = vector.load %arg4[%c0_151, %c6_152] : memref<8x8xf32, #tpu.memory_space<vmem>>, vector<8x1xf32>
    %588 = arith.mulf %586, %587 : vector<8x1xf32>
    %589 = vector.extract_strided_slice %19 {offsets = [7, 0, 0], sizes = [1, 8, 96], strides = [1, 1, 1]} : vector<8x8x96xf32> to vector<1x8x96xf32>
    %590 = vector.shape_cast %589 : vector<1x8x96xf32> to vector<8x96xf32>
    %591 = arith.truncf %539 : vector<8x32xf32> to vector<8x32xbf16>
    %cst_153 = arith.constant dense<0.000000e+00> : vector<8x96xf32>
    %592 = tpu.matmul %591, %3, %cst_153 {dimension_numbers = #tpu.dot_dimension_numbers<[1], [0], [0], [1], [0, 0, 1, 1], [], []>} : vector<8x32xbf16>, vector<32x96xbf16>, vector<8x96xf32> -> vector<8x96xf32>
    %593 = vector.broadcast %4 : vector<1x96xf32> to vector<8x96xf32>
    %594 = arith.addf %592, %593 : vector<8x96xf32>
    %595 = vector.extract_strided_slice %590 {offsets = [0, 0], sizes = [8, 32], strides = [1, 1]} : vector<8x96xf32> to vector<8x32xf32>
    %596 = vector.extract_strided_slice %594 {offsets = [0, 0], sizes = [8, 32], strides = [1, 1]} : vector<8x96xf32> to vector<8x32xf32>
    %597 = arith.addf %595, %596 : vector<8x32xf32>
    %598 = arith.negf %597 : vector<8x32xf32>
    %599 = math.exp %598 : vector<8x32xf32>
    %cst_154 = arith.constant 1.000000e+00 : f32
    %600 = vector.broadcast %cst_154 : f32 to vector<8x32xf32>
    %601 = arith.addf %600, %599 : vector<8x32xf32>
    %602 = arith.divf %600, %601 : vector<8x32xf32>
    %603 = vector.extract_strided_slice %590 {offsets = [0, 32], sizes = [8, 32], strides = [1, 1]} : vector<8x96xf32> to vector<8x32xf32>
    %604 = vector.extract_strided_slice %594 {offsets = [0, 32], sizes = [8, 32], strides = [1, 1]} : vector<8x96xf32> to vector<8x32xf32>
    %605 = arith.addf %603, %604 : vector<8x32xf32>
    %606 = arith.negf %605 : vector<8x32xf32>
    %607 = math.exp %606 : vector<8x32xf32>
    %cst_155 = arith.constant 1.000000e+00 : f32
    %608 = vector.broadcast %cst_155 : f32 to vector<8x32xf32>
    %609 = arith.addf %608, %607 : vector<8x32xf32>
    %610 = arith.divf %608, %609 : vector<8x32xf32>
    %611 = vector.extract_strided_slice %590 {offsets = [0, 64], sizes = [8, 32], strides = [1, 1]} : vector<8x96xf32> to vector<8x32xf32>
    %612 = vector.extract_strided_slice %594 {offsets = [0, 64], sizes = [8, 32], strides = [1, 1]} : vector<8x96xf32> to vector<8x32xf32>
    %613 = arith.mulf %602, %612 : vector<8x32xf32>
    %614 = arith.addf %611, %613 : vector<8x32xf32>
    %615 = math.tanh %614 : vector<8x32xf32>
    %cst_156 = arith.constant 1.000000e+00 : f32
    %616 = vector.broadcast %cst_156 : f32 to vector<8x32xf32>
    %617 = arith.subf %616, %610 : vector<8x32xf32>
    %618 = arith.mulf %617, %615 : vector<8x32xf32>
    %619 = arith.mulf %610, %539 : vector<8x32xf32>
    %620 = arith.addf %618, %619 : vector<8x32xf32>
    %621 = vector.shape_cast %620 : vector<8x32xf32> to vector<1x8x32xf32>
    %622 = vector.broadcast %621 : vector<1x8x32xf32> to vector<16x8x32xf32>
    %623 = arith.mulf %11, %622 : vector<16x8x32xf32>
    %cst_157 = arith.constant dense<0.000000e+00> : vector<16x8xf32>
    %624 = vector.multi_reduction <add>, %623, %cst_157 [2] : vector<16x8x32xf32> to vector<16x8xf32>
    %625 = vector.shape_cast %624 : vector<16x8xf32> to vector<16x8x1xf32>
    %cst_158 = arith.constant dense<0xFF800000> : vector<8x1xf32>
    %626 = vector.multi_reduction <maximumf>, %625, %cst_158 [0] : vector<16x8x1xf32> to vector<8x1xf32>
    %627 = vector.shape_cast %626 : vector<8x1xf32> to vector<1x8x1xf32>
    %628 = vector.broadcast %627 : vector<1x8x1xf32> to vector<16x8x1xf32>
    %629 = arith.subf %625, %628 : vector<16x8x1xf32>
    %630 = math.exp %629 : vector<16x8x1xf32>
    %cst_159 = arith.constant dense<0.000000e+00> : vector<8x1xf32>
    %631 = vector.multi_reduction <add>, %630, %cst_159 [0] : vector<16x8x1xf32> to vector<8x1xf32>
    %632 = vector.shape_cast %631 : vector<8x1xf32> to vector<1x8x1xf32>
    %633 = tpu.reciprocal %632 {approx = true} : vector<1x8x1xf32> -> vector<1x8x1xf32>
    %634 = vector.broadcast %633 : vector<1x8x1xf32> to vector<16x8x1xf32>
    %635 = arith.mulf %630, %634 : vector<16x8x1xf32>
    %636 = vector.broadcast %635 : vector<16x8x1xf32> to vector<16x8x32xf32>
    %637 = arith.mulf %636, %11 : vector<16x8x32xf32>
    %cst_160 = arith.constant dense<0.000000e+00> : vector<8x32xf32>
    %638 = vector.multi_reduction <add>, %637, %cst_160 [0] : vector<16x8x32xf32> to vector<8x32xf32>
    %639 = arith.truncf %620 : vector<8x32xf32> to vector<8x32xbf16>
    %cst_161 = arith.constant dense<0.000000e+00> : vector<8x32xf32>
    %640 = tpu.matmul %639, %5, %cst_161 {dimension_numbers = #tpu.dot_dimension_numbers<[1], [0], [0], [1], [0, 0, 1, 1], [], []>} : vector<8x32xbf16>, vector<32x32xbf16>, vector<8x32xf32> -> vector<8x32xf32>
    %641 = arith.truncf %638 : vector<8x32xf32> to vector<8x32xbf16>
    %cst_162 = arith.constant dense<0.000000e+00> : vector<8x32xf32>
    %642 = tpu.matmul %641, %6, %cst_162 {dimension_numbers = #tpu.dot_dimension_numbers<[1], [0], [0], [1], [0, 0, 1, 1], [], []>} : vector<8x32xbf16>, vector<32x32xbf16>, vector<8x32xf32> -> vector<8x32xf32>
    %643 = arith.addf %640, %642 : vector<8x32xf32>
    %644 = vector.broadcast %7 : vector<1x32xf32> to vector<8x32xf32>
    %645 = arith.addf %643, %644 : vector<8x32xf32>
    %646 = math.tanh %645 : vector<8x32xf32>
    %647 = arith.truncf %646 : vector<8x32xf32> to vector<8x32xbf16>
    %cst_163 = arith.constant dense<0.000000e+00> : vector<8x16xf32>
    %648 = tpu.matmul %647, %8, %cst_163 {dimension_numbers = #tpu.dot_dimension_numbers<[1], [0], [0], [1], [0, 0, 1, 1], [], []>} : vector<8x32xbf16>, vector<32x16xbf16>, vector<8x16xf32> -> vector<8x16xf32>
    %649 = vector.broadcast %9 : vector<1x16xf32> to vector<8x16xf32>
    %650 = arith.addf %648, %649 : vector<8x16xf32>
    %cst_164 = arith.constant dense<0xFF800000> : vector<8xf32>
    %651 = vector.multi_reduction <maximumf>, %650, %cst_164 [1] : vector<8x16xf32> to vector<8xf32>
    %652 = vector.shape_cast %651 : vector<8xf32> to vector<8x1xf32>
    %653 = vector.broadcast %652 : vector<8x1xf32> to vector<8x16xf32>
    %654 = arith.subf %650, %653 : vector<8x16xf32>
    %655 = math.exp %654 : vector<8x16xf32>
    %cst_165 = arith.constant dense<0.000000e+00> : vector<8xf32>
    %656 = vector.multi_reduction <add>, %655, %cst_165 [1] : vector<8x16xf32> to vector<8xf32>
    %657 = vector.shape_cast %656 : vector<8xf32> to vector<8x1xf32>
    %658 = math.log %657 : vector<8x1xf32>
    %659 = arith.addf %658, %652 : vector<8x1xf32>
    %c0_166 = arith.constant 0 : index
    %c7 = arith.constant 7 : index
    %660 = vector.load %arg3[%c0_166, %c7] : memref<8x8xi32, #tpu.memory_space<vmem>>, vector<8x1xi32>
    %661 = vector.broadcast %660 : vector<8x1xi32> to vector<8x16xi32>
    %662 = arith.cmpi eq, %20, %661 : vector<8x16xi32>
    %cst_167 = arith.constant 0.000000e+00 : f32
    %663 = vector.broadcast %cst_167 : f32 to vector<8x16xf32>
    %664 = arith.select %662, %650, %663 : vector<8x16xi1>, vector<8x16xf32>
    %cst_168 = arith.constant dense<0.000000e+00> : vector<8xf32>
    %665 = vector.multi_reduction <add>, %664, %cst_168 [1] : vector<8x16xf32> to vector<8xf32>
    %666 = vector.shape_cast %665 : vector<8xf32> to vector<8x1xf32>
    %667 = arith.subf %659, %666 : vector<8x1xf32>
    %c0_169 = arith.constant 0 : index
    %c7_170 = arith.constant 7 : index
    %668 = vector.load %arg4[%c0_169, %c7_170] : memref<8x8xf32, #tpu.memory_space<vmem>>, vector<8x1xf32>
    %669 = arith.mulf %667, %668 : vector<8x1xf32>
    %c0_171 = arith.constant 0 : index
    %c0_172 = arith.constant 0 : index
    %670 = vector.load %arg17[%c0_171, %c0_172] : memref<8x32xf32, #tpu.memory_space<vmem>>, vector<8x32xf32>
    tpu.vector_store %arg17[%c0_171, %c0_172], %620 {strides = array<i32>} : memref<8x32xf32, #tpu.memory_space<vmem>>, vector<8x32xf32>,
    %671 = tpu.concatenate %102, %183, %264, %345, %426, %507, %588, %669 in 1 : vector<8x1xf32>, vector<8x1xf32>, vector<8x1xf32>, vector<8x1xf32>, vector<8x1xf32>, vector<8x1xf32>, vector<8x1xf32>, vector<8x1xf32> -> vector<8x8xf32>
    %c0_173 = arith.constant 0 : index
    %c0_174 = arith.constant 0 : index
    %672 = vector.load %arg16[%c0_173, %c0_174] : memref<8x8xf32, #tpu.memory_space<vmem>>, vector<8x8xf32>
    tpu.vector_store %arg16[%c0_173, %c0_174], %671 {strides = array<i32>} : memref<8x8xf32, #tpu.memory_space<vmem>>, vector<8x8xf32>,
    return
  }
  func.func @transform_0(%arg0: i32, %arg1: i32) -> (i32, i32, i32) {
    %c0_i32 = arith.constant 0 : i32
    %c0_i32_0 = arith.constant 0 : i32
    return %arg1, %arg0, %c0_i32 : i32, i32, i32
  }
  func.func @transform_1(%arg0: i32, %arg1: i32) -> (i32, i32) {
    %c0_i32 = arith.constant 0 : i32
    return %arg0, %arg1 : i32, i32
  }
  func.func @transform_2(%arg0: i32, %arg1: i32) -> (i32, i32) {
    %c0_i32 = arith.constant 0 : i32
    return %arg0, %arg1 : i32, i32
  }
  func.func @transform_3(%arg0: i32, %arg1: i32) -> (i32, i32) {
    %c0_i32 = arith.constant 0 : i32
    %c0_i32_0 = arith.constant 0 : i32
    return %arg0, %c0_i32 : i32, i32
  }
  func.func @transform_4(%arg0: i32, %arg1: i32) -> (i32, i32, i32) {
    %c0_i32 = arith.constant 0 : i32
    %c0_i32_0 = arith.constant 0 : i32
    %c0_i32_1 = arith.constant 0 : i32
    return %c0_i32, %arg0, %c0_i32_0 : i32, i32, i32
  }
  func.func @transform_5(%arg0: i32, %arg1: i32) -> (i32, i32) {
    %c0_i32 = arith.constant 0 : i32
    %c0_i32_0 = arith.constant 0 : i32
    %c0_i32_1 = arith.constant 0 : i32
    return %c0_i32, %c0_i32_0 : i32, i32
  }
  func.func @transform_6(%arg0: i32, %arg1: i32) -> (i32, i32) {
    %c0_i32 = arith.constant 0 : i32
    %c0_i32_0 = arith.constant 0 : i32
    %c0_i32_1 = arith.constant 0 : i32
    return %c0_i32, %c0_i32_0 : i32, i32
  }
  func.func @transform_7(%arg0: i32, %arg1: i32) -> (i32, i32) {
    %c0_i32 = arith.constant 0 : i32
    %c0_i32_0 = arith.constant 0 : i32
    %c0_i32_1 = arith.constant 0 : i32
    return %c0_i32, %c0_i32_0 : i32, i32
  }
  func.func @transform_8(%arg0: i32, %arg1: i32) -> (i32, i32) {
    %c0_i32 = arith.constant 0 : i32
    %c0_i32_0 = arith.constant 0 : i32
    %c0_i32_1 = arith.constant 0 : i32
    return %c0_i32, %c0_i32_0 : i32, i32
  }
  func.func @transform_9(%arg0: i32, %arg1: i32) -> (i32, i32) {
    %c0_i32 = arith.constant 0 : i32
    %c0_i32_0 = arith.constant 0 : i32
    %c0_i32_1 = arith.constant 0 : i32
    return %c0_i32, %c0_i32_0 : i32, i32
  }
  func.func @transform_10(%arg0: i32, %arg1: i32) -> (i32, i32) {
    %c0_i32 = arith.constant 0 : i32
    %c0_i32_0 = arith.constant 0 : i32
    %c0_i32_1 = arith.constant 0 : i32
    return %c0_i32, %c0_i32_0 : i32, i32
  }
  func.func @transform_11(%arg0: i32, %arg1: i32) -> (i32, i32) {
    %c0_i32 = arith.constant 0 : i32
    %c0_i32_0 = arith.constant 0 : i32
    %c0_i32_1 = arith.constant 0 : i32
    return %c0_i32, %c0_i32_0 : i32, i32
  }
  func.func @transform_12(%arg0: i32, %arg1: i32) -> (i32, i32) {
    %c0_i32 = arith.constant 0 : i32
    %c0_i32_0 = arith.constant 0 : i32
    %c0_i32_1 = arith.constant 0 : i32
    return %c0_i32, %c0_i32_0 : i32, i32
  }
  func.func @transform_13(%arg0: i32, %arg1: i32) -> (i32, i32) {
    %c0_i32 = arith.constant 0 : i32
    %c0_i32_0 = arith.constant 0 : i32
    %c0_i32_1 = arith.constant 0 : i32
    return %c0_i32, %c0_i32_0 : i32, i32
  }
  func.func @transform_14(%arg0: i32, %arg1: i32) -> (i32, i32) {
    %c0_i32 = arith.constant 0 : i32
    return %arg0, %arg1 : i32, i32
  }
}

</mosaic_0001>

<llo_original>
// kernel: _forward_device.3
$region0: #{_forward_device.3}
  #allocation0 [shape = 'u32[]', space=smem, size = 0x4, offset = 0x4, fixed_abs, tag = 'smem constant byte address 0x4 - core index']
  #allocation1 [shape = 'u32[144,128]{1,0:T(1,128)}', space=vmem, size = 0x12000, scoped, tag = 'internal scratch']
  %s0 = inlined_call_operand.vmem [shape: bf16[2048,36], index: 0, kind: input, shape index: {}]
  %s1 = inlined_call_operand.vmem [shape: bf16[36,128], index: 1, kind: input, shape index: {}]
  %s2 = inlined_call_operand.vmem [shape: f32[1,128], index: 2, kind: input, shape index: {}]
  %s3 = inlined_call_operand.vmem [shape: f32[128,128], index: 3, kind: output, shape index: {}]
  %s4 = sld [smem:[#allocation0]]
  $region45: #{_forward_device.3} parent=0
    _
  %s6 = ssub.s32 1, %s4
  %s7 = scalar_select 0, %s6, %s4
  loop: start=0, step=1, limit=4
  $region2: #{_forward_device.3} parent=0 // loop_pre_header
    _
  $region3: #{_forward_device.3} parent=0 // loop_header
    %s9 = sphi 0, %s13
    %p10 = scmp.ge.s32.totalorder %s9, 4
    %s19 = sphi 0, %s21
    %s22 = sphi 0, %s19
    %s23 = sphi 0, %s22
    %s39 = sphi 0, %s23
    %s43 = sphi 0, %s43
    %s45 = sphi 0, %s43
    %s46 = sphi 0, %s45
    %s60 = sphi 0, %s46
    %s64 = sphi 0, %s64
    %s66 = sphi 0, %s64
    %s67 = sphi 0, %s66
    %s81 = sphi 0, %s67
    %s87 = sphi 0, %s89
    %s90 = sphi 0, %s87
    %s91 = sphi 0, %s90
    %s107 = sphi 0, %s91
  $region4: #{_forward_device.3} parent=0 // loop_header_branch
    %12 = sbr.rel (%p10) target = $region8
  $region5: #{_forward_device.3} parent=0 // loop_body
    %s14 = ssub.s32 %s9, 1
    %s15 = ssub.s32 %s9, 2
    %s16 = sadd.s32 %s9, 1
    %s17 = ssub.s32 %s9, %s16
    %p18 = scmp.eq.s32.totalorder %s17, 0
    %s20 = sadd.s32 %s19, 1
    %s21 = scalar_select %p18, %s19, %s20
    %p24 = pneg %p18
    %p25 = scmp.eq.s32.totalorder %s9, 1
    %p26 = por %p24, %p25
    %p27 = scmp.ne.s32.totalorder %s19, %s22
    %p28 = scmp.eq.s32.totalorder %s9, 0
    %p29 = por %p27, %p28
    %p30 = scmp.ne.s32.totalorder %s19, %s22
    %p31 = scmp.eq.s32.totalorder %s14, 1
    %p32 = por %p30, %p31
    %p33 = scmp.ne.s32.totalorder %s22, %s23
    %p34 = scmp.eq.s32.totalorder %s14, 0
    %p35 = por %p33, %p34
    %p36 = scmp.ne.s32.totalorder %s22, %s23
    %p37 = scmp.eq.s32.totalorder %s15, 1
    %p38 = por %p36, %p37
    %p40 = scmp.ne.s32.totalorder %s23, %s39
    %p41 = scmp.eq.s32.totalorder %s15, 0
    %p42 = por %p40, %p41
    %s44 = sadd.s32 %s43, 1
    %p47 = scmp.eq.s32.totalorder %s9, 1
    %p48 = scmp.ne.s32.totalorder %s43, %s45
    %p49 = scmp.eq.s32.totalorder %s9, 0
    %p50 = por %p48, %p49
    %p51 = scmp.ne.s32.totalorder %s43, %s45
    %p52 = scmp.eq.s32.totalorder %s14, 1
    %p53 = por %p51, %p52
    %p54 = scmp.ne.s32.totalorder %s45, %s46
    %p55 = scmp.eq.s32.totalorder %s14, 0
    %p56 = por %p54, %p55
    %p57 = scmp.ne.s32.totalorder %s45, %s46
    %p58 = scmp.eq.s32.totalorder %s15, 1
    %p59 = por %p57, %p58
    %p61 = scmp.ne.s32.totalorder %s46, %s60
    %p62 = scmp.eq.s32.totalorder %s15, 0
    %p63 = por %p61, %p62
    %s65 = sadd.s32 %s64, 1
    %p68 = scmp.eq.s32.totalorder %s9, 1
    %p69 = scmp.ne.s32.totalorder %s64, %s66
    %p70 = scmp.eq.s32.totalorder %s9, 0
    %p71 = por %p69, %p70
    %p72 = scmp.ne.s32.totalorder %s64, %s66
    %p73 = scmp.eq.s32.totalorder %s14, 1
    %p74 = por %p72, %p73
    %p75 = scmp.ne.s32.totalorder %s66, %s67
    %p76 = scmp.eq.s32.totalorder %s14, 0
    %p77 = por %p75, %p76
    %p78 = scmp.ne.s32.totalorder %s66, %s67
    %p79 = scmp.eq.s32.totalorder %s15, 1
    %p80 = por %p78, %p79
    %p82 = scmp.ne.s32.totalorder %s67, %s81
    %p83 = scmp.eq.s32.totalorder %s15, 0
    %p84 = por %p82, %p83
    %s85 = ssub.s32 %s9, %s16
    %p86 = scmp.eq.s32.totalorder %s85, 0
    %s88 = sadd.s32 %s87, 1
    %s89 = scalar_select %p86, %s87, %s88
    %p92 = pneg %p86
    %p93 = scmp.eq.s32.totalorder %s9, 1
    %p94 = por %p92, %p93
    %p95 = scmp.ne.s32.totalorder %s87, %s90
    %p96 = scmp.eq.s32.totalorder %s9, 0
    %p97 = por %p95, %p96
    %p98 = scmp.ne.s32.totalorder %s87, %s90
    %p99 = scmp.eq.s32.totalorder %s14, 1
    %p100 = por %p98, %p99
    %p101 = scmp.ne.s32.totalorder %s90, %s91
    %p102 = scmp.eq.s32.totalorder %s14, 0
    %p103 = por %p101, %p102
    %p104 = scmp.ne.s32.totalorder %s90, %s91
    %p105 = scmp.eq.s32.totalorder %s15, 1
    %p106 = por %p104, %p105
    %p108 = scmp.ne.s32.totalorder %s91, %s107
    %p109 = scmp.eq.s32.totalorder %s15, 0
    %p110 = por %p108, %p109
    %p111 = scmp.le.s32.totalorder 1, %s9
    %p112 = scmp.lt.s32.totalorder %s9, 3
    %p113 = pnand %p111, %p112
    %p114 = pneg %p113
    // Predicated region
    $region9: #{_forward_device.3} parent=5 // pred_check
      _
    $region10: #{_forward_device.3} parent=5 // pred_check_branch
      %116 = sbr.rel (%p113) target = $region12
    $region11: #{_forward_device.3} parent=5 // pred_region
      %s117 = ssub.s32 %s9, 1
      // Predicated region
      $region13: #{_forward_device.3} parent=11 // pred_check
        %p118 = pneg %p56
      $region14: #{_forward_device.3} parent=11 // pred_check_branch
        %120 = sbr.rel (%p118) target = $region16
      $region15: #{_forward_device.3} parent=11 // pred_region
        _
      $region16: #{_forward_device.3} parent=11 // pred_fallthru
        _
      // Predicated region
      $region17: #{_forward_device.3} parent=11 // pred_check
        %p121 = pneg %p77
      $region18: #{_forward_device.3} parent=11 // pred_check_branch
        %123 = sbr.rel (%p121) target = $region20
      $region19: #{_forward_device.3} parent=11 // pred_region
        _
      $region20: #{_forward_device.3} parent=11 // pred_fallthru
        _
    $region12: #{_forward_device.3} parent=5 // pred_fallthru
      _
    %p124 = scmp.lt.s32.totalorder %s9, 2
    // Predicated region
    $region21: #{_forward_device.3} parent=5 // pred_check
      %p125 = pneg %p124
    $region22: #{_forward_device.3} parent=5 // pred_check_branch
      %127 = sbr.rel (%p125) target = $region24
    $region23: #{_forward_device.3} parent=5 // pred_region
      // Predicated region
      $region25: #{_forward_device.3} parent=23 // pred_check
        %p128 = pneg %p29
      $region26: #{_forward_device.3} parent=23 // pred_check_branch
        %130 = sbr.rel (%p128) target = $region28
      $region27: #{_forward_device.3} parent=23 // pred_region
        %s131 = smul.u32 128, %s9
        %p132 = scmp.lt.s32.totalorder %s131, 255
        %s133 = scalar_select %p132, %s131, 255
        %s134 = smul.addr %s133, 4
        %s135 = scalar_lea.vmem %s0, %s134
        %s136 = smul.u32 128, %s9
      $region28: #{_forward_device.3} parent=23 // pred_fallthru
        _
    $region24: #{_forward_device.3} parent=5 // pred_fallthru
      _
    %p137 = scmp.le.s32.totalorder 1, %s9
    %p138 = scmp.lt.s32.totalorder %s9, 3
    %p139 = pnand %p137, %p138
    %p140 = pneg %p139
    // Predicated region
    $region29: #{_forward_device.3} parent=5 // pred_check
      _
    $region30: #{_forward_device.3} parent=5 // pred_check_branch
      %142 = sbr.rel (%p139) target = $region32
    $region31: #{_forward_device.3} parent=5 // pred_region
      %s143 = ssub.s32 %s9, 1
      %s144 = smul.u32 128, %s14
      %p145 = scmp.lt.s32.totalorder %s144, 255
      %s146 = scalar_select %p145, %s144, 255
      %s147 = smul.addr %s146, 4
      %s148 = scalar_lea.vmem %s0, %s147
      %p149 = pneg %p35
      %p150 = pneg %p32
      %p151 = pneg %p56
      %p152 = pneg %p53
      %p153 = pneg %p77
      %p154 = pneg %p74
      %p155 = pneg %p103
      %p156 = pneg %p100
      %s157 = smul.u32 8, %s14
      %p158 = scmp.lt.s32.totalorder %s157, 15
      %s159 = scalar_select %p158, %s157, 15
      %s160 = smul.addr %s159, 8
      %s161 = scalar_lea.vmem %s3, %s160
      %s162 = smul.u32 128, %s14
      %p163 = scmp.lt.s32.totalorder %s162, 255
      %s164 = scalar_select %p163, %s162, 255
      %s165 = smul.addr %s164, 4
      %s166 = scalar_lea.vmem %s0, %s165
      %s167 = smul.u32 128, %s14
      %s168 = smul.u32 8, %s14
      %p169 = scmp.lt.s32.totalorder %s168, 15
      %s170 = scalar_select %p169, %s168, 15
      %s171 = smul.addr %s170, 8
      %s172 = scalar_lea.vmem %s3, %s171
      %s173 = smul.u32 8, %s14
      %v175 = vld [vmem:[%s166] sm:$0xf]
      %v176 = vld [vmem:[%s166 + $0x4] sm:$0xf]
      %v177 = vld [vmem:[%s166 + $0x8] sm:$0xf]
      %v178 = vld [vmem:[%s166 + $0xc] sm:$0xf]
      %v179 = vld [vmem:[%s166 + $0x10] sm:$0xf]
      %v180 = vld [vmem:[%s166 + $0x14] sm:$0xf]
      %v181 = vld [vmem:[%s166 + $0x18] sm:$0xf]
      %v182 = vld [vmem:[%s166 + $0x1c] sm:$0xf]
      %v183 = vld [vmem:[%s166 + $0x20] sm:$0xf]
      %v184 = vld [vmem:[%s166 + $0x24] sm:$0xf]
      %v185 = vld [vmem:[%s166 + $0x28] sm:$0xf]
      %v186 = vld [vmem:[%s166 + $0x2c] sm:$0xf]
      %v187 = vld [vmem:[%s166 + $0x30] sm:$0xf]
      %v188 = vld [vmem:[%s166 + $0x34] sm:$0xf]
      %v189 = vld [vmem:[%s166 + $0x38] sm:$0xf]
      %v190 = vld [vmem:[%s166 + $0x3c] sm:$0xf]
      %v191 = vld [vmem:[%s166 + $0x40] sm:$0xf]
      %v192 = vld [vmem:[%s166 + $0x44] sm:$0xf]
      %v193 = vld [vmem:[%s166 + $0x48] sm:$0xf]
      %v194 = vld [vmem:[%s166 + $0x4c] sm:$0xf]
      %v195 = vld [vmem:[%s166 + $0x50] sm:$0xf]
      %v196 = vld [vmem:[%s166 + $0x54] sm:$0xf]
      %v197 = vld [vmem:[%s166 + $0x58] sm:$0xf]
      %v198 = vld [vmem:[%s166 + $0x5c] sm:$0xf]
      %v199 = vld [vmem:[%s166 + $0x60] sm:$0xf]
      %v200 = vld [vmem:[%s166 + $0x64] sm:$0xf]
      %v201 = vld [vmem:[%s166 + $0x68] sm:$0xf]
      %v202 = vld [vmem:[%s166 + $0x6c] sm:$0xf]
      %v203 = vld [vmem:[%s166 + $0x70] sm:$0xf]
      %v204 = vld [vmem:[%s166 + $0x74] sm:$0xf]
      %v205 = vld [vmem:[%s166 + $0x78] sm:$0xf]
      %v206 = vld [vmem:[%s166 + $0x7c] sm:$0xf]
      %v207 = vld [vmem:[%s166 + $0x80] sm:$0xf]
      %v208 = vld [vmem:[%s166 + $0x84] sm:$0xf]
      %v209 = vld [vmem:[%s166 + $0x88] sm:$0xf]
      %v210 = vld [vmem:[%s166 + $0x8c] sm:$0xf]
      %v211 = vld [vmem:[%s166 + $0x90] sm:$0xf]
      %v212 = vld [vmem:[%s166 + $0x94] sm:$0xf]
      %v213 = vld [vmem:[%s166 + $0x98] sm:$0xf]
      %v214 = vld [vmem:[%s166 + $0x9c] sm:$0xf]
      %v215 = vld [vmem:[%s166 + $0xa0] sm:$0xf]
      %v216 = vld [vmem:[%s166 + $0xa4] sm:$0xf]
      %v217 = vld [vmem:[%s166 + $0xa8] sm:$0xf]
      %v218 = vld [vmem:[%s166 + $0xac] sm:$0xf]
      %v219 = vld [vmem:[%s166 + $0xb0] sm:$0xf]
      %v220 = vld [vmem:[%s166 + $0xb4] sm:$0xf]
      %v221 = vld [vmem:[%s166 + $0xb8] sm:$0xf]
      %v222 = vld [vmem:[%s166 + $0xbc] sm:$0xf]
      %v223 = vld [vmem:[%s166 + $0xc0] sm:$0xf]
      %v224 = vld [vmem:[%s166 + $0xc4] sm:$0xf]
      %v225 = vld [vmem:[%s166 + $0xc8] sm:$0xf]
      %v226 = vld [vmem:[%s166 + $0xcc] sm:$0xf]
      %v227 = vld [vmem:[%s166 + $0xd0] sm:$0xf]
      %v228 = vld [vmem:[%s166 + $0xd4] sm:$0xf]
      %v229 = vld [vmem:[%s166 + $0xd8] sm:$0xf]
      %v230 = vld [vmem:[%s166 + $0xdc] sm:$0xf]
      %v231 = vld [vmem:[%s166 + $0xe0] sm:$0xf]
      %v232 = vld [vmem:[%s166 + $0xe4] sm:$0xf]
      %v233 = vld [vmem:[%s166 + $0xe8] sm:$0xf]
      %v234 = vld [vmem:[%s166 + $0xec] sm:$0xf]
      %v235 = vld [vmem:[%s166 + $0xf0] sm:$0xf]
      %v236 = vld [vmem:[%s166 + $0xf4] sm:$0xf]
      %v237 = vld [vmem:[%s166 + $0xf8] sm:$0xf]
      %v238 = vld [vmem:[%s166 + $0xfc] sm:$0xf]
      %v239 = vld [vmem:[%s166 + $0x100] sm:$0xf]
      %v240 = vld [vmem:[%s166 + $0x104] sm:$0xf]
      %v241 = vld [vmem:[%s166 + $0x108] sm:$0xf]
      %v242 = vld [vmem:[%s166 + $0x10c] sm:$0xf]
      %v243 = vld [vmem:[%s166 + $0x110] sm:$0xf]
      %v244 = vld [vmem:[%s166 + $0x114] sm:$0xf]
      %v245 = vld [vmem:[%s166 + $0x118] sm:$0xf]
      %v246 = vld [vmem:[%s166 + $0x11c] sm:$0xf]
      %v247 = vld [vmem:[%s166 + $0x120] sm:$0xf]
      %v248 = vld [vmem:[%s166 + $0x124] sm:$0xf]
      %v249 = vld [vmem:[%s166 + $0x128] sm:$0xf]
      %v250 = vld [vmem:[%s166 + $0x12c] sm:$0xf]
      %v251 = vld [vmem:[%s166 + $0x130] sm:$0xf]
      %v252 = vld [vmem:[%s166 + $0x134] sm:$0xf]
      %v253 = vld [vmem:[%s166 + $0x138] sm:$0xf]
      %v254 = vld [vmem:[%s166 + $0x13c] sm:$0xf]
      %v255 = vld [vmem:[%s166 + $0x140] sm:$0xf]
      %v256 = vld [vmem:[%s166 + $0x144] sm:$0xf]
      %v257 = vld [vmem:[%s166 + $0x148] sm:$0xf]
      %v258 = vld [vmem:[%s166 + $0x14c] sm:$0xf]
      %v259 = vld [vmem:[%s166 + $0x150] sm:$0xf]
      %v260 = vld [vmem:[%s166 + $0x154] sm:$0xf]
      %v261 = vld [vmem:[%s166 + $0x158] sm:$0xf]
      %v262 = vld [vmem:[%s166 + $0x15c] sm:$0xf]
      %v263 = vld [vmem:[%s166 + $0x160] sm:$0xf]
      %v264 = vld [vmem:[%s166 + $0x164] sm:$0xf]
      %v265 = vld [vmem:[%s166 + $0x168] sm:$0xf]
      %v266 = vld [vmem:[%s166 + $0x16c] sm:$0xf]
      %v267 = vld [vmem:[%s166 + $0x170] sm:$0xf]
      %v268 = vld [vmem:[%s166 + $0x174] sm:$0xf]
      %v269 = vld [vmem:[%s166 + $0x178] sm:$0xf]
      %v270 = vld [vmem:[%s166 + $0x17c] sm:$0xf]
      %v271 = vld [vmem:[%s166 + $0x180] sm:$0xf]
      %v272 = vld [vmem:[%s166 + $0x184] sm:$0xf]
      %v273 = vld [vmem:[%s166 + $0x188] sm:$0xf]
      %v274 = vld [vmem:[%s166 + $0x18c] sm:$0xf]
      %v275 = vld [vmem:[%s166 + $0x190] sm:$0xf]
      %v276 = vld [vmem:[%s166 + $0x194] sm:$0xf]
      %v277 = vld [vmem:[%s166 + $0x198] sm:$0xf]
      %v278 = vld [vmem:[%s166 + $0x19c] sm:$0xf]
      %v279 = vld [vmem:[%s166 + $0x1a0] sm:$0xf]
      %v280 = vld [vmem:[%s166 + $0x1a4] sm:$0xf]
      %v281 = vld [vmem:[%s166 + $0x1a8] sm:$0xf]
      %v282 = vld [vmem:[%s166 + $0x1ac] sm:$0xf]
      %v283 = vld [vmem:[%s166 + $0x1b0] sm:$0xf]
      %v284 = vld [vmem:[%s166 + $0x1b4] sm:$0xf]
      %v285 = vld [vmem:[%s166 + $0x1b8] sm:$0xf]
      %v286 = vld [vmem:[%s166 + $0x1bc] sm:$0xf]
      %v287 = vld [vmem:[%s166 + $0x1c0] sm:$0xf]
      %v288 = vld [vmem:[%s166 + $0x1c4] sm:$0xf]
      %v289 = vld [vmem:[%s166 + $0x1c8] sm:$0xf]
      %v290 = vld [vmem:[%s166 + $0x1cc] sm:$0xf]
      %v291 = vld [vmem:[%s166 + $0x1d0] sm:$0xf]
      %v292 = vld [vmem:[%s166 + $0x1d4] sm:$0xf]
      %v293 = vld [vmem:[%s166 + $0x1d8] sm:$0xf]
      %v294 = vld [vmem:[%s166 + $0x1dc] sm:$0xf]
      %v295 = vld [vmem:[%s166 + $0x1e0] sm:$0xf]
      %v296 = vld [vmem:[%s166 + $0x1e4] sm:$0xf]
      %v297 = vld [vmem:[%s166 + $0x1e8] sm:$0xf]
      %v298 = vld [vmem:[%s166 + $0x1ec] sm:$0xf]
      %v299 = vld [vmem:[%s166 + $0x1f0] sm:$0xf]
      %v300 = vld [vmem:[%s166 + $0x1f4] sm:$0xf]
      %v301 = vld [vmem:[%s166 + $0x1f8] sm:$0xf]
      %v302 = vld [vmem:[%s166 + $0x1fc] sm:$0xf]
      %v303 = vld [vmem:[%s1] sm:$0xf]
      %v304 = vld [vmem:[%s1 + $0x4] sm:$0xf]
      %v305 = vld [vmem:[%s1 + $0x8] sm:$0xf]
      %v306 = vld [vmem:[%s1 + $0xc] sm:$0xf]
      %v307 = vld [vmem:[%s1 + $0x10] sm:$0x3]
      %v308 = vld [vmem:[%s2] sm:$0x1]
      %v310 = vlaneseq
      %v311 = vshrl.u32 %v310, 7
      %v312 = vsub.s32 0, %v311
      %v313 = vrot.slane %v308, %v312
      %v443 = vunpack.c.l.b16 %v175
      %v444 = vunpack.c.l.b16 %v176
      %v445 = vunpack.c.l.b16 %v177
      %v446 = vunpack.c.l.b16 %v178
      %v447 = vunpack.c.l.b16 %v179
      %v448 = vunpack.c.l.b16 %v180
      %v449 = vunpack.c.l.b16 %v181
      %v450 = vunpack.c.l.b16 %v182
      %v451 = vunpack.c.l.b16 %v183
      %v452 = vunpack.c.l.b16 %v184
      %v453 = vunpack.c.l.b16 %v185
      %v454 = vunpack.c.l.b16 %v186
      %v455 = vunpack.c.l.b16 %v187
      %v456 = vunpack.c.l.b16 %v188
      %v457 = vunpack.c.l.b16 %v189
      %v458 = vunpack.c.l.b16 %v190
      %v459 = vunpack.c.l.b16 %v191
      %v460 = vunpack.c.l.b16 %v192
      %v461 = vunpack.c.l.b16 %v193
      %v462 = vunpack.c.l.b16 %v194
      %v463 = vunpack.c.l.b16 %v195
      %v464 = vunpack.c.l.b16 %v196
      %v465 = vunpack.c.l.b16 %v197
      %v466 = vunpack.c.l.b16 %v198
      %v467 = vunpack.c.l.b16 %v199
      %v468 = vunpack.c.l.b16 %v200
      %v469 = vunpack.c.l.b16 %v201
      %v470 = vunpack.c.l.b16 %v202
      %v471 = vunpack.c.l.b16 %v203
      %v472 = vunpack.c.l.b16 %v204
      %v473 = vunpack.c.l.b16 %v205
      %v474 = vunpack.c.l.b16 %v206
      %v475 = vunpack.c.l.b16 %v207
      %v476 = vunpack.c.l.b16 %v208
      %v477 = vunpack.c.l.b16 %v209
      %v478 = vunpack.c.l.b16 %v210
      %v479 = vunpack.c.l.b16 %v211
      %v480 = vunpack.c.l.b16 %v212
      %v481 = vunpack.c.l.b16 %v213
      %v482 = vunpack.c.l.b16 %v214
      %v483 = vunpack.c.l.b16 %v215
      %v484 = vunpack.c.l.b16 %v216
      %v485 = vunpack.c.l.b16 %v217
      %v486 = vunpack.c.l.b16 %v218
      %v487 = vunpack.c.l.b16 %v219
      %v488 = vunpack.c.l.b16 %v220
      %v489 = vunpack.c.l.b16 %v221
      %v490 = vunpack.c.l.b16 %v222
      %v491 = vunpack.c.l.b16 %v223
      %v492 = vunpack.c.l.b16 %v224
      %v493 = vunpack.c.l.b16 %v225
      %v494 = vunpack.c.l.b16 %v226
      %v495 = vunpack.c.l.b16 %v227
      %v496 = vunpack.c.l.b16 %v228
      %v497 = vunpack.c.l.b16 %v229
      %v498 = vunpack.c.l.b16 %v230
      %v499 = vunpack.c.l.b16 %v231
      %v500 = vunpack.c.l.b16 %v232
      %v501 = vunpack.c.l.b16 %v233
      %v502 = vunpack.c.l.b16 %v234
      %v503 = vunpack.c.l.b16 %v235
      %v504 = vunpack.c.l.b16 %v236
      %v505 = vunpack.c.l.b16 %v237
      %v506 = vunpack.c.l.b16 %v238
      %v507 = vunpack.c.l.b16 %v239
      %v508 = vunpack.c.l.b16 %v240
      %v509 = vunpack.c.l.b16 %v241
      %v510 = vunpack.c.l.b16 %v242
      %v511 = vunpack.c.l.b16 %v243
      %v512 = vunpack.c.l.b16 %v244
      %v513 = vunpack.c.l.b16 %v245
      %v514 = vunpack.c.l.b16 %v246
      %v515 = vunpack.c.l.b16 %v247
      %v516 = vunpack.c.l.b16 %v248
      %v517 = vunpack.c.l.b16 %v249
      %v518 = vunpack.c.l.b16 %v250
      %v519 = vunpack.c.l.b16 %v251
      %v520 = vunpack.c.l.b16 %v252
      %v521 = vunpack.c.l.b16 %v253
      %v522 = vunpack.c.l.b16 %v254
      %v523 = vunpack.c.l.b16 %v255
      %v524 = vunpack.c.l.b16 %v256
      %v525 = vunpack.c.l.b16 %v257
      %v526 = vunpack.c.l.b16 %v258
      %v527 = vunpack.c.l.b16 %v259
      %v528 = vunpack.c.l.b16 %v260
      %v529 = vunpack.c.l.b16 %v261
      %v530 = vunpack.c.l.b16 %v262
      %v531 = vunpack.c.l.b16 %v263
      %v532 = vunpack.c.l.b16 %v264
      %v533 = vunpack.c.l.b16 %v265
      %v534 = vunpack.c.l.b16 %v266
      %v535 = vunpack.c.l.b16 %v267
      %v536 = vunpack.c.l.b16 %v268
      %v537 = vunpack.c.l.b16 %v269
      %v538 = vunpack.c.l.b16 %v270
      %v539 = vunpack.c.l.b16 %v271
      %v540 = vunpack.c.l.b16 %v272
      %v541 = vunpack.c.l.b16 %v273
      %v542 = vunpack.c.l.b16 %v274
      %v543 = vunpack.c.l.b16 %v275
      %v544 = vunpack.c.l.b16 %v276
      %v545 = vunpack.c.l.b16 %v277
      %v546 = vunpack.c.l.b16 %v278
      %v547 = vunpack.c.l.b16 %v279
      %v548 = vunpack.c.l.b16 %v280
      %v549 = vunpack.c.l.b16 %v281
      %v550 = vunpack.c.l.b16 %v282
      %v551 = vunpack.c.l.b16 %v283
      %v552 = vunpack.c.l.b16 %v284
      %v553 = vunpack.c.l.b16 %v285
      %v554 = vunpack.c.l.b16 %v286
      %v555 = vunpack.c.l.b16 %v287
      %v556 = vunpack.c.l.b16 %v288
      %v557 = vunpack.c.l.b16 %v289
      %v558 = vunpack.c.l.b16 %v290
      %v559 = vunpack.c.l.b16 %v291
      %v560 = vunpack.c.l.b16 %v292
      %v561 = vunpack.c.l.b16 %v293
      %v562 = vunpack.c.l.b16 %v294
      %v563 = vunpack.c.l.b16 %v295
      %v564 = vunpack.c.l.b16 %v296
      %v565 = vunpack.c.l.b16 %v297
      %v566 = vunpack.c.l.b16 %v298
      %v567 = vunpack.c.l.b16 %v299
      %v568 = vunpack.c.l.b16 %v300
      %v569 = vunpack.c.l.b16 %v301
      %v570 = vunpack.c.l.b16 %v302
      %v571 = vpack.c.b16 %v444, %v443
      %v572 = vpack.c.b16 %v446, %v445
      %v573 = vpack.c.b16 %v448, %v447
      %v574 = vpack.c.b16 %v450, %v449
      %v575 = vpack.c.b16 %v452, %v451
      %v576 = vpack.c.b16 %v454, %v453
      %v577 = vpack.c.b16 %v456, %v455
      %v578 = vpack.c.b16 %v458, %v457
      %v579 = vpack.c.b16 %v460, %v459
      %v580 = vpack.c.b16 %v462, %v461
      %v581 = vpack.c.b16 %v464, %v463
      %v582 = vpack.c.b16 %v466, %v465
      %v583 = vpack.c.b16 %v468, %v467
      %v584 = vpack.c.b16 %v470, %v469
      %v585 = vpack.c.b16 %v472, %v471
      %v586 = vpack.c.b16 %v474, %v473
      %v587 = vpack.c.b16 %v476, %v475
      %v588 = vpack.c.b16 %v478, %v477
      %v589 = vpack.c.b16 %v480, %v479
      %v590 = vpack.c.b16 %v482, %v481
      %v591 = vpack.c.b16 %v484, %v483
      %v592 = vpack.c.b16 %v486, %v485
      %v593 = vpack.c.b16 %v488, %v487
      %v594 = vpack.c.b16 %v490, %v489
      %v595 = vpack.c.b16 %v492, %v491
      %v596 = vpack.c.b16 %v494, %v493
      %v597 = vpack.c.b16 %v496, %v495
      %v598 = vpack.c.b16 %v498, %v497
      %v599 = vpack.c.b16 %v500, %v499
      %v600 = vpack.c.b16 %v502, %v501
      %v601 = vpack.c.b16 %v504, %v503
      %v602 = vpack.c.b16 %v506, %v505
      %v603 = vpack.c.b16 %v508, %v507
      %v604 = vpack.c.b16 %v510, %v509
      %v605 = vpack.c.b16 %v512, %v511
      %v606 = vpack.c.b16 %v514, %v513
      %v607 = vpack.c.b16 %v516, %v515
      %v608 = vpack.c.b16 %v518, %v517
      %v609 = vpack.c.b16 %v520, %v519
      %v610 = vpack.c.b16 %v522, %v521
      %v611 = vpack.c.b16 %v524, %v523
      %v612 = vpack.c.b16 %v526, %v525
      %v613 = vpack.c.b16 %v528, %v527
      %v614 = vpack.c.b16 %v530, %v529
      %v615 = vpack.c.b16 %v532, %v531
      %v616 = vpack.c.b16 %v534, %v533
      %v617 = vpack.c.b16 %v536, %v535
      %v618 = vpack.c.b16 %v538, %v537
      %v619 = vpack.c.b16 %v540, %v539
      %v620 = vpack.c.b16 %v542, %v541
      %v621 = vpack.c.b16 %v544, %v543
      %v622 = vpack.c.b16 %v546, %v545
      %v623 = vpack.c.b16 %v548, %v547
      %v624 = vpack.c.b16 %v550, %v549
      %v625 = vpack.c.b16 %v552, %v551
      %v626 = vpack.c.b16 %v554, %v553
      %v627 = vpack.c.b16 %v556, %v555
      %v628 = vpack.c.b16 %v558, %v557
      %v629 = vpack.c.b16 %v560, %v559
      %v630 = vpack.c.b16 %v562, %v561
      %v631 = vpack.c.b16 %v564, %v563
      %v632 = vpack.c.b16 %v566, %v565
      %v633 = vpack.c.b16 %v568, %v567
      %v634 = vpack.c.b16 %v570, %v569
      %v640 = vunpack.c.l.b16 %v303
      %v641 = vunpack.c.l.b16 %v304
      %v642 = vunpack.c.l.b16 %v305
      %v643 = vunpack.c.l.b16 %v306
      %v644 = vunpack.c.l.b16 %v307
      %v645 = vpack.c.b16 %v641, %v640
      %v646 = vpack.c.b16 %v643, %v642
      %v647 = vpack.c.b16 %v644, %v644
      %vm650 = vcmask 293888
      %v652 = vsel %vm650, %v571, 0
      %v655 = vsel %vm650, %v572, 0
      %v658 = vsel %vm650, %v573, 0
      %v661 = vsel %vm650, %v574, 0
      %v664 = vsel %vm650, %v575, 0
      %v667 = vsel %vm650, %v576, 0
      %v670 = vsel %vm650, %v577, 0
      %v673 = vsel %vm650, %v578, 0
      %v676 = vsel %vm650, %v579, 0
      %v679 = vsel %vm650, %v580, 0
      %v682 = vsel %vm650, %v581, 0
      %v685 = vsel %vm650, %v582, 0
      %v688 = vsel %vm650, %v583, 0
      %v691 = vsel %vm650, %v584, 0
      %v694 = vsel %vm650, %v585, 0
      %v697 = vsel %vm650, %v586, 0
      %v700 = vsel %vm650, %v587, 0
      %v703 = vsel %vm650, %v588, 0
      %v706 = vsel %vm650, %v589, 0
      %v709 = vsel %vm650, %v590, 0
      %v712 = vsel %vm650, %v591, 0
      %v715 = vsel %vm650, %v592, 0
      %v718 = vsel %vm650, %v593, 0
      %v721 = vsel %vm650, %v594, 0
      %v724 = vsel %vm650, %v595, 0
      %v727 = vsel %vm650, %v596, 0
      %v730 = vsel %vm650, %v597, 0
      %v733 = vsel %vm650, %v598, 0
      %v736 = vsel %vm650, %v599, 0
      %v739 = vsel %vm650, %v600, 0
      %v742 = vsel %vm650, %v601, 0
      %v745 = vsel %vm650, %v602, 0
      %v748 = vsel %vm650, %v603, 0
      %v751 = vsel %vm650, %v604, 0
      %v754 = vsel %vm650, %v605, 0
      %v757 = vsel %vm650, %v606, 0
      %v760 = vsel %vm650, %v607, 0
      %v763 = vsel %vm650, %v608, 0
      %v766 = vsel %vm650, %v609, 0
      %v769 = vsel %vm650, %v610, 0
      %v772 = vsel %vm650, %v611, 0
      %v775 = vsel %vm650, %v612, 0
      %v778 = vsel %vm650, %v613, 0
      %v781 = vsel %vm650, %v614, 0
      %v784 = vsel %vm650, %v615, 0
      %v787 = vsel %vm650, %v616, 0
      %v790 = vsel %vm650, %v617, 0
      %v793 = vsel %vm650, %v618, 0
      %v796 = vsel %vm650, %v619, 0
      %v799 = vsel %vm650, %v620, 0
      %v802 = vsel %vm650, %v621, 0
      %v805 = vsel %vm650, %v622, 0
      %v808 = vsel %vm650, %v623, 0
      %v811 = vsel %vm650, %v624, 0
      %v814 = vsel %vm650, %v625, 0
      %v817 = vsel %vm650, %v626, 0
      %v820 = vsel %vm650, %v627, 0
      %v823 = vsel %vm650, %v628, 0
      %v826 = vsel %vm650, %v629, 0
      %v829 = vsel %vm650, %v630, 0
      %v832 = vsel %vm650, %v631, 0
      %v835 = vsel %vm650, %v632, 0
      %v838 = vsel %vm650, %v633, 0
      %v841 = vsel %vm650, %v634, 0
      %vm843 = vcmask 1041408
      %v845 = vsel %vm843, %v647, 0
      %847 = vmatprep.subr.bf16.mxu0 0
      %848 = vmatpush1.bf16.msra.mxu0 %v645
      %849 = vmatprep.subr.bf16.mxu0 0
      %850 = vmatpush1.bf16.msra.mxu0 %v646
      %851 = vmatprep.subr.bf16.mxu0 0
      %852 = vmatpush1.bf16.msra.mxu0 %v845
      %853 = vmatprep.subr.bf16.mxu0 0
      %854 = vmatpush1.bf16.msra.mxu0 0
      %855 = vmatprep.subr.bf16.mxu0 0
      %856 = vmatpush1.bf16.msra.mxu0 0
      %857 = vmatprep.subr.bf16.mxu0 0
      %858 = vmatpush1.bf16.msra.mxu0 0
      %859 = vmatprep.subr.bf16.mxu0 0
      %860 = vmatpush1.bf16.msra.mxu0 0
      %861 = vmatprep.subr.bf16.mxu0 0
      %862 = vmatpush1.bf16.msra.mxu0 0
      %863 = vmatprep.subr.bf16.mxu0 0
      %864 = vmatpush1.bf16.msra.mxu0 0
      %865 = vmatprep.subr.bf16.mxu0 0
      %866 = vmatpush1.bf16.msra.mxu0 0
      %867 = vmatprep.subr.bf16.mxu0 0
      %868 = vmatpush1.bf16.msra.mxu0 0
      %869 = vmatprep.subr.bf16.mxu0 0
      %870 = vmatpush1.bf16.msra.mxu0 0
      %871 = vmatprep.subr.bf16.mxu0 0
      %872 = vmatpush1.bf16.msra.mxu0 0
      %873 = vmatprep.subr.bf16.mxu0 0
      %874 = vmatpush1.bf16.msra.mxu0 0
      %875 = vmatprep.subr.bf16.mxu0 0
      %876 = vmatpush1.bf16.msra.mxu0 0
      %877 = vmatprep.subr.bf16.mxu0 0
      %878 = vmatpush1.bf16.msra.mxu0 0
      %879 = vmatprep.mubr.bf16.mxu0 0
      %880 = vmatmul.mubr.bf16.gmra.mrb[0].mxu0 %v652
      %v881 = vpop.f32.mrb[0].mxu0
      %v882 = vadd.f32 %v313, %v881
      %v883 = vpop.f32.mrb[0].mxu0
      %v884 = vpop.f32.mrb[0].mxu0
      %v885 = vadd.f32 %v313, %v884
      %v886 = vpop.f32.mrb[0].mxu0
      %887 = vmatprep.mubr.bf16.mxu0 0
      %888 = vmatmul.mubr.bf16.gmra.mrb[0].mxu0 %v655
      %v889 = vpop.f32.mrb[0].mxu0
      %v890 = vadd.f32 %v313, %v889
      %v891 = vpop.f32.mrb[0].mxu0
      %v892 = vpop.f32.mrb[0].mxu0
      %v893 = vadd.f32 %v313, %v892
      %v894 = vpop.f32.mrb[0].mxu0
      %895 = vmatprep.mubr.bf16.mxu0 0
      %896 = vmatmul.mubr.bf16.gmra.mrb[0].mxu0 %v658
      %v897 = vpop.f32.mrb[0].mxu0
      %v898 = vadd.f32 %v313, %v897
      %v899 = vpop.f32.mrb[0].mxu0
      %v900 = vpop.f32.mrb[0].mxu0
      %v901 = vadd.f32 %v313, %v900
      %v902 = vpop.f32.mrb[0].mxu0
      %903 = vmatprep.mubr.bf16.mxu0 0
      %904 = vmatmul.mubr.bf16.gmra.mrb[0].mxu0 %v661
      %v905 = vpop.f32.mrb[0].mxu0
      %v906 = vadd.f32 %v313, %v905
      %v907 = vpop.f32.mrb[0].mxu0
      %v908 = vpop.f32.mrb[0].mxu0
      %v909 = vadd.f32 %v313, %v908
      %v910 = vpop.f32.mrb[0].mxu0
      %911 = vmatprep.mubr.bf16.mxu0 0
      %912 = vmatmul.mubr.bf16.gmra.mrb[0].mxu0 %v664
      %v913 = vpop.f32.mrb[0].mxu0
      %v914 = vadd.f32 %v313, %v913
      %v915 = vpop.f32.mrb[0].mxu0
      %v916 = vpop.f32.mrb[0].mxu0
      %v917 = vadd.f32 %v313, %v916
      %v918 = vpop.f32.mrb[0].mxu0
      %919 = vmatprep.mubr.bf16.mxu0 0
      %920 = vmatmul.mubr.bf16.gmra.mrb[0].mxu0 %v667
      %v921 = vpop.f32.mrb[0].mxu0
      %v922 = vadd.f32 %v313, %v921
      %v923 = vpop.f32.mrb[0].mxu0
      %v924 = vpop.f32.mrb[0].mxu0
      %v925 = vadd.f32 %v313, %v924
      %v926 = vpop.f32.mrb[0].mxu0
      %927 = vmatprep.mubr.bf16.mxu0 0
      %928 = vmatmul.mubr.bf16.gmra.mrb[0].mxu0 %v670
      %v929 = vpop.f32.mrb[0].mxu0
      %v930 = vadd.f32 %v313, %v929
      %v931 = vpop.f32.mrb[0].mxu0
      %v932 = vpop.f32.mrb[0].mxu0
      %v933 = vadd.f32 %v313, %v932
      %v934 = vpop.f32.mrb[0].mxu0
      %935 = vmatprep.mubr.bf16.mxu0 0
      %936 = vmatmul.mubr.bf16.gmra.mrb[0].mxu0 %v673
      %v937 = vpop.f32.mrb[0].mxu0
      %v938 = vadd.f32 %v313, %v937
      %v939 = vpop.f32.mrb[0].mxu0
      %v940 = vpop.f32.mrb[0].mxu0
      %v941 = vadd.f32 %v313, %v940
      %v942 = vpop.f32.mrb[0].mxu0
      %943 = vmatprep.mubr.bf16.mxu0 0
      %944 = vmatmul.mubr.bf16.gmra.mrb[0].mxu0 %v676
      %v945 = vpop.f32.mrb[0].mxu0
      %v946 = vadd.f32 %v313, %v945
      %v947 = vpop.f32.mrb[0].mxu0
      %v948 = vpop.f32.mrb[0].mxu0
      %v949 = vadd.f32 %v313, %v948
      %v950 = vpop.f32.mrb[0].mxu0
      %951 = vmatprep.mubr.bf16.mxu0 0
      %952 = vmatmul.mubr.bf16.gmra.mrb[0].mxu0 %v679
      %v953 = vpop.f32.mrb[0].mxu0
      %v954 = vadd.f32 %v313, %v953
      %v955 = vpop.f32.mrb[0].mxu0
      %v956 = vpop.f32.mrb[0].mxu0
      %v957 = vadd.f32 %v313, %v956
      %v958 = vpop.f32.mrb[0].mxu0
      %959 = vmatprep.mubr.bf16.mxu0 0
      %960 = vmatmul.mubr.bf16.gmra.mrb[0].mxu0 %v682
      %v961 = vpop.f32.mrb[0].mxu0
      %v962 = vadd.f32 %v313, %v961
      %v963 = vpop.f32.mrb[0].mxu0
      %v964 = vpop.f32.mrb[0].mxu0
      %v965 = vadd.f32 %v313, %v964
      %v966 = vpop.f32.mrb[0].mxu0
      %967 = vmatprep.mubr.bf16.mxu0 0
      %968 = vmatmul.mubr.bf16.gmra.mrb[0].mxu0 %v685
      %v969 = vpop.f32.mrb[0].mxu0
      %v970 = vadd.f32 %v313, %v969
      %v971 = vpop.f32.mrb[0].mxu0
      %v972 = vpop.f32.mrb[0].mxu0
      %v973 = vadd.f32 %v313, %v972
      %v974 = vpop.f32.mrb[0].mxu0
      %975 = vmatprep.mubr.bf16.mxu0 0
      %976 = vmatmul.mubr.bf16.gmra.mrb[0].mxu0 %v688
      %v977 = vpop.f32.mrb[0].mxu0
      %v978 = vadd.f32 %v313, %v977
      %v979 = vpop.f32.mrb[0].mxu0
      %v980 = vpop.f32.mrb[0].mxu0
      %v981 = vadd.f32 %v313, %v980
      %v982 = vpop.f32.mrb[0].mxu0
      %983 = vmatprep.mubr.bf16.mxu0 0
      %984 = vmatmul.mubr.bf16.gmra.mrb[0].mxu0 %v691
      %v985 = vpop.f32.mrb[0].mxu0
      %v986 = vadd.f32 %v313, %v985
      %v987 = vpop.f32.mrb[0].mxu0
      %v988 = vpop.f32.mrb[0].mxu0
      %v989 = vadd.f32 %v313, %v988
      %v990 = vpop.f32.mrb[0].mxu0
      %991 = vmatprep.mubr.bf16.mxu0 0
      %992 = vmatmul.mubr.bf16.gmra.mrb[0].mxu0 %v694
      %v993 = vpop.f32.mrb[0].mxu0
      %v994 = vadd.f32 %v313, %v993
      %v995 = vpop.f32.mrb[0].mxu0
      %v996 = vpop.f32.mrb[0].mxu0
      %v997 = vadd.f32 %v313, %v996
      %v998 = vpop.f32.mrb[0].mxu0
      %999 = vmatprep.mubr.bf16.mxu0 0
      %1000 = vmatmul.mubr.bf16.gmra.mrb[0].mxu0 %v697
      %v1001 = vpop.f32.mrb[0].mxu0
      %v1002 = vadd.f32 %v313, %v1001
      %v1003 = vpop.f32.mrb[0].mxu0
      %v1004 = vpop.f32.mrb[0].mxu0
      %v1005 = vadd.f32 %v313, %v1004
      %v1006 = vpop.f32.mrb[0].mxu0
      %1007 = vmatprep.mubr.bf16.mxu0 0
      %1008 = vmatmul.mubr.bf16.gmra.mrb[0].mxu0 %v700
      %v1009 = vpop.f32.mrb[0].mxu0
      %v1010 = vadd.f32 %v313, %v1009
      %v1011 = vpop.f32.mrb[0].mxu0
      %v1012 = vpop.f32.mrb[0].mxu0
      %v1013 = vadd.f32 %v313, %v1012
      %v1014 = vpop.f32.mrb[0].mxu0
      %1015 = vmatprep.mubr.bf16.mxu0 0
      %1016 = vmatmul.mubr.bf16.gmra.mrb[0].mxu0 %v703
      %v1017 = vpop.f32.mrb[0].mxu0
      %v1018 = vadd.f32 %v313, %v1017
      %v1019 = vpop.f32.mrb[0].mxu0
      %v1020 = vpop.f32.mrb[0].mxu0
      %v1021 = vadd.f32 %v313, %v1020
      %v1022 = vpop.f32.mrb[0].mxu0
      %1023 = vmatprep.mubr.bf16.mxu0 0
      %1024 = vmatmul.mubr.bf16.gmra.mrb[0].mxu0 %v706
      %v1025 = vpop.f32.mrb[0].mxu0
      %v1026 = vadd.f32 %v313, %v1025
      %v1027 = vpop.f32.mrb[0].mxu0
      %v1028 = vpop.f32.mrb[0].mxu0
      %v1029 = vadd.f32 %v313, %v1028
      %v1030 = vpop.f32.mrb[0].mxu0
      %1031 = vmatprep.mubr.bf16.mxu0 0
      %1032 = vmatmul.mubr.bf16.gmra.mrb[0].mxu0 %v709
      %v1033 = vpop.f32.mrb[0].mxu0
      %v1034 = vadd.f32 %v313, %v1033
      %v1035 = vpop.f32.mrb[0].mxu0
      %v1036 = vpop.f32.mrb[0].mxu0
      %v1037 = vadd.f32 %v313, %v1036
      %v1038 = vpop.f32.mrb[0].mxu0
      %1039 = vmatprep.mubr.bf16.mxu0 0
      %1040 = vmatmul.mubr.bf16.gmra.mrb[0].mxu0 %v712
      %v1041 = vpop.f32.mrb[0].mxu0
      %v1042 = vadd.f32 %v313, %v1041
      %v1043 = vpop.f32.mrb[0].mxu0
      %v1044 = vpop.f32.mrb[0].mxu0
      %v1045 = vadd.f32 %v313, %v1044
      %v1046 = vpop.f32.mrb[0].mxu0
      %1047 = vmatprep.mubr.bf16.mxu0 0
      %1048 = vmatmul.mubr.bf16.gmra.mrb[0].mxu0 %v715
      %v1049 = vpop.f32.mrb[0].mxu0
      %v1050 = vadd.f32 %v313, %v1049
      %v1051 = vpop.f32.mrb[0].mxu0
      %v1052 = vpop.f32.mrb[0].mxu0
      %v1053 = vadd.f32 %v313, %v1052
      %v1054 = vpop.f32.mrb[0].mxu0
      %1055 = vmatprep.mubr.bf16.mxu0 0
      %1056 = vmatmul.mubr.bf16.gmra.mrb[0].mxu0 %v718
      %v1057 = vpop.f32.mrb[0].mxu0
      %v1058 = vadd.f32 %v313, %v1057
      %v1059 = vpop.f32.mrb[0].mxu0
      %v1060 = vpop.f32.mrb[0].mxu0
      %v1061 = vadd.f32 %v313, %v1060
      %v1062 = vpop.f32.mrb[0].mxu0
      %1063 = vmatprep.mubr.bf16.mxu0 0
      %1064 = vmatmul.mubr.bf16.gmra.mrb[0].mxu0 %v721
      %v1065 = vpop.f32.mrb[0].mxu0
      %v1066 = vadd.f32 %v313, %v1065
      %v1067 = vpop.f32.mrb[0].mxu0
      %v1068 = vpop.f32.mrb[0].mxu0
      %v1069 = vadd.f32 %v313, %v1068
      %v1070 = vpop.f32.mrb[0].mxu0
      %1071 = vmatprep.mubr.bf16.mxu0 0
      %1072 = vmatmul.mubr.bf16.gmra.mrb[0].mxu0 %v724
      %v1073 = vpop.f32.mrb[0].mxu0
      %v1074 = vadd.f32 %v313, %v1073
      %v1075 = vpop.f32.mrb[0].mxu0
      %v1076 = vpop.f32.mrb[0].mxu0
      %v1077 = vadd.f32 %v313, %v1076
      %v1078 = vpop.f32.mrb[0].mxu0
      %1079 = vmatprep.mubr.bf16.mxu0 0
      %1080 = vmatmul.mubr.bf16.gmra.mrb[0].mxu0 %v727
      %v1081 = vpop.f32.mrb[0].mxu0
      %v1082 = vadd.f32 %v313, %v1081
      %v1083 = vpop.f32.mrb[0].mxu0
      %v1084 = vpop.f32.mrb[0].mxu0
      %v1085 = vadd.f32 %v313, %v1084
      %v1086 = vpop.f32.mrb[0].mxu0
      %1087 = vmatprep.mubr.bf16.mxu0 0
      %1088 = vmatmul.mubr.bf16.gmra.mrb[0].mxu0 %v730
      %v1089 = vpop.f32.mrb[0].mxu0
      %v1090 = vadd.f32 %v313, %v1089
      %v1091 = vpop.f32.mrb[0].mxu0
      %v1092 = vpop.f32.mrb[0].mxu0
      %v1093 = vadd.f32 %v313, %v1092
      %v1094 = vpop.f32.mrb[0].mxu0
      %1095 = vmatprep.mubr.bf16.mxu0 0
      %1096 = vmatmul.mubr.bf16.gmra.mrb[0].mxu0 %v733
      %v1097 = vpop.f32.mrb[0].mxu0
      %v1098 = vadd.f32 %v313, %v1097
      %v1099 = vpop.f32.mrb[0].mxu0
      %v1100 = vpop.f32.mrb[0].mxu0
      %v1101 = vadd.f32 %v313, %v1100
      %v1102 = vpop.f32.mrb[0].mxu0
      %1103 = vmatprep.mubr.bf16.mxu0 0
      %1104 = vmatmul.mubr.bf16.gmra.mrb[0].mxu0 %v736
      %v1105 = vpop.f32.mrb[0].mxu0
      %v1106 = vadd.f32 %v313, %v1105
      %v1107 = vpop.f32.mrb[0].mxu0
      %v1108 = vpop.f32.mrb[0].mxu0
      %v1109 = vadd.f32 %v313, %v1108
      %v1110 = vpop.f32.mrb[0].mxu0
      %1111 = vmatprep.mubr.bf16.mxu0 0
      %1112 = vmatmul.mubr.bf16.gmra.mrb[0].mxu0 %v739
      %v1113 = vpop.f32.mrb[0].mxu0
      %v1114 = vadd.f32 %v313, %v1113
      %v1115 = vpop.f32.mrb[0].mxu0
      %v1116 = vpop.f32.mrb[0].mxu0
      %v1117 = vadd.f32 %v313, %v1116
      %v1118 = vpop.f32.mrb[0].mxu0
      %1119 = vmatprep.mubr.bf16.mxu0 0
      %1120 = vmatmul.mubr.bf16.gmra.mrb[0].mxu0 %v742
      %v1121 = vpop.f32.mrb[0].mxu0
      %v1122 = vadd.f32 %v313, %v1121
      %v1123 = vpop.f32.mrb[0].mxu0
      %v1124 = vpop.f32.mrb[0].mxu0
      %v1125 = vadd.f32 %v313, %v1124
      %v1126 = vpop.f32.mrb[0].mxu0
      %1127 = vmatprep.mubr.bf16.mxu0 0
      %1128 = vmatmul.mubr.bf16.gmra.mrb[0].mxu0 %v745
      %v1129 = vpop.f32.mrb[0].mxu0
      %v1130 = vadd.f32 %v313, %v1129
      %v1131 = vpop.f32.mrb[0].mxu0
      %v1132 = vpop.f32.mrb[0].mxu0
      %v1133 = vadd.f32 %v313, %v1132
      %v1134 = vpop.f32.mrb[0].mxu0
      %1135 = vmatprep.mubr.bf16.mxu0 0
      %1136 = vmatmul.mubr.bf16.gmra.mrb[0].mxu0 %v748
      %v1137 = vpop.f32.mrb[0].mxu0
      %v1138 = vadd.f32 %v313, %v1137
      %v1139 = vpop.f32.mrb[0].mxu0
      %v1140 = vpop.f32.mrb[0].mxu0
      %v1141 = vadd.f32 %v313, %v1140
      %v1142 = vpop.f32.mrb[0].mxu0
      %1143 = vmatprep.mubr.bf16.mxu0 0
      %1144 = vmatmul.mubr.bf16.gmra.mrb[0].mxu0 %v751
      %v1145 = vpop.f32.mrb[0].mxu0
      %v1146 = vadd.f32 %v313, %v1145
      %v1147 = vpop.f32.mrb[0].mxu0
      %v1148 = vpop.f32.mrb[0].mxu0
      %v1149 = vadd.f32 %v313, %v1148
      %v1150 = vpop.f32.mrb[0].mxu0
      %1151 = vmatprep.mubr.bf16.mxu0 0
      %1152 = vmatmul.mubr.bf16.gmra.mrb[0].mxu0 %v754
      %v1153 = vpop.f32.mrb[0].mxu0
      %v1154 = vadd.f32 %v313, %v1153
      %v1155 = vpop.f32.mrb[0].mxu0
      %v1156 = vpop.f32.mrb[0].mxu0
      %v1157 = vadd.f32 %v313, %v1156
      %v1158 = vpop.f32.mrb[0].mxu0
      %1159 = vmatprep.mubr.bf16.mxu0 0
      %1160 = vmatmul.mubr.bf16.gmra.mrb[0].mxu0 %v757
      %v1161 = vpop.f32.mrb[0].mxu0
      %v1162 = vadd.f32 %v313, %v1161
      %v1163 = vpop.f32.mrb[0].mxu0
      %v1164 = vpop.f32.mrb[0].mxu0
      %v1165 = vadd.f32 %v313, %v1164
      %v1166 = vpop.f32.mrb[0].mxu0
      %1167 = vmatprep.mubr.bf16.mxu0 0
      %1168 = vmatmul.mubr.bf16.gmra.mrb[0].mxu0 %v760
      %v1169 = vpop.f32.mrb[0].mxu0
      %v1170 = vadd.f32 %v313, %v1169
      %v1171 = vpop.f32.mrb[0].mxu0
      %v1172 = vpop.f32.mrb[0].mxu0
      %v1173 = vadd.f32 %v313, %v1172
      %v1174 = vpop.f32.mrb[0].mxu0
      %1175 = vmatprep.mubr.bf16.mxu0 0
      %1176 = vmatmul.mubr.bf16.gmra.mrb[0].mxu0 %v763
      %v1177 = vpop.f32.mrb[0].mxu0
      %v1178 = vadd.f32 %v313, %v1177
      %v1179 = vpop.f32.mrb[0].mxu0
      %v1180 = vpop.f32.mrb[0].mxu0
      %v1181 = vadd.f32 %v313, %v1180
      %v1182 = vpop.f32.mrb[0].mxu0
      %1183 = vmatprep.mubr.bf16.mxu0 0
      %1184 = vmatmul.mubr.bf16.gmra.mrb[0].mxu0 %v766
      %v1185 = vpop.f32.mrb[0].mxu0
      %v1186 = vadd.f32 %v313, %v1185
      %v1187 = vpop.f32.mrb[0].mxu0
      %v1188 = vpop.f32.mrb[0].mxu0
      %v1189 = vadd.f32 %v313, %v1188
      %v1190 = vpop.f32.mrb[0].mxu0
      %1191 = vmatprep.mubr.bf16.mxu0 0
      %1192 = vmatmul.mubr.bf16.gmra.mrb[0].mxu0 %v769
      %v1193 = vpop.f32.mrb[0].mxu0
      %v1194 = vadd.f32 %v313, %v1193
      %v1195 = vpop.f32.mrb[0].mxu0
      %v1196 = vpop.f32.mrb[0].mxu0
      %v1197 = vadd.f32 %v313, %v1196
      %v1198 = vpop.f32.mrb[0].mxu0
      %1199 = vmatprep.mubr.bf16.mxu0 0
      %1200 = vmatmul.mubr.bf16.gmra.mrb[0].mxu0 %v772
      %v1201 = vpop.f32.mrb[0].mxu0
      %v1202 = vadd.f32 %v313, %v1201
      %v1203 = vpop.f32.mrb[0].mxu0
      %v1204 = vpop.f32.mrb[0].mxu0
      %v1205 = vadd.f32 %v313, %v1204
      %v1206 = vpop.f32.mrb[0].mxu0
      %1207 = vmatprep.mubr.bf16.mxu0 0
      %1208 = vmatmul.mubr.bf16.gmra.mrb[0].mxu0 %v775
      %v1209 = vpop.f32.mrb[0].mxu0
      %v1210 = vadd.f32 %v313, %v1209
      %v1211 = vpop.f32.mrb[0].mxu0
      %v1212 = vpop.f32.mrb[0].mxu0
      %v1213 = vadd.f32 %v313, %v1212
      %v1214 = vpop.f32.mrb[0].mxu0
      %1215 = vmatprep.mubr.bf16.mxu0 0
      %1216 = vmatmul.mubr.bf16.gmra.mrb[0].mxu0 %v778
      %v1217 = vpop.f32.mrb[0].mxu0
      %v1218 = vadd.f32 %v313, %v1217
      %v1219 = vpop.f32.mrb[0].mxu0
      %v1220 = vpop.f32.mrb[0].mxu0
      %v1221 = vadd.f32 %v313, %v1220
      %v1222 = vpop.f32.mrb[0].mxu0
      %1223 = vmatprep.mubr.bf16.mxu0 0
      %1224 = vmatmul.mubr.bf16.gmra.mrb[0].mxu0 %v781
      %v1225 = vpop.f32.mrb[0].mxu0
      %v1226 = vadd.f32 %v313, %v1225
      %v1227 = vpop.f32.mrb[0].mxu0
      %v1228 = vpop.f32.mrb[0].mxu0
      %v1229 = vadd.f32 %v313, %v1228
      %v1230 = vpop.f32.mrb[0].mxu0
      %1231 = vmatprep.mubr.bf16.mxu0 0
      %1232 = vmatmul.mubr.bf16.gmra.mrb[0].mxu0 %v784
      %v1233 = vpop.f32.mrb[0].mxu0
      %v1234 = vadd.f32 %v313, %v1233
      %v1235 = vpop.f32.mrb[0].mxu0
      %v1236 = vpop.f32.mrb[0].mxu0
      %v1237 = vadd.f32 %v313, %v1236
      %v1238 = vpop.f32.mrb[0].mxu0
      %1239 = vmatprep.mubr.bf16.mxu0 0
      %1240 = vmatmul.mubr.bf16.gmra.mrb[0].mxu0 %v787
      %v1241 = vpop.f32.mrb[0].mxu0
      %v1242 = vadd.f32 %v313, %v1241
      %v1243 = vpop.f32.mrb[0].mxu0
      %v1244 = vpop.f32.mrb[0].mxu0
      %v1245 = vadd.f32 %v313, %v1244
      %v1246 = vpop.f32.mrb[0].mxu0
      %1247 = vmatprep.mubr.bf16.mxu0 0
      %1248 = vmatmul.mubr.bf16.gmra.mrb[0].mxu0 %v790
      %v1249 = vpop.f32.mrb[0].mxu0
      %v1250 = vadd.f32 %v313, %v1249
      %v1251 = vpop.f32.mrb[0].mxu0
      %v1252 = vpop.f32.mrb[0].mxu0
      %v1253 = vadd.f32 %v313, %v1252
      %v1254 = vpop.f32.mrb[0].mxu0
      %1255 = vmatprep.mubr.bf16.mxu0 0
      %1256 = vmatmul.mubr.bf16.gmra.mrb[0].mxu0 %v793
      %v1257 = vpop.f32.mrb[0].mxu0
      %v1258 = vadd.f32 %v313, %v1257
      %v1259 = vpop.f32.mrb[0].mxu0
      %v1260 = vpop.f32.mrb[0].mxu0
      %v1261 = vadd.f32 %v313, %v1260
      %v1262 = vpop.f32.mrb[0].mxu0
      %1263 = vmatprep.mubr.bf16.mxu0 0
      %1264 = vmatmul.mubr.bf16.gmra.mrb[0].mxu0 %v796
      %v1265 = vpop.f32.mrb[0].mxu0
      %v1266 = vadd.f32 %v313, %v1265
      %v1267 = vpop.f32.mrb[0].mxu0
      %v1268 = vpop.f32.mrb[0].mxu0
      %v1269 = vadd.f32 %v313, %v1268
      %v1270 = vpop.f32.mrb[0].mxu0
      %1271 = vmatprep.mubr.bf16.mxu0 0
      %1272 = vmatmul.mubr.bf16.gmra.mrb[0].mxu0 %v799
      %v1273 = vpop.f32.mrb[0].mxu0
      %v1274 = vadd.f32 %v313, %v1273
      %v1275 = vpop.f32.mrb[0].mxu0
      %v1276 = vpop.f32.mrb[0].mxu0
      %v1277 = vadd.f32 %v313, %v1276
      %v1278 = vpop.f32.mrb[0].mxu0
      %1279 = vmatprep.mubr.bf16.mxu0 0
      %1280 = vmatmul.mubr.bf16.gmra.mrb[0].mxu0 %v802
      %v1281 = vpop.f32.mrb[0].mxu0
      %v1282 = vadd.f32 %v313, %v1281
      %v1283 = vpop.f32.mrb[0].mxu0
      %v1284 = vpop.f32.mrb[0].mxu0
      %v1285 = vadd.f32 %v313, %v1284
      %v1286 = vpop.f32.mrb[0].mxu0
      %1287 = vmatprep.mubr.bf16.mxu0 0
      %1288 = vmatmul.mubr.bf16.gmra.mrb[0].mxu0 %v805
      %v1289 = vpop.f32.mrb[0].mxu0
      %v1290 = vadd.f32 %v313, %v1289
      %v1291 = vpop.f32.mrb[0].mxu0
      %v1292 = vpop.f32.mrb[0].mxu0
      %v1293 = vadd.f32 %v313, %v1292
      %v1294 = vpop.f32.mrb[0].mxu0
      %1295 = vmatprep.mubr.bf16.mxu0 0
      %1296 = vmatmul.mubr.bf16.gmra.mrb[0].mxu0 %v808
      %v1297 = vpop.f32.mrb[0].mxu0
      %v1298 = vadd.f32 %v313, %v1297
      %v1299 = vpop.f32.mrb[0].mxu0
      %v1300 = vpop.f32.mrb[0].mxu0
      %v1301 = vadd.f32 %v313, %v1300
      %v1302 = vpop.f32.mrb[0].mxu0
      %1303 = vmatprep.mubr.bf16.mxu0 0
      %1304 = vmatmul.mubr.bf16.gmra.mrb[0].mxu0 %v811
      %v1305 = vpop.f32.mrb[0].mxu0
      %v1306 = vadd.f32 %v313, %v1305
      %v1307 = vpop.f32.mrb[0].mxu0
      %v1308 = vpop.f32.mrb[0].mxu0
      %v1309 = vadd.f32 %v313, %v1308
      %v1310 = vpop.f32.mrb[0].mxu0
      %1311 = vmatprep.mubr.bf16.mxu0 0
      %1312 = vmatmul.mubr.bf16.gmra.mrb[0].mxu0 %v814
      %v1313 = vpop.f32.mrb[0].mxu0
      %v1314 = vadd.f32 %v313, %v1313
      %v1315 = vpop.f32.mrb[0].mxu0
      %v1316 = vpop.f32.mrb[0].mxu0
      %v1317 = vadd.f32 %v313, %v1316
      %v1318 = vpop.f32.mrb[0].mxu0
      %1319 = vmatprep.mubr.bf16.mxu0 0
      %1320 = vmatmul.mubr.bf16.gmra.mrb[0].mxu0 %v817
      %v1321 = vpop.f32.mrb[0].mxu0
      %v1322 = vadd.f32 %v313, %v1321
      %v1323 = vpop.f32.mrb[0].mxu0
      %v1324 = vpop.f32.mrb[0].mxu0
      %v1325 = vadd.f32 %v313, %v1324
      %v1326 = vpop.f32.mrb[0].mxu0
      %1327 = vmatprep.mubr.bf16.mxu0 0
      %1328 = vmatmul.mubr.bf16.gmra.mrb[0].mxu0 %v820
      %v1329 = vpop.f32.mrb[0].mxu0
      %v1330 = vadd.f32 %v313, %v1329
      %v1331 = vpop.f32.mrb[0].mxu0
      %v1332 = vpop.f32.mrb[0].mxu0
      %v1333 = vadd.f32 %v313, %v1332
      %v1334 = vpop.f32.mrb[0].mxu0
      %1335 = vmatprep.mubr.bf16.mxu0 0
      %1336 = vmatmul.mubr.bf16.gmra.mrb[0].mxu0 %v823
      %v1337 = vpop.f32.mrb[0].mxu0
      %v1338 = vadd.f32 %v313, %v1337
      %v1339 = vpop.f32.mrb[0].mxu0
      %v1340 = vpop.f32.mrb[0].mxu0
      %v1341 = vadd.f32 %v313, %v1340
      %v1342 = vpop.f32.mrb[0].mxu0
      %1343 = vmatprep.mubr.bf16.mxu0 0
      %1344 = vmatmul.mubr.bf16.gmra.mrb[0].mxu0 %v826
      %v1345 = vpop.f32.mrb[0].mxu0
      %v1346 = vadd.f32 %v313, %v1345
      %v1347 = vpop.f32.mrb[0].mxu0
      %v1348 = vpop.f32.mrb[0].mxu0
      %v1349 = vadd.f32 %v313, %v1348
      %v1350 = vpop.f32.mrb[0].mxu0
      %1351 = vmatprep.mubr.bf16.mxu0 0
      %1352 = vmatmul.mubr.bf16.gmra.mrb[0].mxu0 %v829
      %v1353 = vpop.f32.mrb[0].mxu0
      %v1354 = vadd.f32 %v313, %v1353
      %v1355 = vpop.f32.mrb[0].mxu0
      %v1356 = vpop.f32.mrb[0].mxu0
      %v1357 = vadd.f32 %v313, %v1356
      %v1358 = vpop.f32.mrb[0].mxu0
      %1359 = vmatprep.mubr.bf16.mxu0 0
      %1360 = vmatmul.mubr.bf16.gmra.mrb[0].mxu0 %v832
      %v1361 = vpop.f32.mrb[0].mxu0
      %v1362 = vadd.f32 %v313, %v1361
      %v1363 = vpop.f32.mrb[0].mxu0
      %v1364 = vpop.f32.mrb[0].mxu0
      %v1365 = vadd.f32 %v313, %v1364
      %v1366 = vpop.f32.mrb[0].mxu0
      %1367 = vmatprep.mubr.bf16.mxu0 0
      %1368 = vmatmul.mubr.bf16.gmra.mrb[0].mxu0 %v835
      %v1369 = vpop.f32.mrb[0].mxu0
      %v1370 = vadd.f32 %v313, %v1369
      %v1371 = vpop.f32.mrb[0].mxu0
      %v1372 = vpop.f32.mrb[0].mxu0
      %v1373 = vadd.f32 %v313, %v1372
      %v1374 = vpop.f32.mrb[0].mxu0
      %1375 = vmatprep.mubr.bf16.mxu0 0
      %1376 = vmatmul.mubr.bf16.gmra.mrb[0].mxu0 %v838
      %v1377 = vpop.f32.mrb[0].mxu0
      %v1378 = vadd.f32 %v313, %v1377
      %v1379 = vpop.f32.mrb[0].mxu0
      %v1380 = vpop.f32.mrb[0].mxu0
      %v1381 = vadd.f32 %v313, %v1380
      %v1382 = vpop.f32.mrb[0].mxu0
      %1383 = vmatprep.mubr.bf16.mxu0 0
      %1384 = vmatmul.mubr.bf16.gmra.mrb[0].mxu0 %v841
      %v1385 = vpop.f32.mrb[0].mxu0
      %v1386 = vadd.f32 %v313, %v1385
      %v1387 = vpop.f32.mrb[0].mxu0
      %v1388 = vpop.f32.mrb[0].mxu0
      %v1389 = vadd.f32 %v313, %v1388
      %v1390 = vpop.f32.mrb[0].mxu0
      %1391 = vdwg.mxu0
      %v1392 = vmax.f32 %v882, 0.0
      %v1393 = vmax.f32 %v885, 0.0
      %v1394 = vmax.f32 %v890, 0.0
      %v1395 = vmax.f32 %v893, 0.0
      %v1396 = vmax.f32 %v898, 0.0
      %v1397 = vmax.f32 %v901, 0.0
      %v1398 = vmax.f32 %v906, 0.0
      %v1399 = vmax.f32 %v909, 0.0
      %v1400 = vmax.f32 %v914, 0.0
      %v1401 = vmax.f32 %v917, 0.0
      %v1402 = vmax.f32 %v922, 0.0
      %v1403 = vmax.f32 %v925, 0.0
      %v1404 = vmax.f32 %v930, 0.0
      %v1405 = vmax.f32 %v933, 0.0
      %v1406 = vmax.f32 %v938, 0.0
      %v1407 = vmax.f32 %v941, 0.0
      %v1408 = vmax.f32 %v946, 0.0
      %v1409 = vmax.f32 %v949, 0.0
      %v1410 = vmax.f32 %v954, 0.0
      %v1411 = vmax.f32 %v957, 0.0
      %v1412 = vmax.f32 %v962, 0.0
      %v1413 = vmax.f32 %v965, 0.0
      %v1414 = vmax.f32 %v970, 0.0
      %v1415 = vmax.f32 %v973, 0.0
      %v1416 = vmax.f32 %v978, 0.0
      %v1417 = vmax.f32 %v981, 0.0
      %v1418 = vmax.f32 %v986, 0.0
      %v1419 = vmax.f32 %v989, 0.0
      %v1420 = vmax.f32 %v994, 0.0
      %v1421 = vmax.f32 %v997, 0.0
      %v1422 = vmax.f32 %v1002, 0.0
      %v1423 = vmax.f32 %v1005, 0.0
      %v1424 = vmax.f32 %v1010, 0.0
      %v1425 = vmax.f32 %v1013, 0.0
      %v1426 = vmax.f32 %v1018, 0.0
      %v1427 = vmax.f32 %v1021, 0.0
      %v1428 = vmax.f32 %v1026, 0.0
      %v1429 = vmax.f32 %v1029, 0.0
      %v1430 = vmax.f32 %v1034, 0.0
      %v1431 = vmax.f32 %v1037, 0.0
      %v1432 = vmax.f32 %v1042, 0.0
      %v1433 = vmax.f32 %v1045, 0.0
      %v1434 = vmax.f32 %v1050, 0.0
      %v1435 = vmax.f32 %v1053, 0.0
      %v1436 = vmax.f32 %v1058, 0.0
      %v1437 = vmax.f32 %v1061, 0.0
      %v1438 = vmax.f32 %v1066, 0.0
      %v1439 = vmax.f32 %v1069, 0.0
      %v1440 = vmax.f32 %v1074, 0.0
      %v1441 = vmax.f32 %v1077, 0.0
      %v1442 = vmax.f32 %v1082, 0.0
      %v1443 = vmax.f32 %v1085, 0.0
      %v1444 = vmax.f32 %v1090, 0.0
      %v1445 = vmax.f32 %v1093, 0.0
      %v1446 = vmax.f32 %v1098, 0.0
      %v1447 = vmax.f32 %v1101, 0.0
      %v1448 = vmax.f32 %v1106, 0.0
      %v1449 = vmax.f32 %v1109, 0.0
      %v1450 = vmax.f32 %v1114, 0.0
      %v1451 = vmax.f32 %v1117, 0.0
      %v1452 = vmax.f32 %v1122, 0.0
      %v1453 = vmax.f32 %v1125, 0.0
      %v1454 = vmax.f32 %v1130, 0.0
      %v1455 = vmax.f32 %v1133, 0.0
      %v1456 = vmax.f32 %v1138, 0.0
      %v1457 = vmax.f32 %v1141, 0.0
      %v1458 = vmax.f32 %v1146, 0.0
      %v1459 = vmax.f32 %v1149, 0.0
      %v1460 = vmax.f32 %v1154, 0.0
      %v1461 = vmax.f32 %v1157, 0.0
      %v1462 = vmax.f32 %v1162, 0.0
      %v1463 = vmax.f32 %v1165, 0.0
      %v1464 = vmax.f32 %v1170, 0.0
      %v1465 = vmax.f32 %v1173, 0.0
      %v1466 = vmax.f32 %v1178, 0.0
      %v1467 = vmax.f32 %v1181, 0.0
      %v1468 = vmax.f32 %v1186, 0.0
      %v1469 = vmax.f32 %v1189, 0.0
      %v1470 = vmax.f32 %v1194, 0.0
      %v1471 = vmax.f32 %v1197, 0.0
      %v1472 = vmax.f32 %v1202, 0.0
      %v1473 = vmax.f32 %v1205, 0.0
      %v1474 = vmax.f32 %v1210, 0.0
      %v1475 = vmax.f32 %v1213, 0.0
      %v1476 = vmax.f32 %v1218, 0.0
      %v1477 = vmax.f32 %v1221, 0.0
      %v1478 = vmax.f32 %v1226, 0.0
      %v1479 = vmax.f32 %v1229, 0.0
      %v1480 = vmax.f32 %v1234, 0.0
      %v1481 = vmax.f32 %v1237, 0.0
      %v1482 = vmax.f32 %v1242, 0.0
      %v1483 = vmax.f32 %v1245, 0.0
      %v1484 = vmax.f32 %v1250, 0.0
      %v1485 = vmax.f32 %v1253, 0.0
      %v1486 = vmax.f32 %v1258, 0.0
      %v1487 = vmax.f32 %v1261, 0.0
      %v1488 = vmax.f32 %v1266, 0.0
      %v1489 = vmax.f32 %v1269, 0.0
      %v1490 = vmax.f32 %v1274, 0.0
      %v1491 = vmax.f32 %v1277, 0.0
      %v1492 = vmax.f32 %v1282, 0.0
      %v1493 = vmax.f32 %v1285, 0.0
      %v1494 = vmax.f32 %v1290, 0.0
      %v1495 = vmax.f32 %v1293, 0.0
      %v1496 = vmax.f32 %v1298, 0.0
      %v1497 = vmax.f32 %v1301, 0.0
      %v1498 = vmax.f32 %v1306, 0.0
      %v1499 = vmax.f32 %v1309, 0.0
      %v1500 = vmax.f32 %v1314, 0.0
      %v1501 = vmax.f32 %v1317, 0.0
      %v1502 = vmax.f32 %v1322, 0.0
      %v1503 = vmax.f32 %v1325, 0.0
      %v1504 = vmax.f32 %v1330, 0.0
      %v1505 = vmax.f32 %v1333, 0.0
      %v1506 = vmax.f32 %v1338, 0.0
      %v1507 = vmax.f32 %v1341, 0.0
      %v1508 = vmax.f32 %v1346, 0.0
      %v1509 = vmax.f32 %v1349, 0.0
      %v1510 = vmax.f32 %v1354, 0.0
      %v1511 = vmax.f32 %v1357, 0.0
      %v1512 = vmax.f32 %v1362, 0.0
      %v1513 = vmax.f32 %v1365, 0.0
      %v1514 = vmax.f32 %v1370, 0.0
      %v1515 = vmax.f32 %v1373, 0.0
      %v1516 = vmax.f32 %v1378, 0.0
      %v1517 = vmax.f32 %v1381, 0.0
      %v1518 = vmax.f32 %v1386, 0.0
      %v1519 = vmax.f32 %v1389, 0.0
      %v1520 = vadd.f32 %v1392, %v1393
      %v1521 = vrot.slane %v1520, 4
      %v1522 = vadd.f32 %v1520, %v1521
      %v1523 = vrot.slane %v1522, 2
      %v1524 = vadd.f32 %v1522, %v1523
      %v1525 = vrot.slane %v1524, 1
      %v1526 = vadd.f32 %v1524, %v1525
      %v1527 = vadd.f32 %v1394, %v1395
      %v1528 = vrot.slane %v1527, 4
      %v1529 = vadd.f32 %v1527, %v1528
      %v1530 = vrot.slane %v1529, 2
      %v1531 = vadd.f32 %v1529, %v1530
      %v1532 = vrot.slane %v1531, 1
      %v1533 = vadd.f32 %v1531, %v1532
      %v1534 = vadd.f32 %v1396, %v1397
      %v1535 = vrot.slane %v1534, 4
      %v1536 = vadd.f32 %v1534, %v1535
      %v1537 = vrot.slane %v1536, 2
      %v1538 = vadd.f32 %v1536, %v1537
      %v1539 = vrot.slane %v1538, 1
      %v1540 = vadd.f32 %v1538, %v1539
      %v1541 = vadd.f32 %v1398, %v1399
      %v1542 = vrot.slane %v1541, 4
      %v1543 = vadd.f32 %v1541, %v1542
      %v1544 = vrot.slane %v1543, 2
      %v1545 = vadd.f32 %v1543, %v1544
      %v1546 = vrot.slane %v1545, 1
      %v1547 = vadd.f32 %v1545, %v1546
      %v1548 = vadd.f32 %v1400, %v1401
      %v1549 = vrot.slane %v1548, 4
      %v1550 = vadd.f32 %v1548, %v1549
      %v1551 = vrot.slane %v1550, 2
      %v1552 = vadd.f32 %v1550, %v1551
      %v1553 = vrot.slane %v1552, 1
      %v1554 = vadd.f32 %v1552, %v1553
      %v1555 = vadd.f32 %v1402, %v1403
      %v1556 = vrot.slane %v1555, 4
      %v1557 = vadd.f32 %v1555, %v1556
      %v1558 = vrot.slane %v1557, 2
      %v1559 = vadd.f32 %v1557, %v1558
      %v1560 = vrot.slane %v1559, 1
      %v1561 = vadd.f32 %v1559, %v1560
      %v1562 = vadd.f32 %v1404, %v1405
      %v1563 = vrot.slane %v1562, 4
      %v1564 = vadd.f32 %v1562, %v1563
      %v1565 = vrot.slane %v1564, 2
      %v1566 = vadd.f32 %v1564, %v1565
      %v1567 = vrot.slane %v1566, 1
      %v1568 = vadd.f32 %v1566, %v1567
      %v1569 = vadd.f32 %v1406, %v1407
      %v1570 = vrot.slane %v1569, 4
      %v1571 = vadd.f32 %v1569, %v1570
      %v1572 = vrot.slane %v1571, 2
      %v1573 = vadd.f32 %v1571, %v1572
      %v1574 = vrot.slane %v1573, 1
      %v1575 = vadd.f32 %v1573, %v1574
      %v1576 = vadd.f32 %v1408, %v1409
      %v1577 = vrot.slane %v1576, 4
      %v1578 = vadd.f32 %v1576, %v1577
      %v1579 = vrot.slane %v1578, 2
      %v1580 = vadd.f32 %v1578, %v1579
      %v1581 = vrot.slane %v1580, 1
      %v1582 = vadd.f32 %v1580, %v1581
      %v1583 = vadd.f32 %v1410, %v1411
      %v1584 = vrot.slane %v1583, 4
      %v1585 = vadd.f32 %v1583, %v1584
      %v1586 = vrot.slane %v1585, 2
      %v1587 = vadd.f32 %v1585, %v1586
      %v1588 = vrot.slane %v1587, 1
      %v1589 = vadd.f32 %v1587, %v1588
      %v1590 = vadd.f32 %v1412, %v1413
      %v1591 = vrot.slane %v1590, 4
      %v1592 = vadd.f32 %v1590, %v1591
      %v1593 = vrot.slane %v1592, 2
      %v1594 = vadd.f32 %v1592, %v1593
      %v1595 = vrot.slane %v1594, 1
      %v1596 = vadd.f32 %v1594, %v1595
      %v1597 = vadd.f32 %v1414, %v1415
      %v1598 = vrot.slane %v1597, 4
      %v1599 = vadd.f32 %v1597, %v1598
      %v1600 = vrot.slane %v1599, 2
      %v1601 = vadd.f32 %v1599, %v1600
      %v1602 = vrot.slane %v1601, 1
      %v1603 = vadd.f32 %v1601, %v1602
      %v1604 = vadd.f32 %v1416, %v1417
      %v1605 = vrot.slane %v1604, 4
      %v1606 = vadd.f32 %v1604, %v1605
      %v1607 = vrot.slane %v1606, 2
      %v1608 = vadd.f32 %v1606, %v1607
      %v1609 = vrot.slane %v1608, 1
      %v1610 = vadd.f32 %v1608, %v1609
      %v1611 = vadd.f32 %v1418, %v1419
      %v1612 = vrot.slane %v1611, 4
      %v1613 = vadd.f32 %v1611, %v1612
      %v1614 = vrot.slane %v1613, 2
      %v1615 = vadd.f32 %v1613, %v1614
      %v1616 = vrot.slane %v1615, 1
      %v1617 = vadd.f32 %v1615, %v1616
      %v1618 = vadd.f32 %v1420, %v1421
      %v1619 = vrot.slane %v1618, 4
      %v1620 = vadd.f32 %v1618, %v1619
      %v1621 = vrot.slane %v1620, 2
      %v1622 = vadd.f32 %v1620, %v1621
      %v1623 = vrot.slane %v1622, 1
      %v1624 = vadd.f32 %v1622, %v1623
      %v1625 = vadd.f32 %v1422, %v1423
      %v1626 = vrot.slane %v1625, 4
      %v1627 = vadd.f32 %v1625, %v1626
      %v1628 = vrot.slane %v1627, 2
      %v1629 = vadd.f32 %v1627, %v1628
      %v1630 = vrot.slane %v1629, 1
      %v1631 = vadd.f32 %v1629, %v1630
      %v1632 = vadd.f32 %v1424, %v1425
      %v1633 = vrot.slane %v1632, 4
      %v1634 = vadd.f32 %v1632, %v1633
      %v1635 = vrot.slane %v1634, 2
      %v1636 = vadd.f32 %v1634, %v1635
      %v1637 = vrot.slane %v1636, 1
      %v1638 = vadd.f32 %v1636, %v1637
      %v1639 = vadd.f32 %v1426, %v1427
      %v1640 = vrot.slane %v1639, 4
      %v1641 = vadd.f32 %v1639, %v1640
      %v1642 = vrot.slane %v1641, 2
      %v1643 = vadd.f32 %v1641, %v1642
      %v1644 = vrot.slane %v1643, 1
      %v1645 = vadd.f32 %v1643, %v1644
      %v1646 = vadd.f32 %v1428, %v1429
      %v1647 = vrot.slane %v1646, 4
      %v1648 = vadd.f32 %v1646, %v1647
      %v1649 = vrot.slane %v1648, 2
      %v1650 = vadd.f32 %v1648, %v1649
      %v1651 = vrot.slane %v1650, 1
      %v1652 = vadd.f32 %v1650, %v1651
      %v1653 = vadd.f32 %v1430, %v1431
      %v1654 = vrot.slane %v1653, 4
      %v1655 = vadd.f32 %v1653, %v1654
      %v1656 = vrot.slane %v1655, 2
      %v1657 = vadd.f32 %v1655, %v1656
      %v1658 = vrot.slane %v1657, 1
      %v1659 = vadd.f32 %v1657, %v1658
      %v1660 = vadd.f32 %v1432, %v1433
      %v1661 = vrot.slane %v1660, 4
      %v1662 = vadd.f32 %v1660, %v1661
      %v1663 = vrot.slane %v1662, 2
      %v1664 = vadd.f32 %v1662, %v1663
      %v1665 = vrot.slane %v1664, 1
      %v1666 = vadd.f32 %v1664, %v1665
      %v1667 = vadd.f32 %v1434, %v1435
      %v1668 = vrot.slane %v1667, 4
      %v1669 = vadd.f32 %v1667, %v1668
      %v1670 = vrot.slane %v1669, 2
      %v1671 = vadd.f32 %v1669, %v1670
      %v1672 = vrot.slane %v1671, 1
      %v1673 = vadd.f32 %v1671, %v1672
      %v1674 = vadd.f32 %v1436, %v1437
      %v1675 = vrot.slane %v1674, 4
      %v1676 = vadd.f32 %v1674, %v1675
      %v1677 = vrot.slane %v1676, 2
      %v1678 = vadd.f32 %v1676, %v1677
      %v1679 = vrot.slane %v1678, 1
      %v1680 = vadd.f32 %v1678, %v1679
      %v1681 = vadd.f32 %v1438, %v1439
      %v1682 = vrot.slane %v1681, 4
      %v1683 = vadd.f32 %v1681, %v1682
      %v1684 = vrot.slane %v1683, 2
      %v1685 = vadd.f32 %v1683, %v1684
      %v1686 = vrot.slane %v1685, 1
      %v1687 = vadd.f32 %v1685, %v1686
      %v1688 = vadd.f32 %v1440, %v1441
      %v1689 = vrot.slane %v1688, 4
      %v1690 = vadd.f32 %v1688, %v1689
      %v1691 = vrot.slane %v1690, 2
      %v1692 = vadd.f32 %v1690, %v1691
      %v1693 = vrot.slane %v1692, 1
      %v1694 = vadd.f32 %v1692, %v1693
      %v1695 = vadd.f32 %v1442, %v1443
      %v1696 = vrot.slane %v1695, 4
      %v1697 = vadd.f32 %v1695, %v1696
      %v1698 = vrot.slane %v1697, 2
      %v1699 = vadd.f32 %v1697, %v1698
      %v1700 = vrot.slane %v1699, 1
      %v1701 = vadd.f32 %v1699, %v1700
      %v1702 = vadd.f32 %v1444, %v1445
      %v1703 = vrot.slane %v1702, 4
      %v1704 = vadd.f32 %v1702, %v1703
      %v1705 = vrot.slane %v1704, 2
      %v1706 = vadd.f32 %v1704, %v1705
      %v1707 = vrot.slane %v1706, 1
      %v1708 = vadd.f32 %v1706, %v1707
      %v1709 = vadd.f32 %v1446, %v1447
      %v1710 = vrot.slane %v1709, 4
      %v1711 = vadd.f32 %v1709, %v1710
      %v1712 = vrot.slane %v1711, 2
      %v1713 = vadd.f32 %v1711, %v1712
      %v1714 = vrot.slane %v1713, 1
      %v1715 = vadd.f32 %v1713, %v1714
      %v1716 = vadd.f32 %v1448, %v1449
      %v1717 = vrot.slane %v1716, 4
      %v1718 = vadd.f32 %v1716, %v1717
      %v1719 = vrot.slane %v1718, 2
      %v1720 = vadd.f32 %v1718, %v1719
      %v1721 = vrot.slane %v1720, 1
      %v1722 = vadd.f32 %v1720, %v1721
      %v1723 = vadd.f32 %v1450, %v1451
      %v1724 = vrot.slane %v1723, 4
      %v1725 = vadd.f32 %v1723, %v1724
      %v1726 = vrot.slane %v1725, 2
      %v1727 = vadd.f32 %v1725, %v1726
      %v1728 = vrot.slane %v1727, 1
      %v1729 = vadd.f32 %v1727, %v1728
      %v1730 = vadd.f32 %v1452, %v1453
      %v1731 = vrot.slane %v1730, 4
      %v1732 = vadd.f32 %v1730, %v1731
      %v1733 = vrot.slane %v1732, 2
      %v1734 = vadd.f32 %v1732, %v1733
      %v1735 = vrot.slane %v1734, 1
      %v1736 = vadd.f32 %v1734, %v1735
      %v1737 = vadd.f32 %v1454, %v1455
      %v1738 = vrot.slane %v1737, 4
      %v1739 = vadd.f32 %v1737, %v1738
      %v1740 = vrot.slane %v1739, 2
      %v1741 = vadd.f32 %v1739, %v1740
      %v1742 = vrot.slane %v1741, 1
      %v1743 = vadd.f32 %v1741, %v1742
      %v1744 = vadd.f32 %v1456, %v1457
      %v1745 = vrot.slane %v1744, 4
      %v1746 = vadd.f32 %v1744, %v1745
      %v1747 = vrot.slane %v1746, 2
      %v1748 = vadd.f32 %v1746, %v1747
      %v1749 = vrot.slane %v1748, 1
      %v1750 = vadd.f32 %v1748, %v1749
      %v1751 = vadd.f32 %v1458, %v1459
      %v1752 = vrot.slane %v1751, 4
      %v1753 = vadd.f32 %v1751, %v1752
      %v1754 = vrot.slane %v1753, 2
      %v1755 = vadd.f32 %v1753, %v1754
      %v1756 = vrot.slane %v1755, 1
      %v1757 = vadd.f32 %v1755, %v1756
      %v1758 = vadd.f32 %v1460, %v1461
      %v1759 = vrot.slane %v1758, 4
      %v1760 = vadd.f32 %v1758, %v1759
      %v1761 = vrot.slane %v1760, 2
      %v1762 = vadd.f32 %v1760, %v1761
      %v1763 = vrot.slane %v1762, 1
      %v1764 = vadd.f32 %v1762, %v1763
      %v1765 = vadd.f32 %v1462, %v1463
      %v1766 = vrot.slane %v1765, 4
      %v1767 = vadd.f32 %v1765, %v1766
      %v1768 = vrot.slane %v1767, 2
      %v1769 = vadd.f32 %v1767, %v1768
      %v1770 = vrot.slane %v1769, 1
      %v1771 = vadd.f32 %v1769, %v1770
      %v1772 = vadd.f32 %v1464, %v1465
      %v1773 = vrot.slane %v1772, 4
      %v1774 = vadd.f32 %v1772, %v1773
      %v1775 = vrot.slane %v1774, 2
      %v1776 = vadd.f32 %v1774, %v1775
      %v1777 = vrot.slane %v1776, 1
      %v1778 = vadd.f32 %v1776, %v1777
      %v1779 = vadd.f32 %v1466, %v1467
      %v1780 = vrot.slane %v1779, 4
      %v1781 = vadd.f32 %v1779, %v1780
      %v1782 = vrot.slane %v1781, 2
      %v1783 = vadd.f32 %v1781, %v1782
      %v1784 = vrot.slane %v1783, 1
      %v1785 = vadd.f32 %v1783, %v1784
      %v1786 = vadd.f32 %v1468, %v1469
      %v1787 = vrot.slane %v1786, 4
      %v1788 = vadd.f32 %v1786, %v1787
      %v1789 = vrot.slane %v1788, 2
      %v1790 = vadd.f32 %v1788, %v1789
      %v1791 = vrot.slane %v1790, 1
      %v1792 = vadd.f32 %v1790, %v1791
      %v1793 = vadd.f32 %v1470, %v1471
      %v1794 = vrot.slane %v1793, 4
      %v1795 = vadd.f32 %v1793, %v1794
      %v1796 = vrot.slane %v1795, 2
      %v1797 = vadd.f32 %v1795, %v1796
      %v1798 = vrot.slane %v1797, 1
      %v1799 = vadd.f32 %v1797, %v1798
      %v1800 = vadd.f32 %v1472, %v1473
      %v1801 = vrot.slane %v1800, 4
      %v1802 = vadd.f32 %v1800, %v1801
      %v1803 = vrot.slane %v1802, 2
      %v1804 = vadd.f32 %v1802, %v1803
      %v1805 = vrot.slane %v1804, 1
      %v1806 = vadd.f32 %v1804, %v1805
      %v1807 = vadd.f32 %v1474, %v1475
      %v1808 = vrot.slane %v1807, 4
      %v1809 = vadd.f32 %v1807, %v1808
      %v1810 = vrot.slane %v1809, 2
      %v1811 = vadd.f32 %v1809, %v1810
      %v1812 = vrot.slane %v1811, 1
      %v1813 = vadd.f32 %v1811, %v1812
      %v1814 = vadd.f32 %v1476, %v1477
      %v1815 = vrot.slane %v1814, 4
      %v1816 = vadd.f32 %v1814, %v1815
      %v1817 = vrot.slane %v1816, 2
      %v1818 = vadd.f32 %v1816, %v1817
      %v1819 = vrot.slane %v1818, 1
      %v1820 = vadd.f32 %v1818, %v1819
      %v1821 = vadd.f32 %v1478, %v1479
      %v1822 = vrot.slane %v1821, 4
      %v1823 = vadd.f32 %v1821, %v1822
      %v1824 = vrot.slane %v1823, 2
      %v1825 = vadd.f32 %v1823, %v1824
      %v1826 = vrot.slane %v1825, 1
      %v1827 = vadd.f32 %v1825, %v1826
      %v1828 = vadd.f32 %v1480, %v1481
      %v1829 = vrot.slane %v1828, 4
      %v1830 = vadd.f32 %v1828, %v1829
      %v1831 = vrot.slane %v1830, 2
      %v1832 = vadd.f32 %v1830, %v1831
      %v1833 = vrot.slane %v1832, 1
      %v1834 = vadd.f32 %v1832, %v1833
      %v1835 = vadd.f32 %v1482, %v1483
      %v1836 = vrot.slane %v1835, 4
      %v1837 = vadd.f32 %v1835, %v1836
      %v1838 = vrot.slane %v1837, 2
      %v1839 = vadd.f32 %v1837, %v1838
      %v1840 = vrot.slane %v1839, 1
      %v1841 = vadd.f32 %v1839, %v1840
      %v1842 = vadd.f32 %v1484, %v1485
      %v1843 = vrot.slane %v1842, 4
      %v1844 = vadd.f32 %v1842, %v1843
      %v1845 = vrot.slane %v1844, 2
      %v1846 = vadd.f32 %v1844, %v1845
      %v1847 = vrot.slane %v1846, 1
      %v1848 = vadd.f32 %v1846, %v1847
      %v1849 = vadd.f32 %v1486, %v1487
      %v1850 = vrot.slane %v1849, 4
      %v1851 = vadd.f32 %v1849, %v1850
      %v1852 = vrot.slane %v1851, 2
      %v1853 = vadd.f32 %v1851, %v1852
      %v1854 = vrot.slane %v1853, 1
      %v1855 = vadd.f32 %v1853, %v1854
      %v1856 = vadd.f32 %v1488, %v1489
      %v1857 = vrot.slane %v1856, 4
      %v1858 = vadd.f32 %v1856, %v1857
      %v1859 = vrot.slane %v1858, 2
      %v1860 = vadd.f32 %v1858, %v1859
      %v1861 = vrot.slane %v1860, 1
      %v1862 = vadd.f32 %v1860, %v1861
      %v1863 = vadd.f32 %v1490, %v1491
      %v1864 = vrot.slane %v1863, 4
      %v1865 = vadd.f32 %v1863, %v1864
      %v1866 = vrot.slane %v1865, 2
      %v1867 = vadd.f32 %v1865, %v1866
      %v1868 = vrot.slane %v1867, 1
      %v1869 = vadd.f32 %v1867, %v1868
      %v1870 = vadd.f32 %v1492, %v1493
      %v1871 = vrot.slane %v1870, 4
      %v1872 = vadd.f32 %v1870, %v1871
      %v1873 = vrot.slane %v1872, 2
      %v1874 = vadd.f32 %v1872, %v1873
      %v1875 = vrot.slane %v1874, 1
      %v1876 = vadd.f32 %v1874, %v1875
      %v1877 = vadd.f32 %v1494, %v1495
      %v1878 = vrot.slane %v1877, 4
      %v1879 = vadd.f32 %v1877, %v1878
      %v1880 = vrot.slane %v1879, 2
      %v1881 = vadd.f32 %v1879, %v1880
      %v1882 = vrot.slane %v1881, 1
      %v1883 = vadd.f32 %v1881, %v1882
      %v1884 = vadd.f32 %v1496, %v1497
      %v1885 = vrot.slane %v1884, 4
      %v1886 = vadd.f32 %v1884, %v1885
      %v1887 = vrot.slane %v1886, 2
      %v1888 = vadd.f32 %v1886, %v1887
      %v1889 = vrot.slane %v1888, 1
      %v1890 = vadd.f32 %v1888, %v1889
      %v1891 = vadd.f32 %v1498, %v1499
      %v1892 = vrot.slane %v1891, 4
      %v1893 = vadd.f32 %v1891, %v1892
      %v1894 = vrot.slane %v1893, 2
      %v1895 = vadd.f32 %v1893, %v1894
      %v1896 = vrot.slane %v1895, 1
      %v1897 = vadd.f32 %v1895, %v1896
      %v1898 = vadd.f32 %v1500, %v1501
      %v1899 = vrot.slane %v1898, 4
      %v1900 = vadd.f32 %v1898, %v1899
      %v1901 = vrot.slane %v1900, 2
      %v1902 = vadd.f32 %v1900, %v1901
      %v1903 = vrot.slane %v1902, 1
      %v1904 = vadd.f32 %v1902, %v1903
      %v1905 = vadd.f32 %v1502, %v1503
      %v1906 = vrot.slane %v1905, 4
      %v1907 = vadd.f32 %v1905, %v1906
      %v1908 = vrot.slane %v1907, 2
      %v1909 = vadd.f32 %v1907, %v1908
      %v1910 = vrot.slane %v1909, 1
      %v1911 = vadd.f32 %v1909, %v1910
      %v1912 = vadd.f32 %v1504, %v1505
      %v1913 = vrot.slane %v1912, 4
      %v1914 = vadd.f32 %v1912, %v1913
      %v1915 = vrot.slane %v1914, 2
      %v1916 = vadd.f32 %v1914, %v1915
      %v1917 = vrot.slane %v1916, 1
      %v1918 = vadd.f32 %v1916, %v1917
      %v1919 = vadd.f32 %v1506, %v1507
      %v1920 = vrot.slane %v1919, 4
      %v1921 = vadd.f32 %v1919, %v1920
      %v1922 = vrot.slane %v1921, 2
      %v1923 = vadd.f32 %v1921, %v1922
      %v1924 = vrot.slane %v1923, 1
      %v1925 = vadd.f32 %v1923, %v1924
      %v1926 = vadd.f32 %v1508, %v1509
      %v1927 = vrot.slane %v1926, 4
      %v1928 = vadd.f32 %v1926, %v1927
      %v1929 = vrot.slane %v1928, 2
      %v1930 = vadd.f32 %v1928, %v1929
      %v1931 = vrot.slane %v1930, 1
      %v1932 = vadd.f32 %v1930, %v1931
      %v1933 = vadd.f32 %v1510, %v1511
      %v1934 = vrot.slane %v1933, 4
      %v1935 = vadd.f32 %v1933, %v1934
      %v1936 = vrot.slane %v1935, 2
      %v1937 = vadd.f32 %v1935, %v1936
      %v1938 = vrot.slane %v1937, 1
      %v1939 = vadd.f32 %v1937, %v1938
      %v1940 = vadd.f32 %v1512, %v1513
      %v1941 = vrot.slane %v1940, 4
      %v1942 = vadd.f32 %v1940, %v1941
      %v1943 = vrot.slane %v1942, 2
      %v1944 = vadd.f32 %v1942, %v1943
      %v1945 = vrot.slane %v1944, 1
      %v1946 = vadd.f32 %v1944, %v1945
      %v1947 = vadd.f32 %v1514, %v1515
      %v1948 = vrot.slane %v1947, 4
      %v1949 = vadd.f32 %v1947, %v1948
      %v1950 = vrot.slane %v1949, 2
      %v1951 = vadd.f32 %v1949, %v1950
      %v1952 = vrot.slane %v1951, 1
      %v1953 = vadd.f32 %v1951, %v1952
      %v1954 = vadd.f32 %v1516, %v1517
      %v1955 = vrot.slane %v1954, 4
      %v1956 = vadd.f32 %v1954, %v1955
      %v1957 = vrot.slane %v1956, 2
      %v1958 = vadd.f32 %v1956, %v1957
      %v1959 = vrot.slane %v1958, 1
      %v1960 = vadd.f32 %v1958, %v1959
      %v1961 = vadd.f32 %v1518, %v1519
      %v1962 = vrot.slane %v1961, 4
      %v1963 = vadd.f32 %v1961, %v1962
      %v1964 = vrot.slane %v1963, 2
      %v1965 = vadd.f32 %v1963, %v1964
      %v1966 = vrot.slane %v1965, 1
      %v1967 = vadd.f32 %v1965, %v1966
      %v1968 = vrcp.pop 16.0
      %v1969 = vmul.f32 %v1526, %v1968
      %v1970 = vmul.f32 %v1533, %v1968
      %v1971 = vmul.f32 %v1540, %v1968
      %v1972 = vmul.f32 %v1547, %v1968
      %v1973 = vmul.f32 %v1554, %v1968
      %v1974 = vmul.f32 %v1561, %v1968
      %v1975 = vmul.f32 %v1568, %v1968
      %v1976 = vmul.f32 %v1575, %v1968
      %v1977 = vmul.f32 %v1582, %v1968
      %v1978 = vmul.f32 %v1589, %v1968
      %v1979 = vmul.f32 %v1596, %v1968
      %v1980 = vmul.f32 %v1603, %v1968
      %v1981 = vmul.f32 %v1610, %v1968
      %v1982 = vmul.f32 %v1617, %v1968
      %v1983 = vmul.f32 %v1624, %v1968
      %v1984 = vmul.f32 %v1631, %v1968
      %v1985 = vmul.f32 %v1638, %v1968
      %v1986 = vmul.f32 %v1645, %v1968
      %v1987 = vmul.f32 %v1652, %v1968
      %v1988 = vmul.f32 %v1659, %v1968
      %v1989 = vmul.f32 %v1666, %v1968
      %v1990 = vmul.f32 %v1673, %v1968
      %v1991 = vmul.f32 %v1680, %v1968
      %v1992 = vmul.f32 %v1687, %v1968
      %v1993 = vmul.f32 %v1694, %v1968
      %v1994 = vmul.f32 %v1701, %v1968
      %v1995 = vmul.f32 %v1708, %v1968
      %v1996 = vmul.f32 %v1715, %v1968
      %v1997 = vmul.f32 %v1722, %v1968
      %v1998 = vmul.f32 %v1729, %v1968
      %v1999 = vmul.f32 %v1736, %v1968
      %v2000 = vmul.f32 %v1743, %v1968
      %v2001 = vmul.f32 %v1750, %v1968
      %v2002 = vmul.f32 %v1757, %v1968
      %v2003 = vmul.f32 %v1764, %v1968
      %v2004 = vmul.f32 %v1771, %v1968
      %v2005 = vmul.f32 %v1778, %v1968
      %v2006 = vmul.f32 %v1785, %v1968
      %v2007 = vmul.f32 %v1792, %v1968
      %v2008 = vmul.f32 %v1799, %v1968
      %v2009 = vmul.f32 %v1806, %v1968
      %v2010 = vmul.f32 %v1813, %v1968
      %v2011 = vmul.f32 %v1820, %v1968
      %v2012 = vmul.f32 %v1827, %v1968
      %v2013 = vmul.f32 %v1834, %v1968
      %v2014 = vmul.f32 %v1841, %v1968
      %v2015 = vmul.f32 %v1848, %v1968
      %v2016 = vmul.f32 %v1855, %v1968
      %v2017 = vmul.f32 %v1862, %v1968
      %v2018 = vmul.f32 %v1869, %v1968
      %v2019 = vmul.f32 %v1876, %v1968
      %v2020 = vmul.f32 %v1883, %v1968
      %v2021 = vmul.f32 %v1890, %v1968
      %v2022 = vmul.f32 %v1897, %v1968
      %v2023 = vmul.f32 %v1904, %v1968
      %v2024 = vmul.f32 %v1911, %v1968
      %v2025 = vmul.f32 %v1918, %v1968
      %v2026 = vmul.f32 %v1925, %v1968
      %v2027 = vmul.f32 %v1932, %v1968
      %v2028 = vmul.f32 %v1939, %v1968
      %v2029 = vmul.f32 %v1946, %v1968
      %v2030 = vmul.f32 %v1953, %v1968
      %v2031 = vmul.f32 %v1960, %v1968
      %v2032 = vmul.f32 %v1967, %v1968
      %vm2097 = vcmask 1041409
      %v2098 = vsel %vm2097, %v1970, %v1969
      %vm2099 = vcmask 1042434
      %v2100 = vsel %vm2099, %v1971, %v2098
      %vm2101 = vcmask 1043459
      %v2102 = vsel %vm2101, %v1972, %v2100
      %vm2103 = vcmask 1044484
      %v2104 = vsel %vm2103, %v1973, %v2102
      %vm2105 = vcmask 1045509
      %v2106 = vsel %vm2105, %v1974, %v2104
      %vm2107 = vcmask 1046534
      %v2108 = vsel %vm2107, %v1975, %v2106
      %vm2109 = vcmask 1047559
      %v2110 = vsel %vm2109, %v1976, %v2108
      %v2111 = vsel %vm2097, %v1978, %v1977
      %v2112 = vsel %vm2099, %v1979, %v2111
      %v2113 = vsel %vm2101, %v1980, %v2112
      %v2114 = vsel %vm2103, %v1981, %v2113
      %v2115 = vsel %vm2105, %v1982, %v2114
      %v2116 = vsel %vm2107, %v1983, %v2115
      %v2117 = vsel %vm2109, %v1984, %v2116
      %v2118 = vsel %vm2097, %v1986, %v1985
      %v2119 = vsel %vm2099, %v1987, %v2118
      %v2120 = vsel %vm2101, %v1988, %v2119
      %v2121 = vsel %vm2103, %v1989, %v2120
      %v2122 = vsel %vm2105, %v1990, %v2121
      %v2123 = vsel %vm2107, %v1991, %v2122
      %v2124 = vsel %vm2109, %v1992, %v2123
      %v2125 = vsel %vm2097, %v1994, %v1993
      %v2126 = vsel %vm2099, %v1995, %v2125
      %v2127 = vsel %vm2101, %v1996, %v2126
      %v2128 = vsel %vm2103, %v1997, %v2127
      %v2129 = vsel %vm2105, %v1998, %v2128
      %v2130 = vsel %vm2107, %v1999, %v2129
      %v2131 = vsel %vm2109, %v2000, %v2130
      %v2132 = vsel %vm2097, %v2002, %v2001
      %v2133 = vsel %vm2099, %v2003, %v2132
      %v2134 = vsel %vm2101, %v2004, %v2133
      %v2135 = vsel %vm2103, %v2005, %v2134
      %v2136 = vsel %vm2105, %v2006, %v2135
      %v2137 = vsel %vm2107, %v2007, %v2136
      %v2138 = vsel %vm2109, %v2008, %v2137
      %v2139 = vsel %vm2097, %v2010, %v2009
      %v2140 = vsel %vm2099, %v2011, %v2139
      %v2141 = vsel %vm2101, %v2012, %v2140
      %v2142 = vsel %vm2103, %v2013, %v2141
      %v2143 = vsel %vm2105, %v2014, %v2142
      %v2144 = vsel %vm2107, %v2015, %v2143
      %v2145 = vsel %vm2109, %v2016, %v2144
      %v2146 = vsel %vm2097, %v2018, %v2017
      %v2147 = vsel %vm2099, %v2019, %v2146
      %v2148 = vsel %vm2101, %v2020, %v2147
      %v2149 = vsel %vm2103, %v2021, %v2148
      %v2150 = vsel %vm2105, %v2022, %v2149
      %v2151 = vsel %vm2107, %v2023, %v2150
      %v2152 = vsel %vm2109, %v2024, %v2151
      %v2153 = vsel %vm2097, %v2026, %v2025
      %v2154 = vsel %vm2099, %v2027, %v2153
      %v2155 = vsel %vm2101, %v2028, %v2154
      %v2156 = vsel %vm2103, %v2029, %v2155
      %v2157 = vsel %vm2105, %v2030, %v2156
      %v2158 = vsel %vm2107, %v2031, %v2157
      %v2159 = vsel %vm2109, %v2032, %v2158
      %2168 = vst [vmem:[%s172] sm:$0xff] %v2110
      %2169 = vst [vmem:[%s172 + $0x8] sm:$0xff] %v2117
      %2170 = vst [vmem:[%s172 + $0x10] sm:$0xff] %v2124
      %2171 = vst [vmem:[%s172 + $0x18] sm:$0xff] %v2131
      %2172 = vst [vmem:[%s172 + $0x20] sm:$0xff] %v2138
      %2173 = vst [vmem:[%s172 + $0x28] sm:$0xff] %v2145
      %2174 = vst [vmem:[%s172 + $0x30] sm:$0xff] %v2152
      %2175 = vst [vmem:[%s172 + $0x38] sm:$0xff] %v2159
      %s2176 = smul.u32 8, %s14
      %p2177 = scmp.lt.s32.totalorder %s2176, 15
      %s2178 = scalar_select %p2177, %s2176, 15
      %s2179 = smul.addr %s2178, 8
      %s2180 = scalar_lea.vmem %s3, %s2179
      // Predicated region
      $region33: #{_forward_device.3} parent=31 // pred_check
        %p2181 = pneg %p100
      $region34: #{_forward_device.3} parent=31 // pred_check_branch
        %2183 = sbr.rel (%p2181) target = $region36
      $region35: #{_forward_device.3} parent=31 // pred_region
        %s2184 = smul.u32 8, %s14
      $region36: #{_forward_device.3} parent=31 // pred_fallthru
        _
    $region32: #{_forward_device.3} parent=5 // pred_fallthru
      _
    %p2185 = scmp.le.s32.totalorder 2, %s9
    // Predicated region
    $region37: #{_forward_device.3} parent=5 // pred_check
      %p2186 = pneg %p2185
    $region38: #{_forward_device.3} parent=5 // pred_check_branch
      %2188 = sbr.rel (%p2186) target = $region40
    $region39: #{_forward_device.3} parent=5 // pred_region
      %s2189 = ssub.s32 %s9, 2
      // Predicated region
      $region41: #{_forward_device.3} parent=39 // pred_check
        %p2190 = pneg %p106
      $region42: #{_forward_device.3} parent=39 // pred_check_branch
        %2192 = sbr.rel (%p2190) target = $region44
      $region43: #{_forward_device.3} parent=39 // pred_region
        %s2193 = smul.u32 8, %s15
        %p2194 = scmp.lt.s32.totalorder %s2193, 15
        %s2195 = scalar_select %p2194, %s2193, 15
        %s2196 = smul.addr %s2195, 8
        %s2197 = scalar_lea.vmem %s3, %s2196
      $region44: #{_forward_device.3} parent=39 // pred_fallthru
        _
    $region40: #{_forward_device.3} parent=5 // pred_fallthru
      _
  $region6: #{_forward_device.3} parent=0 // loop_footer
    %s13 = sadd.s32 1, %s9
  $region7: #{_forward_device.3} parent=0 // loop_footer_branch
    %8 = sbr.rel target = $region3
  $region8: #{_forward_device.3} parent=0 // loop_exit
    _

// kernel: _forward_device.4
$region0: #{_forward_device.4}
  #allocation0 [shape = 'u32[]', space=smem, size = 0x4, offset = 0x4, fixed_abs, tag = 'smem constant byte address 0x4 - core index']
  #allocation1 [shape = 'u32[144,128]{1,0:T(1,128)}', space=vmem, size = 0x12000, scoped, tag = 'internal scratch']
  #allocation2 [shape = 'f32[8,32]{1,0:T(8,128)}', space=vmem, size = 0x1000, scoped, tag = 'scratch operand']
  %s0 = inlined_call_operand.vmem [shape: bf16[16,8,32], index: 0, kind: input, shape index: {}]
  %s1 = inlined_call_operand.vmem [shape: bf16[32,96], index: 1, kind: input, shape index: {}]
  %s2 = inlined_call_operand.vmem [shape: bf16[32,96], index: 2, kind: input, shape index: {}]
  %s3 = inlined_call_operand.vmem [shape: f32[1,96], index: 3, kind: input, shape index: {}]
  %s4 = inlined_call_operand.vmem [shape: f32[1,96], index: 4, kind: input, shape index: {}]
  %s5 = inlined_call_operand.vmem [shape: bf16[16,8,32], index: 5, kind: output, shape index: {0}]
  %s6 = inlined_call_operand.vmem [shape: f32[8,32], index: 6, kind: output, shape index: {1}]
  %7 = xla_tuple %s5, %s6
  %s8 = sld [smem:[#allocation0]]
  $region46: #{_forward_device.4} parent=0
    _
  %s10 = ssub.s32 1, %s8
  %s11 = scalar_select 0, %s10, %s8
  // Predicated region
  $region2: #{_forward_device.4} parent=0 // pred_check
    _
  $region3: #{_forward_device.4} parent=0 // pred_check_branch
    %13 = sbr.rel (0) target = $region5
  $region4: #{_forward_device.4} parent=0 // pred_region
    _
  $region5: #{_forward_device.4} parent=0 // pred_fallthru
    _
  // Predicated region
  $region6: #{_forward_device.4} parent=0 // pred_check
    _
  $region7: #{_forward_device.4} parent=0 // pred_check_branch
    %15 = sbr.rel (0) target = $region9
  $region8: #{_forward_device.4} parent=0 // pred_region
    _
  $region9: #{_forward_device.4} parent=0 // pred_fallthru
    _
  // Predicated region
  $region10: #{_forward_device.4} parent=0 // pred_check
    _
  $region11: #{_forward_device.4} parent=0 // pred_check_branch
    %17 = sbr.rel (0) target = $region13
  $region12: #{_forward_device.4} parent=0 // pred_region
    _
  $region13: #{_forward_device.4} parent=0 // pred_fallthru
    _
  // Predicated region
  $region14: #{_forward_device.4} parent=0 // pred_check
    _
  $region15: #{_forward_device.4} parent=0 // pred_check_branch
    %19 = sbr.rel (0) target = $region17
  $region16: #{_forward_device.4} parent=0 // pred_region
    _
  $region17: #{_forward_device.4} parent=0 // pred_fallthru
    _
  // Predicated region
  $region18: #{_forward_device.4} parent=0 // pred_check
    _
  $region19: #{_forward_device.4} parent=0 // pred_check_branch
    %21 = sbr.rel (0) target = $region21
  $region20: #{_forward_device.4} parent=0 // pred_region
    _
  $region21: #{_forward_device.4} parent=0 // pred_fallthru
    _
  %p23 = scmp.eq.s32.totalorder 0, 0
  // Predicated region
  $region22: #{_forward_device.4} parent=0 // pred_check
    %p24 = pneg %p23
  $region23: #{_forward_device.4} parent=0 // pred_check_branch
    %26 = sbr.rel (%p24) target = $region25
  $region24: #{_forward_device.4} parent=0 // pred_region
    %vm27 = vcmask 261120
    %28 = vst.msk [vmem:[#allocation2] sm:$0xff] %vm27, 0.0
  $region25: #{_forward_device.4} parent=0 // pred_fallthru
    _
  %v29 = vld [vmem:[%s2] sm:$0xf]
  %v30 = vld [vmem:[%s2 + $0x4] sm:$0xf]
  %v31 = vld [vmem:[%s2 + $0x8] sm:$0xf]
  %v32 = vld [vmem:[%s2 + $0xc] sm:$0xf]
  %v33 = vld [vmem:[%s4] sm:$0x1]
  %v34 = vld [vmem:[%s0] sm:$0xf]
  %v35 = vld [vmem:[%s0 + $0x4] sm:$0xf]
  %v36 = vld [vmem:[%s0 + $0x8] sm:$0xf]
  %v37 = vld [vmem:[%s0 + $0xc] sm:$0xf]
  %v38 = vld [vmem:[%s0 + $0x10] sm:$0xf]
  %v39 = vld [vmem:[%s0 + $0x14] sm:$0xf]
  %v40 = vld [vmem:[%s0 + $0x18] sm:$0xf]
  %v41 = vld [vmem:[%s0 + $0x1c] sm:$0xf]
  %v42 = vld [vmem:[%s0 + $0x20] sm:$0xf]
  %v43 = vld [vmem:[%s0 + $0x24] sm:$0xf]
  %v44 = vld [vmem:[%s0 + $0x28] sm:$0xf]
  %v45 = vld [vmem:[%s0 + $0x2c] sm:$0xf]
  %v46 = vld [vmem:[%s0 + $0x30] sm:$0xf]
  %v47 = vld [vmem:[%s0 + $0x34] sm:$0xf]
  %v48 = vld [vmem:[%s0 + $0x38] sm:$0xf]
  %v49 = vld [vmem:[%s0 + $0x3c] sm:$0xf]
  %v50 = vld [vmem:[%s1] sm:$0xf]
  %v51 = vld [vmem:[%s1 + $0x4] sm:$0xf]
  %v52 = vld [vmem:[%s1 + $0x8] sm:$0xf]
  %v53 = vld [vmem:[%s1 + $0xc] sm:$0xf]
  %v54 = vld [vmem:[%s3] sm:$0x1]
  %v56 = vlaneseq
  %v57 = vshrl.u32 %v56, 7
  %v58 = vsub.s32 0, %v57
  %v59 = vrot.slane %v54, %v58
  %v77 = vunpack.c.l.b16 %v34
  %v78 = vunpack.c.l.b16 %v35
  %v79 = vunpack.c.l.b16 %v36
  %v80 = vunpack.c.l.b16 %v37
  %v81 = vunpack.c.l.b16 %v38
  %v82 = vunpack.c.l.b16 %v39
  %v83 = vunpack.c.l.b16 %v40
  %v84 = vunpack.c.l.b16 %v41
  %v85 = vunpack.c.l.b16 %v42
  %v86 = vunpack.c.l.b16 %v43
  %v87 = vunpack.c.l.b16 %v44
  %v88 = vunpack.c.l.b16 %v45
  %v89 = vunpack.c.l.b16 %v46
  %v90 = vunpack.c.l.b16 %v47
  %v91 = vunpack.c.l.b16 %v48
  %v92 = vunpack.c.l.b16 %v49
  %v93 = vpack.c.b16 %v78, %v77
  %v94 = vpack.c.b16 %v80, %v79
  %v95 = vpack.c.b16 %v82, %v81
  %v96 = vpack.c.b16 %v84, %v83
  %v97 = vpack.c.b16 %v86, %v85
  %v98 = vpack.c.b16 %v88, %v87
  %v99 = vpack.c.b16 %v90, %v89
  %v100 = vpack.c.b16 %v92, %v91
  %v105 = vunpack.c.l.b16 %v50
  %v106 = vunpack.c.l.b16 %v51
  %v107 = vunpack.c.l.b16 %v52
  %v108 = vunpack.c.l.b16 %v53
  %v109 = vpack.c.b16 %v106, %v105
  %v110 = vpack.c.b16 %v108, %v107
  %vm113 = vcmask 261120
  %v115 = vsel %vm113, %v93, 0
  %v118 = vsel %vm113, %v94, 0
  %v121 = vsel %vm113, %v95, 0
  %v124 = vsel %vm113, %v96, 0
  %v127 = vsel %vm113, %v97, 0
  %v130 = vsel %vm113, %v98, 0
  %v133 = vsel %vm113, %v99, 0
  %v136 = vsel %vm113, %v100, 0
  %138 = vmatprep.subr.bf16.mxu0 0
  %139 = vmatpush1.bf16.msra.mxu0 %v109
  %140 = vmatprep.subr.bf16.mxu0 0
  %141 = vmatpush1.bf16.msra.mxu0 %v110
  %142 = vmatprep.subr.bf16.mxu0 0
  %143 = vmatpush1.bf16.msra.mxu0 0
  %144 = vmatprep.subr.bf16.mxu0 0
  %145 = vmatpush1.bf16.msra.mxu0 0
  %146 = vmatprep.subr.bf16.mxu0 0
  %147 = vmatpush1.bf16.msra.mxu0 0
  %148 = vmatprep.subr.bf16.mxu0 0
  %149 = vmatpush1.bf16.msra.mxu0 0
  %150 = vmatprep.subr.bf16.mxu0 0
  %151 = vmatpush1.bf16.msra.mxu0 0
  %152 = vmatprep.subr.bf16.mxu0 0
  %153 = vmatpush1.bf16.msra.mxu0 0
  %154 = vmatprep.subr.bf16.mxu0 0
  %155 = vmatpush1.bf16.msra.mxu0 0
  %156 = vmatprep.subr.bf16.mxu0 0
  %157 = vmatpush1.bf16.msra.mxu0 0
  %158 = vmatprep.subr.bf16.mxu0 0
  %159 = vmatpush1.bf16.msra.mxu0 0
  %160 = vmatprep.subr.bf16.mxu0 0
  %161 = vmatpush1.bf16.msra.mxu0 0
  %162 = vmatprep.subr.bf16.mxu0 0
  %163 = vmatpush1.bf16.msra.mxu0 0
  %164 = vmatprep.subr.bf16.mxu0 0
  %165 = vmatpush1.bf16.msra.mxu0 0
  %166 = vmatprep.subr.bf16.mxu0 0
  %167 = vmatpush1.bf16.msra.mxu0 0
  %168 = vmatprep.subr.bf16.mxu0 0
  %169 = vmatpush1.bf16.msra.mxu0 0
  %170 = vmatprep.mubr.bf16.mxu0 0
  %171 = vmatmul.mubr.bf16.gmra.mrb[0].mxu0 %v115
  %v172 = vpop.f32.mrb[0].mxu0
  %v173 = vadd.f32 %v59, %v172
  %v174 = vpop.f32.mrb[0].mxu0
  %v175 = vpop.f32.mrb[0].mxu0
  %v176 = vadd.f32 %v59, %v175
  %v177 = vpop.f32.mrb[0].mxu0
  %178 = vmatprep.mubr.bf16.mxu0 0
  %179 = vmatmul.mubr.bf16.gmra.mrb[0].mxu0 %v118
  %v180 = vpop.f32.mrb[0].mxu0
  %v181 = vadd.f32 %v59, %v180
  %v182 = vpop.f32.mrb[0].mxu0
  %v183 = vpop.f32.mrb[0].mxu0
  %v184 = vadd.f32 %v59, %v183
  %v185 = vpop.f32.mrb[0].mxu0
  %186 = vmatprep.mubr.bf16.mxu0 0
  %187 = vmatmul.mubr.bf16.gmra.mrb[0].mxu0 %v121
  %v188 = vpop.f32.mrb[0].mxu0
  %v189 = vadd.f32 %v59, %v188
  %v190 = vpop.f32.mrb[0].mxu0
  %v191 = vpop.f32.mrb[0].mxu0
  %v192 = vadd.f32 %v59, %v191
  %v193 = vpop.f32.mrb[0].mxu0
  %194 = vmatprep.mubr.bf16.mxu0 0
  %195 = vmatmul.mubr.bf16.gmra.mrb[0].mxu0 %v124
  %v196 = vpop.f32.mrb[0].mxu0
  %v197 = vadd.f32 %v59, %v196
  %v198 = vpop.f32.mrb[0].mxu0
  %v199 = vpop.f32.mrb[0].mxu0
  %v200 = vadd.f32 %v59, %v199
  %v201 = vpop.f32.mrb[0].mxu0
  %202 = vmatprep.mubr.bf16.mxu0 0
  %203 = vmatmul.mubr.bf16.gmra.mrb[0].mxu0 %v127
  %v204 = vpop.f32.mrb[0].mxu0
  %v205 = vadd.f32 %v59, %v204
  %v206 = vpop.f32.mrb[0].mxu0
  %v207 = vpop.f32.mrb[0].mxu0
  %v208 = vadd.f32 %v59, %v207
  %v209 = vpop.f32.mrb[0].mxu0
  %210 = vmatprep.mubr.bf16.mxu0 0
  %211 = vmatmul.mubr.bf16.gmra.mrb[0].mxu0 %v130
  %v212 = vpop.f32.mrb[0].mxu0
  %v213 = vadd.f32 %v59, %v212
  %v214 = vpop.f32.mrb[0].mxu0
  %v215 = vpop.f32.mrb[0].mxu0
  %v216 = vadd.f32 %v59, %v215
  %v217 = vpop.f32.mrb[0].mxu0
  %218 = vmatprep.mubr.bf16.mxu0 0
  %219 = vmatmul.mubr.bf16.gmra.mrb[0].mxu0 %v133
  %v220 = vpop.f32.mrb[0].mxu0
  %v221 = vadd.f32 %v59, %v220
  %v222 = vpop.f32.mrb[0].mxu0
  %v223 = vpop.f32.mrb[0].mxu0
  %v224 = vadd.f32 %v59, %v223
  %v225 = vpop.f32.mrb[0].mxu0
  %226 = vmatprep.mubr.bf16.mxu0 0
  %227 = vmatmul.mubr.bf16.gmra.mrb[0].mxu0 %v136
  %v228 = vpop.f32.mrb[0].mxu0
  %v229 = vadd.f32 %v59, %v228
  %v230 = vpop.f32.mrb[0].mxu0
  %v231 = vpop.f32.mrb[0].mxu0
  %v232 = vadd.f32 %v59, %v231
  %v233 = vpop.f32.mrb[0].mxu0
  %234 = vdwg.mxu0
  %v235 = vld [vmem:[#allocation2] sm:$0xff]
  %v236 = vpack.c.bf16 %v235, %v235
  %v238 = vlaneseq
  %v239 = vshrl.u32 %v238, 7
  %v240 = vsub.s32 0, %v239
  %v241 = vrot.slane %v33, %v240
  %v247 = vunpack.c.l.b16 %v29
  %v248 = vunpack.c.l.b16 %v30
  %v249 = vunpack.c.l.b16 %v31
  %v250 = vunpack.c.l.b16 %v32
  %v251 = vpack.c.b16 %v248, %v247
  %v252 = vpack.c.b16 %v250, %v249
  %v256 = vsel %vm113, %v236, 0
  %258 = vmatprep.subr.bf16.mxu0 0
  %259 = vmatpush1.bf16.msra.mxu0 %v251
  %260 = vmatprep.subr.bf16.mxu0 0
  %261 = vmatpush1.bf16.msra.mxu0 %v252
  %262 = vmatprep.subr.bf16.mxu0 0
  %263 = vmatpush1.bf16.msra.mxu0 0
  %264 = vmatprep.subr.bf16.mxu0 0
  %265 = vmatpush1.bf16.msra.mxu0 0
  %266 = vmatprep.subr.bf16.mxu0 0
  %267 = vmatpush1.bf16.msra.mxu0 0
  %268 = vmatprep.subr.bf16.mxu0 0
  %269 = vmatpush1.bf16.msra.mxu0 0
  %270 = vmatprep.subr.bf16.mxu0 0
  %271 = vmatpush1.bf16.msra.mxu0 0
  %272 = vmatprep.subr.bf16.mxu0 0
  %273 = vmatpush1.bf16.msra.mxu0 0
  %274 = vmatprep.subr.bf16.mxu0 0
  %275 = vmatpush1.bf16.msra.mxu0 0
  %276 = vmatprep.subr.bf16.mxu0 0
  %277 = vmatpush1.bf16.msra.mxu0 0
  %278 = vmatprep.subr.bf16.mxu0 0
  %279 = vmatpush1.bf16.msra.mxu0 0
  %280 = vmatprep.subr.bf16.mxu0 0
  %281 = vmatpush1.bf16.msra.mxu0 0
  %282 = vmatprep.subr.bf16.mxu0 0
  %283 = vmatpush1.bf16.msra.mxu0 0
  %284 = vmatprep.subr.bf16.mxu0 0
  %285 = vmatpush1.bf16.msra.mxu0 0
  %286 = vmatprep.subr.bf16.mxu0 0
  %287 = vmatpush1.bf16.msra.mxu0 0
  %288 = vmatprep.subr.bf16.mxu0 0
  %289 = vmatpush1.bf16.msra.mxu0 0
  %290 = vmatprep.mubr.bf16.mxu0 0
  %291 = vmatmul.mubr.bf16.gmra.mrb[0].mxu0 %v256
  %v292 = vpop.f32.mrb[0].mxu0
  %v293 = vadd.f32 %v241, %v292
  %v294 = vpop.f32.mrb[0].mxu0
  %v295 = vpop.f32.mrb[0].mxu0
  %v296 = vpop.f32.mrb[0].mxu0
  %297 = vdwg.mxu0
  %v298 = vadd.f32 %v173, %v293
  %v299 = vxor.u32 %v298, 2147483648
  %v300 = vmul.f32 %v299, 1.442695
  %v301 = vpow.pop %v300
  %v302 = vadd.f32 %v301, 1.0
  %v303 = vrcp.pop %v302
  %v304 = vmul.f32 1.0, %v303
  %306 = vrot.lane.b32.xlu0 %v293, 64
  %v307 = vpop.permute.xlu0 %306
  %v309 = vmul.f32 %v304, %v307
  %311 = vrot.lane.b32.xlu0 %v309, 64
  %v312 = vpop.permute.xlu0 %311
  %v314 = vadd.f32 %v173, %v312
  %v315 = vtanh.pop %v314
  %v316 = vsub.f32 1.0, %v304
  %318 = vrot.lane.b32.xlu0 %v315, 96
  %v319 = vpop.permute.xlu0 %318
  %v321 = vmul.f32 %v316, %v319
  %323 = vrot.lane.b32.xlu0 %v235, 32
  %v324 = vpop.permute.xlu0 %323
  %v326 = vmul.f32 %v304, %v324
  %v327 = vadd.f32 %v321, %v326
  %v328 = vpack.c.bf16 %v327, %v327
  %v330 = vunpack.c.l.b16 %v328
  %v331 = vpack.c.b16 %v330, %v330
  %332 = vrot.lane.b32.xlu0 %v331, 96
  %v333 = vpop.permute.xlu0 %332
  %vm335 = vcmask 257024
  %336 = vst.msk [vmem:[%s5] sm:$0xf] %vm335, %v333
  %337 = vrot.lane.b32.xlu0 %v328, 96
  %v338 = vpop.permute.xlu0 %337
  %v340 = vsel %vm113, %v338, 0
  %342 = vmatprep.subr.bf16.mxu0 0
  %343 = vmatpush1.bf16.msra.mxu0 %v251
  %344 = vmatprep.subr.bf16.mxu0 0
  %345 = vmatpush1.bf16.msra.mxu0 %v252
  %346 = vmatprep.subr.bf16.mxu0 0
  %347 = vmatpush1.bf16.msra.mxu0 0
  %348 = vmatprep.subr.bf16.mxu0 0
  %349 = vmatpush1.bf16.msra.mxu0 0
  %350 = vmatprep.subr.bf16.mxu0 0
  %351 = vmatpush1.bf16.msra.mxu0 0
  %352 = vmatprep.subr.bf16.mxu0 0
  %353 = vmatpush1.bf16.msra.mxu0 0
  %354 = vmatprep.subr.bf16.mxu0 0
  %355 = vmatpush1.bf16.msra.mxu0 0
  %356 = vmatprep.subr.bf16.mxu0 0
  %357 = vmatpush1.bf16.msra.mxu0 0
  %358 = vmatprep.subr.bf16.mxu0 0
  %359 = vmatpush1.bf16.msra.mxu0 0
  %360 = vmatprep.subr.bf16.mxu0 0
  %361 = vmatpush1.bf16.msra.mxu0 0
  %362 = vmatprep.subr.bf16.mxu0 0
  %363 = vmatpush1.bf16.msra.mxu0 0
  %364 = vmatprep.subr.bf16.mxu0 0
  %365 = vmatpush1.bf16.msra.mxu0 0
  %366 = vmatprep.subr.bf16.mxu0 0
  %367 = vmatpush1.bf16.msra.mxu0 0
  %368 = vmatprep.subr.bf16.mxu0 0
  %369 = vmatpush1.bf16.msra.mxu0 0
  %370 = vmatprep.subr.bf16.mxu0 0
  %371 = vmatpush1.bf16.msra.mxu0 0
  %372 = vmatprep.subr.bf16.mxu0 0
  %373 = vmatpush1.bf16.msra.mxu0 0
  %374 = vmatprep.mubr.bf16.mxu0 0
  %375 = vmatmul.mubr.bf16.gmra.mrb[0].mxu0 %v340
  %v376 = vpop.f32.mrb[0].mxu0
  %v377 = vadd.f32 %v241, %v376
  %v378 = vpop.f32.mrb[0].mxu0
  %v379 = vpop.f32.mrb[0].mxu0
  %v380 = vpop.f32.mrb[0].mxu0
  %381 = vdwg.mxu0
  %v382 = vadd.f32 %v176, %v377
  %v383 = vxor.u32 %v382, 2147483648
  %v384 = vmul.f32 %v383, 1.442695
  %v385 = vpow.pop %v384
  %v386 = vadd.f32 %v385, 1.0
  %v387 = vrcp.pop %v386
  %v388 = vmul.f32 1.0, %v387
  %390 = vrot.lane.b32.xlu0 %v377, 64
  %v391 = vpop.permute.xlu0 %390
  %v393 = vmul.f32 %v388, %v391
  %395 = vrot.lane.b32.xlu0 %v393, 64
  %v396 = vpop.permute.xlu0 %395
  %v398 = vadd.f32 %v176, %v396
  %v399 = vtanh.pop %v398
  %v400 = vsub.f32 1.0, %v388
  %402 = vrot.lane.b32.xlu0 %v399, 96
  %v403 = vpop.permute.xlu0 %402
  %v405 = vmul.f32 %v400, %v403
  %v406 = vmul.f32 %v388, %v327
  %v407 = vadd.f32 %v405, %v406
  %v408 = vpack.c.bf16 %v407, %v407
  %v410 = vunpack.c.l.b16 %v408
  %v411 = vpack.c.b16 %v410, %v410
  %412 = vrot.lane.b32.xlu0 %v411, 96
  %v413 = vpop.permute.xlu0 %412
  %s415 = scalar_lea.vmem %s5, 4
  %416 = vst.msk [vmem:[%s415] sm:$0xf] %vm335, %v413
  %417 = vrot.lane.b32.xlu0 %v408, 96
  %v418 = vpop.permute.xlu0 %417
  %v420 = vsel %vm113, %v418, 0
  %422 = vmatprep.subr.bf16.mxu0 0
  %423 = vmatpush1.bf16.msra.mxu0 %v251
  %424 = vmatprep.subr.bf16.mxu0 0
  %425 = vmatpush1.bf16.msra.mxu0 %v252
  %426 = vmatprep.subr.bf16.mxu0 0
  %427 = vmatpush1.bf16.msra.mxu0 0
  %428 = vmatprep.subr.bf16.mxu0 0
  %429 = vmatpush1.bf16.msra.mxu0 0
  %430 = vmatprep.subr.bf16.mxu0 0
  %431 = vmatpush1.bf16.msra.mxu0 0
  %432 = vmatprep.subr.bf16.mxu0 0
  %433 = vmatpush1.bf16.msra.mxu0 0
  %434 = vmatprep.subr.bf16.mxu0 0
  %435 = vmatpush1.bf16.msra.mxu0 0
  %436 = vmatprep.subr.bf16.mxu0 0
  %437 = vmatpush1.bf16.msra.mxu0 0
  %438 = vmatprep.subr.bf16.mxu0 0
  %439 = vmatpush1.bf16.msra.mxu0 0
  %440 = vmatprep.subr.bf16.mxu0 0
  %441 = vmatpush1.bf16.msra.mxu0 0
  %442 = vmatprep.subr.bf16.mxu0 0
  %443 = vmatpush1.bf16.msra.mxu0 0
  %444 = vmatprep.subr.bf16.mxu0 0
  %445 = vmatpush1.bf16.msra.mxu0 0
  %446 = vmatprep.subr.bf16.mxu0 0
  %447 = vmatpush1.bf16.msra.mxu0 0
  %448 = vmatprep.subr.bf16.mxu0 0
  %449 = vmatpush1.bf16.msra.mxu0 0
  %450 = vmatprep.subr.bf16.mxu0 0
  %451 = vmatpush1.bf16.msra.mxu0 0
  %452 = vmatprep.subr.bf16.mxu0 0
  %453 = vmatpush1.bf16.msra.mxu0 0
  %454 = vmatprep.mubr.bf16.mxu0 0
  %455 = vmatmul.mubr.bf16.gmra.mrb[0].mxu0 %v420
  %v456 = vpop.f32.mrb[0].mxu0
  %v457 = vadd.f32 %v241, %v456
  %v458 = vpop.f32.mrb[0].mxu0
  %v459 = vpop.f32.mrb[0].mxu0
  %v460 = vpop.f32.mrb[0].mxu0
  %461 = vdwg.mxu0
  %v462 = vadd.f32 %v181, %v457
  %v463 = vxor.u32 %v462, 2147483648
  %v464 = vmul.f32 %v463, 1.442695
  %v465 = vpow.pop %v464
  %v466 = vadd.f32 %v465, 1.0
  %v467 = vrcp.pop %v466
  %v468 = vmul.f32 1.0, %v467
  %470 = vrot.lane.b32.xlu0 %v457, 64
  %v471 = vpop.permute.xlu0 %470
  %v473 = vmul.f32 %v468, %v471
  %475 = vrot.lane.b32.xlu0 %v473, 64
  %v476 = vpop.permute.xlu0 %475
  %v478 = vadd.f32 %v181, %v476
  %v479 = vtanh.pop %v478
  %v480 = vsub.f32 1.0, %v468
  %482 = vrot.lane.b32.xlu0 %v479, 96
  %v483 = vpop.permute.xlu0 %482
  %v485 = vmul.f32 %v480, %v483
  %v486 = vmul.f32 %v468, %v407
  %v487 = vadd.f32 %v485, %v486
  %v488 = vpack.c.bf16 %v487, %v487
  %v490 = vunpack.c.l.b16 %v488
  %v491 = vpack.c.b16 %v490, %v490
  %492 = vrot.lane.b32.xlu0 %v491, 96
  %v493 = vpop.permute.xlu0 %492
  %s495 = scalar_lea.vmem %s5, 8
  %496 = vst.msk [vmem:[%s495] sm:$0xf] %vm335, %v493
  %497 = vrot.lane.b32.xlu0 %v488, 96
  %v498 = vpop.permute.xlu0 %497
  %v500 = vsel %vm113, %v498, 0
  %502 = vmatprep.subr.bf16.mxu0 0
  %503 = vmatpush1.bf16.msra.mxu0 %v251
  %504 = vmatprep.subr.bf16.mxu0 0
  %505 = vmatpush1.bf16.msra.mxu0 %v252
  %506 = vmatprep.subr.bf16.mxu0 0
  %507 = vmatpush1.bf16.msra.mxu0 0
  %508 = vmatprep.subr.bf16.mxu0 0
  %509 = vmatpush1.bf16.msra.mxu0 0
  %510 = vmatprep.subr.bf16.mxu0 0
  %511 = vmatpush1.bf16.msra.mxu0 0
  %512 = vmatprep.subr.bf16.mxu0 0
  %513 = vmatpush1.bf16.msra.mxu0 0
  %514 = vmatprep.subr.bf16.mxu0 0
  %515 = vmatpush1.bf16.msra.mxu0 0
  %516 = vmatprep.subr.bf16.mxu0 0
  %517 = vmatpush1.bf16.msra.mxu0 0
  %518 = vmatprep.subr.bf16.mxu0 0
  %519 = vmatpush1.bf16.msra.mxu0 0
  %520 = vmatprep.subr.bf16.mxu0 0
  %521 = vmatpush1.bf16.msra.mxu0 0
  %522 = vmatprep.subr.bf16.mxu0 0
  %523 = vmatpush1.bf16.msra.mxu0 0
  %524 = vmatprep.subr.bf16.mxu0 0
  %525 = vmatpush1.bf16.msra.mxu0 0
  %526 = vmatprep.subr.bf16.mxu0 0
  %527 = vmatpush1.bf16.msra.mxu0 0
  %528 = vmatprep.subr.bf16.mxu0 0
  %529 = vmatpush1.bf16.msra.mxu0 0
  %530 = vmatprep.subr.bf16.mxu0 0
  %531 = vmatpush1.bf16.msra.mxu0 0
  %532 = vmatprep.subr.bf16.mxu0 0
  %533 = vmatpush1.bf16.msra.mxu0 0
  %534 = vmatprep.mubr.bf16.mxu0 0
  %535 = vmatmul.mubr.bf16.gmra.mrb[0].mxu0 %v500
  %v536 = vpop.f32.mrb[0].mxu0
  %v537 = vadd.f32 %v241, %v536
  %v538 = vpop.f32.mrb[0].mxu0
  %v539 = vpop.f32.mrb[0].mxu0
  %v540 = vpop.f32.mrb[0].mxu0
  %541 = vdwg.mxu0
  %v542 = vadd.f32 %v184, %v537
  %v543 = vxor.u32 %v542, 2147483648
  %v544 = vmul.f32 %v543, 1.442695
  %v545 = vpow.pop %v544
  %v546 = vadd.f32 %v545, 1.0
  %v547 = vrcp.pop %v546
  %v548 = vmul.f32 1.0, %v547
  %550 = vrot.lane.b32.xlu0 %v537, 64
  %v551 = vpop.permute.xlu0 %550
  %v553 = vmul.f32 %v548, %v551
  %555 = vrot.lane.b32.xlu0 %v553, 64
  %v556 = vpop.permute.xlu0 %555
  %v558 = vadd.f32 %v184, %v556
  %v559 = vtanh.pop %v558
  %v560 = vsub.f32 1.0, %v548
  %562 = vrot.lane.b32.xlu0 %v559, 96
  %v563 = vpop.permute.xlu0 %562
  %v565 = vmul.f32 %v560, %v563
  %v566 = vmul.f32 %v548, %v487
  %v567 = vadd.f32 %v565, %v566
  %v568 = vpack.c.bf16 %v567, %v567
  %v570 = vunpack.c.l.b16 %v568
  %v571 = vpack.c.b16 %v570, %v570
  %572 = vrot.lane.b32.xlu0 %v571, 96
  %v573 = vpop.permute.xlu0 %572
  %s575 = scalar_lea.vmem %s5, 12
  %576 = vst.msk [vmem:[%s575] sm:$0xf] %vm335, %v573
  %577 = vrot.lane.b32.xlu0 %v568, 96
  %v578 = vpop.permute.xlu0 %577
  %v580 = vsel %vm113, %v578, 0
  %582 = vmatprep.subr.bf16.mxu0 0
  %583 = vmatpush1.bf16.msra.mxu0 %v251
  %584 = vmatprep.subr.bf16.mxu0 0
  %585 = vmatpush1.bf16.msra.mxu0 %v252
  %586 = vmatprep.subr.bf16.mxu0 0
  %587 = vmatpush1.bf16.msra.mxu0 0
  %588 = vmatprep.subr.bf16.mxu0 0
  %589 = vmatpush1.bf16.msra.mxu0 0
  %590 = vmatprep.subr.bf16.mxu0 0
  %591 = vmatpush1.bf16.msra.mxu0 0
  %592 = vmatprep.subr.bf16.mxu0 0
  %593 = vmatpush1.bf16.msra.mxu0 0
  %594 = vmatprep.subr.bf16.mxu0 0
  %595 = vmatpush1.bf16.msra.mxu0 0
  %596 = vmatprep.subr.bf16.mxu0 0
  %597 = vmatpush1.bf16.msra.mxu0 0
  %598 = vmatprep.subr.bf16.mxu0 0
  %599 = vmatpush1.bf16.msra.mxu0 0
  %600 = vmatprep.subr.bf16.mxu0 0
  %601 = vmatpush1.bf16.msra.mxu0 0
  %602 = vmatprep.subr.bf16.mxu0 0
  %603 = vmatpush1.bf16.msra.mxu0 0
  %604 = vmatprep.subr.bf16.mxu0 0
  %605 = vmatpush1.bf16.msra.mxu0 0
  %606 = vmatprep.subr.bf16.mxu0 0
  %607 = vmatpush1.bf16.msra.mxu0 0
  %608 = vmatprep.subr.bf16.mxu0 0
  %609 = vmatpush1.bf16.msra.mxu0 0
  %610 = vmatprep.subr.bf16.mxu0 0
  %611 = vmatpush1.bf16.msra.mxu0 0
  %612 = vmatprep.subr.bf16.mxu0 0
  %613 = vmatpush1.bf16.msra.mxu0 0
  %614 = vmatprep.mubr.bf16.mxu0 0
  %615 = vmatmul.mubr.bf16.gmra.mrb[0].mxu0 %v580
  %v616 = vpop.f32.mrb[0].mxu0
  %v617 = vadd.f32 %v241, %v616
  %v618 = vpop.f32.mrb[0].mxu0
  %v619 = vpop.f32.mrb[0].mxu0
  %v620 = vpop.f32.mrb[0].mxu0
  %621 = vdwg.mxu0
  %v622 = vadd.f32 %v189, %v617
  %v623 = vxor.u32 %v622, 2147483648
  %v624 = vmul.f32 %v623, 1.442695
  %v625 = vpow.pop %v624
  %v626 = vadd.f32 %v625, 1.0
  %v627 = vrcp.pop %v626
  %v628 = vmul.f32 1.0, %v627
  %630 = vrot.lane.b32.xlu0 %v617, 64
  %v631 = vpop.permute.xlu0 %630
  %v633 = vmul.f32 %v628, %v631
  %635 = vrot.lane.b32.xlu0 %v633, 64
  %v636 = vpop.permute.xlu0 %635
  %v638 = vadd.f32 %v189, %v636
  %v639 = vtanh.pop %v638
  %v640 = vsub.f32 1.0, %v628
  %642 = vrot.lane.b32.xlu0 %v639, 96
  %v643 = vpop.permute.xlu0 %642
  %v645 = vmul.f32 %v640, %v643
  %v646 = vmul.f32 %v628, %v567
  %v647 = vadd.f32 %v645, %v646
  %v648 = vpack.c.bf16 %v647, %v647
  %v650 = vunpack.c.l.b16 %v648
  %v651 = vpack.c.b16 %v650, %v650
  %652 = vrot.lane.b32.xlu0 %v651, 96
  %v653 = vpop.permute.xlu0 %652
  %s655 = scalar_lea.vmem %s5, 16
  %656 = vst.msk [vmem:[%s655] sm:$0xf] %vm335, %v653
  %657 = vrot.lane.b32.xlu0 %v648, 96
  %v658 = vpop.permute.xlu0 %657
  %v660 = vsel %vm113, %v658, 0
  %662 = vmatprep.subr.bf16.mxu0 0
  %663 = vmatpush1.bf16.msra.mxu0 %v251
  %664 = vmatprep.subr.bf16.mxu0 0
  %665 = vmatpush1.bf16.msra.mxu0 %v252
  %666 = vmatprep.subr.bf16.mxu0 0
  %667 = vmatpush1.bf16.msra.mxu0 0
  %668 = vmatprep.subr.bf16.mxu0 0
  %669 = vmatpush1.bf16.msra.mxu0 0
  %670 = vmatprep.subr.bf16.mxu0 0
  %671 = vmatpush1.bf16.msra.mxu0 0
  %672 = vmatprep.subr.bf16.mxu0 0
  %673 = vmatpush1.bf16.msra.mxu0 0
  %674 = vmatprep.subr.bf16.mxu0 0
  %675 = vmatpush1.bf16.msra.mxu0 0
  %676 = vmatprep.subr.bf16.mxu0 0
  %677 = vmatpush1.bf16.msra.mxu0 0
  %678 = vmatprep.subr.bf16.mxu0 0
  %679 = vmatpush1.bf16.msra.mxu0 0
  %680 = vmatprep.subr.bf16.mxu0 0
  %681 = vmatpush1.bf16.msra.mxu0 0
  %682 = vmatprep.subr.bf16.mxu0 0
  %683 = vmatpush1.bf16.msra.mxu0 0
  %684 = vmatprep.subr.bf16.mxu0 0
  %685 = vmatpush1.bf16.msra.mxu0 0
  %686 = vmatprep.subr.bf16.mxu0 0
  %687 = vmatpush1.bf16.msra.mxu0 0
  %688 = vmatprep.subr.bf16.mxu0 0
  %689 = vmatpush1.bf16.msra.mxu0 0
  %690 = vmatprep.subr.bf16.mxu0 0
  %691 = vmatpush1.bf16.msra.mxu0 0
  %692 = vmatprep.subr.bf16.mxu0 0
  %693 = vmatpush1.bf16.msra.mxu0 0
  %694 = vmatprep.mubr.bf16.mxu0 0
  %695 = vmatmul.mubr.bf16.gmra.mrb[0].mxu0 %v660
  %v696 = vpop.f32.mrb[0].mxu0
  %v697 = vadd.f32 %v241, %v696
  %v698 = vpop.f32.mrb[0].mxu0
  %v699 = vpop.f32.mrb[0].mxu0
  %v700 = vpop.f32.mrb[0].mxu0
  %701 = vdwg.mxu0
  %v702 = vadd.f32 %v192, %v697
  %v703 = vxor.u32 %v702, 2147483648
  %v704 = vmul.f32 %v703, 1.442695
  %v705 = vpow.pop %v704
  %v706 = vadd.f32 %v705, 1.0
  %v707 = vrcp.pop %v706
  %v708 = vmul.f32 1.0, %v707
  %710 = vrot.lane.b32.xlu0 %v697, 64
  %v711 = vpop.permute.xlu0 %710
  %v713 = vmul.f32 %v708, %v711
  %715 = vrot.lane.b32.xlu0 %v713, 64
  %v716 = vpop.permute.xlu0 %715
  %v718 = vadd.f32 %v192, %v716
  %v719 = vtanh.pop %v718
  %v720 = vsub.f32 1.0, %v708
  %722 = vrot.lane.b32.xlu0 %v719, 96
  %v723 = vpop.permute.xlu0 %722
  %v725 = vmul.f32 %v720, %v723
  %v726 = vmul.f32 %v708, %v647
  %v727 = vadd.f32 %v725, %v726
  %v728 = vpack.c.bf16 %v727, %v727
  %v730 = vunpack.c.l.b16 %v728
  %v731 = vpack.c.b16 %v730, %v730
  %732 = vrot.lane.b32.xlu0 %v731, 96
  %v733 = vpop.permute.xlu0 %732
  %s735 = scalar_lea.vmem %s5, 20
  %736 = vst.msk [vmem:[%s735] sm:$0xf] %vm335, %v733
  %737 = vrot.lane.b32.xlu0 %v728, 96
  %v738 = vpop.permute.xlu0 %737
  %v740 = vsel %vm113, %v738, 0
  %742 = vmatprep.subr.bf16.mxu0 0
  %743 = vmatpush1.bf16.msra.mxu0 %v251
  %744 = vmatprep.subr.bf16.mxu0 0
  %745 = vmatpush1.bf16.msra.mxu0 %v252
  %746 = vmatprep.subr.bf16.mxu0 0
  %747 = vmatpush1.bf16.msra.mxu0 0
  %748 = vmatprep.subr.bf16.mxu0 0
  %749 = vmatpush1.bf16.msra.mxu0 0
  %750 = vmatprep.subr.bf16.mxu0 0
  %751 = vmatpush1.bf16.msra.mxu0 0
  %752 = vmatprep.subr.bf16.mxu0 0
  %753 = vmatpush1.bf16.msra.mxu0 0
  %754 = vmatprep.subr.bf16.mxu0 0
  %755 = vmatpush1.bf16.msra.mxu0 0
  %756 = vmatprep.subr.bf16.mxu0 0
  %757 = vmatpush1.bf16.msra.mxu0 0
  %758 = vmatprep.subr.bf16.mxu0 0
  %759 = vmatpush1.bf16.msra.mxu0 0
  %760 = vmatprep.subr.bf16.mxu0 0
  %761 = vmatpush1.bf16.msra.mxu0 0
  %762 = vmatprep.subr.bf16.mxu0 0
  %763 = vmatpush1.bf16.msra.mxu0 0
  %764 = vmatprep.subr.bf16.mxu0 0
  %765 = vmatpush1.bf16.msra.mxu0 0
  %766 = vmatprep.subr.bf16.mxu0 0
  %767 = vmatpush1.bf16.msra.mxu0 0
  %768 = vmatprep.subr.bf16.mxu0 0
  %769 = vmatpush1.bf16.msra.mxu0 0
  %770 = vmatprep.subr.bf16.mxu0 0
  %771 = vmatpush1.bf16.msra.mxu0 0
  %772 = vmatprep.subr.bf16.mxu0 0
  %773 = vmatpush1.bf16.msra.mxu0 0
  %774 = vmatprep.mubr.bf16.mxu0 0
  %775 = vmatmul.mubr.bf16.gmra.mrb[0].mxu0 %v740
  %v776 = vpop.f32.mrb[0].mxu0
  %v777 = vadd.f32 %v241, %v776
  %v778 = vpop.f32.mrb[0].mxu0
  %v779 = vpop.f32.mrb[0].mxu0
  %v780 = vpop.f32.mrb[0].mxu0
  %781 = vdwg.mxu0
  %v782 = vadd.f32 %v197, %v777
  %v783 = vxor.u32 %v782, 2147483648
  %v784 = vmul.f32 %v783, 1.442695
  %v785 = vpow.pop %v784
  %v786 = vadd.f32 %v785, 1.0
  %v787 = vrcp.pop %v786
  %v788 = vmul.f32 1.0, %v787
  %790 = vrot.lane.b32.xlu0 %v777, 64
  %v791 = vpop.permute.xlu0 %790
  %v793 = vmul.f32 %v788, %v791
  %795 = vrot.lane.b32.xlu0 %v793, 64
  %v796 = vpop.permute.xlu0 %795
  %v798 = vadd.f32 %v197, %v796
  %v799 = vtanh.pop %v798
  %v800 = vsub.f32 1.0, %v788
  %802 = vrot.lane.b32.xlu0 %v799, 96
  %v803 = vpop.permute.xlu0 %802
  %v805 = vmul.f32 %v800, %v803
  %v806 = vmul.f32 %v788, %v727
  %v807 = vadd.f32 %v805, %v806
  %v808 = vpack.c.bf16 %v807, %v807
  %v810 = vunpack.c.l.b16 %v808
  %v811 = vpack.c.b16 %v810, %v810
  %812 = vrot.lane.b32.xlu0 %v811, 96
  %v813 = vpop.permute.xlu0 %812
  %s815 = scalar_lea.vmem %s5, 24
  %816 = vst.msk [vmem:[%s815] sm:$0xf] %vm335, %v813
  %817 = vrot.lane.b32.xlu0 %v808, 96
  %v818 = vpop.permute.xlu0 %817
  %v820 = vsel %vm113, %v818, 0
  %822 = vmatprep.subr.bf16.mxu0 0
  %823 = vmatpush1.bf16.msra.mxu0 %v251
  %824 = vmatprep.subr.bf16.mxu0 0
  %825 = vmatpush1.bf16.msra.mxu0 %v252
  %826 = vmatprep.subr.bf16.mxu0 0
  %827 = vmatpush1.bf16.msra.mxu0 0
  %828 = vmatprep.subr.bf16.mxu0 0
  %829 = vmatpush1.bf16.msra.mxu0 0
  %830 = vmatprep.subr.bf16.mxu0 0
  %831 = vmatpush1.bf16.msra.mxu0 0
  %832 = vmatprep.subr.bf16.mxu0 0
  %833 = vmatpush1.bf16.msra.mxu0 0
  %834 = vmatprep.subr.bf16.mxu0 0
  %835 = vmatpush1.bf16.msra.mxu0 0
  %836 = vmatprep.subr.bf16.mxu0 0
  %837 = vmatpush1.bf16.msra.mxu0 0
  %838 = vmatprep.subr.bf16.mxu0 0
  %839 = vmatpush1.bf16.msra.mxu0 0
  %840 = vmatprep.subr.bf16.mxu0 0
  %841 = vmatpush1.bf16.msra.mxu0 0
  %842 = vmatprep.subr.bf16.mxu0 0
  %843 = vmatpush1.bf16.msra.mxu0 0
  %844 = vmatprep.subr.bf16.mxu0 0
  %845 = vmatpush1.bf16.msra.mxu0 0
  %846 = vmatprep.subr.bf16.mxu0 0
  %847 = vmatpush1.bf16.msra.mxu0 0
  %848 = vmatprep.subr.bf16.mxu0 0
  %849 = vmatpush1.bf16.msra.mxu0 0
  %850 = vmatprep.subr.bf16.mxu0 0
  %851 = vmatpush1.bf16.msra.mxu0 0
  %852 = vmatprep.subr.bf16.mxu0 0
  %853 = vmatpush1.bf16.msra.mxu0 0
  %854 = vmatprep.mubr.bf16.mxu0 0
  %855 = vmatmul.mubr.bf16.gmra.mrb[0].mxu0 %v820
  %v856 = vpop.f32.mrb[0].mxu0
  %v857 = vadd.f32 %v241, %v856
  %v858 = vpop.f32.mrb[0].mxu0
  %v859 = vpop.f32.mrb[0].mxu0
  %v860 = vpop.f32.mrb[0].mxu0
  %861 = vdwg.mxu0
  %v862 = vadd.f32 %v200, %v857
  %v863 = vxor.u32 %v862, 2147483648
  %v864 = vmul.f32 %v863, 1.442695
  %v865 = vpow.pop %v864
  %v866 = vadd.f32 %v865, 1.0
  %v867 = vrcp.pop %v866
  %v868 = vmul.f32 1.0, %v867
  %870 = vrot.lane.b32.xlu0 %v857, 64
  %v871 = vpop.permute.xlu0 %870
  %v873 = vmul.f32 %v868, %v871
  %875 = vrot.lane.b32.xlu0 %v873, 64
  %v876 = vpop.permute.xlu0 %875
  %v878 = vadd.f32 %v200, %v876
  %v879 = vtanh.pop %v878
  %v880 = vsub.f32 1.0, %v868
  %882 = vrot.lane.b32.xlu0 %v879, 96
  %v883 = vpop.permute.xlu0 %882
  %v885 = vmul.f32 %v880, %v883
  %v886 = vmul.f32 %v868, %v807
  %v887 = vadd.f32 %v885, %v886
  %v888 = vpack.c.bf16 %v887, %v887
  %v890 = vunpack.c.l.b16 %v888
  %v891 = vpack.c.b16 %v890, %v890
  %892 = vrot.lane.b32.xlu0 %v891, 96
  %v893 = vpop.permute.xlu0 %892
  %s895 = scalar_lea.vmem %s5, 28
  %896 = vst.msk [vmem:[%s895] sm:$0xf] %vm335, %v893
  %897 = vrot.lane.b32.xlu0 %v888, 96
  %v898 = vpop.permute.xlu0 %897
  %v900 = vsel %vm113, %v898, 0
  %902 = vmatprep.subr.bf16.mxu0 0
  %903 = vmatpush1.bf16.msra.mxu0 %v251
  %904 = vmatprep.subr.bf16.mxu0 0
  %905 = vmatpush1.bf16.msra.mxu0 %v252
  %906 = vmatprep.subr.bf16.mxu0 0
  %907 = vmatpush1.bf16.msra.mxu0 0
  %908 = vmatprep.subr.bf16.mxu0 0
  %909 = vmatpush1.bf16.msra.mxu0 0
  %910 = vmatprep.subr.bf16.mxu0 0
  %911 = vmatpush1.bf16.msra.mxu0 0
  %912 = vmatprep.subr.bf16.mxu0 0
  %913 = vmatpush1.bf16.msra.mxu0 0
  %914 = vmatprep.subr.bf16.mxu0 0
  %915 = vmatpush1.bf16.msra.mxu0 0
  %916 = vmatprep.subr.bf16.mxu0 0
  %917 = vmatpush1.bf16.msra.mxu0 0
  %918 = vmatprep.subr.bf16.mxu0 0
  %919 = vmatpush1.bf16.msra.mxu0 0
  %920 = vmatprep.subr.bf16.mxu0 0
  %921 = vmatpush1.bf16.msra.mxu0 0
  %922 = vmatprep.subr.bf16.mxu0 0
  %923 = vmatpush1.bf16.msra.mxu0 0
  %924 = vmatprep.subr.bf16.mxu0 0
  %925 = vmatpush1.bf16.msra.mxu0 0
  %926 = vmatprep.subr.bf16.mxu0 0
  %927 = vmatpush1.bf16.msra.mxu0 0
  %928 = vmatprep.subr.bf16.mxu0 0
  %929 = vmatpush1.bf16.msra.mxu0 0
  %930 = vmatprep.subr.bf16.mxu0 0
  %931 = vmatpush1.bf16.msra.mxu0 0
  %932 = vmatprep.subr.bf16.mxu0 0
  %933 = vmatpush1.bf16.msra.mxu0 0
  %934 = vmatprep.mubr.bf16.mxu0 0
  %935 = vmatmul.mubr.bf16.gmra.mrb[0].mxu0 %v900
  %v936 = vpop.f32.mrb[0].mxu0
  %v937 = vadd.f32 %v241, %v936
  %v938 = vpop.f32.mrb[0].mxu0
  %v939 = vpop.f32.mrb[0].mxu0
  %v940 = vpop.f32.mrb[0].mxu0
  %941 = vdwg.mxu0
  %v942 = vadd.f32 %v205, %v937
  %v943 = vxor.u32 %v942, 2147483648
  %v944 = vmul.f32 %v943, 1.442695
  %v945 = vpow.pop %v944
  %v946 = vadd.f32 %v945, 1.0
  %v947 = vrcp.pop %v946
  %v948 = vmul.f32 1.0, %v947
  %950 = vrot.lane.b32.xlu0 %v937, 64
  %v951 = vpop.permute.xlu0 %950
  %v953 = vmul.f32 %v948, %v951
  %955 = vrot.lane.b32.xlu0 %v953, 64
  %v956 = vpop.permute.xlu0 %955
  %v958 = vadd.f32 %v205, %v956
  %v959 = vtanh.pop %v958
  %v960 = vsub.f32 1.0, %v948
  %962 = vrot.lane.b32.xlu0 %v959, 96
  %v963 = vpop.permute.xlu0 %962
  %v965 = vmul.f32 %v960, %v963
  %v966 = vmul.f32 %v948, %v887
  %v967 = vadd.f32 %v965, %v966
  %v968 = vpack.c.bf16 %v967, %v967
  %v970 = vunpack.c.l.b16 %v968
  %v971 = vpack.c.b16 %v970, %v970
  %972 = vrot.lane.b32.xlu0 %v971, 96
  %v973 = vpop.permute.xlu0 %972
  %s975 = scalar_lea.vmem %s5, 32
  %976 = vst.msk [vmem:[%s975] sm:$0xf] %vm335, %v973
  %977 = vrot.lane.b32.xlu0 %v968, 96
  %v978 = vpop.permute.xlu0 %977
  %v980 = vsel %vm113, %v978, 0
  %982 = vmatprep.subr.bf16.mxu0 0
  %983 = vmatpush1.bf16.msra.mxu0 %v251
  %984 = vmatprep.subr.bf16.mxu0 0
  %985 = vmatpush1.bf16.msra.mxu0 %v252
  %986 = vmatprep.subr.bf16.mxu0 0
  %987 = vmatpush1.bf16.msra.mxu0 0
  %988 = vmatprep.subr.bf16.mxu0 0
  %989 = vmatpush1.bf16.msra.mxu0 0
  %990 = vmatprep.subr.bf16.mxu0 0
  %991 = vmatpush1.bf16.msra.mxu0 0
  %992 = vmatprep.subr.bf16.mxu0 0
  %993 = vmatpush1.bf16.msra.mxu0 0
  %994 = vmatprep.subr.bf16.mxu0 0
  %995 = vmatpush1.bf16.msra.mxu0 0
  %996 = vmatprep.subr.bf16.mxu0 0
  %997 = vmatpush1.bf16.msra.mxu0 0
  %998 = vmatprep.subr.bf16.mxu0 0
  %999 = vmatpush1.bf16.msra.mxu0 0
  %1000 = vmatprep.subr.bf16.mxu0 0
  %1001 = vmatpush1.bf16.msra.mxu0 0
  %1002 = vmatprep.subr.bf16.mxu0 0
  %1003 = vmatpush1.bf16.msra.mxu0 0
  %1004 = vmatprep.subr.bf16.mxu0 0
  %1005 = vmatpush1.bf16.msra.mxu0 0
  %1006 = vmatprep.subr.bf16.mxu0 0
  %1007 = vmatpush1.bf16.msra.mxu0 0
  %1008 = vmatprep.subr.bf16.mxu0 0
  %1009 = vmatpush1.bf16.msra.mxu0 0
  %1010 = vmatprep.subr.bf16.mxu0 0
  %1011 = vmatpush1.bf16.msra.mxu0 0
  %1012 = vmatprep.subr.bf16.mxu0 0
  %1013 = vmatpush1.bf16.msra.mxu0 0
  %1014 = vmatprep.mubr.bf16.mxu0 0
  %1015 = vmatmul.mubr.bf16.gmra.mrb[0].mxu0 %v980
  %v1016 = vpop.f32.mrb[0].mxu0
  %v1017 = vadd.f32 %v241, %v1016
  %v1018 = vpop.f32.mrb[0].mxu0
  %v1019 = vpop.f32.mrb[0].mxu0
  %v1020 = vpop.f32.mrb[0].mxu0
  %1021 = vdwg.mxu0
  %v1022 = vadd.f32 %v208, %v1017
  %v1023 = vxor.u32 %v1022, 2147483648
  %v1024 = vmul.f32 %v1023, 1.442695
  %v1025 = vpow.pop %v1024
  %v1026 = vadd.f32 %v1025, 1.0
  %v1027 = vrcp.pop %v1026
  %v1028 = vmul.f32 1.0, %v1027
  %1030 = vrot.lane.b32.xlu0 %v1017, 64
  %v1031 = vpop.permute.xlu0 %1030
  %v1033 = vmul.f32 %v1028, %v1031
  %1035 = vrot.lane.b32.xlu0 %v1033, 64
  %v1036 = vpop.permute.xlu0 %1035
  %v1038 = vadd.f32 %v208, %v1036
  %v1039 = vtanh.pop %v1038
  %v1040 = vsub.f32 1.0, %v1028
  %1042 = vrot.lane.b32.xlu0 %v1039, 96
  %v1043 = vpop.permute.xlu0 %1042
  %v1045 = vmul.f32 %v1040, %v1043
  %v1046 = vmul.f32 %v1028, %v967
  %v1047 = vadd.f32 %v1045, %v1046
  %v1048 = vpack.c.bf16 %v1047, %v1047
  %v1050 = vunpack.c.l.b16 %v1048
  %v1051 = vpack.c.b16 %v1050, %v1050
  %1052 = vrot.lane.b32.xlu0 %v1051, 96
  %v1053 = vpop.permute.xlu0 %1052
  %s1055 = scalar_lea.vmem %s5, 36
  %1056 = vst.msk [vmem:[%s1055] sm:$0xf] %vm335, %v1053
  %1057 = vrot.lane.b32.xlu0 %v1048, 96
  %v1058 = vpop.permute.xlu0 %1057
  %v1060 = vsel %vm113, %v1058, 0
  %1062 = vmatprep.subr.bf16.mxu0 0
  %1063 = vmatpush1.bf16.msra.mxu0 %v251
  %1064 = vmatprep.subr.bf16.mxu0 0
  %1065 = vmatpush1.bf16.msra.mxu0 %v252
  %1066 = vmatprep.subr.bf16.mxu0 0
  %1067 = vmatpush1.bf16.msra.mxu0 0
  %1068 = vmatprep.subr.bf16.mxu0 0
  %1069 = vmatpush1.bf16.msra.mxu0 0
  %1070 = vmatprep.subr.bf16.mxu0 0
  %1071 = vmatpush1.bf16.msra.mxu0 0
  %1072 = vmatprep.subr.bf16.mxu0 0
  %1073 = vmatpush1.bf16.msra.mxu0 0
  %1074 = vmatprep.subr.bf16.mxu0 0
  %1075 = vmatpush1.bf16.msra.mxu0 0
  %1076 = vmatprep.subr.bf16.mxu0 0
  %1077 = vmatpush1.bf16.msra.mxu0 0
  %1078 = vmatprep.subr.bf16.mxu0 0
  %1079 = vmatpush1.bf16.msra.mxu0 0
  %1080 = vmatprep.subr.bf16.mxu0 0
  %1081 = vmatpush1.bf16.msra.mxu0 0
  %1082 = vmatprep.subr.bf16.mxu0 0
  %1083 = vmatpush1.bf16.msra.mxu0 0
  %1084 = vmatprep.subr.bf16.mxu0 0
  %1085 = vmatpush1.bf16.msra.mxu0 0
  %1086 = vmatprep.subr.bf16.mxu0 0
  %1087 = vmatpush1.bf16.msra.mxu0 0
  %1088 = vmatprep.subr.bf16.mxu0 0
  %1089 = vmatpush1.bf16.msra.mxu0 0
  %1090 = vmatprep.subr.bf16.mxu0 0
  %1091 = vmatpush1.bf16.msra.mxu0 0
  %1092 = vmatprep.subr.bf16.mxu0 0
  %1093 = vmatpush1.bf16.msra.mxu0 0
  %1094 = vmatprep.mubr.bf16.mxu0 0
  %1095 = vmatmul.mubr.bf16.gmra.mrb[0].mxu0 %v1060
  %v1096 = vpop.f32.mrb[0].mxu0
  %v1097 = vadd.f32 %v241, %v1096
  %v1098 = vpop.f32.mrb[0].mxu0
  %v1099 = vpop.f32.mrb[0].mxu0
  %v1100 = vpop.f32.mrb[0].mxu0
  %1101 = vdwg.mxu0
  %v1102 = vadd.f32 %v213, %v1097
  %v1103 = vxor.u32 %v1102, 2147483648
  %v1104 = vmul.f32 %v1103, 1.442695
  %v1105 = vpow.pop %v1104
  %v1106 = vadd.f32 %v1105, 1.0
  %v1107 = vrcp.pop %v1106
  %v1108 = vmul.f32 1.0, %v1107
  %1110 = vrot.lane.b32.xlu0 %v1097, 64
  %v1111 = vpop.permute.xlu0 %1110
  %v1113 = vmul.f32 %v1108, %v1111
  %1115 = vrot.lane.b32.xlu0 %v1113, 64
  %v1116 = vpop.permute.xlu0 %1115
  %v1118 = vadd.f32 %v213, %v1116
  %v1119 = vtanh.pop %v1118
  %v1120 = vsub.f32 1.0, %v1108
  %1122 = vrot.lane.b32.xlu0 %v1119, 96
  %v1123 = vpop.permute.xlu0 %1122
  %v1125 = vmul.f32 %v1120, %v1123
  %v1126 = vmul.f32 %v1108, %v1047
  %v1127 = vadd.f32 %v1125, %v1126
  %v1128 = vpack.c.bf16 %v1127, %v1127
  %v1130 = vunpack.c.l.b16 %v1128
  %v1131 = vpack.c.b16 %v1130, %v1130
  %1132 = vrot.lane.b32.xlu0 %v1131, 96
  %v1133 = vpop.permute.xlu0 %1132
  %s1135 = scalar_lea.vmem %s5, 40
  %1136 = vst.msk [vmem:[%s1135] sm:$0xf] %vm335, %v1133
  %1137 = vrot.lane.b32.xlu0 %v1128, 96
  %v1138 = vpop.permute.xlu0 %1137
  %v1140 = vsel %vm113, %v1138, 0
  %1142 = vmatprep.subr.bf16.mxu0 0
  %1143 = vmatpush1.bf16.msra.mxu0 %v251
  %1144 = vmatprep.subr.bf16.mxu0 0
  %1145 = vmatpush1.bf16.msra.mxu0 %v252
  %1146 = vmatprep.subr.bf16.mxu0 0
  %1147 = vmatpush1.bf16.msra.mxu0 0
  %1148 = vmatprep.subr.bf16.mxu0 0
  %1149 = vmatpush1.bf16.msra.mxu0 0
  %1150 = vmatprep.subr.bf16.mxu0 0
  %1151 = vmatpush1.bf16.msra.mxu0 0
  %1152 = vmatprep.subr.bf16.mxu0 0
  %1153 = vmatpush1.bf16.msra.mxu0 0
  %1154 = vmatprep.subr.bf16.mxu0 0
  %1155 = vmatpush1.bf16.msra.mxu0 0
  %1156 = vmatprep.subr.bf16.mxu0 0
  %1157 = vmatpush1.bf16.msra.mxu0 0
  %1158 = vmatprep.subr.bf16.mxu0 0
  %1159 = vmatpush1.bf16.msra.mxu0 0
  %1160 = vmatprep.subr.bf16.mxu0 0
  %1161 = vmatpush1.bf16.msra.mxu0 0
  %1162 = vmatprep.subr.bf16.mxu0 0
  %1163 = vmatpush1.bf16.msra.mxu0 0
  %1164 = vmatprep.subr.bf16.mxu0 0
  %1165 = vmatpush1.bf16.msra.mxu0 0
  %1166 = vmatprep.subr.bf16.mxu0 0
  %1167 = vmatpush1.bf16.msra.mxu0 0
  %1168 = vmatprep.subr.bf16.mxu0 0
  %1169 = vmatpush1.bf16.msra.mxu0 0
  %1170 = vmatprep.subr.bf16.mxu0 0
  %1171 = vmatpush1.bf16.msra.mxu0 0
  %1172 = vmatprep.subr.bf16.mxu0 0
  %1173 = vmatpush1.bf16.msra.mxu0 0
  %1174 = vmatprep.mubr.bf16.mxu0 0
  %1175 = vmatmul.mubr.bf16.gmra.mrb[0].mxu0 %v1140
  %v1176 = vpop.f32.mrb[0].mxu0
  %v1177 = vadd.f32 %v241, %v1176
  %v1178 = vpop.f32.mrb[0].mxu0
  %v1179 = vpop.f32.mrb[0].mxu0
  %v1180 = vpop.f32.mrb[0].mxu0
  %1181 = vdwg.mxu0
  %v1182 = vadd.f32 %v216, %v1177
  %v1183 = vxor.u32 %v1182, 2147483648
  %v1184 = vmul.f32 %v1183, 1.442695
  %v1185 = vpow.pop %v1184
  %v1186 = vadd.f32 %v1185, 1.0
  %v1187 = vrcp.pop %v1186
  %v1188 = vmul.f32 1.0, %v1187
  %1190 = vrot.lane.b32.xlu0 %v1177, 64
  %v1191 = vpop.permute.xlu0 %1190
  %v1193 = vmul.f32 %v1188, %v1191
  %1195 = vrot.lane.b32.xlu0 %v1193, 64
  %v1196 = vpop.permute.xlu0 %1195
  %v1198 = vadd.f32 %v216, %v1196
  %v1199 = vtanh.pop %v1198
  %v1200 = vsub.f32 1.0, %v1188
  %1202 = vrot.lane.b32.xlu0 %v1199, 96
  %v1203 = vpop.permute.xlu0 %1202
  %v1205 = vmul.f32 %v1200, %v1203
  %v1206 = vmul.f32 %v1188, %v1127
  %v1207 = vadd.f32 %v1205, %v1206
  %v1208 = vpack.c.bf16 %v1207, %v1207
  %v1210 = vunpack.c.l.b16 %v1208
  %v1211 = vpack.c.b16 %v1210, %v1210
  %1212 = vrot.lane.b32.xlu0 %v1211, 96
  %v1213 = vpop.permute.xlu0 %1212
  %s1215 = scalar_lea.vmem %s5, 44
  %1216 = vst.msk [vmem:[%s1215] sm:$0xf] %vm335, %v1213
  %1217 = vrot.lane.b32.xlu0 %v1208, 96
  %v1218 = vpop.permute.xlu0 %1217
  %v1220 = vsel %vm113, %v1218, 0
  %1222 = vmatprep.subr.bf16.mxu0 0
  %1223 = vmatpush1.bf16.msra.mxu0 %v251
  %1224 = vmatprep.subr.bf16.mxu0 0
  %1225 = vmatpush1.bf16.msra.mxu0 %v252
  %1226 = vmatprep.subr.bf16.mxu0 0
  %1227 = vmatpush1.bf16.msra.mxu0 0
  %1228 = vmatprep.subr.bf16.mxu0 0
  %1229 = vmatpush1.bf16.msra.mxu0 0
  %1230 = vmatprep.subr.bf16.mxu0 0
  %1231 = vmatpush1.bf16.msra.mxu0 0
  %1232 = vmatprep.subr.bf16.mxu0 0
  %1233 = vmatpush1.bf16.msra.mxu0 0
  %1234 = vmatprep.subr.bf16.mxu0 0
  %1235 = vmatpush1.bf16.msra.mxu0 0
  %1236 = vmatprep.subr.bf16.mxu0 0
  %1237 = vmatpush1.bf16.msra.mxu0 0
  %1238 = vmatprep.subr.bf16.mxu0 0
  %1239 = vmatpush1.bf16.msra.mxu0 0
  %1240 = vmatprep.subr.bf16.mxu0 0
  %1241 = vmatpush1.bf16.msra.mxu0 0
  %1242 = vmatprep.subr.bf16.mxu0 0
  %1243 = vmatpush1.bf16.msra.mxu0 0
  %1244 = vmatprep.subr.bf16.mxu0 0
  %1245 = vmatpush1.bf16.msra.mxu0 0
  %1246 = vmatprep.subr.bf16.mxu0 0
  %1247 = vmatpush1.bf16.msra.mxu0 0
  %1248 = vmatprep.subr.bf16.mxu0 0
  %1249 = vmatpush1.bf16.msra.mxu0 0
  %1250 = vmatprep.subr.bf16.mxu0 0
  %1251 = vmatpush1.bf16.msra.mxu0 0
  %1252 = vmatprep.subr.bf16.mxu0 0
  %1253 = vmatpush1.bf16.msra.mxu0 0
  %1254 = vmatprep.mubr.bf16.mxu0 0
  %1255 = vmatmul.mubr.bf16.gmra.mrb[0].mxu0 %v1220
  %v1256 = vpop.f32.mrb[0].mxu0
  %v1257 = vadd.f32 %v241, %v1256
  %v1258 = vpop.f32.mrb[0].mxu0
  %v1259 = vpop.f32.mrb[0].mxu0
  %v1260 = vpop.f32.mrb[0].mxu0
  %1261 = vdwg.mxu0
  %v1262 = vadd.f32 %v221, %v1257
  %v1263 = vxor.u32 %v1262, 2147483648
  %v1264 = vmul.f32 %v1263, 1.442695
  %v1265 = vpow.pop %v1264
  %v1266 = vadd.f32 %v1265, 1.0
  %v1267 = vrcp.pop %v1266
  %v1268 = vmul.f32 1.0, %v1267
  %1270 = vrot.lane.b32.xlu0 %v1257, 64
  %v1271 = vpop.permute.xlu0 %1270
  %v1273 = vmul.f32 %v1268, %v1271
  %1275 = vrot.lane.b32.xlu0 %v1273, 64
  %v1276 = vpop.permute.xlu0 %1275
  %v1278 = vadd.f32 %v221, %v1276
  %v1279 = vtanh.pop %v1278
  %v1280 = vsub.f32 1.0, %v1268
  %1282 = vrot.lane.b32.xlu0 %v1279, 96
  %v1283 = vpop.permute.xlu0 %1282
  %v1285 = vmul.f32 %v1280, %v1283
  %v1286 = vmul.f32 %v1268, %v1207
  %v1287 = vadd.f32 %v1285, %v1286
  %v1288 = vpack.c.bf16 %v1287, %v1287
  %v1290 = vunpack.c.l.b16 %v1288
  %v1291 = vpack.c.b16 %v1290, %v1290
  %1292 = vrot.lane.b32.xlu0 %v1291, 96
  %v1293 = vpop.permute.xlu0 %1292
  %s1295 = scalar_lea.vmem %s5, 48
  %1296 = vst.msk [vmem:[%s1295] sm:$0xf] %vm335, %v1293
  %1297 = vrot.lane.b32.xlu0 %v1288, 96
  %v1298 = vpop.permute.xlu0 %1297
  %v1300 = vsel %vm113, %v1298, 0
  %1302 = vmatprep.subr.bf16.mxu0 0
  %1303 = vmatpush1.bf16.msra.mxu0 %v251
  %1304 = vmatprep.subr.bf16.mxu0 0
  %1305 = vmatpush1.bf16.msra.mxu0 %v252
  %1306 = vmatprep.subr.bf16.mxu0 0
  %1307 = vmatpush1.bf16.msra.mxu0 0
  %1308 = vmatprep.subr.bf16.mxu0 0
  %1309 = vmatpush1.bf16.msra.mxu0 0
  %1310 = vmatprep.subr.bf16.mxu0 0
  %1311 = vmatpush1.bf16.msra.mxu0 0
  %1312 = vmatprep.subr.bf16.mxu0 0
  %1313 = vmatpush1.bf16.msra.mxu0 0
  %1314 = vmatprep.subr.bf16.mxu0 0
  %1315 = vmatpush1.bf16.msra.mxu0 0
  %1316 = vmatprep.subr.bf16.mxu0 0
  %1317 = vmatpush1.bf16.msra.mxu0 0
  %1318 = vmatprep.subr.bf16.mxu0 0
  %1319 = vmatpush1.bf16.msra.mxu0 0
  %1320 = vmatprep.subr.bf16.mxu0 0
  %1321 = vmatpush1.bf16.msra.mxu0 0
  %1322 = vmatprep.subr.bf16.mxu0 0
  %1323 = vmatpush1.bf16.msra.mxu0 0
  %1324 = vmatprep.subr.bf16.mxu0 0
  %1325 = vmatpush1.bf16.msra.mxu0 0
  %1326 = vmatprep.subr.bf16.mxu0 0
  %1327 = vmatpush1.bf16.msra.mxu0 0
  %1328 = vmatprep.subr.bf16.mxu0 0
  %1329 = vmatpush1.bf16.msra.mxu0 0
  %1330 = vmatprep.subr.bf16.mxu0 0
  %1331 = vmatpush1.bf16.msra.mxu0 0
  %1332 = vmatprep.subr.bf16.mxu0 0
  %1333 = vmatpush1.bf16.msra.mxu0 0
  %1334 = vmatprep.mubr.bf16.mxu0 0
  %1335 = vmatmul.mubr.bf16.gmra.mrb[0].mxu0 %v1300
  %v1336 = vpop.f32.mrb[0].mxu0
  %v1337 = vadd.f32 %v241, %v1336
  %v1338 = vpop.f32.mrb[0].mxu0
  %v1339 = vpop.f32.mrb[0].mxu0
  %v1340 = vpop.f32.mrb[0].mxu0
  %1341 = vdwg.mxu0
  %v1342 = vadd.f32 %v224, %v1337
  %v1343 = vxor.u32 %v1342, 2147483648
  %v1344 = vmul.f32 %v1343, 1.442695
  %v1345 = vpow.pop %v1344
  %v1346 = vadd.f32 %v1345, 1.0
  %v1347 = vrcp.pop %v1346
  %v1348 = vmul.f32 1.0, %v1347
  %1350 = vrot.lane.b32.xlu0 %v1337, 64
  %v1351 = vpop.permute.xlu0 %1350
  %v1353 = vmul.f32 %v1348, %v1351
  %1355 = vrot.lane.b32.xlu0 %v1353, 64
  %v1356 = vpop.permute.xlu0 %1355
  %v1358 = vadd.f32 %v224, %v1356
  %v1359 = vtanh.pop %v1358
  %v1360 = vsub.f32 1.0, %v1348
  %1362 = vrot.lane.b32.xlu0 %v1359, 96
  %v1363 = vpop.permute.xlu0 %1362
  %v1365 = vmul.f32 %v1360, %v1363
  %v1366 = vmul.f32 %v1348, %v1287
  %v1367 = vadd.f32 %v1365, %v1366
  %v1368 = vpack.c.bf16 %v1367, %v1367
  %v1370 = vunpack.c.l.b16 %v1368
  %v1371 = vpack.c.b16 %v1370, %v1370
  %1372 = vrot.lane.b32.xlu0 %v1371, 96
  %v1373 = vpop.permute.xlu0 %1372
  %s1375 = scalar_lea.vmem %s5, 52
  %1376 = vst.msk [vmem:[%s1375] sm:$0xf] %vm335, %v1373
  %1377 = vrot.lane.b32.xlu0 %v1368, 96
  %v1378 = vpop.permute.xlu0 %1377
  %v1380 = vsel %vm113, %v1378, 0
  %1382 = vmatprep.subr.bf16.mxu0 0
  %1383 = vmatpush1.bf16.msra.mxu0 %v251
  %1384 = vmatprep.subr.bf16.mxu0 0
  %1385 = vmatpush1.bf16.msra.mxu0 %v252
  %1386 = vmatprep.subr.bf16.mxu0 0
  %1387 = vmatpush1.bf16.msra.mxu0 0
  %1388 = vmatprep.subr.bf16.mxu0 0
  %1389 = vmatpush1.bf16.msra.mxu0 0
  %1390 = vmatprep.subr.bf16.mxu0 0
  %1391 = vmatpush1.bf16.msra.mxu0 0
  %1392 = vmatprep.subr.bf16.mxu0 0
  %1393 = vmatpush1.bf16.msra.mxu0 0
  %1394 = vmatprep.subr.bf16.mxu0 0
  %1395 = vmatpush1.bf16.msra.mxu0 0
  %1396 = vmatprep.subr.bf16.mxu0 0
  %1397 = vmatpush1.bf16.msra.mxu0 0
  %1398 = vmatprep.subr.bf16.mxu0 0
  %1399 = vmatpush1.bf16.msra.mxu0 0
  %1400 = vmatprep.subr.bf16.mxu0 0
  %1401 = vmatpush1.bf16.msra.mxu0 0
  %1402 = vmatprep.subr.bf16.mxu0 0
  %1403 = vmatpush1.bf16.msra.mxu0 0
  %1404 = vmatprep.subr.bf16.mxu0 0
  %1405 = vmatpush1.bf16.msra.mxu0 0
  %1406 = vmatprep.subr.bf16.mxu0 0
  %1407 = vmatpush1.bf16.msra.mxu0 0
  %1408 = vmatprep.subr.bf16.mxu0 0
  %1409 = vmatpush1.bf16.msra.mxu0 0
  %1410 = vmatprep.subr.bf16.mxu0 0
  %1411 = vmatpush1.bf16.msra.mxu0 0
  %1412 = vmatprep.subr.bf16.mxu0 0
  %1413 = vmatpush1.bf16.msra.mxu0 0
  %1414 = vmatprep.mubr.bf16.mxu0 0
  %1415 = vmatmul.mubr.bf16.gmra.mrb[0].mxu0 %v1380
  %v1416 = vpop.f32.mrb[0].mxu0
  %v1417 = vadd.f32 %v241, %v1416
  %v1418 = vpop.f32.mrb[0].mxu0
  %v1419 = vpop.f32.mrb[0].mxu0
  %v1420 = vpop.f32.mrb[0].mxu0
  %1421 = vdwg.mxu0
  %v1422 = vadd.f32 %v229, %v1417
  %v1423 = vxor.u32 %v1422, 2147483648
  %v1424 = vmul.f32 %v1423, 1.442695
  %v1425 = vpow.pop %v1424
  %v1426 = vadd.f32 %v1425, 1.0
  %v1427 = vrcp.pop %v1426
  %v1428 = vmul.f32 1.0, %v1427
  %1430 = vrot.lane.b32.xlu0 %v1417, 64
  %v1431 = vpop.permute.xlu0 %1430
  %v1433 = vmul.f32 %v1428, %v1431
  %1435 = vrot.lane.b32.xlu0 %v1433, 64
  %v1436 = vpop.permute.xlu0 %1435
  %v1438 = vadd.f32 %v229, %v1436
  %v1439 = vtanh.pop %v1438
  %v1440 = vsub.f32 1.0, %v1428
  %1442 = vrot.lane.b32.xlu0 %v1439, 96
  %v1443 = vpop.permute.xlu0 %1442
  %v1445 = vmul.f32 %v1440, %v1443
  %v1446 = vmul.f32 %v1428, %v1367
  %v1447 = vadd.f32 %v1445, %v1446
  %v1448 = vpack.c.bf16 %v1447, %v1447
  %v1450 = vunpack.c.l.b16 %v1448
  %v1451 = vpack.c.b16 %v1450, %v1450
  %1452 = vrot.lane.b32.xlu0 %v1451, 96
  %v1453 = vpop.permute.xlu0 %1452
  %s1455 = scalar_lea.vmem %s5, 56
  %1456 = vst.msk [vmem:[%s1455] sm:$0xf] %vm335, %v1453
  %1457 = vrot.lane.b32.xlu0 %v1448, 96
  %v1458 = vpop.permute.xlu0 %1457
  %v1460 = vsel %vm113, %v1458, 0
  %1462 = vmatprep.subr.bf16.mxu0 0
  %1463 = vmatpush1.bf16.msra.mxu0 %v251
  %1464 = vmatprep.subr.bf16.mxu0 0
  %1465 = vmatpush1.bf16.msra.mxu0 %v252
  %1466 = vmatprep.subr.bf16.mxu0 0
  %1467 = vmatpush1.bf16.msra.mxu0 0
  %1468 = vmatprep.subr.bf16.mxu0 0
  %1469 = vmatpush1.bf16.msra.mxu0 0
  %1470 = vmatprep.subr.bf16.mxu0 0
  %1471 = vmatpush1.bf16.msra.mxu0 0
  %1472 = vmatprep.subr.bf16.mxu0 0
  %1473 = vmatpush1.bf16.msra.mxu0 0
  %1474 = vmatprep.subr.bf16.mxu0 0
  %1475 = vmatpush1.bf16.msra.mxu0 0
  %1476 = vmatprep.subr.bf16.mxu0 0
  %1477 = vmatpush1.bf16.msra.mxu0 0
  %1478 = vmatprep.subr.bf16.mxu0 0
  %1479 = vmatpush1.bf16.msra.mxu0 0
  %1480 = vmatprep.subr.bf16.mxu0 0
  %1481 = vmatpush1.bf16.msra.mxu0 0
  %1482 = vmatprep.subr.bf16.mxu0 0
  %1483 = vmatpush1.bf16.msra.mxu0 0
  %1484 = vmatprep.subr.bf16.mxu0 0
  %1485 = vmatpush1.bf16.msra.mxu0 0
  %1486 = vmatprep.subr.bf16.mxu0 0
  %1487 = vmatpush1.bf16.msra.mxu0 0
  %1488 = vmatprep.subr.bf16.mxu0 0
  %1489 = vmatpush1.bf16.msra.mxu0 0
  %1490 = vmatprep.subr.bf16.mxu0 0
  %1491 = vmatpush1.bf16.msra.mxu0 0
  %1492 = vmatprep.subr.bf16.mxu0 0
  %1493 = vmatpush1.bf16.msra.mxu0 0
  %1494 = vmatprep.mubr.bf16.mxu0 0
  %1495 = vmatmul.mubr.bf16.gmra.mrb[0].mxu0 %v1460
  %v1496 = vpop.f32.mrb[0].mxu0
  %v1497 = vadd.f32 %v241, %v1496
  %v1498 = vpop.f32.mrb[0].mxu0
  %v1499 = vpop.f32.mrb[0].mxu0
  %v1500 = vpop.f32.mrb[0].mxu0
  %1501 = vdwg.mxu0
  %v1502 = vadd.f32 %v232, %v1497
  %v1503 = vxor.u32 %v1502, 2147483648
  %v1504 = vmul.f32 %v1503, 1.442695
  %v1505 = vpow.pop %v1504
  %v1506 = vadd.f32 %v1505, 1.0
  %v1507 = vrcp.pop %v1506
  %v1508 = vmul.f32 1.0, %v1507
  %1510 = vrot.lane.b32.xlu0 %v1497, 64
  %v1511 = vpop.permute.xlu0 %1510
  %v1513 = vmul.f32 %v1508, %v1511
  %1515 = vrot.lane.b32.xlu0 %v1513, 64
  %v1516 = vpop.permute.xlu0 %1515
  %v1518 = vadd.f32 %v232, %v1516
  %v1519 = vtanh.pop %v1518
  %v1520 = vsub.f32 1.0, %v1508
  %1522 = vrot.lane.b32.xlu0 %v1519, 96
  %v1523 = vpop.permute.xlu0 %1522
  %v1525 = vmul.f32 %v1520, %v1523
  %v1526 = vmul.f32 %v1508, %v1447
  %v1527 = vadd.f32 %v1525, %v1526
  %v1528 = vpack.c.bf16 %v1527, %v1527
  %v1530 = vunpack.c.l.b16 %v1528
  %v1531 = vpack.c.b16 %v1530, %v1530
  %1532 = vrot.lane.b32.xlu0 %v1531, 96
  %v1533 = vpop.permute.xlu0 %1532
  %s1535 = scalar_lea.vmem %s5, 60
  %1536 = vst.msk [vmem:[%s1535] sm:$0xf] %vm335, %v1533
  %1538 = vrot.lane.b32.xlu0 %v1527, 96
  %v1539 = vpop.permute.xlu0 %1538
  %1541 = vst.msk [vmem:[#allocation2] sm:$0xff] %vm113, %v1539
  // Predicated region
  $region26: #{_forward_device.4} parent=0 // pred_check
    %p1542 = pneg %p23
  $region27: #{_forward_device.4} parent=0 // pred_check_branch
    %1544 = sbr.rel (%p1542) target = $region29
  $region28: #{_forward_device.4} parent=0 // pred_region
    %1545 = vst.msk [vmem:[%s6] sm:$0xff] %vm113, %v1539
  $region29: #{_forward_device.4} parent=0 // pred_fallthru
    _
  // Predicated region
  $region30: #{_forward_device.4} parent=0 // pred_check
    _
  $region31: #{_forward_device.4} parent=0 // pred_check_branch
    %1547 = sbr.rel (0) target = $region33
  $region32: #{_forward_device.4} parent=0 // pred_region
    _
  $region33: #{_forward_device.4} parent=0 // pred_fallthru
    _
  // Predicated region
  $region34: #{_forward_device.4} parent=0 // pred_check
    _
  $region35: #{_forward_device.4} parent=0 // pred_check_branch
    %1549 = sbr.rel (0) target = $region37
  $region36: #{_forward_device.4} parent=0 // pred_region
    _
  $region37: #{_forward_device.4} parent=0 // pred_fallthru
    _
  // Predicated region
  $region38: #{_forward_device.4} parent=0 // pred_check
    _
  $region39: #{_forward_device.4} parent=0 // pred_check_branch
    %1551 = sbr.rel (0) target = $region41
  $region40: #{_forward_device.4} parent=0 // pred_region
    _
  $region41: #{_forward_device.4} parent=0 // pred_fallthru
    _
  // Predicated region
  $region42: #{_forward_device.4} parent=0 // pred_check
    _
  $region43: #{_forward_device.4} parent=0 // pred_check_branch
    %1553 = sbr.rel (0) target = $region45
  $region44: #{_forward_device.4} parent=0 // pred_region
    _
  $region45: #{_forward_device.4} parent=0 // pred_fallthru
    _

// kernel: _forward_device.5
$region0: #{_forward_device.5}
  #allocation0 [shape = 'u32[]', space=smem, size = 0x4, offset = 0x4, fixed_abs, tag = 'smem constant byte address 0x4 - core index']
  #allocation1 [shape = 'u32[144,128]{1,0:T(1,128)}', space=vmem, size = 0x12000, scoped, tag = 'internal scratch']
  #allocation2 [shape = 'f32[8,32]{1,0:T(8,128)}', space=vmem, size = 0x1000, scoped, tag = 'scratch operand']
  %s0 = inlined_call_operand.vmem [shape: bf16[8,8,32], index: 0, kind: input, shape index: {}]
  %s1 = inlined_call_operand.vmem [shape: s32[8,8], index: 1, kind: input, shape index: {}]
  %s2 = inlined_call_operand.vmem [shape: f32[8,8], index: 2, kind: input, shape index: {}]
  %s3 = inlined_call_operand.vmem [shape: f32[8,32], index: 3, kind: input, shape index: {}]
  %s4 = inlined_call_operand.vmem [shape: bf16[16,8,32], index: 4, kind: input, shape index: {}]
  %s5 = inlined_call_operand.vmem [shape: bf16[32,96], index: 5, kind: input, shape index: {}]
  %s6 = inlined_call_operand.vmem [shape: bf16[32,96], index: 6, kind: input, shape index: {}]
  %s7 = inlined_call_operand.vmem [shape: f32[1,96], index: 7, kind: input, shape index: {}]
  %s8 = inlined_call_operand.vmem [shape: f32[1,96], index: 8, kind: input, shape index: {}]
  %s9 = inlined_call_operand.vmem [shape: bf16[32,32], index: 9, kind: input, shape index: {}]
  %s10 = inlined_call_operand.vmem [shape: bf16[32,32], index: 10, kind: input, shape index: {}]
  %s11 = inlined_call_operand.vmem [shape: f32[1,32], index: 11, kind: input, shape index: {}]
  %s12 = inlined_call_operand.vmem [shape: bf16[32,16], index: 12, kind: input, shape index: {}]
  %s13 = inlined_call_operand.vmem [shape: f32[1,16], index: 13, kind: input, shape index: {}]
  %s14 = inlined_call_operand.vmem [shape: f32[8,8], index: 14, kind: output, shape index: {}]
  %s15 = sld [smem:[#allocation0]]
  $region70: #{_forward_device.5} parent=0
    _
  %s17 = ssub.s32 1, %s15
  %s18 = scalar_select 0, %s17, %s15
  // Predicated region
  $region2: #{_forward_device.5} parent=0 // pred_check
    _
  $region3: #{_forward_device.5} parent=0 // pred_check_branch
    %20 = sbr.rel (0) target = $region5
  $region4: #{_forward_device.5} parent=0 // pred_region
    _
  $region5: #{_forward_device.5} parent=0 // pred_fallthru
    _
  // Predicated region
  $region6: #{_forward_device.5} parent=0 // pred_check
    _
  $region7: #{_forward_device.5} parent=0 // pred_check_branch
    %22 = sbr.rel (0) target = $region9
  $region8: #{_forward_device.5} parent=0 // pred_region
    _
  $region9: #{_forward_device.5} parent=0 // pred_fallthru
    _
  // Predicated region
  $region10: #{_forward_device.5} parent=0 // pred_check
    _
  $region11: #{_forward_device.5} parent=0 // pred_check_branch
    %24 = sbr.rel (0) target = $region13
  $region12: #{_forward_device.5} parent=0 // pred_region
    _
  $region13: #{_forward_device.5} parent=0 // pred_fallthru
    _
  // Predicated region
  $region14: #{_forward_device.5} parent=0 // pred_check
    _
  $region15: #{_forward_device.5} parent=0 // pred_check_branch
    %26 = sbr.rel (0) target = $region17
  $region16: #{_forward_device.5} parent=0 // pred_region
    _
  $region17: #{_forward_device.5} parent=0 // pred_fallthru
    _
  // Predicated region
  $region18: #{_forward_device.5} parent=0 // pred_check
    _
  $region19: #{_forward_device.5} parent=0 // pred_check_branch
    %28 = sbr.rel (0) target = $region21
  $region20: #{_forward_device.5} parent=0 // pred_region
    _
  $region21: #{_forward_device.5} parent=0 // pred_fallthru
    _
  // Predicated region
  $region22: #{_forward_device.5} parent=0 // pred_check
    _
  $region23: #{_forward_device.5} parent=0 // pred_check_branch
    %30 = sbr.rel (0) target = $region25
  $region24: #{_forward_device.5} parent=0 // pred_region
    _
  $region25: #{_forward_device.5} parent=0 // pred_fallthru
    _
  // Predicated region
  $region26: #{_forward_device.5} parent=0 // pred_check
    _
  $region27: #{_forward_device.5} parent=0 // pred_check_branch
    %32 = sbr.rel (0) target = $region29
  $region28: #{_forward_device.5} parent=0 // pred_region
    _
  $region29: #{_forward_device.5} parent=0 // pred_fallthru
    _
  // Predicated region
  $region30: #{_forward_device.5} parent=0 // pred_check
    _
  $region31: #{_forward_device.5} parent=0 // pred_check_branch
    %34 = sbr.rel (0) target = $region33
  $region32: #{_forward_device.5} parent=0 // pred_region
    _
  $region33: #{_forward_device.5} parent=0 // pred_fallthru
    _
  // Predicated region
  $region34: #{_forward_device.5} parent=0 // pred_check
    _
  $region35: #{_forward_device.5} parent=0 // pred_check_branch
    %36 = sbr.rel (0) target = $region37
  $region36: #{_forward_device.5} parent=0 // pred_region
    _
  $region37: #{_forward_device.5} parent=0 // pred_fallthru
    _
  // Predicated region
  $region38: #{_forward_device.5} parent=0 // pred_check
    _
  $region39: #{_forward_device.5} parent=0 // pred_check_branch
    %38 = sbr.rel (0) target = $region41
  $region40: #{_forward_device.5} parent=0 // pred_region
    _
  $region41: #{_forward_device.5} parent=0 // pred_fallthru
    _
  // Predicated region
  $region42: #{_forward_device.5} parent=0 // pred_check
    _
  $region43: #{_forward_device.5} parent=0 // pred_check_branch
    %40 = sbr.rel (0) target = $region45
  $region44: #{_forward_device.5} parent=0 // pred_region
    _
  $region45: #{_forward_device.5} parent=0 // pred_fallthru
    _
  // Predicated region
  $region46: #{_forward_device.5} parent=0 // pred_check
    _
  $region47: #{_forward_device.5} parent=0 // pred_check_branch
    %42 = sbr.rel (0) target = $region49
  $region48: #{_forward_device.5} parent=0 // pred_region
    _
  $region49: #{_forward_device.5} parent=0 // pred_fallthru
    _
  // Predicated region
  $region50: #{_forward_device.5} parent=0 // pred_check
    _
  $region51: #{_forward_device.5} parent=0 // pred_check_branch
    %44 = sbr.rel (0) target = $region53
  $region52: #{_forward_device.5} parent=0 // pred_region
    _
  $region53: #{_forward_device.5} parent=0 // pred_fallthru
    _
  // Predicated region
  $region54: #{_forward_device.5} parent=0 // pred_check
    _
  $region55: #{_forward_device.5} parent=0 // pred_check_branch
    %46 = sbr.rel (0) target = $region57
  $region56: #{_forward_device.5} parent=0 // pred_region
    _
  $region57: #{_forward_device.5} parent=0 // pred_fallthru
    _
  %p48 = scmp.eq.s32.totalorder 0, 0
  // Predicated region
  $region58: #{_forward_device.5} parent=0 // pred_check
    %p49 = pneg %p48
  $region59: #{_forward_device.5} parent=0 // pred_check_branch
    %51 = sbr.rel (%p49) target = $region61
  $region60: #{_forward_device.5} parent=0 // pred_region
    %v52 = vld [vmem:[%s3] sm:$0xff]
    %vm53 = vcmask 261120
    %54 = vst.msk [vmem:[#allocation2] sm:$0xff] %vm53, %v52
  $region61: #{_forward_device.5} parent=0 // pred_fallthru
    _
  %v55 = vld [vmem:[%s6] sm:$0xf]
  %v56 = vld [vmem:[%s6 + $0x4] sm:$0xf]
  %v57 = vld [vmem:[%s6 + $0x8] sm:$0xf]
  %v58 = vld [vmem:[%s6 + $0xc] sm:$0xf]
  %v59 = vld [vmem:[%s8] sm:$0x1]
  %v60 = vld [vmem:[%s9] sm:$0xf]
  %v61 = vld [vmem:[%s9 + $0x4] sm:$0xf]
  %v62 = vld [vmem:[%s9 + $0x8] sm:$0xf]
  %v63 = vld [vmem:[%s9 + $0xc] sm:$0xf]
  %v64 = vld [vmem:[%s10] sm:$0xf]
  %v65 = vld [vmem:[%s10 + $0x4] sm:$0xf]
  %v66 = vld [vmem:[%s10 + $0x8] sm:$0xf]
  %v67 = vld [vmem:[%s10 + $0xc] sm:$0xf]
  %v68 = vld [vmem:[%s11] sm:$0x1]
  %v69 = vld [vmem:[%s12] sm:$0xf]
  %v70 = vld [vmem:[%s12 + $0x4] sm:$0xf]
  %v71 = vld [vmem:[%s12 + $0x8] sm:$0xf]
  %v72 = vld [vmem:[%s12 + $0xc] sm:$0xf]
  %v73 = vld [vmem:[%s13] sm:$0x1]
  %v74 = vld [vmem:[%s4] sm:$0xf]
  %v75 = vld [vmem:[%s4 + $0x4] sm:$0xf]
  %v76 = vld [vmem:[%s4 + $0x8] sm:$0xf]
  %v77 = vld [vmem:[%s4 + $0xc] sm:$0xf]
  %v78 = vld [vmem:[%s4 + $0x10] sm:$0xf]
  %v79 = vld [vmem:[%s4 + $0x14] sm:$0xf]
  %v80 = vld [vmem:[%s4 + $0x18] sm:$0xf]
  %v81 = vld [vmem:[%s4 + $0x1c] sm:$0xf]
  %v82 = vld [vmem:[%s4 + $0x20] sm:$0xf]
  %v83 = vld [vmem:[%s4 + $0x24] sm:$0xf]
  %v84 = vld [vmem:[%s4 + $0x28] sm:$0xf]
  %v85 = vld [vmem:[%s4 + $0x2c] sm:$0xf]
  %v86 = vld [vmem:[%s4 + $0x30] sm:$0xf]
  %v87 = vld [vmem:[%s4 + $0x34] sm:$0xf]
  %v88 = vld [vmem:[%s4 + $0x38] sm:$0xf]
  %v89 = vld [vmem:[%s4 + $0x3c] sm:$0xf]
  %v90 = vunpack.c.l.bf16 %v74
  %v91 = vunpack.c.l.bf16 %v75
  %v92 = vunpack.c.l.bf16 %v76
  %v93 = vunpack.c.l.bf16 %v77
  %v94 = vunpack.c.l.bf16 %v78
  %v95 = vunpack.c.l.bf16 %v79
  %v96 = vunpack.c.l.bf16 %v80
  %v97 = vunpack.c.l.bf16 %v81
  %v98 = vunpack.c.l.bf16 %v82
  %v99 = vunpack.c.l.bf16 %v83
  %v100 = vunpack.c.l.bf16 %v84
  %v101 = vunpack.c.l.bf16 %v85
  %v102 = vunpack.c.l.bf16 %v86
  %v103 = vunpack.c.l.bf16 %v87
  %v104 = vunpack.c.l.bf16 %v88
  %v105 = vunpack.c.l.bf16 %v89
  %v106 = vld [vmem:[%s0] sm:$0xf]
  %v107 = vld [vmem:[%s0 + $0x4] sm:$0xf]
  %v108 = vld [vmem:[%s0 + $0x8] sm:$0xf]
  %v109 = vld [vmem:[%s0 + $0xc] sm:$0xf]
  %v110 = vld [vmem:[%s0 + $0x10] sm:$0xf]
  %v111 = vld [vmem:[%s0 + $0x14] sm:$0xf]
  %v112 = vld [vmem:[%s0 + $0x18] sm:$0xf]
  %v113 = vld [vmem:[%s0 + $0x1c] sm:$0xf]
  %v114 = vld [vmem:[%s5] sm:$0xf]
  %v115 = vld [vmem:[%s5 + $0x4] sm:$0xf]
  %v116 = vld [vmem:[%s5 + $0x8] sm:$0xf]
  %v117 = vld [vmem:[%s5 + $0xc] sm:$0xf]
  %v118 = vld [vmem:[%s7] sm:$0x1]
  %v120 = vlaneseq
  %v121 = vshrl.u32 %v120, 7
  %v122 = vsub.s32 0, %v121
  %v123 = vrot.slane %v118, %v122
  %v133 = vunpack.c.l.b16 %v106
  %v134 = vunpack.c.l.b16 %v107
  %v135 = vunpack.c.l.b16 %v108
  %v136 = vunpack.c.l.b16 %v109
  %v137 = vunpack.c.l.b16 %v110
  %v138 = vunpack.c.l.b16 %v111
  %v139 = vunpack.c.l.b16 %v112
  %v140 = vunpack.c.l.b16 %v113
  %v141 = vpack.c.b16 %v134, %v133
  %v142 = vpack.c.b16 %v136, %v135
  %v143 = vpack.c.b16 %v138, %v137
  %v144 = vpack.c.b16 %v140, %v139
  %v149 = vunpack.c.l.b16 %v114
  %v150 = vunpack.c.l.b16 %v115
  %v151 = vunpack.c.l.b16 %v116
  %v152 = vunpack.c.l.b16 %v117
  %v153 = vpack.c.b16 %v150, %v149
  %v154 = vpack.c.b16 %v152, %v151
  %vm157 = vcmask 261120
  %v159 = vsel %vm157, %v141, 0
  %v162 = vsel %vm157, %v142, 0
  %v165 = vsel %vm157, %v143, 0
  %v168 = vsel %vm157, %v144, 0
  %170 = vmatprep.subr.bf16.mxu0 0
  %171 = vmatpush1.bf16.msra.mxu0 %v153
  %172 = vmatprep.subr.bf16.mxu0 0
  %173 = vmatpush1.bf16.msra.mxu0 %v154
  %174 = vmatprep.subr.bf16.mxu0 0
  %175 = vmatpush1.bf16.msra.mxu0 0
  %176 = vmatprep.subr.bf16.mxu0 0
  %177 = vmatpush1.bf16.msra.mxu0 0
  %178 = vmatprep.subr.bf16.mxu0 0
  %179 = vmatpush1.bf16.msra.mxu0 0
  %180 = vmatprep.subr.bf16.mxu0 0
  %181 = vmatpush1.bf16.msra.mxu0 0
  %182 = vmatprep.subr.bf16.mxu0 0
  %183 = vmatpush1.bf16.msra.mxu0 0
  %184 = vmatprep.subr.bf16.mxu0 0
  %185 = vmatpush1.bf16.msra.mxu0 0
  %186 = vmatprep.subr.bf16.mxu0 0
  %187 = vmatpush1.bf16.msra.mxu0 0
  %188 = vmatprep.subr.bf16.mxu0 0
  %189 = vmatpush1.bf16.msra.mxu0 0
  %190 = vmatprep.subr.bf16.mxu0 0
  %191 = vmatpush1.bf16.msra.mxu0 0
  %192 = vmatprep.subr.bf16.mxu0 0
  %193 = vmatpush1.bf16.msra.mxu0 0
  %194 = vmatprep.subr.bf16.mxu0 0
  %195 = vmatpush1.bf16.msra.mxu0 0
  %196 = vmatprep.subr.bf16.mxu0 0
  %197 = vmatpush1.bf16.msra.mxu0 0
  %198 = vmatprep.subr.bf16.mxu0 0
  %199 = vmatpush1.bf16.msra.mxu0 0
  %200 = vmatprep.subr.bf16.mxu0 0
  %201 = vmatpush1.bf16.msra.mxu0 0
  %202 = vmatprep.mubr.bf16.mxu0 0
  %203 = vmatmul.mubr.bf16.gmra.mrb[0].mxu0 %v159
  %v204 = vpop.f32.mrb[0].mxu0
  %v205 = vadd.f32 %v123, %v204
  %v206 = vpop.f32.mrb[0].mxu0
  %v207 = vpop.f32.mrb[0].mxu0
  %v208 = vadd.f32 %v123, %v207
  %v209 = vpop.f32.mrb[0].mxu0
  %210 = vmatprep.mubr.bf16.mxu0 0
  %211 = vmatmul.mubr.bf16.gmra.mrb[0].mxu0 %v162
  %v212 = vpop.f32.mrb[0].mxu0
  %v213 = vadd.f32 %v123, %v212
  %v214 = vpop.f32.mrb[0].mxu0
  %v215 = vpop.f32.mrb[0].mxu0
  %v216 = vadd.f32 %v123, %v215
  %v217 = vpop.f32.mrb[0].mxu0
  %218 = vmatprep.mubr.bf16.mxu0 0
  %219 = vmatmul.mubr.bf16.gmra.mrb[0].mxu0 %v165
  %v220 = vpop.f32.mrb[0].mxu0
  %v221 = vadd.f32 %v123, %v220
  %v222 = vpop.f32.mrb[0].mxu0
  %v223 = vpop.f32.mrb[0].mxu0
  %v224 = vadd.f32 %v123, %v223
  %v225 = vpop.f32.mrb[0].mxu0
  %226 = vmatprep.mubr.bf16.mxu0 0
  %227 = vmatmul.mubr.bf16.gmra.mrb[0].mxu0 %v168
  %v228 = vpop.f32.mrb[0].mxu0
  %v229 = vadd.f32 %v123, %v228
  %v230 = vpop.f32.mrb[0].mxu0
  %v231 = vpop.f32.mrb[0].mxu0
  %v232 = vadd.f32 %v123, %v231
  %v233 = vpop.f32.mrb[0].mxu0
  %234 = vdwg.mxu0
  %v235 = vlaneseq
  %v236 = vand.u32 %v235, 127
  %v237 = vld [vmem:[#allocation2] sm:$0xff]
  %v238 = vpack.c.bf16 %v237, %v237
  %v240 = vlaneseq
  %v241 = vshrl.u32 %v240, 7
  %v242 = vsub.s32 0, %v241
  %v243 = vrot.slane %v59, %v242
  %v249 = vunpack.c.l.b16 %v55
  %v250 = vunpack.c.l.b16 %v56
  %v251 = vunpack.c.l.b16 %v57
  %v252 = vunpack.c.l.b16 %v58
  %v253 = vpack.c.b16 %v250, %v249
  %v254 = vpack.c.b16 %v252, %v251
  %v258 = vsel %vm157, %v238, 0
  %260 = vmatprep.subr.bf16.mxu0 0
  %261 = vmatpush1.bf16.msra.mxu0 %v253
  %262 = vmatprep.subr.bf16.mxu0 0
  %263 = vmatpush1.bf16.msra.mxu0 %v254
  %264 = vmatprep.subr.bf16.mxu0 0
  %265 = vmatpush1.bf16.msra.mxu0 0
  %266 = vmatprep.subr.bf16.mxu0 0
  %267 = vmatpush1.bf16.msra.mxu0 0
  %268 = vmatprep.subr.bf16.mxu0 0
  %269 = vmatpush1.bf16.msra.mxu0 0
  %270 = vmatprep.subr.bf16.mxu0 0
  %271 = vmatpush1.bf16.msra.mxu0 0
  %272 = vmatprep.subr.bf16.mxu0 0
  %273 = vmatpush1.bf16.msra.mxu0 0
  %274 = vmatprep.subr.bf16.mxu0 0
  %275 = vmatpush1.bf16.msra.mxu0 0
  %276 = vmatprep.subr.bf16.mxu0 0
  %277 = vmatpush1.bf16.msra.mxu0 0
  %278 = vmatprep.subr.bf16.mxu0 0
  %279 = vmatpush1.bf16.msra.mxu0 0
  %280 = vmatprep.subr.bf16.mxu0 0
  %281 = vmatpush1.bf16.msra.mxu0 0
  %282 = vmatprep.subr.bf16.mxu0 0
  %283 = vmatpush1.bf16.msra.mxu0 0
  %284 = vmatprep.subr.bf16.mxu0 0
  %285 = vmatpush1.bf16.msra.mxu0 0
  %286 = vmatprep.subr.bf16.mxu0 0
  %287 = vmatpush1.bf16.msra.mxu0 0
  %288 = vmatprep.subr.bf16.mxu0 0
  %289 = vmatpush1.bf16.msra.mxu0 0
  %290 = vmatprep.subr.bf16.mxu0 0
  %291 = vmatpush1.bf16.msra.mxu0 0
  %292 = vmatprep.mubr.bf16.mxu0 0
  %293 = vmatmul.mubr.bf16.gmra.mrb[0].mxu0 %v258
  %v294 = vpop.f32.mrb[0].mxu0
  %v295 = vadd.f32 %v243, %v294
  %v296 = vpop.f32.mrb[0].mxu0
  %v297 = vpop.f32.mrb[0].mxu0
  %v298 = vpop.f32.mrb[0].mxu0
  %299 = vdwg.mxu0
  %v300 = vadd.f32 %v205, %v295
  %v301 = vxor.u32 %v300, 2147483648
  %v302 = vmul.f32 %v301, 1.442695
  %v303 = vpow.pop %v302
  %v304 = vadd.f32 %v303, 1.0
  %v305 = vrcp.pop %v304
  %v306 = vmul.f32 1.0, %v305
  %308 = vrot.lane.b32.xlu0 %v295, 64
  %v309 = vpop.permute.xlu0 %308
  %v311 = vmul.f32 %v306, %v309
  %313 = vrot.lane.b32.xlu0 %v311, 64
  %v314 = vpop.permute.xlu0 %313
  %v316 = vadd.f32 %v205, %v314
  %v317 = vtanh.pop %v316
  %v318 = vsub.f32 1.0, %v306
  %320 = vrot.lane.b32.xlu0 %v317, 96
  %v321 = vpop.permute.xlu0 %320
  %v323 = vmul.f32 %v318, %v321
  %325 = vrot.lane.b32.xlu0 %v237, 32
  %v326 = vpop.permute.xlu0 %325
  %v328 = vmul.f32 %v306, %v326
  %v329 = vadd.f32 %v323, %v328
  %331 = vrot.lane.b32.xlu0 %v329, 96
  %v332 = vpop.permute.xlu0 %331
  %v334 = vmul.f32 %v90, %v332
  %v335 = vmul.f32 %v91, %v332
  %v336 = vmul.f32 %v92, %v332
  %v337 = vmul.f32 %v93, %v332
  %v338 = vmul.f32 %v94, %v332
  %v339 = vmul.f32 %v95, %v332
  %v340 = vmul.f32 %v96, %v332
  %v341 = vmul.f32 %v97, %v332
  %v342 = vmul.f32 %v98, %v332
  %v343 = vmul.f32 %v99, %v332
  %v344 = vmul.f32 %v100, %v332
  %v345 = vmul.f32 %v101, %v332
  %v346 = vmul.f32 %v102, %v332
  %v347 = vmul.f32 %v103, %v332
  %v348 = vmul.f32 %v104, %v332
  %v349 = vmul.f32 %v105, %v332
  %v350 = vsel %vm157, %v334, 0.0
  %351 = vadd.xlane.f32.xlu0 %v350
  %v352 = vpop.xlane.xlu0 %351
  %v353 = vsel %vm157, %v335, 0.0
  %354 = vadd.xlane.f32.xlu0 %v353
  %v355 = vpop.xlane.xlu0 %354
  %v356 = vsel %vm157, %v336, 0.0
  %357 = vadd.xlane.f32.xlu0 %v356
  %v358 = vpop.xlane.xlu0 %357
  %v359 = vsel %vm157, %v337, 0.0
  %360 = vadd.xlane.f32.xlu0 %v359
  %v361 = vpop.xlane.xlu0 %360
  %v362 = vsel %vm157, %v338, 0.0
  %363 = vadd.xlane.f32.xlu0 %v362
  %v364 = vpop.xlane.xlu0 %363
  %v365 = vsel %vm157, %v339, 0.0
  %366 = vadd.xlane.f32.xlu0 %v365
  %v367 = vpop.xlane.xlu0 %366
  %v368 = vsel %vm157, %v340, 0.0
  %369 = vadd.xlane.f32.xlu0 %v368
  %v370 = vpop.xlane.xlu0 %369
  %v371 = vsel %vm157, %v341, 0.0
  %372 = vadd.xlane.f32.xlu0 %v371
  %v373 = vpop.xlane.xlu0 %372
  %v374 = vsel %vm157, %v342, 0.0
  %375 = vadd.xlane.f32.xlu0 %v374
  %v376 = vpop.xlane.xlu0 %375
  %v377 = vsel %vm157, %v343, 0.0
  %378 = vadd.xlane.f32.xlu0 %v377
  %v379 = vpop.xlane.xlu0 %378
  %v380 = vsel %vm157, %v344, 0.0
  %381 = vadd.xlane.f32.xlu0 %v380
  %v382 = vpop.xlane.xlu0 %381
  %v383 = vsel %vm157, %v345, 0.0
  %384 = vadd.xlane.f32.xlu0 %v383
  %v385 = vpop.xlane.xlu0 %384
  %v386 = vsel %vm157, %v346, 0.0
  %387 = vadd.xlane.f32.xlu0 %v386
  %v388 = vpop.xlane.xlu0 %387
  %v389 = vsel %vm157, %v347, 0.0
  %390 = vadd.xlane.f32.xlu0 %v389
  %v391 = vpop.xlane.xlu0 %390
  %v392 = vsel %vm157, %v348, 0.0
  %393 = vadd.xlane.f32.xlu0 %v392
  %v394 = vpop.xlane.xlu0 %393
  %v395 = vsel %vm157, %v349, 0.0
  %396 = vadd.xlane.f32.xlu0 %v395
  %v397 = vpop.xlane.xlu0 %396
  %v398 = vmax.f32 %v352, %v364
  %v399 = vmax.f32 %v355, %v367
  %v400 = vmax.f32 %v358, %v370
  %v401 = vmax.f32 %v361, %v373
  %v402 = vmax.f32 %v398, %v376
  %v403 = vmax.f32 %v399, %v379
  %v404 = vmax.f32 %v400, %v382
  %v405 = vmax.f32 %v401, %v385
  %v406 = vmax.f32 %v402, %v388
  %v407 = vmax.f32 %v403, %v391
  %v408 = vmax.f32 %v404, %v394
  %v409 = vmax.f32 %v405, %v397
  %v410 = vmax.f32 %v406, %v407
  %v411 = vmax.f32 %v408, %v409
  %v412 = vmax.f32 %v410, %v411
  %v413 = vsub.f32 %v352, %v412
  %v414 = vsub.f32 %v355, %v412
  %v415 = vsub.f32 %v358, %v412
  %v416 = vsub.f32 %v361, %v412
  %v417 = vsub.f32 %v364, %v412
  %v418 = vsub.f32 %v367, %v412
  %v419 = vsub.f32 %v370, %v412
  %v420 = vsub.f32 %v373, %v412
  %v421 = vsub.f32 %v376, %v412
  %v422 = vsub.f32 %v379, %v412
  %v423 = vsub.f32 %v382, %v412
  %v424 = vsub.f32 %v385, %v412
  %v425 = vsub.f32 %v388, %v412
  %v426 = vsub.f32 %v391, %v412
  %v427 = vsub.f32 %v394, %v412
  %v428 = vsub.f32 %v397, %v412
  %v429 = vmul.f32 %v413, 1.442695
  %v430 = vpow.pop %v429
  %v431 = vmul.f32 %v414, 1.442695
  %v432 = vpow.pop %v431
  %v433 = vmul.f32 %v415, 1.442695
  %v434 = vpow.pop %v433
  %v435 = vmul.f32 %v416, 1.442695
  %v436 = vpow.pop %v435
  %v437 = vmul.f32 %v417, 1.442695
  %v438 = vpow.pop %v437
  %v439 = vmul.f32 %v418, 1.442695
  %v440 = vpow.pop %v439
  %v441 = vmul.f32 %v419, 1.442695
  %v442 = vpow.pop %v441
  %v443 = vmul.f32 %v420, 1.442695
  %v444 = vpow.pop %v443
  %v445 = vmul.f32 %v421, 1.442695
  %v446 = vpow.pop %v445
  %v447 = vmul.f32 %v422, 1.442695
  %v448 = vpow.pop %v447
  %v449 = vmul.f32 %v423, 1.442695
  %v450 = vpow.pop %v449
  %v451 = vmul.f32 %v424, 1.442695
  %v452 = vpow.pop %v451
  %v453 = vmul.f32 %v425, 1.442695
  %v454 = vpow.pop %v453
  %v455 = vmul.f32 %v426, 1.442695
  %v456 = vpow.pop %v455
  %v457 = vmul.f32 %v427, 1.442695
  %v458 = vpow.pop %v457
  %v459 = vmul.f32 %v428, 1.442695
  %v460 = vpow.pop %v459
  %v461 = vadd.f32 %v430, %v432
  %v462 = vadd.f32 %v461, %v434
  %v463 = vadd.f32 %v462, %v436
  %v464 = vadd.f32 %v463, %v438
  %v465 = vadd.f32 %v464, %v440
  %v466 = vadd.f32 %v465, %v442
  %v467 = vadd.f32 %v466, %v444
  %v468 = vadd.f32 %v467, %v446
  %v469 = vadd.f32 %v468, %v448
  %v470 = vadd.f32 %v469, %v450
  %v471 = vadd.f32 %v470, %v452
  %v472 = vadd.f32 %v471, %v454
  %v473 = vadd.f32 %v472, %v456
  %v474 = vadd.f32 %v473, %v458
  %v475 = vadd.f32 %v474, %v460
  %v476 = vrcp.pop %v475
  %v477 = vmul.f32 %v430, %v476
  %v478 = vmul.f32 %v432, %v476
  %v479 = vmul.f32 %v434, %v476
  %v480 = vmul.f32 %v436, %v476
  %v481 = vmul.f32 %v438, %v476
  %v482 = vmul.f32 %v440, %v476
  %v483 = vmul.f32 %v442, %v476
  %v484 = vmul.f32 %v444, %v476
  %v485 = vmul.f32 %v446, %v476
  %v486 = vmul.f32 %v448, %v476
  %v487 = vmul.f32 %v450, %v476
  %v488 = vmul.f32 %v452, %v476
  %v489 = vmul.f32 %v454, %v476
  %v490 = vmul.f32 %v456, %v476
  %v491 = vmul.f32 %v458, %v476
  %v492 = vmul.f32 %v460, %v476
  %v493 = vmul.f32 %v477, %v90
  %v494 = vmul.f32 %v478, %v91
  %v495 = vmul.f32 %v479, %v92
  %v496 = vmul.f32 %v480, %v93
  %v497 = vmul.f32 %v481, %v94
  %v498 = vmul.f32 %v482, %v95
  %v499 = vmul.f32 %v483, %v96
  %v500 = vmul.f32 %v484, %v97
  %v501 = vmul.f32 %v485, %v98
  %v502 = vmul.f32 %v486, %v99
  %v503 = vmul.f32 %v487, %v100
  %v504 = vmul.f32 %v488, %v101
  %v505 = vmul.f32 %v489, %v102
  %v506 = vmul.f32 %v490, %v103
  %v507 = vmul.f32 %v491, %v104
  %v508 = vmul.f32 %v492, %v105
  %v509 = vsel %vm157, %v493, 0.0
  %v510 = vsel %vm157, %v494, 0.0
  %v511 = vadd.f32 %v509, %v510
  %v512 = vsel %vm157, %v495, 0.0
  %v513 = vadd.f32 %v511, %v512
  %v514 = vsel %vm157, %v496, 0.0
  %v515 = vadd.f32 %v513, %v514
  %v516 = vsel %vm157, %v497, 0.0
  %v517 = vadd.f32 %v515, %v516
  %v518 = vsel %vm157, %v498, 0.0
  %v519 = vadd.f32 %v517, %v518
  %v520 = vsel %vm157, %v499, 0.0
  %v521 = vadd.f32 %v519, %v520
  %v522 = vsel %vm157, %v500, 0.0
  %v523 = vadd.f32 %v521, %v522
  %v524 = vsel %vm157, %v501, 0.0
  %v525 = vadd.f32 %v523, %v524
  %v526 = vsel %vm157, %v502, 0.0
  %v527 = vadd.f32 %v525, %v526
  %v528 = vsel %vm157, %v503, 0.0
  %v529 = vadd.f32 %v527, %v528
  %v530 = vsel %vm157, %v504, 0.0
  %v531 = vadd.f32 %v529, %v530
  %v532 = vsel %vm157, %v505, 0.0
  %v533 = vadd.f32 %v531, %v532
  %v534 = vsel %vm157, %v506, 0.0
  %v535 = vadd.f32 %v533, %v534
  %v536 = vsel %vm157, %v507, 0.0
  %v537 = vadd.f32 %v535, %v536
  %v538 = vsel %vm157, %v508, 0.0
  %v539 = vadd.f32 %v537, %v538
  %v540 = vpack.c.bf16 %v329, %v329
  %v541 = vpack.c.bf16 %v539, %v539
  %v546 = vunpack.c.l.b16 %v64
  %v547 = vunpack.c.l.b16 %v65
  %v548 = vunpack.c.l.b16 %v66
  %v549 = vunpack.c.l.b16 %v67
  %v550 = vpack.c.b16 %v547, %v546
  %v551 = vpack.c.b16 %v549, %v548
  %v555 = vsel %vm157, %v541, 0
  %557 = vmatprep.subr.bf16.mxu0 0
  %558 = vmatpush1.bf16.msra.mxu0 %v550
  %559 = vmatprep.subr.bf16.mxu0 0
  %560 = vmatpush1.bf16.msra.mxu0 %v551
  %561 = vmatprep.subr.bf16.mxu0 0
  %562 = vmatpush1.bf16.msra.mxu0 0
  %563 = vmatprep.subr.bf16.mxu0 0
  %564 = vmatpush1.bf16.msra.mxu0 0
  %565 = vmatprep.subr.bf16.mxu0 0
  %566 = vmatpush1.bf16.msra.mxu0 0
  %567 = vmatprep.subr.bf16.mxu0 0
  %568 = vmatpush1.bf16.msra.mxu0 0
  %569 = vmatprep.subr.bf16.mxu0 0
  %570 = vmatpush1.bf16.msra.mxu0 0
  %571 = vmatprep.subr.bf16.mxu0 0
  %572 = vmatpush1.bf16.msra.mxu0 0
  %573 = vmatprep.subr.bf16.mxu0 0
  %574 = vmatpush1.bf16.msra.mxu0 0
  %575 = vmatprep.subr.bf16.mxu0 0
  %576 = vmatpush1.bf16.msra.mxu0 0
  %577 = vmatprep.subr.bf16.mxu0 0
  %578 = vmatpush1.bf16.msra.mxu0 0
  %579 = vmatprep.subr.bf16.mxu0 0
  %580 = vmatpush1.bf16.msra.mxu0 0
  %581 = vmatprep.subr.bf16.mxu0 0
  %582 = vmatpush1.bf16.msra.mxu0 0
  %583 = vmatprep.subr.bf16.mxu0 0
  %584 = vmatpush1.bf16.msra.mxu0 0
  %585 = vmatprep.subr.bf16.mxu0 0
  %586 = vmatpush1.bf16.msra.mxu0 0
  %587 = vmatprep.subr.bf16.mxu0 0
  %588 = vmatpush1.bf16.msra.mxu0 0
  %589 = vmatprep.mubr.bf16.mxu0 0
  %590 = vmatmul.mubr.bf16.gmra.mrb[0].mxu0 %v555
  %v591 = vpop.f32.mrb[0].mxu0
  %v592 = vadd.f32 0.0, %v591
  %v593 = vpop.f32.mrb[0].mxu0
  %v594 = vpop.f32.mrb[0].mxu0
  %v595 = vpop.f32.mrb[0].mxu0
  %596 = vdwg.mxu0
  %598 = vrot.lane.b32.xlu0 %v540, 96
  %v599 = vpop.permute.xlu0 %598
  %v604 = vunpack.c.l.b16 %v60
  %v605 = vunpack.c.l.b16 %v61
  %v606 = vunpack.c.l.b16 %v62
  %v607 = vunpack.c.l.b16 %v63
  %v608 = vpack.c.b16 %v605, %v604
  %v609 = vpack.c.b16 %v607, %v606
  %v613 = vsel %vm157, %v599, 0
  %615 = vmatprep.subr.bf16.mxu0 0
  %616 = vmatpush1.bf16.msra.mxu0 %v608
  %617 = vmatprep.subr.bf16.mxu0 0
  %618 = vmatpush1.bf16.msra.mxu0 %v609
  %619 = vmatprep.subr.bf16.mxu0 0
  %620 = vmatpush1.bf16.msra.mxu0 0
  %621 = vmatprep.subr.bf16.mxu0 0
  %622 = vmatpush1.bf16.msra.mxu0 0
  %623 = vmatprep.subr.bf16.mxu0 0
  %624 = vmatpush1.bf16.msra.mxu0 0
  %625 = vmatprep.subr.bf16.mxu0 0
  %626 = vmatpush1.bf16.msra.mxu0 0
  %627 = vmatprep.subr.bf16.mxu0 0
  %628 = vmatpush1.bf16.msra.mxu0 0
  %629 = vmatprep.subr.bf16.mxu0 0
  %630 = vmatpush1.bf16.msra.mxu0 0
  %631 = vmatprep.subr.bf16.mxu0 0
  %632 = vmatpush1.bf16.msra.mxu0 0
  %633 = vmatprep.subr.bf16.mxu0 0
  %634 = vmatpush1.bf16.msra.mxu0 0
  %635 = vmatprep.subr.bf16.mxu0 0
  %636 = vmatpush1.bf16.msra.mxu0 0
  %637 = vmatprep.subr.bf16.mxu0 0
  %638 = vmatpush1.bf16.msra.mxu0 0
  %639 = vmatprep.subr.bf16.mxu0 0
  %640 = vmatpush1.bf16.msra.mxu0 0
  %641 = vmatprep.subr.bf16.mxu0 0
  %642 = vmatpush1.bf16.msra.mxu0 0
  %643 = vmatprep.subr.bf16.mxu0 0
  %644 = vmatpush1.bf16.msra.mxu0 0
  %645 = vmatprep.subr.bf16.mxu0 0
  %646 = vmatpush1.bf16.msra.mxu0 0
  %647 = vmatprep.mubr.bf16.mxu0 0
  %648 = vmatmul.mubr.bf16.gmra.mrb[0].mxu0 %v613
  %v649 = vpop.f32.mrb[0].mxu0
  %v650 = vadd.f32 %v592, %v649
  %v651 = vpop.f32.mrb[0].mxu0
  %v652 = vpop.f32.mrb[0].mxu0
  %v653 = vpop.f32.mrb[0].mxu0
  %654 = vdwg.mxu0
  %v656 = vlaneseq
  %v657 = vshrl.u32 %v656, 7
  %v658 = vsub.s32 0, %v657
  %v659 = vrot.slane %v68, %v658
  %v661 = vadd.f32 %v650, %v659
  %v662 = vtanh.pop %v661
  %v663 = vpack.c.bf16 %v662, %v662
  %v665 = vlaneseq
  %v666 = vshrl.u32 %v665, 7
  %v667 = vsub.s32 0, %v666
  %v668 = vrot.slane %v73, %v667
  %v674 = vunpack.c.l.b16 %v69
  %v675 = vunpack.c.l.b16 %v70
  %v676 = vunpack.c.l.b16 %v71
  %v677 = vunpack.c.l.b16 %v72
  %v678 = vpack.c.b16 %v675, %v674
  %v679 = vpack.c.b16 %v677, %v676
  %v683 = vsel %vm157, %v663, 0
  %685 = vmatprep.subr.bf16.mxu0 0
  %686 = vmatpush1.bf16.msra.mxu0 %v678
  %687 = vmatprep.subr.bf16.mxu0 0
  %688 = vmatpush1.bf16.msra.mxu0 %v679
  %689 = vmatprep.subr.bf16.mxu0 0
  %690 = vmatpush1.bf16.msra.mxu0 0
  %691 = vmatprep.subr.bf16.mxu0 0
  %692 = vmatpush1.bf16.msra.mxu0 0
  %693 = vmatprep.subr.bf16.mxu0 0
  %694 = vmatpush1.bf16.msra.mxu0 0
  %695 = vmatprep.subr.bf16.mxu0 0
  %696 = vmatpush1.bf16.msra.mxu0 0
  %697 = vmatprep.subr.bf16.mxu0 0
  %698 = vmatpush1.bf16.msra.mxu0 0
  %699 = vmatprep.subr.bf16.mxu0 0
  %700 = vmatpush1.bf16.msra.mxu0 0
  %701 = vmatprep.subr.bf16.mxu0 0
  %702 = vmatpush1.bf16.msra.mxu0 0
  %703 = vmatprep.subr.bf16.mxu0 0
  %704 = vmatpush1.bf16.msra.mxu0 0
  %705 = vmatprep.subr.bf16.mxu0 0
  %706 = vmatpush1.bf16.msra.mxu0 0
  %707 = vmatprep.subr.bf16.mxu0 0
  %708 = vmatpush1.bf16.msra.mxu0 0
  %709 = vmatprep.subr.bf16.mxu0 0
  %710 = vmatpush1.bf16.msra.mxu0 0
  %711 = vmatprep.subr.bf16.mxu0 0
  %712 = vmatpush1.bf16.msra.mxu0 0
  %713 = vmatprep.subr.bf16.mxu0 0
  %714 = vmatpush1.bf16.msra.mxu0 0
  %715 = vmatprep.subr.bf16.mxu0 0
  %716 = vmatpush1.bf16.msra.mxu0 0
  %717 = vmatprep.mubr.bf16.mxu0 0
  %718 = vmatmul.mubr.bf16.gmra.mrb[0].mxu0 %v683
  %v719 = vpop.f32.mrb[0].mxu0
  %v720 = vadd.f32 %v668, %v719
  %v721 = vpop.f32.mrb[0].mxu0
  %v722 = vpop.f32.mrb[0].mxu0
  %v723 = vpop.f32.mrb[0].mxu0
  %724 = vdwg.mxu0
  %vm725 = vcmask 130048
  %v726 = vsel %vm725, %v720, -inf
  %727 = vmax.xlane.f32.xlu0 %v726
  %v728 = vpop.xlane.xlu0 %727
  %v729 = vsub.f32 %v720, %v728
  %v730 = vmul.f32 %v729, 1.442695
  %v731 = vpow.pop %v730
  %v732 = vsel %vm725, %v731, 0.0
  %733 = vadd.xlane.f32.xlu0 %v732
  %v734 = vpop.xlane.xlu0 %733
  %v735 = vlog2.pop %v734
  %v736 = vmul.f32 %v735, 0.6931472
  %v737 = vadd.f32 %v736, %v728
  %v738 = vld [vmem:[%s1] sm:$0xff]
  %739 = vset.pattern.permute.xlu0 0
  %740 = vperm.xlu0 %739, %v738
  %v741 = vpop.permute.xlu0 %740
  %vm742 = vcmp.eq.s32.totalorder %v236, %v741
  %v743 = vsel %vm742, %v720, 0.0
  %v744 = vsel %vm725, %v743, 0.0
  %745 = vadd.xlane.f32.xlu0 %v744
  %v746 = vpop.xlane.xlu0 %745
  %v747 = vsub.f32 %v737, %v746
  %v748 = vld [vmem:[%s2] sm:$0xff]
  %v749 = vmul.f32 %v747, %v748
  %750 = vmatprep.subr.bf16.mxu0 0
  %751 = vmatpush1.bf16.msra.mxu0 %v253
  %752 = vmatprep.subr.bf16.mxu0 0
  %753 = vmatpush1.bf16.msra.mxu0 %v254
  %754 = vmatprep.subr.bf16.mxu0 0
  %755 = vmatpush1.bf16.msra.mxu0 0
  %756 = vmatprep.subr.bf16.mxu0 0
  %757 = vmatpush1.bf16.msra.mxu0 0
  %758 = vmatprep.subr.bf16.mxu0 0
  %759 = vmatpush1.bf16.msra.mxu0 0
  %760 = vmatprep.subr.bf16.mxu0 0
  %761 = vmatpush1.bf16.msra.mxu0 0
  %762 = vmatprep.subr.bf16.mxu0 0
  %763 = vmatpush1.bf16.msra.mxu0 0
  %764 = vmatprep.subr.bf16.mxu0 0
  %765 = vmatpush1.bf16.msra.mxu0 0
  %766 = vmatprep.subr.bf16.mxu0 0
  %767 = vmatpush1.bf16.msra.mxu0 0
  %768 = vmatprep.subr.bf16.mxu0 0
  %769 = vmatpush1.bf16.msra.mxu0 0
  %770 = vmatprep.subr.bf16.mxu0 0
  %771 = vmatpush1.bf16.msra.mxu0 0
  %772 = vmatprep.subr.bf16.mxu0 0
  %773 = vmatpush1.bf16.msra.mxu0 0
  %774 = vmatprep.subr.bf16.mxu0 0
  %775 = vmatpush1.bf16.msra.mxu0 0
  %776 = vmatprep.subr.bf16.mxu0 0
  %777 = vmatpush1.bf16.msra.mxu0 0
  %778 = vmatprep.subr.bf16.mxu0 0
  %779 = vmatpush1.bf16.msra.mxu0 0
  %780 = vmatprep.subr.bf16.mxu0 0
  %781 = vmatpush1.bf16.msra.mxu0 0
  %782 = vmatprep.mubr.bf16.mxu0 0
  %783 = vmatmul.mubr.bf16.gmra.mrb[0].mxu0 %v613
  %v784 = vpop.f32.mrb[0].mxu0
  %v785 = vadd.f32 %v243, %v784
  %v786 = vpop.f32.mrb[0].mxu0
  %v787 = vpop.f32.mrb[0].mxu0
  %v788 = vpop.f32.mrb[0].mxu0
  %789 = vdwg.mxu0
  %v790 = vadd.f32 %v208, %v785
  %v791 = vxor.u32 %v790, 2147483648
  %v792 = vmul.f32 %v791, 1.442695
  %v793 = vpow.pop %v792
  %v794 = vadd.f32 %v793, 1.0
  %v795 = vrcp.pop %v794
  %v796 = vmul.f32 1.0, %v795
  %798 = vrot.lane.b32.xlu0 %v785, 64
  %v799 = vpop.permute.xlu0 %798
  %v801 = vmul.f32 %v796, %v799
  %803 = vrot.lane.b32.xlu0 %v801, 64
  %v804 = vpop.permute.xlu0 %803
  %v806 = vadd.f32 %v208, %v804
  %v807 = vtanh.pop %v806
  %v808 = vsub.f32 1.0, %v796
  %810 = vrot.lane.b32.xlu0 %v807, 96
  %v811 = vpop.permute.xlu0 %810
  %v813 = vmul.f32 %v808, %v811
  %v814 = vmul.f32 %v796, %v329
  %v815 = vadd.f32 %v813, %v814
  %817 = vrot.lane.b32.xlu0 %v815, 96
  %v818 = vpop.permute.xlu0 %817
  %v820 = vmul.f32 %v90, %v818
  %v821 = vmul.f32 %v91, %v818
  %v822 = vmul.f32 %v92, %v818
  %v823 = vmul.f32 %v93, %v818
  %v824 = vmul.f32 %v94, %v818
  %v825 = vmul.f32 %v95, %v818
  %v826 = vmul.f32 %v96, %v818
  %v827 = vmul.f32 %v97, %v818
  %v828 = vmul.f32 %v98, %v818
  %v829 = vmul.f32 %v99, %v818
  %v830 = vmul.f32 %v100, %v818
  %v831 = vmul.f32 %v101, %v818
  %v832 = vmul.f32 %v102, %v818
  %v833 = vmul.f32 %v103, %v818
  %v834 = vmul.f32 %v104, %v818
  %v835 = vmul.f32 %v105, %v818
  %v836 = vsel %vm157, %v820, 0.0
  %837 = vadd.xlane.f32.xlu0 %v836
  %v838 = vpop.xlane.xlu0 %837
  %v839 = vsel %vm157, %v821, 0.0
  %840 = vadd.xlane.f32.xlu0 %v839
  %v841 = vpop.xlane.xlu0 %840
  %v842 = vsel %vm157, %v822, 0.0
  %843 = vadd.xlane.f32.xlu0 %v842
  %v844 = vpop.xlane.xlu0 %843
  %v845 = vsel %vm157, %v823, 0.0
  %846 = vadd.xlane.f32.xlu0 %v845
  %v847 = vpop.xlane.xlu0 %846
  %v848 = vsel %vm157, %v824, 0.0
  %849 = vadd.xlane.f32.xlu0 %v848
  %v850 = vpop.xlane.xlu0 %849
  %v851 = vsel %vm157, %v825, 0.0
  %852 = vadd.xlane.f32.xlu0 %v851
  %v853 = vpop.xlane.xlu0 %852
  %v854 = vsel %vm157, %v826, 0.0
  %855 = vadd.xlane.f32.xlu0 %v854
  %v856 = vpop.xlane.xlu0 %855
  %v857 = vsel %vm157, %v827, 0.0
  %858 = vadd.xlane.f32.xlu0 %v857
  %v859 = vpop.xlane.xlu0 %858
  %v860 = vsel %vm157, %v828, 0.0
  %861 = vadd.xlane.f32.xlu0 %v860
  %v862 = vpop.xlane.xlu0 %861
  %v863 = vsel %vm157, %v829, 0.0
  %864 = vadd.xlane.f32.xlu0 %v863
  %v865 = vpop.xlane.xlu0 %864
  %v866 = vsel %vm157, %v830, 0.0
  %867 = vadd.xlane.f32.xlu0 %v866
  %v868 = vpop.xlane.xlu0 %867
  %v869 = vsel %vm157, %v831, 0.0
  %870 = vadd.xlane.f32.xlu0 %v869
  %v871 = vpop.xlane.xlu0 %870
  %v872 = vsel %vm157, %v832, 0.0
  %873 = vadd.xlane.f32.xlu0 %v872
  %v874 = vpop.xlane.xlu0 %873
  %v875 = vsel %vm157, %v833, 0.0
  %876 = vadd.xlane.f32.xlu0 %v875
  %v877 = vpop.xlane.xlu0 %876
  %v878 = vsel %vm157, %v834, 0.0
  %879 = vadd.xlane.f32.xlu0 %v878
  %v880 = vpop.xlane.xlu0 %879
  %v881 = vsel %vm157, %v835, 0.0
  %882 = vadd.xlane.f32.xlu0 %v881
  %v883 = vpop.xlane.xlu0 %882
  %v884 = vmax.f32 %v838, %v850
  %v885 = vmax.f32 %v841, %v853
  %v886 = vmax.f32 %v844, %v856
  %v887 = vmax.f32 %v847, %v859
  %v888 = vmax.f32 %v884, %v862
  %v889 = vmax.f32 %v885, %v865
  %v890 = vmax.f32 %v886, %v868
  %v891 = vmax.f32 %v887, %v871
  %v892 = vmax.f32 %v888, %v874
  %v893 = vmax.f32 %v889, %v877
  %v894 = vmax.f32 %v890, %v880
  %v895 = vmax.f32 %v891, %v883
  %v896 = vmax.f32 %v892, %v893
  %v897 = vmax.f32 %v894, %v895
  %v898 = vmax.f32 %v896, %v897
  %v899 = vsub.f32 %v838, %v898
  %v900 = vsub.f32 %v841, %v898
  %v901 = vsub.f32 %v844, %v898
  %v902 = vsub.f32 %v847, %v898
  %v903 = vsub.f32 %v850, %v898
  %v904 = vsub.f32 %v853, %v898
  %v905 = vsub.f32 %v856, %v898
  %v906 = vsub.f32 %v859, %v898
  %v907 = vsub.f32 %v862, %v898
  %v908 = vsub.f32 %v865, %v898
  %v909 = vsub.f32 %v868, %v898
  %v910 = vsub.f32 %v871, %v898
  %v911 = vsub.f32 %v874, %v898
  %v912 = vsub.f32 %v877, %v898
  %v913 = vsub.f32 %v880, %v898
  %v914 = vsub.f32 %v883, %v898
  %v915 = vmul.f32 %v899, 1.442695
  %v916 = vpow.pop %v915
  %v917 = vmul.f32 %v900, 1.442695
  %v918 = vpow.pop %v917
  %v919 = vmul.f32 %v901, 1.442695
  %v920 = vpow.pop %v919
  %v921 = vmul.f32 %v902, 1.442695
  %v922 = vpow.pop %v921
  %v923 = vmul.f32 %v903, 1.442695
  %v924 = vpow.pop %v923
  %v925 = vmul.f32 %v904, 1.442695
  %v926 = vpow.pop %v925
  %v927 = vmul.f32 %v905, 1.442695
  %v928 = vpow.pop %v927
  %v929 = vmul.f32 %v906, 1.442695
  %v930 = vpow.pop %v929
  %v931 = vmul.f32 %v907, 1.442695
  %v932 = vpow.pop %v931
  %v933 = vmul.f32 %v908, 1.442695
  %v934 = vpow.pop %v933
  %v935 = vmul.f32 %v909, 1.442695
  %v936 = vpow.pop %v935
  %v937 = vmul.f32 %v910, 1.442695
  %v938 = vpow.pop %v937
  %v939 = vmul.f32 %v911, 1.442695
  %v940 = vpow.pop %v939
  %v941 = vmul.f32 %v912, 1.442695
  %v942 = vpow.pop %v941
  %v943 = vmul.f32 %v913, 1.442695
  %v944 = vpow.pop %v943
  %v945 = vmul.f32 %v914, 1.442695
  %v946 = vpow.pop %v945
  %v947 = vadd.f32 %v916, %v918
  %v948 = vadd.f32 %v947, %v920
  %v949 = vadd.f32 %v948, %v922
  %v950 = vadd.f32 %v949, %v924
  %v951 = vadd.f32 %v950, %v926
  %v952 = vadd.f32 %v951, %v928
  %v953 = vadd.f32 %v952, %v930
  %v954 = vadd.f32 %v953, %v932
  %v955 = vadd.f32 %v954, %v934
  %v956 = vadd.f32 %v955, %v936
  %v957 = vadd.f32 %v956, %v938
  %v958 = vadd.f32 %v957, %v940
  %v959 = vadd.f32 %v958, %v942
  %v960 = vadd.f32 %v959, %v944
  %v961 = vadd.f32 %v960, %v946
  %v962 = vrcp.pop %v961
  %v963 = vmul.f32 %v916, %v962
  %v964 = vmul.f32 %v918, %v962
  %v965 = vmul.f32 %v920, %v962
  %v966 = vmul.f32 %v922, %v962
  %v967 = vmul.f32 %v924, %v962
  %v968 = vmul.f32 %v926, %v962
  %v969 = vmul.f32 %v928, %v962
  %v970 = vmul.f32 %v930, %v962
  %v971 = vmul.f32 %v932, %v962
  %v972 = vmul.f32 %v934, %v962
  %v973 = vmul.f32 %v936, %v962
  %v974 = vmul.f32 %v938, %v962
  %v975 = vmul.f32 %v940, %v962
  %v976 = vmul.f32 %v942, %v962
  %v977 = vmul.f32 %v944, %v962
  %v978 = vmul.f32 %v946, %v962
  %v979 = vmul.f32 %v963, %v90
  %v980 = vmul.f32 %v964, %v91
  %v981 = vmul.f32 %v965, %v92
  %v982 = vmul.f32 %v966, %v93
  %v983 = vmul.f32 %v967, %v94
  %v984 = vmul.f32 %v968, %v95
  %v985 = vmul.f32 %v969, %v96
  %v986 = vmul.f32 %v970, %v97
  %v987 = vmul.f32 %v971, %v98
  %v988 = vmul.f32 %v972, %v99
  %v989 = vmul.f32 %v973, %v100
  %v990 = vmul.f32 %v974, %v101
  %v991 = vmul.f32 %v975, %v102
  %v992 = vmul.f32 %v976, %v103
  %v993 = vmul.f32 %v977, %v104
  %v994 = vmul.f32 %v978, %v105
  %v995 = vsel %vm157, %v979, 0.0
  %v996 = vsel %vm157, %v980, 0.0
  %v997 = vadd.f32 %v995, %v996
  %v998 = vsel %vm157, %v981, 0.0
  %v999 = vadd.f32 %v997, %v998
  %v1000 = vsel %vm157, %v982, 0.0
  %v1001 = vadd.f32 %v999, %v1000
  %v1002 = vsel %vm157, %v983, 0.0
  %v1003 = vadd.f32 %v1001, %v1002
  %v1004 = vsel %vm157, %v984, 0.0
  %v1005 = vadd.f32 %v1003, %v1004
  %v1006 = vsel %vm157, %v985, 0.0
  %v1007 = vadd.f32 %v1005, %v1006
  %v1008 = vsel %vm157, %v986, 0.0
  %v1009 = vadd.f32 %v1007, %v1008
  %v1010 = vsel %vm157, %v987, 0.0
  %v1011 = vadd.f32 %v1009, %v1010
  %v1012 = vsel %vm157, %v988, 0.0
  %v1013 = vadd.f32 %v1011, %v1012
  %v1014 = vsel %vm157, %v989, 0.0
  %v1015 = vadd.f32 %v1013, %v1014
  %v1016 = vsel %vm157, %v990, 0.0
  %v1017 = vadd.f32 %v1015, %v1016
  %v1018 = vsel %vm157, %v991, 0.0
  %v1019 = vadd.f32 %v1017, %v1018
  %v1020 = vsel %vm157, %v992, 0.0
  %v1021 = vadd.f32 %v1019, %v1020
  %v1022 = vsel %vm157, %v993, 0.0
  %v1023 = vadd.f32 %v1021, %v1022
  %v1024 = vsel %vm157, %v994, 0.0
  %v1025 = vadd.f32 %v1023, %v1024
  %v1026 = vpack.c.bf16 %v815, %v815
  %v1027 = vpack.c.bf16 %v1025, %v1025
  %v1029 = vsel %vm157, %v1027, 0
  %1031 = vmatprep.subr.bf16.mxu0 0
  %1032 = vmatpush1.bf16.msra.mxu0 %v550
  %1033 = vmatprep.subr.bf16.mxu0 0
  %1034 = vmatpush1.bf16.msra.mxu0 %v551
  %1035 = vmatprep.subr.bf16.mxu0 0
  %1036 = vmatpush1.bf16.msra.mxu0 0
  %1037 = vmatprep.subr.bf16.mxu0 0
  %1038 = vmatpush1.bf16.msra.mxu0 0
  %1039 = vmatprep.subr.bf16.mxu0 0
  %1040 = vmatpush1.bf16.msra.mxu0 0
  %1041 = vmatprep.subr.bf16.mxu0 0
  %1042 = vmatpush1.bf16.msra.mxu0 0
  %1043 = vmatprep.subr.bf16.mxu0 0
  %1044 = vmatpush1.bf16.msra.mxu0 0
  %1045 = vmatprep.subr.bf16.mxu0 0
  %1046 = vmatpush1.bf16.msra.mxu0 0
  %1047 = vmatprep.subr.bf16.mxu0 0
  %1048 = vmatpush1.bf16.msra.mxu0 0
  %1049 = vmatprep.subr.bf16.mxu0 0
  %1050 = vmatpush1.bf16.msra.mxu0 0
  %1051 = vmatprep.subr.bf16.mxu0 0
  %1052 = vmatpush1.bf16.msra.mxu0 0
  %1053 = vmatprep.subr.bf16.mxu0 0
  %1054 = vmatpush1.bf16.msra.mxu0 0
  %1055 = vmatprep.subr.bf16.mxu0 0
  %1056 = vmatpush1.bf16.msra.mxu0 0
  %1057 = vmatprep.subr.bf16.mxu0 0
  %1058 = vmatpush1.bf16.msra.mxu0 0
  %1059 = vmatprep.subr.bf16.mxu0 0
  %1060 = vmatpush1.bf16.msra.mxu0 0
  %1061 = vmatprep.subr.bf16.mxu0 0
  %1062 = vmatpush1.bf16.msra.mxu0 0
  %1063 = vmatprep.mubr.bf16.mxu0 0
  %1064 = vmatmul.mubr.bf16.gmra.mrb[0].mxu0 %v1029
  %v1065 = vpop.f32.mrb[0].mxu0
  %v1066 = vadd.f32 0.0, %v1065
  %v1067 = vpop.f32.mrb[0].mxu0
  %v1068 = vpop.f32.mrb[0].mxu0
  %v1069 = vpop.f32.mrb[0].mxu0
  %1070 = vdwg.mxu0
  %1072 = vrot.lane.b32.xlu0 %v1026, 96
  %v1073 = vpop.permute.xlu0 %1072
  %v1075 = vsel %vm157, %v1073, 0
  %1077 = vmatprep.subr.bf16.mxu0 0
  %1078 = vmatpush1.bf16.msra.mxu0 %v608
  %1079 = vmatprep.subr.bf16.mxu0 0
  %1080 = vmatpush1.bf16.msra.mxu0 %v609
  %1081 = vmatprep.subr.bf16.mxu0 0
  %1082 = vmatpush1.bf16.msra.mxu0 0
  %1083 = vmatprep.subr.bf16.mxu0 0
  %1084 = vmatpush1.bf16.msra.mxu0 0
  %1085 = vmatprep.subr.bf16.mxu0 0
  %1086 = vmatpush1.bf16.msra.mxu0 0
  %1087 = vmatprep.subr.bf16.mxu0 0
  %1088 = vmatpush1.bf16.msra.mxu0 0
  %1089 = vmatprep.subr.bf16.mxu0 0
  %1090 = vmatpush1.bf16.msra.mxu0 0
  %1091 = vmatprep.subr.bf16.mxu0 0
  %1092 = vmatpush1.bf16.msra.mxu0 0
  %1093 = vmatprep.subr.bf16.mxu0 0
  %1094 = vmatpush1.bf16.msra.mxu0 0
  %1095 = vmatprep.subr.bf16.mxu0 0
  %1096 = vmatpush1.bf16.msra.mxu0 0
  %1097 = vmatprep.subr.bf16.mxu0 0
  %1098 = vmatpush1.bf16.msra.mxu0 0
  %1099 = vmatprep.subr.bf16.mxu0 0
  %1100 = vmatpush1.bf16.msra.mxu0 0
  %1101 = vmatprep.subr.bf16.mxu0 0
  %1102 = vmatpush1.bf16.msra.mxu0 0
  %1103 = vmatprep.subr.bf16.mxu0 0
  %1104 = vmatpush1.bf16.msra.mxu0 0
  %1105 = vmatprep.subr.bf16.mxu0 0
  %1106 = vmatpush1.bf16.msra.mxu0 0
  %1107 = vmatprep.subr.bf16.mxu0 0
  %1108 = vmatpush1.bf16.msra.mxu0 0
  %1109 = vmatprep.mubr.bf16.mxu0 0
  %1110 = vmatmul.mubr.bf16.gmra.mrb[0].mxu0 %v1075
  %v1111 = vpop.f32.mrb[0].mxu0
  %v1112 = vadd.f32 %v1066, %v1111
  %v1113 = vpop.f32.mrb[0].mxu0
  %v1114 = vpop.f32.mrb[0].mxu0
  %v1115 = vpop.f32.mrb[0].mxu0
  %1116 = vdwg.mxu0
  %v1117 = vadd.f32 %v1112, %v659
  %v1118 = vtanh.pop %v1117
  %v1119 = vpack.c.bf16 %v1118, %v1118
  %v1121 = vsel %vm157, %v1119, 0
  %1123 = vmatprep.subr.bf16.mxu0 0
  %1124 = vmatpush1.bf16.msra.mxu0 %v678
  %1125 = vmatprep.subr.bf16.mxu0 0
  %1126 = vmatpush1.bf16.msra.mxu0 %v679
  %1127 = vmatprep.subr.bf16.mxu0 0
  %1128 = vmatpush1.bf16.msra.mxu0 0
  %1129 = vmatprep.subr.bf16.mxu0 0
  %1130 = vmatpush1.bf16.msra.mxu0 0
  %1131 = vmatprep.subr.bf16.mxu0 0
  %1132 = vmatpush1.bf16.msra.mxu0 0
  %1133 = vmatprep.subr.bf16.mxu0 0
  %1134 = vmatpush1.bf16.msra.mxu0 0
  %1135 = vmatprep.subr.bf16.mxu0 0
  %1136 = vmatpush1.bf16.msra.mxu0 0
  %1137 = vmatprep.subr.bf16.mxu0 0
  %1138 = vmatpush1.bf16.msra.mxu0 0
  %1139 = vmatprep.subr.bf16.mxu0 0
  %1140 = vmatpush1.bf16.msra.mxu0 0
  %1141 = vmatprep.subr.bf16.mxu0 0
  %1142 = vmatpush1.bf16.msra.mxu0 0
  %1143 = vmatprep.subr.bf16.mxu0 0
  %1144 = vmatpush1.bf16.msra.mxu0 0
  %1145 = vmatprep.subr.bf16.mxu0 0
  %1146 = vmatpush1.bf16.msra.mxu0 0
  %1147 = vmatprep.subr.bf16.mxu0 0
  %1148 = vmatpush1.bf16.msra.mxu0 0
  %1149 = vmatprep.subr.bf16.mxu0 0
  %1150 = vmatpush1.bf16.msra.mxu0 0
  %1151 = vmatprep.subr.bf16.mxu0 0
  %1152 = vmatpush1.bf16.msra.mxu0 0
  %1153 = vmatprep.subr.bf16.mxu0 0
  %1154 = vmatpush1.bf16.msra.mxu0 0
  %1155 = vmatprep.mubr.bf16.mxu0 0
  %1156 = vmatmul.mubr.bf16.gmra.mrb[0].mxu0 %v1121
  %v1157 = vpop.f32.mrb[0].mxu0
  %v1158 = vadd.f32 %v668, %v1157
  %v1159 = vpop.f32.mrb[0].mxu0
  %v1160 = vpop.f32.mrb[0].mxu0
  %v1161 = vpop.f32.mrb[0].mxu0
  %1162 = vdwg.mxu0
  %v1163 = vsel %vm725, %v1158, -inf
  %1164 = vmax.xlane.f32.xlu0 %v1163
  %v1165 = vpop.xlane.xlu0 %1164
  %v1166 = vsub.f32 %v1158, %v1165
  %v1167 = vmul.f32 %v1166, 1.442695
  %v1168 = vpow.pop %v1167
  %v1169 = vsel %vm725, %v1168, 0.0
  %1170 = vadd.xlane.f32.xlu0 %v1169
  %v1171 = vpop.xlane.xlu0 %1170
  %v1172 = vlog2.pop %v1171
  %v1173 = vmul.f32 %v1172, 0.6931472
  %v1174 = vadd.f32 %v1173, %v1165
  %1175 = vset.pattern.permute.xlu0 1
  %1176 = vperm.xlu0 %1175, %v738
  %v1177 = vpop.permute.xlu0 %1176
  %vm1178 = vcmp.eq.s32.totalorder %v236, %v1177
  %v1179 = vsel %vm1178, %v1158, 0.0
  %v1180 = vsel %vm725, %v1179, 0.0
  %1181 = vadd.xlane.f32.xlu0 %v1180
  %v1182 = vpop.xlane.xlu0 %1181
  %v1183 = vsub.f32 %v1174, %v1182
  %v1184 = vmul.f32 %v1183, %v748
  %1185 = vmatprep.subr.bf16.mxu0 0
  %1186 = vmatpush1.bf16.msra.mxu0 %v253
  %1187 = vmatprep.subr.bf16.mxu0 0
  %1188 = vmatpush1.bf16.msra.mxu0 %v254
  %1189 = vmatprep.subr.bf16.mxu0 0
  %1190 = vmatpush1.bf16.msra.mxu0 0
  %1191 = vmatprep.subr.bf16.mxu0 0
  %1192 = vmatpush1.bf16.msra.mxu0 0
  %1193 = vmatprep.subr.bf16.mxu0 0
  %1194 = vmatpush1.bf16.msra.mxu0 0
  %1195 = vmatprep.subr.bf16.mxu0 0
  %1196 = vmatpush1.bf16.msra.mxu0 0
  %1197 = vmatprep.subr.bf16.mxu0 0
  %1198 = vmatpush1.bf16.msra.mxu0 0
  %1199 = vmatprep.subr.bf16.mxu0 0
  %1200 = vmatpush1.bf16.msra.mxu0 0
  %1201 = vmatprep.subr.bf16.mxu0 0
  %1202 = vmatpush1.bf16.msra.mxu0 0
  %1203 = vmatprep.subr.bf16.mxu0 0
  %1204 = vmatpush1.bf16.msra.mxu0 0
  %1205 = vmatprep.subr.bf16.mxu0 0
  %1206 = vmatpush1.bf16.msra.mxu0 0
  %1207 = vmatprep.subr.bf16.mxu0 0
  %1208 = vmatpush1.bf16.msra.mxu0 0
  %1209 = vmatprep.subr.bf16.mxu0 0
  %1210 = vmatpush1.bf16.msra.mxu0 0
  %1211 = vmatprep.subr.bf16.mxu0 0
  %1212 = vmatpush1.bf16.msra.mxu0 0
  %1213 = vmatprep.subr.bf16.mxu0 0
  %1214 = vmatpush1.bf16.msra.mxu0 0
  %1215 = vmatprep.subr.bf16.mxu0 0
  %1216 = vmatpush1.bf16.msra.mxu0 0
  %1217 = vmatprep.mubr.bf16.mxu0 0
  %1218 = vmatmul.mubr.bf16.gmra.mrb[0].mxu0 %v1075
  %v1219 = vpop.f32.mrb[0].mxu0
  %v1220 = vadd.f32 %v243, %v1219
  %v1221 = vpop.f32.mrb[0].mxu0
  %v1222 = vpop.f32.mrb[0].mxu0
  %v1223 = vpop.f32.mrb[0].mxu0
  %1224 = vdwg.mxu0
  %v1225 = vadd.f32 %v213, %v1220
  %v1226 = vxor.u32 %v1225, 2147483648
  %v1227 = vmul.f32 %v1226, 1.442695
  %v1228 = vpow.pop %v1227
  %v1229 = vadd.f32 %v1228, 1.0
  %v1230 = vrcp.pop %v1229
  %v1231 = vmul.f32 1.0, %v1230
  %1233 = vrot.lane.b32.xlu0 %v1220, 64
  %v1234 = vpop.permute.xlu0 %1233
  %v1236 = vmul.f32 %v1231, %v1234
  %1238 = vrot.lane.b32.xlu0 %v1236, 64
  %v1239 = vpop.permute.xlu0 %1238
  %v1241 = vadd.f32 %v213, %v1239
  %v1242 = vtanh.pop %v1241
  %v1243 = vsub.f32 1.0, %v1231
  %1245 = vrot.lane.b32.xlu0 %v1242, 96
  %v1246 = vpop.permute.xlu0 %1245
  %v1248 = vmul.f32 %v1243, %v1246
  %v1249 = vmul.f32 %v1231, %v815
  %v1250 = vadd.f32 %v1248, %v1249
  %1252 = vrot.lane.b32.xlu0 %v1250, 96
  %v1253 = vpop.permute.xlu0 %1252
  %v1255 = vmul.f32 %v90, %v1253
  %v1256 = vmul.f32 %v91, %v1253
  %v1257 = vmul.f32 %v92, %v1253
  %v1258 = vmul.f32 %v93, %v1253
  %v1259 = vmul.f32 %v94, %v1253
  %v1260 = vmul.f32 %v95, %v1253
  %v1261 = vmul.f32 %v96, %v1253
  %v1262 = vmul.f32 %v97, %v1253
  %v1263 = vmul.f32 %v98, %v1253
  %v1264 = vmul.f32 %v99, %v1253
  %v1265 = vmul.f32 %v100, %v1253
  %v1266 = vmul.f32 %v101, %v1253
  %v1267 = vmul.f32 %v102, %v1253
  %v1268 = vmul.f32 %v103, %v1253
  %v1269 = vmul.f32 %v104, %v1253
  %v1270 = vmul.f32 %v105, %v1253
  %v1271 = vsel %vm157, %v1255, 0.0
  %1272 = vadd.xlane.f32.xlu0 %v1271
  %v1273 = vpop.xlane.xlu0 %1272
  %v1274 = vsel %vm157, %v1256, 0.0
  %1275 = vadd.xlane.f32.xlu0 %v1274
  %v1276 = vpop.xlane.xlu0 %1275
  %v1277 = vsel %vm157, %v1257, 0.0
  %1278 = vadd.xlane.f32.xlu0 %v1277
  %v1279 = vpop.xlane.xlu0 %1278
  %v1280 = vsel %vm157, %v1258, 0.0
  %1281 = vadd.xlane.f32.xlu0 %v1280
  %v1282 = vpop.xlane.xlu0 %1281
  %v1283 = vsel %vm157, %v1259, 0.0
  %1284 = vadd.xlane.f32.xlu0 %v1283
  %v1285 = vpop.xlane.xlu0 %1284
  %v1286 = vsel %vm157, %v1260, 0.0
  %1287 = vadd.xlane.f32.xlu0 %v1286
  %v1288 = vpop.xlane.xlu0 %1287
  %v1289 = vsel %vm157, %v1261, 0.0
  %1290 = vadd.xlane.f32.xlu0 %v1289
  %v1291 = vpop.xlane.xlu0 %1290
  %v1292 = vsel %vm157, %v1262, 0.0
  %1293 = vadd.xlane.f32.xlu0 %v1292
  %v1294 = vpop.xlane.xlu0 %1293
  %v1295 = vsel %vm157, %v1263, 0.0
  %1296 = vadd.xlane.f32.xlu0 %v1295
  %v1297 = vpop.xlane.xlu0 %1296
  %v1298 = vsel %vm157, %v1264, 0.0
  %1299 = vadd.xlane.f32.xlu0 %v1298
  %v1300 = vpop.xlane.xlu0 %1299
  %v1301 = vsel %vm157, %v1265, 0.0
  %1302 = vadd.xlane.f32.xlu0 %v1301
  %v1303 = vpop.xlane.xlu0 %1302
  %v1304 = vsel %vm157, %v1266, 0.0
  %1305 = vadd.xlane.f32.xlu0 %v1304
  %v1306 = vpop.xlane.xlu0 %1305
  %v1307 = vsel %vm157, %v1267, 0.0
  %1308 = vadd.xlane.f32.xlu0 %v1307
  %v1309 = vpop.xlane.xlu0 %1308
  %v1310 = vsel %vm157, %v1268, 0.0
  %1311 = vadd.xlane.f32.xlu0 %v1310
  %v1312 = vpop.xlane.xlu0 %1311
  %v1313 = vsel %vm157, %v1269, 0.0
  %1314 = vadd.xlane.f32.xlu0 %v1313
  %v1315 = vpop.xlane.xlu0 %1314
  %v1316 = vsel %vm157, %v1270, 0.0
  %1317 = vadd.xlane.f32.xlu0 %v1316
  %v1318 = vpop.xlane.xlu0 %1317
  %v1319 = vmax.f32 %v1273, %v1285
  %v1320 = vmax.f32 %v1276, %v1288
  %v1321 = vmax.f32 %v1279, %v1291
  %v1322 = vmax.f32 %v1282, %v1294
  %v1323 = vmax.f32 %v1319, %v1297
  %v1324 = vmax.f32 %v1320, %v1300
  %v1325 = vmax.f32 %v1321, %v1303
  %v1326 = vmax.f32 %v1322, %v1306
  %v1327 = vmax.f32 %v1323, %v1309
  %v1328 = vmax.f32 %v1324, %v1312
  %v1329 = vmax.f32 %v1325, %v1315
  %v1330 = vmax.f32 %v1326, %v1318
  %v1331 = vmax.f32 %v1327, %v1328
  %v1332 = vmax.f32 %v1329, %v1330
  %v1333 = vmax.f32 %v1331, %v1332
  %v1334 = vsub.f32 %v1273, %v1333
  %v1335 = vsub.f32 %v1276, %v1333
  %v1336 = vsub.f32 %v1279, %v1333
  %v1337 = vsub.f32 %v1282, %v1333
  %v1338 = vsub.f32 %v1285, %v1333
  %v1339 = vsub.f32 %v1288, %v1333
  %v1340 = vsub.f32 %v1291, %v1333
  %v1341 = vsub.f32 %v1294, %v1333
  %v1342 = vsub.f32 %v1297, %v1333
  %v1343 = vsub.f32 %v1300, %v1333
  %v1344 = vsub.f32 %v1303, %v1333
  %v1345 = vsub.f32 %v1306, %v1333
  %v1346 = vsub.f32 %v1309, %v1333
  %v1347 = vsub.f32 %v1312, %v1333
  %v1348 = vsub.f32 %v1315, %v1333
  %v1349 = vsub.f32 %v1318, %v1333
  %v1350 = vmul.f32 %v1334, 1.442695
  %v1351 = vpow.pop %v1350
  %v1352 = vmul.f32 %v1335, 1.442695
  %v1353 = vpow.pop %v1352
  %v1354 = vmul.f32 %v1336, 1.442695
  %v1355 = vpow.pop %v1354
  %v1356 = vmul.f32 %v1337, 1.442695
  %v1357 = vpow.pop %v1356
  %v1358 = vmul.f32 %v1338, 1.442695
  %v1359 = vpow.pop %v1358
  %v1360 = vmul.f32 %v1339, 1.442695
  %v1361 = vpow.pop %v1360
  %v1362 = vmul.f32 %v1340, 1.442695
  %v1363 = vpow.pop %v1362
  %v1364 = vmul.f32 %v1341, 1.442695
  %v1365 = vpow.pop %v1364
  %v1366 = vmul.f32 %v1342, 1.442695
  %v1367 = vpow.pop %v1366
  %v1368 = vmul.f32 %v1343, 1.442695
  %v1369 = vpow.pop %v1368
  %v1370 = vmul.f32 %v1344, 1.442695
  %v1371 = vpow.pop %v1370
  %v1372 = vmul.f32 %v1345, 1.442695
  %v1373 = vpow.pop %v1372
  %v1374 = vmul.f32 %v1346, 1.442695
  %v1375 = vpow.pop %v1374
  %v1376 = vmul.f32 %v1347, 1.442695
  %v1377 = vpow.pop %v1376
  %v1378 = vmul.f32 %v1348, 1.442695
  %v1379 = vpow.pop %v1378
  %v1380 = vmul.f32 %v1349, 1.442695
  %v1381 = vpow.pop %v1380
  %v1382 = vadd.f32 %v1351, %v1353
  %v1383 = vadd.f32 %v1382, %v1355
  %v1384 = vadd.f32 %v1383, %v1357
  %v1385 = vadd.f32 %v1384, %v1359
  %v1386 = vadd.f32 %v1385, %v1361
  %v1387 = vadd.f32 %v1386, %v1363
  %v1388 = vadd.f32 %v1387, %v1365
  %v1389 = vadd.f32 %v1388, %v1367
  %v1390 = vadd.f32 %v1389, %v1369
  %v1391 = vadd.f32 %v1390, %v1371
  %v1392 = vadd.f32 %v1391, %v1373
  %v1393 = vadd.f32 %v1392, %v1375
  %v1394 = vadd.f32 %v1393, %v1377
  %v1395 = vadd.f32 %v1394, %v1379
  %v1396 = vadd.f32 %v1395, %v1381
  %v1397 = vrcp.pop %v1396
  %v1398 = vmul.f32 %v1351, %v1397
  %v1399 = vmul.f32 %v1353, %v1397
  %v1400 = vmul.f32 %v1355, %v1397
  %v1401 = vmul.f32 %v1357, %v1397
  %v1402 = vmul.f32 %v1359, %v1397
  %v1403 = vmul.f32 %v1361, %v1397
  %v1404 = vmul.f32 %v1363, %v1397
  %v1405 = vmul.f32 %v1365, %v1397
  %v1406 = vmul.f32 %v1367, %v1397
  %v1407 = vmul.f32 %v1369, %v1397
  %v1408 = vmul.f32 %v1371, %v1397
  %v1409 = vmul.f32 %v1373, %v1397
  %v1410 = vmul.f32 %v1375, %v1397
  %v1411 = vmul.f32 %v1377, %v1397
  %v1412 = vmul.f32 %v1379, %v1397
  %v1413 = vmul.f32 %v1381, %v1397
  %v1414 = vmul.f32 %v1398, %v90
  %v1415 = vmul.f32 %v1399, %v91
  %v1416 = vmul.f32 %v1400, %v92
  %v1417 = vmul.f32 %v1401, %v93
  %v1418 = vmul.f32 %v1402, %v94
  %v1419 = vmul.f32 %v1403, %v95
  %v1420 = vmul.f32 %v1404, %v96
  %v1421 = vmul.f32 %v1405, %v97
  %v1422 = vmul.f32 %v1406, %v98
  %v1423 = vmul.f32 %v1407, %v99
  %v1424 = vmul.f32 %v1408, %v100
  %v1425 = vmul.f32 %v1409, %v101
  %v1426 = vmul.f32 %v1410, %v102
  %v1427 = vmul.f32 %v1411, %v103
  %v1428 = vmul.f32 %v1412, %v104
  %v1429 = vmul.f32 %v1413, %v105
  %v1430 = vsel %vm157, %v1414, 0.0
  %v1431 = vsel %vm157, %v1415, 0.0
  %v1432 = vadd.f32 %v1430, %v1431
  %v1433 = vsel %vm157, %v1416, 0.0
  %v1434 = vadd.f32 %v1432, %v1433
  %v1435 = vsel %vm157, %v1417, 0.0
  %v1436 = vadd.f32 %v1434, %v1435
  %v1437 = vsel %vm157, %v1418, 0.0
  %v1438 = vadd.f32 %v1436, %v1437
  %v1439 = vsel %vm157, %v1419, 0.0
  %v1440 = vadd.f32 %v1438, %v1439
  %v1441 = vsel %vm157, %v1420, 0.0
  %v1442 = vadd.f32 %v1440, %v1441
  %v1443 = vsel %vm157, %v1421, 0.0
  %v1444 = vadd.f32 %v1442, %v1443
  %v1445 = vsel %vm157, %v1422, 0.0
  %v1446 = vadd.f32 %v1444, %v1445
  %v1447 = vsel %vm157, %v1423, 0.0
  %v1448 = vadd.f32 %v1446, %v1447
  %v1449 = vsel %vm157, %v1424, 0.0
  %v1450 = vadd.f32 %v1448, %v1449
  %v1451 = vsel %vm157, %v1425, 0.0
  %v1452 = vadd.f32 %v1450, %v1451
  %v1453 = vsel %vm157, %v1426, 0.0
  %v1454 = vadd.f32 %v1452, %v1453
  %v1455 = vsel %vm157, %v1427, 0.0
  %v1456 = vadd.f32 %v1454, %v1455
  %v1457 = vsel %vm157, %v1428, 0.0
  %v1458 = vadd.f32 %v1456, %v1457
  %v1459 = vsel %vm157, %v1429, 0.0
  %v1460 = vadd.f32 %v1458, %v1459
  %v1461 = vpack.c.bf16 %v1250, %v1250
  %v1462 = vpack.c.bf16 %v1460, %v1460
  %v1464 = vsel %vm157, %v1462, 0
  %1466 = vmatprep.subr.bf16.mxu0 0
  %1467 = vmatpush1.bf16.msra.mxu0 %v550
  %1468 = vmatprep.subr.bf16.mxu0 0
  %1469 = vmatpush1.bf16.msra.mxu0 %v551
  %1470 = vmatprep.subr.bf16.mxu0 0
  %1471 = vmatpush1.bf16.msra.mxu0 0
  %1472 = vmatprep.subr.bf16.mxu0 0
  %1473 = vmatpush1.bf16.msra.mxu0 0
  %1474 = vmatprep.subr.bf16.mxu0 0
  %1475 = vmatpush1.bf16.msra.mxu0 0
  %1476 = vmatprep.subr.bf16.mxu0 0
  %1477 = vmatpush1.bf16.msra.mxu0 0
  %1478 = vmatprep.subr.bf16.mxu0 0
  %1479 = vmatpush1.bf16.msra.mxu0 0
  %1480 = vmatprep.subr.bf16.mxu0 0
  %1481 = vmatpush1.bf16.msra.mxu0 0
  %1482 = vmatprep.subr.bf16.mxu0 0
  %1483 = vmatpush1.bf16.msra.mxu0 0
  %1484 = vmatprep.subr.bf16.mxu0 0
  %1485 = vmatpush1.bf16.msra.mxu0 0
  %1486 = vmatprep.subr.bf16.mxu0 0
  %1487 = vmatpush1.bf16.msra.mxu0 0
  %1488 = vmatprep.subr.bf16.mxu0 0
  %1489 = vmatpush1.bf16.msra.mxu0 0
  %1490 = vmatprep.subr.bf16.mxu0 0
  %1491 = vmatpush1.bf16.msra.mxu0 0
  %1492 = vmatprep.subr.bf16.mxu0 0
  %1493 = vmatpush1.bf16.msra.mxu0 0
  %1494 = vmatprep.subr.bf16.mxu0 0
  %1495 = vmatpush1.bf16.msra.mxu0 0
  %1496 = vmatprep.subr.bf16.mxu0 0
  %1497 = vmatpush1.bf16.msra.mxu0 0
  %1498 = vmatprep.mubr.bf16.mxu0 0
  %1499 = vmatmul.mubr.bf16.gmra.mrb[0].mxu0 %v1464
  %v1500 = vpop.f32.mrb[0].mxu0
  %v1501 = vadd.f32 0.0, %v1500
  %v1502 = vpop.f32.mrb[0].mxu0
  %v1503 = vpop.f32.mrb[0].mxu0
  %v1504 = vpop.f32.mrb[0].mxu0
  %1505 = vdwg.mxu0
  %1507 = vrot.lane.b32.xlu0 %v1461, 96
  %v1508 = vpop.permute.xlu0 %1507
  %v1510 = vsel %vm157, %v1508, 0
  %1512 = vmatprep.subr.bf16.mxu0 0
  %1513 = vmatpush1.bf16.msra.mxu0 %v608
  %1514 = vmatprep.subr.bf16.mxu0 0
  %1515 = vmatpush1.bf16.msra.mxu0 %v609
  %1516 = vmatprep.subr.bf16.mxu0 0
  %1517 = vmatpush1.bf16.msra.mxu0 0
  %1518 = vmatprep.subr.bf16.mxu0 0
  %1519 = vmatpush1.bf16.msra.mxu0 0
  %1520 = vmatprep.subr.bf16.mxu0 0
  %1521 = vmatpush1.bf16.msra.mxu0 0
  %1522 = vmatprep.subr.bf16.mxu0 0
  %1523 = vmatpush1.bf16.msra.mxu0 0
  %1524 = vmatprep.subr.bf16.mxu0 0
  %1525 = vmatpush1.bf16.msra.mxu0 0
  %1526 = vmatprep.subr.bf16.mxu0 0
  %1527 = vmatpush1.bf16.msra.mxu0 0
  %1528 = vmatprep.subr.bf16.mxu0 0
  %1529 = vmatpush1.bf16.msra.mxu0 0
  %1530 = vmatprep.subr.bf16.mxu0 0
  %1531 = vmatpush1.bf16.msra.mxu0 0
  %1532 = vmatprep.subr.bf16.mxu0 0
  %1533 = vmatpush1.bf16.msra.mxu0 0
  %1534 = vmatprep.subr.bf16.mxu0 0
  %1535 = vmatpush1.bf16.msra.mxu0 0
  %1536 = vmatprep.subr.bf16.mxu0 0
  %1537 = vmatpush1.bf16.msra.mxu0 0
  %1538 = vmatprep.subr.bf16.mxu0 0
  %1539 = vmatpush1.bf16.msra.mxu0 0
  %1540 = vmatprep.subr.bf16.mxu0 0
  %1541 = vmatpush1.bf16.msra.mxu0 0
  %1542 = vmatprep.subr.bf16.mxu0 0
  %1543 = vmatpush1.bf16.msra.mxu0 0
  %1544 = vmatprep.mubr.bf16.mxu0 0
  %1545 = vmatmul.mubr.bf16.gmra.mrb[0].mxu0 %v1510
  %v1546 = vpop.f32.mrb[0].mxu0
  %v1547 = vadd.f32 %v1501, %v1546
  %v1548 = vpop.f32.mrb[0].mxu0
  %v1549 = vpop.f32.mrb[0].mxu0
  %v1550 = vpop.f32.mrb[0].mxu0
  %1551 = vdwg.mxu0
  %v1552 = vadd.f32 %v1547, %v659
  %v1553 = vtanh.pop %v1552
  %v1554 = vpack.c.bf16 %v1553, %v1553
  %v1556 = vsel %vm157, %v1554, 0
  %1558 = vmatprep.subr.bf16.mxu0 0
  %1559 = vmatpush1.bf16.msra.mxu0 %v678
  %1560 = vmatprep.subr.bf16.mxu0 0
  %1561 = vmatpush1.bf16.msra.mxu0 %v679
  %1562 = vmatprep.subr.bf16.mxu0 0
  %1563 = vmatpush1.bf16.msra.mxu0 0
  %1564 = vmatprep.subr.bf16.mxu0 0
  %1565 = vmatpush1.bf16.msra.mxu0 0
  %1566 = vmatprep.subr.bf16.mxu0 0
  %1567 = vmatpush1.bf16.msra.mxu0 0
  %1568 = vmatprep.subr.bf16.mxu0 0
  %1569 = vmatpush1.bf16.msra.mxu0 0
  %1570 = vmatprep.subr.bf16.mxu0 0
  %1571 = vmatpush1.bf16.msra.mxu0 0
  %1572 = vmatprep.subr.bf16.mxu0 0
  %1573 = vmatpush1.bf16.msra.mxu0 0
  %1574 = vmatprep.subr.bf16.mxu0 0
  %1575 = vmatpush1.bf16.msra.mxu0 0
  %1576 = vmatprep.subr.bf16.mxu0 0
  %1577 = vmatpush1.bf16.msra.mxu0 0
  %1578 = vmatprep.subr.bf16.mxu0 0
  %1579 = vmatpush1.bf16.msra.mxu0 0
  %1580 = vmatprep.subr.bf16.mxu0 0
  %1581 = vmatpush1.bf16.msra.mxu0 0
  %1582 = vmatprep.subr.bf16.mxu0 0
  %1583 = vmatpush1.bf16.msra.mxu0 0
  %1584 = vmatprep.subr.bf16.mxu0 0
  %1585 = vmatpush1.bf16.msra.mxu0 0
  %1586 = vmatprep.subr.bf16.mxu0 0
  %1587 = vmatpush1.bf16.msra.mxu0 0
  %1588 = vmatprep.subr.bf16.mxu0 0
  %1589 = vmatpush1.bf16.msra.mxu0 0
  %1590 = vmatprep.mubr.bf16.mxu0 0
  %1591 = vmatmul.mubr.bf16.gmra.mrb[0].mxu0 %v1556
  %v1592 = vpop.f32.mrb[0].mxu0
  %v1593 = vadd.f32 %v668, %v1592
  %v1594 = vpop.f32.mrb[0].mxu0
  %v1595 = vpop.f32.mrb[0].mxu0
  %v1596 = vpop.f32.mrb[0].mxu0
  %1597 = vdwg.mxu0
  %v1598 = vsel %vm725, %v1593, -inf
  %1599 = vmax.xlane.f32.xlu0 %v1598
  %v1600 = vpop.xlane.xlu0 %1599
  %v1601 = vsub.f32 %v1593, %v1600
  %v1602 = vmul.f32 %v1601, 1.442695
  %v1603 = vpow.pop %v1602
  %v1604 = vsel %vm725, %v1603, 0.0
  %1605 = vadd.xlane.f32.xlu0 %v1604
  %v1606 = vpop.xlane.xlu0 %1605
  %v1607 = vlog2.pop %v1606
  %v1608 = vmul.f32 %v1607, 0.6931472
  %v1609 = vadd.f32 %v1608, %v1600
  %1610 = vset.pattern.permute.xlu0 2
  %1611 = vperm.xlu0 %1610, %v738
  %v1612 = vpop.permute.xlu0 %1611
  %vm1613 = vcmp.eq.s32.totalorder %v236, %v1612
  %v1614 = vsel %vm1613, %v1593, 0.0
  %v1615 = vsel %vm725, %v1614, 0.0
  %1616 = vadd.xlane.f32.xlu0 %v1615
  %v1617 = vpop.xlane.xlu0 %1616
  %v1618 = vsub.f32 %v1609, %v1617
  %v1619 = vmul.f32 %v1618, %v748
  %1620 = vmatprep.subr.bf16.mxu0 0
  %1621 = vmatpush1.bf16.msra.mxu0 %v253
  %1622 = vmatprep.subr.bf16.mxu0 0
  %1623 = vmatpush1.bf16.msra.mxu0 %v254
  %1624 = vmatprep.subr.bf16.mxu0 0
  %1625 = vmatpush1.bf16.msra.mxu0 0
  %1626 = vmatprep.subr.bf16.mxu0 0
  %1627 = vmatpush1.bf16.msra.mxu0 0
  %1628 = vmatprep.subr.bf16.mxu0 0
  %1629 = vmatpush1.bf16.msra.mxu0 0
  %1630 = vmatprep.subr.bf16.mxu0 0
  %1631 = vmatpush1.bf16.msra.mxu0 0
  %1632 = vmatprep.subr.bf16.mxu0 0
  %1633 = vmatpush1.bf16.msra.mxu0 0
  %1634 = vmatprep.subr.bf16.mxu0 0
  %1635 = vmatpush1.bf16.msra.mxu0 0
  %1636 = vmatprep.subr.bf16.mxu0 0
  %1637 = vmatpush1.bf16.msra.mxu0 0
  %1638 = vmatprep.subr.bf16.mxu0 0
  %1639 = vmatpush1.bf16.msra.mxu0 0
  %1640 = vmatprep.subr.bf16.mxu0 0
  %1641 = vmatpush1.bf16.msra.mxu0 0
  %1642 = vmatprep.subr.bf16.mxu0 0
  %1643 = vmatpush1.bf16.msra.mxu0 0
  %1644 = vmatprep.subr.bf16.mxu0 0
  %1645 = vmatpush1.bf16.msra.mxu0 0
  %1646 = vmatprep.subr.bf16.mxu0 0
  %1647 = vmatpush1.bf16.msra.mxu0 0
  %1648 = vmatprep.subr.bf16.mxu0 0
  %1649 = vmatpush1.bf16.msra.mxu0 0
  %1650 = vmatprep.subr.bf16.mxu0 0
  %1651 = vmatpush1.bf16.msra.mxu0 0
  %1652 = vmatprep.mubr.bf16.mxu0 0
  %1653 = vmatmul.mubr.bf16.gmra.mrb[0].mxu0 %v1510
  %v1654 = vpop.f32.mrb[0].mxu0
  %v1655 = vadd.f32 %v243, %v1654
  %v1656 = vpop.f32.mrb[0].mxu0
  %v1657 = vpop.f32.mrb[0].mxu0
  %v1658 = vpop.f32.mrb[0].mxu0
  %1659 = vdwg.mxu0
  %v1660 = vadd.f32 %v216, %v1655
  %v1661 = vxor.u32 %v1660, 2147483648
  %v1662 = vmul.f32 %v1661, 1.442695
  %v1663 = vpow.pop %v1662
  %v1664 = vadd.f32 %v1663, 1.0
  %v1665 = vrcp.pop %v1664
  %v1666 = vmul.f32 1.0, %v1665
  %1668 = vrot.lane.b32.xlu0 %v1655, 64
  %v1669 = vpop.permute.xlu0 %1668
  %v1671 = vmul.f32 %v1666, %v1669
  %1673 = vrot.lane.b32.xlu0 %v1671, 64
  %v1674 = vpop.permute.xlu0 %1673
  %v1676 = vadd.f32 %v216, %v1674
  %v1677 = vtanh.pop %v1676
  %v1678 = vsub.f32 1.0, %v1666
  %1680 = vrot.lane.b32.xlu0 %v1677, 96
  %v1681 = vpop.permute.xlu0 %1680
  %v1683 = vmul.f32 %v1678, %v1681
  %v1684 = vmul.f32 %v1666, %v1250
  %v1685 = vadd.f32 %v1683, %v1684
  %1687 = vrot.lane.b32.xlu0 %v1685, 96
  %v1688 = vpop.permute.xlu0 %1687
  %v1690 = vmul.f32 %v90, %v1688
  %v1691 = vmul.f32 %v91, %v1688
  %v1692 = vmul.f32 %v92, %v1688
  %v1693 = vmul.f32 %v93, %v1688
  %v1694 = vmul.f32 %v94, %v1688
  %v1695 = vmul.f32 %v95, %v1688
  %v1696 = vmul.f32 %v96, %v1688
  %v1697 = vmul.f32 %v97, %v1688
  %v1698 = vmul.f32 %v98, %v1688
  %v1699 = vmul.f32 %v99, %v1688
  %v1700 = vmul.f32 %v100, %v1688
  %v1701 = vmul.f32 %v101, %v1688
  %v1702 = vmul.f32 %v102, %v1688
  %v1703 = vmul.f32 %v103, %v1688
  %v1704 = vmul.f32 %v104, %v1688
  %v1705 = vmul.f32 %v105, %v1688
  %v1706 = vsel %vm157, %v1690, 0.0
  %1707 = vadd.xlane.f32.xlu0 %v1706
  %v1708 = vpop.xlane.xlu0 %1707
  %v1709 = vsel %vm157, %v1691, 0.0
  %1710 = vadd.xlane.f32.xlu0 %v1709
  %v1711 = vpop.xlane.xlu0 %1710
  %v1712 = vsel %vm157, %v1692, 0.0
  %1713 = vadd.xlane.f32.xlu0 %v1712
  %v1714 = vpop.xlane.xlu0 %1713
  %v1715 = vsel %vm157, %v1693, 0.0
  %1716 = vadd.xlane.f32.xlu0 %v1715
  %v1717 = vpop.xlane.xlu0 %1716
  %v1718 = vsel %vm157, %v1694, 0.0
  %1719 = vadd.xlane.f32.xlu0 %v1718
  %v1720 = vpop.xlane.xlu0 %1719
  %v1721 = vsel %vm157, %v1695, 0.0
  %1722 = vadd.xlane.f32.xlu0 %v1721
  %v1723 = vpop.xlane.xlu0 %1722
  %v1724 = vsel %vm157, %v1696, 0.0
  %1725 = vadd.xlane.f32.xlu0 %v1724
  %v1726 = vpop.xlane.xlu0 %1725
  %v1727 = vsel %vm157, %v1697, 0.0
  %1728 = vadd.xlane.f32.xlu0 %v1727
  %v1729 = vpop.xlane.xlu0 %1728
  %v1730 = vsel %vm157, %v1698, 0.0
  %1731 = vadd.xlane.f32.xlu0 %v1730
  %v1732 = vpop.xlane.xlu0 %1731
  %v1733 = vsel %vm157, %v1699, 0.0
  %1734 = vadd.xlane.f32.xlu0 %v1733
  %v1735 = vpop.xlane.xlu0 %1734
  %v1736 = vsel %vm157, %v1700, 0.0
  %1737 = vadd.xlane.f32.xlu0 %v1736
  %v1738 = vpop.xlane.xlu0 %1737
  %v1739 = vsel %vm157, %v1701, 0.0
  %1740 = vadd.xlane.f32.xlu0 %v1739
  %v1741 = vpop.xlane.xlu0 %1740
  %v1742 = vsel %vm157, %v1702, 0.0
  %1743 = vadd.xlane.f32.xlu0 %v1742
  %v1744 = vpop.xlane.xlu0 %1743
  %v1745 = vsel %vm157, %v1703, 0.0
  %1746 = vadd.xlane.f32.xlu0 %v1745
  %v1747 = vpop.xlane.xlu0 %1746
  %v1748 = vsel %vm157, %v1704, 0.0
  %1749 = vadd.xlane.f32.xlu0 %v1748
  %v1750 = vpop.xlane.xlu0 %1749
  %v1751 = vsel %vm157, %v1705, 0.0
  %1752 = vadd.xlane.f32.xlu0 %v1751
  %v1753 = vpop.xlane.xlu0 %1752
  %v1754 = vmax.f32 %v1708, %v1720
  %v1755 = vmax.f32 %v1711, %v1723
  %v1756 = vmax.f32 %v1714, %v1726
  %v1757 = vmax.f32 %v1717, %v1729
  %v1758 = vmax.f32 %v1754, %v1732
  %v1759 = vmax.f32 %v1755, %v1735
  %v1760 = vmax.f32 %v1756, %v1738
  %v1761 = vmax.f32 %v1757, %v1741
  %v1762 = vmax.f32 %v1758, %v1744
  %v1763 = vmax.f32 %v1759, %v1747
  %v1764 = vmax.f32 %v1760, %v1750
  %v1765 = vmax.f32 %v1761, %v1753
  %v1766 = vmax.f32 %v1762, %v1763
  %v1767 = vmax.f32 %v1764, %v1765
  %v1768 = vmax.f32 %v1766, %v1767
  %v1769 = vsub.f32 %v1708, %v1768
  %v1770 = vsub.f32 %v1711, %v1768
  %v1771 = vsub.f32 %v1714, %v1768
  %v1772 = vsub.f32 %v1717, %v1768
  %v1773 = vsub.f32 %v1720, %v1768
  %v1774 = vsub.f32 %v1723, %v1768
  %v1775 = vsub.f32 %v1726, %v1768
  %v1776 = vsub.f32 %v1729, %v1768
  %v1777 = vsub.f32 %v1732, %v1768
  %v1778 = vsub.f32 %v1735, %v1768
  %v1779 = vsub.f32 %v1738, %v1768
  %v1780 = vsub.f32 %v1741, %v1768
  %v1781 = vsub.f32 %v1744, %v1768
  %v1782 = vsub.f32 %v1747, %v1768
  %v1783 = vsub.f32 %v1750, %v1768
  %v1784 = vsub.f32 %v1753, %v1768
  %v1785 = vmul.f32 %v1769, 1.442695
  %v1786 = vpow.pop %v1785
  %v1787 = vmul.f32 %v1770, 1.442695
  %v1788 = vpow.pop %v1787
  %v1789 = vmul.f32 %v1771, 1.442695
  %v1790 = vpow.pop %v1789
  %v1791 = vmul.f32 %v1772, 1.442695
  %v1792 = vpow.pop %v1791
  %v1793 = vmul.f32 %v1773, 1.442695
  %v1794 = vpow.pop %v1793
  %v1795 = vmul.f32 %v1774, 1.442695
  %v1796 = vpow.pop %v1795
  %v1797 = vmul.f32 %v1775, 1.442695
  %v1798 = vpow.pop %v1797
  %v1799 = vmul.f32 %v1776, 1.442695
  %v1800 = vpow.pop %v1799
  %v1801 = vmul.f32 %v1777, 1.442695
  %v1802 = vpow.pop %v1801
  %v1803 = vmul.f32 %v1778, 1.442695
  %v1804 = vpow.pop %v1803
  %v1805 = vmul.f32 %v1779, 1.442695
  %v1806 = vpow.pop %v1805
  %v1807 = vmul.f32 %v1780, 1.442695
  %v1808 = vpow.pop %v1807
  %v1809 = vmul.f32 %v1781, 1.442695
  %v1810 = vpow.pop %v1809
  %v1811 = vmul.f32 %v1782, 1.442695
  %v1812 = vpow.pop %v1811
  %v1813 = vmul.f32 %v1783, 1.442695
  %v1814 = vpow.pop %v1813
  %v1815 = vmul.f32 %v1784, 1.442695
  %v1816 = vpow.pop %v1815
  %v1817 = vadd.f32 %v1786, %v1788
  %v1818 = vadd.f32 %v1817, %v1790
  %v1819 = vadd.f32 %v1818, %v1792
  %v1820 = vadd.f32 %v1819, %v1794
  %v1821 = vadd.f32 %v1820, %v1796
  %v1822 = vadd.f32 %v1821, %v1798
  %v1823 = vadd.f32 %v1822, %v1800
  %v1824 = vadd.f32 %v1823, %v1802
  %v1825 = vadd.f32 %v1824, %v1804
  %v1826 = vadd.f32 %v1825, %v1806
  %v1827 = vadd.f32 %v1826, %v1808
  %v1828 = vadd.f32 %v1827, %v1810
  %v1829 = vadd.f32 %v1828, %v1812
  %v1830 = vadd.f32 %v1829, %v1814
  %v1831 = vadd.f32 %v1830, %v1816
  %v1832 = vrcp.pop %v1831
  %v1833 = vmul.f32 %v1786, %v1832
  %v1834 = vmul.f32 %v1788, %v1832
  %v1835 = vmul.f32 %v1790, %v1832
  %v1836 = vmul.f32 %v1792, %v1832
  %v1837 = vmul.f32 %v1794, %v1832
  %v1838 = vmul.f32 %v1796, %v1832
  %v1839 = vmul.f32 %v1798, %v1832
  %v1840 = vmul.f32 %v1800, %v1832
  %v1841 = vmul.f32 %v1802, %v1832
  %v1842 = vmul.f32 %v1804, %v1832
  %v1843 = vmul.f32 %v1806, %v1832
  %v1844 = vmul.f32 %v1808, %v1832
  %v1845 = vmul.f32 %v1810, %v1832
  %v1846 = vmul.f32 %v1812, %v1832
  %v1847 = vmul.f32 %v1814, %v1832
  %v1848 = vmul.f32 %v1816, %v1832
  %v1849 = vmul.f32 %v1833, %v90
  %v1850 = vmul.f32 %v1834, %v91
  %v1851 = vmul.f32 %v1835, %v92
  %v1852 = vmul.f32 %v1836, %v93
  %v1853 = vmul.f32 %v1837, %v94
  %v1854 = vmul.f32 %v1838, %v95
  %v1855 = vmul.f32 %v1839, %v96
  %v1856 = vmul.f32 %v1840, %v97
  %v1857 = vmul.f32 %v1841, %v98
  %v1858 = vmul.f32 %v1842, %v99
  %v1859 = vmul.f32 %v1843, %v100
  %v1860 = vmul.f32 %v1844, %v101
  %v1861 = vmul.f32 %v1845, %v102
  %v1862 = vmul.f32 %v1846, %v103
  %v1863 = vmul.f32 %v1847, %v104
  %v1864 = vmul.f32 %v1848, %v105
  %v1865 = vsel %vm157, %v1849, 0.0
  %v1866 = vsel %vm157, %v1850, 0.0
  %v1867 = vadd.f32 %v1865, %v1866
  %v1868 = vsel %vm157, %v1851, 0.0
  %v1869 = vadd.f32 %v1867, %v1868
  %v1870 = vsel %vm157, %v1852, 0.0
  %v1871 = vadd.f32 %v1869, %v1870
  %v1872 = vsel %vm157, %v1853, 0.0
  %v1873 = vadd.f32 %v1871, %v1872
  %v1874 = vsel %vm157, %v1854, 0.0
  %v1875 = vadd.f32 %v1873, %v1874
  %v1876 = vsel %vm157, %v1855, 0.0
  %v1877 = vadd.f32 %v1875, %v1876
  %v1878 = vsel %vm157, %v1856, 0.0
  %v1879 = vadd.f32 %v1877, %v1878
  %v1880 = vsel %vm157, %v1857, 0.0
  %v1881 = vadd.f32 %v1879, %v1880
  %v1882 = vsel %vm157, %v1858, 0.0
  %v1883 = vadd.f32 %v1881, %v1882
  %v1884 = vsel %vm157, %v1859, 0.0
  %v1885 = vadd.f32 %v1883, %v1884
  %v1886 = vsel %vm157, %v1860, 0.0
  %v1887 = vadd.f32 %v1885, %v1886
  %v1888 = vsel %vm157, %v1861, 0.0
  %v1889 = vadd.f32 %v1887, %v1888
  %v1890 = vsel %vm157, %v1862, 0.0
  %v1891 = vadd.f32 %v1889, %v1890
  %v1892 = vsel %vm157, %v1863, 0.0
  %v1893 = vadd.f32 %v1891, %v1892
  %v1894 = vsel %vm157, %v1864, 0.0
  %v1895 = vadd.f32 %v1893, %v1894
  %v1896 = vpack.c.bf16 %v1685, %v1685
  %v1897 = vpack.c.bf16 %v1895, %v1895
  %v1899 = vsel %vm157, %v1897, 0
  %1901 = vmatprep.subr.bf16.mxu0 0
  %1902 = vmatpush1.bf16.msra.mxu0 %v550
  %1903 = vmatprep.subr.bf16.mxu0 0
  %1904 = vmatpush1.bf16.msra.mxu0 %v551
  %1905 = vmatprep.subr.bf16.mxu0 0
  %1906 = vmatpush1.bf16.msra.mxu0 0
  %1907 = vmatprep.subr.bf16.mxu0 0
  %1908 = vmatpush1.bf16.msra.mxu0 0
  %1909 = vmatprep.subr.bf16.mxu0 0
  %1910 = vmatpush1.bf16.msra.mxu0 0
  %1911 = vmatprep.subr.bf16.mxu0 0
  %1912 = vmatpush1.bf16.msra.mxu0 0
  %1913 = vmatprep.subr.bf16.mxu0 0
  %1914 = vmatpush1.bf16.msra.mxu0 0
  %1915 = vmatprep.subr.bf16.mxu0 0
  %1916 = vmatpush1.bf16.msra.mxu0 0
  %1917 = vmatprep.subr.bf16.mxu0 0
  %1918 = vmatpush1.bf16.msra.mxu0 0
  %1919 = vmatprep.subr.bf16.mxu0 0
  %1920 = vmatpush1.bf16.msra.mxu0 0
  %1921 = vmatprep.subr.bf16.mxu0 0
  %1922 = vmatpush1.bf16.msra.mxu0 0
  %1923 = vmatprep.subr.bf16.mxu0 0
  %1924 = vmatpush1.bf16.msra.mxu0 0
  %1925 = vmatprep.subr.bf16.mxu0 0
  %1926 = vmatpush1.bf16.msra.mxu0 0
  %1927 = vmatprep.subr.bf16.mxu0 0
  %1928 = vmatpush1.bf16.msra.mxu0 0
  %1929 = vmatprep.subr.bf16.mxu0 0
  %1930 = vmatpush1.bf16.msra.mxu0 0
  %1931 = vmatprep.subr.bf16.mxu0 0
  %1932 = vmatpush1.bf16.msra.mxu0 0
  %1933 = vmatprep.mubr.bf16.mxu0 0
  %1934 = vmatmul.mubr.bf16.gmra.mrb[0].mxu0 %v1899
  %v1935 = vpop.f32.mrb[0].mxu0
  %v1936 = vadd.f32 0.0, %v1935
  %v1937 = vpop.f32.mrb[0].mxu0
  %v1938 = vpop.f32.mrb[0].mxu0
  %v1939 = vpop.f32.mrb[0].mxu0
  %1940 = vdwg.mxu0
  %1942 = vrot.lane.b32.xlu0 %v1896, 96
  %v1943 = vpop.permute.xlu0 %1942
  %v1945 = vsel %vm157, %v1943, 0
  %1947 = vmatprep.subr.bf16.mxu0 0
  %1948 = vmatpush1.bf16.msra.mxu0 %v608
  %1949 = vmatprep.subr.bf16.mxu0 0
  %1950 = vmatpush1.bf16.msra.mxu0 %v609
  %1951 = vmatprep.subr.bf16.mxu0 0
  %1952 = vmatpush1.bf16.msra.mxu0 0
  %1953 = vmatprep.subr.bf16.mxu0 0
  %1954 = vmatpush1.bf16.msra.mxu0 0
  %1955 = vmatprep.subr.bf16.mxu0 0
  %1956 = vmatpush1.bf16.msra.mxu0 0
  %1957 = vmatprep.subr.bf16.mxu0 0
  %1958 = vmatpush1.bf16.msra.mxu0 0
  %1959 = vmatprep.subr.bf16.mxu0 0
  %1960 = vmatpush1.bf16.msra.mxu0 0
  %1961 = vmatprep.subr.bf16.mxu0 0
  %1962 = vmatpush1.bf16.msra.mxu0 0
  %1963 = vmatprep.subr.bf16.mxu0 0
  %1964 = vmatpush1.bf16.msra.mxu0 0
  %1965 = vmatprep.subr.bf16.mxu0 0
  %1966 = vmatpush1.bf16.msra.mxu0 0
  %1967 = vmatprep.subr.bf16.mxu0 0
  %1968 = vmatpush1.bf16.msra.mxu0 0
  %1969 = vmatprep.subr.bf16.mxu0 0
  %1970 = vmatpush1.bf16.msra.mxu0 0
  %1971 = vmatprep.subr.bf16.mxu0 0
  %1972 = vmatpush1.bf16.msra.mxu0 0
  %1973 = vmatprep.subr.bf16.mxu0 0
  %1974 = vmatpush1.bf16.msra.mxu0 0
  %1975 = vmatprep.subr.bf16.mxu0 0
  %1976 = vmatpush1.bf16.msra.mxu0 0
  %1977 = vmatprep.subr.bf16.mxu0 0
  %1978 = vmatpush1.bf16.msra.mxu0 0
  %1979 = vmatprep.mubr.bf16.mxu0 0
  %1980 = vmatmul.mubr.bf16.gmra.mrb[0].mxu0 %v1945
  %v1981 = vpop.f32.mrb[0].mxu0
  %v1982 = vadd.f32 %v1936, %v1981
  %v1983 = vpop.f32.mrb[0].mxu0
  %v1984 = vpop.f32.mrb[0].mxu0
  %v1985 = vpop.f32.mrb[0].mxu0
  %1986 = vdwg.mxu0
  %v1987 = vadd.f32 %v1982, %v659
  %v1988 = vtanh.pop %v1987
  %v1989 = vpack.c.bf16 %v1988, %v1988
  %v1991 = vsel %vm157, %v1989, 0
  %1993 = vmatprep.subr.bf16.mxu0 0
  %1994 = vmatpush1.bf16.msra.mxu0 %v678
  %1995 = vmatprep.subr.bf16.mxu0 0
  %1996 = vmatpush1.bf16.msra.mxu0 %v679
  %1997 = vmatprep.subr.bf16.mxu0 0
  %1998 = vmatpush1.bf16.msra.mxu0 0
  %1999 = vmatprep.subr.bf16.mxu0 0
  %2000 = vmatpush1.bf16.msra.mxu0 0
  %2001 = vmatprep.subr.bf16.mxu0 0
  %2002 = vmatpush1.bf16.msra.mxu0 0
  %2003 = vmatprep.subr.bf16.mxu0 0
  %2004 = vmatpush1.bf16.msra.mxu0 0
  %2005 = vmatprep.subr.bf16.mxu0 0
  %2006 = vmatpush1.bf16.msra.mxu0 0
  %2007 = vmatprep.subr.bf16.mxu0 0
  %2008 = vmatpush1.bf16.msra.mxu0 0
  %2009 = vmatprep.subr.bf16.mxu0 0
  %2010 = vmatpush1.bf16.msra.mxu0 0
  %2011 = vmatprep.subr.bf16.mxu0 0
  %2012 = vmatpush1.bf16.msra.mxu0 0
  %2013 = vmatprep.subr.bf16.mxu0 0
  %2014 = vmatpush1.bf16.msra.mxu0 0
  %2015 = vmatprep.subr.bf16.mxu0 0
  %2016 = vmatpush1.bf16.msra.mxu0 0
  %2017 = vmatprep.subr.bf16.mxu0 0
  %2018 = vmatpush1.bf16.msra.mxu0 0
  %2019 = vmatprep.subr.bf16.mxu0 0
  %2020 = vmatpush1.bf16.msra.mxu0 0
  %2021 = vmatprep.subr.bf16.mxu0 0
  %2022 = vmatpush1.bf16.msra.mxu0 0
  %2023 = vmatprep.subr.bf16.mxu0 0
  %2024 = vmatpush1.bf16.msra.mxu0 0
  %2025 = vmatprep.mubr.bf16.mxu0 0
  %2026 = vmatmul.mubr.bf16.gmra.mrb[0].mxu0 %v1991
  %v2027 = vpop.f32.mrb[0].mxu0
  %v2028 = vadd.f32 %v668, %v2027
  %v2029 = vpop.f32.mrb[0].mxu0
  %v2030 = vpop.f32.mrb[0].mxu0
  %v2031 = vpop.f32.mrb[0].mxu0
  %2032 = vdwg.mxu0
  %v2033 = vsel %vm725, %v2028, -inf
  %2034 = vmax.xlane.f32.xlu0 %v2033
  %v2035 = vpop.xlane.xlu0 %2034
  %v2036 = vsub.f32 %v2028, %v2035
  %v2037 = vmul.f32 %v2036, 1.442695
  %v2038 = vpow.pop %v2037
  %v2039 = vsel %vm725, %v2038, 0.0
  %2040 = vadd.xlane.f32.xlu0 %v2039
  %v2041 = vpop.xlane.xlu0 %2040
  %v2042 = vlog2.pop %v2041
  %v2043 = vmul.f32 %v2042, 0.6931472
  %v2044 = vadd.f32 %v2043, %v2035
  %2045 = vset.pattern.permute.xlu0 3
  %2046 = vperm.xlu0 %2045, %v738
  %v2047 = vpop.permute.xlu0 %2046
  %vm2048 = vcmp.eq.s32.totalorder %v236, %v2047
  %v2049 = vsel %vm2048, %v2028, 0.0
  %v2050 = vsel %vm725, %v2049, 0.0
  %2051 = vadd.xlane.f32.xlu0 %v2050
  %v2052 = vpop.xlane.xlu0 %2051
  %v2053 = vsub.f32 %v2044, %v2052
  %v2054 = vmul.f32 %v2053, %v748
  %2055 = vmatprep.subr.bf16.mxu0 0
  %2056 = vmatpush1.bf16.msra.mxu0 %v253
  %2057 = vmatprep.subr.bf16.mxu0 0
  %2058 = vmatpush1.bf16.msra.mxu0 %v254
  %2059 = vmatprep.subr.bf16.mxu0 0
  %2060 = vmatpush1.bf16.msra.mxu0 0
  %2061 = vmatprep.subr.bf16.mxu0 0
  %2062 = vmatpush1.bf16.msra.mxu0 0
  %2063 = vmatprep.subr.bf16.mxu0 0
  %2064 = vmatpush1.bf16.msra.mxu0 0
  %2065 = vmatprep.subr.bf16.mxu0 0
  %2066 = vmatpush1.bf16.msra.mxu0 0
  %2067 = vmatprep.subr.bf16.mxu0 0
  %2068 = vmatpush1.bf16.msra.mxu0 0
  %2069 = vmatprep.subr.bf16.mxu0 0
  %2070 = vmatpush1.bf16.msra.mxu0 0
  %2071 = vmatprep.subr.bf16.mxu0 0
  %2072 = vmatpush1.bf16.msra.mxu0 0
  %2073 = vmatprep.subr.bf16.mxu0 0
  %2074 = vmatpush1.bf16.msra.mxu0 0
  %2075 = vmatprep.subr.bf16.mxu0 0
  %2076 = vmatpush1.bf16.msra.mxu0 0
  %2077 = vmatprep.subr.bf16.mxu0 0
  %2078 = vmatpush1.bf16.msra.mxu0 0
  %2079 = vmatprep.subr.bf16.mxu0 0
  %2080 = vmatpush1.bf16.msra.mxu0 0
  %2081 = vmatprep.subr.bf16.mxu0 0
  %2082 = vmatpush1.bf16.msra.mxu0 0
  %2083 = vmatprep.subr.bf16.mxu0 0
  %2084 = vmatpush1.bf16.msra.mxu0 0
  %2085 = vmatprep.subr.bf16.mxu0 0
  %2086 = vmatpush1.bf16.msra.mxu0 0
  %2087 = vmatprep.mubr.bf16.mxu0 0
  %2088 = vmatmul.mubr.bf16.gmra.mrb[0].mxu0 %v1945
  %v2089 = vpop.f32.mrb[0].mxu0
  %v2090 = vadd.f32 %v243, %v2089
  %v2091 = vpop.f32.mrb[0].mxu0
  %v2092 = vpop.f32.mrb[0].mxu0
  %v2093 = vpop.f32.mrb[0].mxu0
  %2094 = vdwg.mxu0
  %v2095 = vadd.f32 %v221, %v2090
  %v2096 = vxor.u32 %v2095, 2147483648
  %v2097 = vmul.f32 %v2096, 1.442695
  %v2098 = vpow.pop %v2097
  %v2099 = vadd.f32 %v2098, 1.0
  %v2100 = vrcp.pop %v2099
  %v2101 = vmul.f32 1.0, %v2100
  %2103 = vrot.lane.b32.xlu0 %v2090, 64
  %v2104 = vpop.permute.xlu0 %2103
  %v2106 = vmul.f32 %v2101, %v2104
  %2108 = vrot.lane.b32.xlu0 %v2106, 64
  %v2109 = vpop.permute.xlu0 %2108
  %v2111 = vadd.f32 %v221, %v2109
  %v2112 = vtanh.pop %v2111
  %v2113 = vsub.f32 1.0, %v2101
  %2115 = vrot.lane.b32.xlu0 %v2112, 96
  %v2116 = vpop.permute.xlu0 %2115
  %v2118 = vmul.f32 %v2113, %v2116
  %v2119 = vmul.f32 %v2101, %v1685
  %v2120 = vadd.f32 %v2118, %v2119
  %2122 = vrot.lane.b32.xlu0 %v2120, 96
  %v2123 = vpop.permute.xlu0 %2122
  %v2125 = vmul.f32 %v90, %v2123
  %v2126 = vmul.f32 %v91, %v2123
  %v2127 = vmul.f32 %v92, %v2123
  %v2128 = vmul.f32 %v93, %v2123
  %v2129 = vmul.f32 %v94, %v2123
  %v2130 = vmul.f32 %v95, %v2123
  %v2131 = vmul.f32 %v96, %v2123
  %v2132 = vmul.f32 %v97, %v2123
  %v2133 = vmul.f32 %v98, %v2123
  %v2134 = vmul.f32 %v99, %v2123
  %v2135 = vmul.f32 %v100, %v2123
  %v2136 = vmul.f32 %v101, %v2123
  %v2137 = vmul.f32 %v102, %v2123
  %v2138 = vmul.f32 %v103, %v2123
  %v2139 = vmul.f32 %v104, %v2123
  %v2140 = vmul.f32 %v105, %v2123
  %v2141 = vsel %vm157, %v2125, 0.0
  %2142 = vadd.xlane.f32.xlu0 %v2141
  %v2143 = vpop.xlane.xlu0 %2142
  %v2144 = vsel %vm157, %v2126, 0.0
  %2145 = vadd.xlane.f32.xlu0 %v2144
  %v2146 = vpop.xlane.xlu0 %2145
  %v2147 = vsel %vm157, %v2127, 0.0
  %2148 = vadd.xlane.f32.xlu0 %v2147
  %v2149 = vpop.xlane.xlu0 %2148
  %v2150 = vsel %vm157, %v2128, 0.0
  %2151 = vadd.xlane.f32.xlu0 %v2150
  %v2152 = vpop.xlane.xlu0 %2151
  %v2153 = vsel %vm157, %v2129, 0.0
  %2154 = vadd.xlane.f32.xlu0 %v2153
  %v2155 = vpop.xlane.xlu0 %2154
  %v2156 = vsel %vm157, %v2130, 0.0
  %2157 = vadd.xlane.f32.xlu0 %v2156
  %v2158 = vpop.xlane.xlu0 %2157
  %v2159 = vsel %vm157, %v2131, 0.0
  %2160 = vadd.xlane.f32.xlu0 %v2159
  %v2161 = vpop.xlane.xlu0 %2160
  %v2162 = vsel %vm157, %v2132, 0.0
  %2163 = vadd.xlane.f32.xlu0 %v2162
  %v2164 = vpop.xlane.xlu0 %2163
  %v2165 = vsel %vm157, %v2133, 0.0
  %2166 = vadd.xlane.f32.xlu0 %v2165
  %v2167 = vpop.xlane.xlu0 %2166
  %v2168 = vsel %vm157, %v2134, 0.0
  %2169 = vadd.xlane.f32.xlu0 %v2168
  %v2170 = vpop.xlane.xlu0 %2169
  %v2171 = vsel %vm157, %v2135, 0.0
  %2172 = vadd.xlane.f32.xlu0 %v2171
  %v2173 = vpop.xlane.xlu0 %2172
  %v2174 = vsel %vm157, %v2136, 0.0
  %2175 = vadd.xlane.f32.xlu0 %v2174
  %v2176 = vpop.xlane.xlu0 %2175
  %v2177 = vsel %vm157, %v2137, 0.0
  %2178 = vadd.xlane.f32.xlu0 %v2177
  %v2179 = vpop.xlane.xlu0 %2178
  %v2180 = vsel %vm157, %v2138, 0.0
  %2181 = vadd.xlane.f32.xlu0 %v2180
  %v2182 = vpop.xlane.xlu0 %2181
  %v2183 = vsel %vm157, %v2139, 0.0
  %2184 = vadd.xlane.f32.xlu0 %v2183
  %v2185 = vpop.xlane.xlu0 %2184
  %v2186 = vsel %vm157, %v2140, 0.0
  %2187 = vadd.xlane.f32.xlu0 %v2186
  %v2188 = vpop.xlane.xlu0 %2187
  %v2189 = vmax.f32 %v2143, %v2155
  %v2190 = vmax.f32 %v2146, %v2158
  %v2191 = vmax.f32 %v2149, %v2161
  %v2192 = vmax.f32 %v2152, %v2164
  %v2193 = vmax.f32 %v2189, %v2167
  %v2194 = vmax.f32 %v2190, %v2170
  %v2195 = vmax.f32 %v2191, %v2173
  %v2196 = vmax.f32 %v2192, %v2176
  %v2197 = vmax.f32 %v2193, %v2179
  %v2198 = vmax.f32 %v2194, %v2182
  %v2199 = vmax.f32 %v2195, %v2185
  %v2200 = vmax.f32 %v2196, %v2188
  %v2201 = vmax.f32 %v2197, %v2198
  %v2202 = vmax.f32 %v2199, %v2200
  %v2203 = vmax.f32 %v2201, %v2202
  %v2204 = vsub.f32 %v2143, %v2203
  %v2205 = vsub.f32 %v2146, %v2203
  %v2206 = vsub.f32 %v2149, %v2203
  %v2207 = vsub.f32 %v2152, %v2203
  %v2208 = vsub.f32 %v2155, %v2203
  %v2209 = vsub.f32 %v2158, %v2203
  %v2210 = vsub.f32 %v2161, %v2203
  %v2211 = vsub.f32 %v2164, %v2203
  %v2212 = vsub.f32 %v2167, %v2203
  %v2213 = vsub.f32 %v2170, %v2203
  %v2214 = vsub.f32 %v2173, %v2203
  %v2215 = vsub.f32 %v2176, %v2203
  %v2216 = vsub.f32 %v2179, %v2203
  %v2217 = vsub.f32 %v2182, %v2203
  %v2218 = vsub.f32 %v2185, %v2203
  %v2219 = vsub.f32 %v2188, %v2203
  %v2220 = vmul.f32 %v2204, 1.442695
  %v2221 = vpow.pop %v2220
  %v2222 = vmul.f32 %v2205, 1.442695
  %v2223 = vpow.pop %v2222
  %v2224 = vmul.f32 %v2206, 1.442695
  %v2225 = vpow.pop %v2224
  %v2226 = vmul.f32 %v2207, 1.442695
  %v2227 = vpow.pop %v2226
  %v2228 = vmul.f32 %v2208, 1.442695
  %v2229 = vpow.pop %v2228
  %v2230 = vmul.f32 %v2209, 1.442695
  %v2231 = vpow.pop %v2230
  %v2232 = vmul.f32 %v2210, 1.442695
  %v2233 = vpow.pop %v2232
  %v2234 = vmul.f32 %v2211, 1.442695
  %v2235 = vpow.pop %v2234
  %v2236 = vmul.f32 %v2212, 1.442695
  %v2237 = vpow.pop %v2236
  %v2238 = vmul.f32 %v2213, 1.442695
  %v2239 = vpow.pop %v2238
  %v2240 = vmul.f32 %v2214, 1.442695
  %v2241 = vpow.pop %v2240
  %v2242 = vmul.f32 %v2215, 1.442695
  %v2243 = vpow.pop %v2242
  %v2244 = vmul.f32 %v2216, 1.442695
  %v2245 = vpow.pop %v2244
  %v2246 = vmul.f32 %v2217, 1.442695
  %v2247 = vpow.pop %v2246
  %v2248 = vmul.f32 %v2218, 1.442695
  %v2249 = vpow.pop %v2248
  %v2250 = vmul.f32 %v2219, 1.442695
  %v2251 = vpow.pop %v2250
  %v2252 = vadd.f32 %v2221, %v2223
  %v2253 = vadd.f32 %v2252, %v2225
  %v2254 = vadd.f32 %v2253, %v2227
  %v2255 = vadd.f32 %v2254, %v2229
  %v2256 = vadd.f32 %v2255, %v2231
  %v2257 = vadd.f32 %v2256, %v2233
  %v2258 = vadd.f32 %v2257, %v2235
  %v2259 = vadd.f32 %v2258, %v2237
  %v2260 = vadd.f32 %v2259, %v2239
  %v2261 = vadd.f32 %v2260, %v2241
  %v2262 = vadd.f32 %v2261, %v2243
  %v2263 = vadd.f32 %v2262, %v2245
  %v2264 = vadd.f32 %v2263, %v2247
  %v2265 = vadd.f32 %v2264, %v2249
  %v2266 = vadd.f32 %v2265, %v2251
  %v2267 = vrcp.pop %v2266
  %v2268 = vmul.f32 %v2221, %v2267
  %v2269 = vmul.f32 %v2223, %v2267
  %v2270 = vmul.f32 %v2225, %v2267
  %v2271 = vmul.f32 %v2227, %v2267
  %v2272 = vmul.f32 %v2229, %v2267
  %v2273 = vmul.f32 %v2231, %v2267
  %v2274 = vmul.f32 %v2233, %v2267
  %v2275 = vmul.f32 %v2235, %v2267
  %v2276 = vmul.f32 %v2237, %v2267
  %v2277 = vmul.f32 %v2239, %v2267
  %v2278 = vmul.f32 %v2241, %v2267
  %v2279 = vmul.f32 %v2243, %v2267
  %v2280 = vmul.f32 %v2245, %v2267
  %v2281 = vmul.f32 %v2247, %v2267
  %v2282 = vmul.f32 %v2249, %v2267
  %v2283 = vmul.f32 %v2251, %v2267
  %v2284 = vmul.f32 %v2268, %v90
  %v2285 = vmul.f32 %v2269, %v91
  %v2286 = vmul.f32 %v2270, %v92
  %v2287 = vmul.f32 %v2271, %v93
  %v2288 = vmul.f32 %v2272, %v94
  %v2289 = vmul.f32 %v2273, %v95
  %v2290 = vmul.f32 %v2274, %v96
  %v2291 = vmul.f32 %v2275, %v97
  %v2292 = vmul.f32 %v2276, %v98
  %v2293 = vmul.f32 %v2277, %v99
  %v2294 = vmul.f32 %v2278, %v100
  %v2295 = vmul.f32 %v2279, %v101
  %v2296 = vmul.f32 %v2280, %v102
  %v2297 = vmul.f32 %v2281, %v103
  %v2298 = vmul.f32 %v2282, %v104
  %v2299 = vmul.f32 %v2283, %v105
  %v2300 = vsel %vm157, %v2284, 0.0
  %v2301 = vsel %vm157, %v2285, 0.0
  %v2302 = vadd.f32 %v2300, %v2301
  %v2303 = vsel %vm157, %v2286, 0.0
  %v2304 = vadd.f32 %v2302, %v2303
  %v2305 = vsel %vm157, %v2287, 0.0
  %v2306 = vadd.f32 %v2304, %v2305
  %v2307 = vsel %vm157, %v2288, 0.0
  %v2308 = vadd.f32 %v2306, %v2307
  %v2309 = vsel %vm157, %v2289, 0.0
  %v2310 = vadd.f32 %v2308, %v2309
  %v2311 = vsel %vm157, %v2290, 0.0
  %v2312 = vadd.f32 %v2310, %v2311
  %v2313 = vsel %vm157, %v2291, 0.0
  %v2314 = vadd.f32 %v2312, %v2313
  %v2315 = vsel %vm157, %v2292, 0.0
  %v2316 = vadd.f32 %v2314, %v2315
  %v2317 = vsel %vm157, %v2293, 0.0
  %v2318 = vadd.f32 %v2316, %v2317
  %v2319 = vsel %vm157, %v2294, 0.0
  %v2320 = vadd.f32 %v2318, %v2319
  %v2321 = vsel %vm157, %v2295, 0.0
  %v2322 = vadd.f32 %v2320, %v2321
  %v2323 = vsel %vm157, %v2296, 0.0
  %v2324 = vadd.f32 %v2322, %v2323
  %v2325 = vsel %vm157, %v2297, 0.0
  %v2326 = vadd.f32 %v2324, %v2325
  %v2327 = vsel %vm157, %v2298, 0.0
  %v2328 = vadd.f32 %v2326, %v2327
  %v2329 = vsel %vm157, %v2299, 0.0
  %v2330 = vadd.f32 %v2328, %v2329
  %v2331 = vpack.c.bf16 %v2120, %v2120
  %v2332 = vpack.c.bf16 %v2330, %v2330
  %v2334 = vsel %vm157, %v2332, 0
  %2336 = vmatprep.subr.bf16.mxu0 0
  %2337 = vmatpush1.bf16.msra.mxu0 %v550
  %2338 = vmatprep.subr.bf16.mxu0 0
  %2339 = vmatpush1.bf16.msra.mxu0 %v551
  %2340 = vmatprep.subr.bf16.mxu0 0
  %2341 = vmatpush1.bf16.msra.mxu0 0
  %2342 = vmatprep.subr.bf16.mxu0 0
  %2343 = vmatpush1.bf16.msra.mxu0 0
  %2344 = vmatprep.subr.bf16.mxu0 0
  %2345 = vmatpush1.bf16.msra.mxu0 0
  %2346 = vmatprep.subr.bf16.mxu0 0
  %2347 = vmatpush1.bf16.msra.mxu0 0
  %2348 = vmatprep.subr.bf16.mxu0 0
  %2349 = vmatpush1.bf16.msra.mxu0 0
  %2350 = vmatprep.subr.bf16.mxu0 0
  %2351 = vmatpush1.bf16.msra.mxu0 0
  %2352 = vmatprep.subr.bf16.mxu0 0
  %2353 = vmatpush1.bf16.msra.mxu0 0
  %2354 = vmatprep.subr.bf16.mxu0 0
  %2355 = vmatpush1.bf16.msra.mxu0 0
  %2356 = vmatprep.subr.bf16.mxu0 0
  %2357 = vmatpush1.bf16.msra.mxu0 0
  %2358 = vmatprep.subr.bf16.mxu0 0
  %2359 = vmatpush1.bf16.msra.mxu0 0
  %2360 = vmatprep.subr.bf16.mxu0 0
  %2361 = vmatpush1.bf16.msra.mxu0 0
  %2362 = vmatprep.subr.bf16.mxu0 0
  %2363 = vmatpush1.bf16.msra.mxu0 0
  %2364 = vmatprep.subr.bf16.mxu0 0
  %2365 = vmatpush1.bf16.msra.mxu0 0
  %2366 = vmatprep.subr.bf16.mxu0 0
  %2367 = vmatpush1.bf16.msra.mxu0 0
  %2368 = vmatprep.mubr.bf16.mxu0 0
  %2369 = vmatmul.mubr.bf16.gmra.mrb[0].mxu0 %v2334
  %v2370 = vpop.f32.mrb[0].mxu0
  %v2371 = vadd.f32 0.0, %v2370
  %v2372 = vpop.f32.mrb[0].mxu0
  %v2373 = vpop.f32.mrb[0].mxu0
  %v2374 = vpop.f32.mrb[0].mxu0
  %2375 = vdwg.mxu0
  %2377 = vrot.lane.b32.xlu0 %v2331, 96
  %v2378 = vpop.permute.xlu0 %2377
  %v2380 = vsel %vm157, %v2378, 0
  %2382 = vmatprep.subr.bf16.mxu0 0
  %2383 = vmatpush1.bf16.msra.mxu0 %v608
  %2384 = vmatprep.subr.bf16.mxu0 0
  %2385 = vmatpush1.bf16.msra.mxu0 %v609
  %2386 = vmatprep.subr.bf16.mxu0 0
  %2387 = vmatpush1.bf16.msra.mxu0 0
  %2388 = vmatprep.subr.bf16.mxu0 0
  %2389 = vmatpush1.bf16.msra.mxu0 0
  %2390 = vmatprep.subr.bf16.mxu0 0
  %2391 = vmatpush1.bf16.msra.mxu0 0
  %2392 = vmatprep.subr.bf16.mxu0 0
  %2393 = vmatpush1.bf16.msra.mxu0 0
  %2394 = vmatprep.subr.bf16.mxu0 0
  %2395 = vmatpush1.bf16.msra.mxu0 0
  %2396 = vmatprep.subr.bf16.mxu0 0
  %2397 = vmatpush1.bf16.msra.mxu0 0
  %2398 = vmatprep.subr.bf16.mxu0 0
  %2399 = vmatpush1.bf16.msra.mxu0 0
  %2400 = vmatprep.subr.bf16.mxu0 0
  %2401 = vmatpush1.bf16.msra.mxu0 0
  %2402 = vmatprep.subr.bf16.mxu0 0
  %2403 = vmatpush1.bf16.msra.mxu0 0
  %2404 = vmatprep.subr.bf16.mxu0 0
  %2405 = vmatpush1.bf16.msra.mxu0 0
  %2406 = vmatprep.subr.bf16.mxu0 0
  %2407 = vmatpush1.bf16.msra.mxu0 0
  %2408 = vmatprep.subr.bf16.mxu0 0
  %2409 = vmatpush1.bf16.msra.mxu0 0
  %2410 = vmatprep.subr.bf16.mxu0 0
  %2411 = vmatpush1.bf16.msra.mxu0 0
  %2412 = vmatprep.subr.bf16.mxu0 0
  %2413 = vmatpush1.bf16.msra.mxu0 0
  %2414 = vmatprep.mubr.bf16.mxu0 0
  %2415 = vmatmul.mubr.bf16.gmra.mrb[0].mxu0 %v2380
  %v2416 = vpop.f32.mrb[0].mxu0
  %v2417 = vadd.f32 %v2371, %v2416
  %v2418 = vpop.f32.mrb[0].mxu0
  %v2419 = vpop.f32.mrb[0].mxu0
  %v2420 = vpop.f32.mrb[0].mxu0
  %2421 = vdwg.mxu0
  %v2422 = vadd.f32 %v2417, %v659
  %v2423 = vtanh.pop %v2422
  %v2424 = vpack.c.bf16 %v2423, %v2423
  %v2426 = vsel %vm157, %v2424, 0
  %2428 = vmatprep.subr.bf16.mxu0 0
  %2429 = vmatpush1.bf16.msra.mxu0 %v678
  %2430 = vmatprep.subr.bf16.mxu0 0
  %2431 = vmatpush1.bf16.msra.mxu0 %v679
  %2432 = vmatprep.subr.bf16.mxu0 0
  %2433 = vmatpush1.bf16.msra.mxu0 0
  %2434 = vmatprep.subr.bf16.mxu0 0
  %2435 = vmatpush1.bf16.msra.mxu0 0
  %2436 = vmatprep.subr.bf16.mxu0 0
  %2437 = vmatpush1.bf16.msra.mxu0 0
  %2438 = vmatprep.subr.bf16.mxu0 0
  %2439 = vmatpush1.bf16.msra.mxu0 0
  %2440 = vmatprep.subr.bf16.mxu0 0
  %2441 = vmatpush1.bf16.msra.mxu0 0
  %2442 = vmatprep.subr.bf16.mxu0 0
  %2443 = vmatpush1.bf16.msra.mxu0 0
  %2444 = vmatprep.subr.bf16.mxu0 0
  %2445 = vmatpush1.bf16.msra.mxu0 0
  %2446 = vmatprep.subr.bf16.mxu0 0
  %2447 = vmatpush1.bf16.msra.mxu0 0
  %2448 = vmatprep.subr.bf16.mxu0 0
  %2449 = vmatpush1.bf16.msra.mxu0 0
  %2450 = vmatprep.subr.bf16.mxu0 0
  %2451 = vmatpush1.bf16.msra.mxu0 0
  %2452 = vmatprep.subr.bf16.mxu0 0
  %2453 = vmatpush1.bf16.msra.mxu0 0
  %2454 = vmatprep.subr.bf16.mxu0 0
  %2455 = vmatpush1.bf16.msra.mxu0 0
  %2456 = vmatprep.subr.bf16.mxu0 0
  %2457 = vmatpush1.bf16.msra.mxu0 0
  %2458 = vmatprep.subr.bf16.mxu0 0
  %2459 = vmatpush1.bf16.msra.mxu0 0
  %2460 = vmatprep.mubr.bf16.mxu0 0
  %2461 = vmatmul.mubr.bf16.gmra.mrb[0].mxu0 %v2426
  %v2462 = vpop.f32.mrb[0].mxu0
  %v2463 = vadd.f32 %v668, %v2462
  %v2464 = vpop.f32.mrb[0].mxu0
  %v2465 = vpop.f32.mrb[0].mxu0
  %v2466 = vpop.f32.mrb[0].mxu0
  %2467 = vdwg.mxu0
  %v2468 = vsel %vm725, %v2463, -inf
  %2469 = vmax.xlane.f32.xlu0 %v2468
  %v2470 = vpop.xlane.xlu0 %2469
  %v2471 = vsub.f32 %v2463, %v2470
  %v2472 = vmul.f32 %v2471, 1.442695
  %v2473 = vpow.pop %v2472
  %v2474 = vsel %vm725, %v2473, 0.0
  %2475 = vadd.xlane.f32.xlu0 %v2474
  %v2476 = vpop.xlane.xlu0 %2475
  %v2477 = vlog2.pop %v2476
  %v2478 = vmul.f32 %v2477, 0.6931472
  %v2479 = vadd.f32 %v2478, %v2470
  %2480 = vset.pattern.permute.xlu0 4
  %2481 = vperm.xlu0 %2480, %v738
  %v2482 = vpop.permute.xlu0 %2481
  %vm2483 = vcmp.eq.s32.totalorder %v236, %v2482
  %v2484 = vsel %vm2483, %v2463, 0.0
  %v2485 = vsel %vm725, %v2484, 0.0
  %2486 = vadd.xlane.f32.xlu0 %v2485
  %v2487 = vpop.xlane.xlu0 %2486
  %v2488 = vsub.f32 %v2479, %v2487
  %v2489 = vmul.f32 %v2488, %v748
  %2490 = vmatprep.subr.bf16.mxu0 0
  %2491 = vmatpush1.bf16.msra.mxu0 %v253
  %2492 = vmatprep.subr.bf16.mxu0 0
  %2493 = vmatpush1.bf16.msra.mxu0 %v254
  %2494 = vmatprep.subr.bf16.mxu0 0
  %2495 = vmatpush1.bf16.msra.mxu0 0
  %2496 = vmatprep.subr.bf16.mxu0 0
  %2497 = vmatpush1.bf16.msra.mxu0 0
  %2498 = vmatprep.subr.bf16.mxu0 0
  %2499 = vmatpush1.bf16.msra.mxu0 0
  %2500 = vmatprep.subr.bf16.mxu0 0
  %2501 = vmatpush1.bf16.msra.mxu0 0
  %2502 = vmatprep.subr.bf16.mxu0 0
  %2503 = vmatpush1.bf16.msra.mxu0 0
  %2504 = vmatprep.subr.bf16.mxu0 0
  %2505 = vmatpush1.bf16.msra.mxu0 0
  %2506 = vmatprep.subr.bf16.mxu0 0
  %2507 = vmatpush1.bf16.msra.mxu0 0
  %2508 = vmatprep.subr.bf16.mxu0 0
  %2509 = vmatpush1.bf16.msra.mxu0 0
  %2510 = vmatprep.subr.bf16.mxu0 0
  %2511 = vmatpush1.bf16.msra.mxu0 0
  %2512 = vmatprep.subr.bf16.mxu0 0
  %2513 = vmatpush1.bf16.msra.mxu0 0
  %2514 = vmatprep.subr.bf16.mxu0 0
  %2515 = vmatpush1.bf16.msra.mxu0 0
  %2516 = vmatprep.subr.bf16.mxu0 0
  %2517 = vmatpush1.bf16.msra.mxu0 0
  %2518 = vmatprep.subr.bf16.mxu0 0
  %2519 = vmatpush1.bf16.msra.mxu0 0
  %2520 = vmatprep.subr.bf16.mxu0 0
  %2521 = vmatpush1.bf16.msra.mxu0 0
  %2522 = vmatprep.mubr.bf16.mxu0 0
  %2523 = vmatmul.mubr.bf16.gmra.mrb[0].mxu0 %v2380
  %v2524 = vpop.f32.mrb[0].mxu0
  %v2525 = vadd.f32 %v243, %v2524
  %v2526 = vpop.f32.mrb[0].mxu0
  %v2527 = vpop.f32.mrb[0].mxu0
  %v2528 = vpop.f32.mrb[0].mxu0
  %2529 = vdwg.mxu0
  %v2530 = vadd.f32 %v224, %v2525
  %v2531 = vxor.u32 %v2530, 2147483648
  %v2532 = vmul.f32 %v2531, 1.442695
  %v2533 = vpow.pop %v2532
  %v2534 = vadd.f32 %v2533, 1.0
  %v2535 = vrcp.pop %v2534
  %v2536 = vmul.f32 1.0, %v2535
  %2538 = vrot.lane.b32.xlu0 %v2525, 64
  %v2539 = vpop.permute.xlu0 %2538
  %v2541 = vmul.f32 %v2536, %v2539
  %2543 = vrot.lane.b32.xlu0 %v2541, 64
  %v2544 = vpop.permute.xlu0 %2543
  %v2546 = vadd.f32 %v224, %v2544
  %v2547 = vtanh.pop %v2546
  %v2548 = vsub.f32 1.0, %v2536
  %2550 = vrot.lane.b32.xlu0 %v2547, 96
  %v2551 = vpop.permute.xlu0 %2550
  %v2553 = vmul.f32 %v2548, %v2551
  %v2554 = vmul.f32 %v2536, %v2120
  %v2555 = vadd.f32 %v2553, %v2554
  %2557 = vrot.lane.b32.xlu0 %v2555, 96
  %v2558 = vpop.permute.xlu0 %2557
  %v2560 = vmul.f32 %v90, %v2558
  %v2561 = vmul.f32 %v91, %v2558
  %v2562 = vmul.f32 %v92, %v2558
  %v2563 = vmul.f32 %v93, %v2558
  %v2564 = vmul.f32 %v94, %v2558
  %v2565 = vmul.f32 %v95, %v2558
  %v2566 = vmul.f32 %v96, %v2558
  %v2567 = vmul.f32 %v97, %v2558
  %v2568 = vmul.f32 %v98, %v2558
  %v2569 = vmul.f32 %v99, %v2558
  %v2570 = vmul.f32 %v100, %v2558
  %v2571 = vmul.f32 %v101, %v2558
  %v2572 = vmul.f32 %v102, %v2558
  %v2573 = vmul.f32 %v103, %v2558
  %v2574 = vmul.f32 %v104, %v2558
  %v2575 = vmul.f32 %v105, %v2558
  %v2576 = vsel %vm157, %v2560, 0.0
  %2577 = vadd.xlane.f32.xlu0 %v2576
  %v2578 = vpop.xlane.xlu0 %2577
  %v2579 = vsel %vm157, %v2561, 0.0
  %2580 = vadd.xlane.f32.xlu0 %v2579
  %v2581 = vpop.xlane.xlu0 %2580
  %v2582 = vsel %vm157, %v2562, 0.0
  %2583 = vadd.xlane.f32.xlu0 %v2582
  %v2584 = vpop.xlane.xlu0 %2583
  %v2585 = vsel %vm157, %v2563, 0.0
  %2586 = vadd.xlane.f32.xlu0 %v2585
  %v2587 = vpop.xlane.xlu0 %2586
  %v2588 = vsel %vm157, %v2564, 0.0
  %2589 = vadd.xlane.f32.xlu0 %v2588
  %v2590 = vpop.xlane.xlu0 %2589
  %v2591 = vsel %vm157, %v2565, 0.0
  %2592 = vadd.xlane.f32.xlu0 %v2591
  %v2593 = vpop.xlane.xlu0 %2592
  %v2594 = vsel %vm157, %v2566, 0.0
  %2595 = vadd.xlane.f32.xlu0 %v2594
  %v2596 = vpop.xlane.xlu0 %2595
  %v2597 = vsel %vm157, %v2567, 0.0
  %2598 = vadd.xlane.f32.xlu0 %v2597
  %v2599 = vpop.xlane.xlu0 %2598
  %v2600 = vsel %vm157, %v2568, 0.0
  %2601 = vadd.xlane.f32.xlu0 %v2600
  %v2602 = vpop.xlane.xlu0 %2601
  %v2603 = vsel %vm157, %v2569, 0.0
  %2604 = vadd.xlane.f32.xlu0 %v2603
  %v2605 = vpop.xlane.xlu0 %2604
  %v2606 = vsel %vm157, %v2570, 0.0
  %2607 = vadd.xlane.f32.xlu0 %v2606
  %v2608 = vpop.xlane.xlu0 %2607
  %v2609 = vsel %vm157, %v2571, 0.0
  %2610 = vadd.xlane.f32.xlu0 %v2609
  %v2611 = vpop.xlane.xlu0 %2610
  %v2612 = vsel %vm157, %v2572, 0.0
  %2613 = vadd.xlane.f32.xlu0 %v2612
  %v2614 = vpop.xlane.xlu0 %2613
  %v2615 = vsel %vm157, %v2573, 0.0
  %2616 = vadd.xlane.f32.xlu0 %v2615
  %v2617 = vpop.xlane.xlu0 %2616
  %v2618 = vsel %vm157, %v2574, 0.0
  %2619 = vadd.xlane.f32.xlu0 %v2618
  %v2620 = vpop.xlane.xlu0 %2619
  %v2621 = vsel %vm157, %v2575, 0.0
  %2622 = vadd.xlane.f32.xlu0 %v2621
  %v2623 = vpop.xlane.xlu0 %2622
  %v2624 = vmax.f32 %v2578, %v2590
  %v2625 = vmax.f32 %v2581, %v2593
  %v2626 = vmax.f32 %v2584, %v2596
  %v2627 = vmax.f32 %v2587, %v2599
  %v2628 = vmax.f32 %v2624, %v2602
  %v2629 = vmax.f32 %v2625, %v2605
  %v2630 = vmax.f32 %v2626, %v2608
  %v2631 = vmax.f32 %v2627, %v2611
  %v2632 = vmax.f32 %v2628, %v2614
  %v2633 = vmax.f32 %v2629, %v2617
  %v2634 = vmax.f32 %v2630, %v2620
  %v2635 = vmax.f32 %v2631, %v2623
  %v2636 = vmax.f32 %v2632, %v2633
  %v2637 = vmax.f32 %v2634, %v2635
  %v2638 = vmax.f32 %v2636, %v2637
  %v2639 = vsub.f32 %v2578, %v2638
  %v2640 = vsub.f32 %v2581, %v2638
  %v2641 = vsub.f32 %v2584, %v2638
  %v2642 = vsub.f32 %v2587, %v2638
  %v2643 = vsub.f32 %v2590, %v2638
  %v2644 = vsub.f32 %v2593, %v2638
  %v2645 = vsub.f32 %v2596, %v2638
  %v2646 = vsub.f32 %v2599, %v2638
  %v2647 = vsub.f32 %v2602, %v2638
  %v2648 = vsub.f32 %v2605, %v2638
  %v2649 = vsub.f32 %v2608, %v2638
  %v2650 = vsub.f32 %v2611, %v2638
  %v2651 = vsub.f32 %v2614, %v2638
  %v2652 = vsub.f32 %v2617, %v2638
  %v2653 = vsub.f32 %v2620, %v2638
  %v2654 = vsub.f32 %v2623, %v2638
  %v2655 = vmul.f32 %v2639, 1.442695
  %v2656 = vpow.pop %v2655
  %v2657 = vmul.f32 %v2640, 1.442695
  %v2658 = vpow.pop %v2657
  %v2659 = vmul.f32 %v2641, 1.442695
  %v2660 = vpow.pop %v2659
  %v2661 = vmul.f32 %v2642, 1.442695
  %v2662 = vpow.pop %v2661
  %v2663 = vmul.f32 %v2643, 1.442695
  %v2664 = vpow.pop %v2663
  %v2665 = vmul.f32 %v2644, 1.442695
  %v2666 = vpow.pop %v2665
  %v2667 = vmul.f32 %v2645, 1.442695
  %v2668 = vpow.pop %v2667
  %v2669 = vmul.f32 %v2646, 1.442695
  %v2670 = vpow.pop %v2669
  %v2671 = vmul.f32 %v2647, 1.442695
  %v2672 = vpow.pop %v2671
  %v2673 = vmul.f32 %v2648, 1.442695
  %v2674 = vpow.pop %v2673
  %v2675 = vmul.f32 %v2649, 1.442695
  %v2676 = vpow.pop %v2675
  %v2677 = vmul.f32 %v2650, 1.442695
  %v2678 = vpow.pop %v2677
  %v2679 = vmul.f32 %v2651, 1.442695
  %v2680 = vpow.pop %v2679
  %v2681 = vmul.f32 %v2652, 1.442695
  %v2682 = vpow.pop %v2681
  %v2683 = vmul.f32 %v2653, 1.442695
  %v2684 = vpow.pop %v2683
  %v2685 = vmul.f32 %v2654, 1.442695
  %v2686 = vpow.pop %v2685
  %v2687 = vadd.f32 %v2656, %v2658
  %v2688 = vadd.f32 %v2687, %v2660
  %v2689 = vadd.f32 %v2688, %v2662
  %v2690 = vadd.f32 %v2689, %v2664
  %v2691 = vadd.f32 %v2690, %v2666
  %v2692 = vadd.f32 %v2691, %v2668
  %v2693 = vadd.f32 %v2692, %v2670
  %v2694 = vadd.f32 %v2693, %v2672
  %v2695 = vadd.f32 %v2694, %v2674
  %v2696 = vadd.f32 %v2695, %v2676
  %v2697 = vadd.f32 %v2696, %v2678
  %v2698 = vadd.f32 %v2697, %v2680
  %v2699 = vadd.f32 %v2698, %v2682
  %v2700 = vadd.f32 %v2699, %v2684
  %v2701 = vadd.f32 %v2700, %v2686
  %v2702 = vrcp.pop %v2701
  %v2703 = vmul.f32 %v2656, %v2702
  %v2704 = vmul.f32 %v2658, %v2702
  %v2705 = vmul.f32 %v2660, %v2702
  %v2706 = vmul.f32 %v2662, %v2702
  %v2707 = vmul.f32 %v2664, %v2702
  %v2708 = vmul.f32 %v2666, %v2702
  %v2709 = vmul.f32 %v2668, %v2702
  %v2710 = vmul.f32 %v2670, %v2702
  %v2711 = vmul.f32 %v2672, %v2702
  %v2712 = vmul.f32 %v2674, %v2702
  %v2713 = vmul.f32 %v2676, %v2702
  %v2714 = vmul.f32 %v2678, %v2702
  %v2715 = vmul.f32 %v2680, %v2702
  %v2716 = vmul.f32 %v2682, %v2702
  %v2717 = vmul.f32 %v2684, %v2702
  %v2718 = vmul.f32 %v2686, %v2702
  %v2719 = vmul.f32 %v2703, %v90
  %v2720 = vmul.f32 %v2704, %v91
  %v2721 = vmul.f32 %v2705, %v92
  %v2722 = vmul.f32 %v2706, %v93
  %v2723 = vmul.f32 %v2707, %v94
  %v2724 = vmul.f32 %v2708, %v95
  %v2725 = vmul.f32 %v2709, %v96
  %v2726 = vmul.f32 %v2710, %v97
  %v2727 = vmul.f32 %v2711, %v98
  %v2728 = vmul.f32 %v2712, %v99
  %v2729 = vmul.f32 %v2713, %v100
  %v2730 = vmul.f32 %v2714, %v101
  %v2731 = vmul.f32 %v2715, %v102
  %v2732 = vmul.f32 %v2716, %v103
  %v2733 = vmul.f32 %v2717, %v104
  %v2734 = vmul.f32 %v2718, %v105
  %v2735 = vsel %vm157, %v2719, 0.0
  %v2736 = vsel %vm157, %v2720, 0.0
  %v2737 = vadd.f32 %v2735, %v2736
  %v2738 = vsel %vm157, %v2721, 0.0
  %v2739 = vadd.f32 %v2737, %v2738
  %v2740 = vsel %vm157, %v2722, 0.0
  %v2741 = vadd.f32 %v2739, %v2740
  %v2742 = vsel %vm157, %v2723, 0.0
  %v2743 = vadd.f32 %v2741, %v2742
  %v2744 = vsel %vm157, %v2724, 0.0
  %v2745 = vadd.f32 %v2743, %v2744
  %v2746 = vsel %vm157, %v2725, 0.0
  %v2747 = vadd.f32 %v2745, %v2746
  %v2748 = vsel %vm157, %v2726, 0.0
  %v2749 = vadd.f32 %v2747, %v2748
  %v2750 = vsel %vm157, %v2727, 0.0
  %v2751 = vadd.f32 %v2749, %v2750
  %v2752 = vsel %vm157, %v2728, 0.0
  %v2753 = vadd.f32 %v2751, %v2752
  %v2754 = vsel %vm157, %v2729, 0.0
  %v2755 = vadd.f32 %v2753, %v2754
  %v2756 = vsel %vm157, %v2730, 0.0
  %v2757 = vadd.f32 %v2755, %v2756
  %v2758 = vsel %vm157, %v2731, 0.0
  %v2759 = vadd.f32 %v2757, %v2758
  %v2760 = vsel %vm157, %v2732, 0.0
  %v2761 = vadd.f32 %v2759, %v2760
  %v2762 = vsel %vm157, %v2733, 0.0
  %v2763 = vadd.f32 %v2761, %v2762
  %v2764 = vsel %vm157, %v2734, 0.0
  %v2765 = vadd.f32 %v2763, %v2764
  %v2766 = vpack.c.bf16 %v2555, %v2555
  %v2767 = vpack.c.bf16 %v2765, %v2765
  %v2769 = vsel %vm157, %v2767, 0
  %2771 = vmatprep.subr.bf16.mxu0 0
  %2772 = vmatpush1.bf16.msra.mxu0 %v550
  %2773 = vmatprep.subr.bf16.mxu0 0
  %2774 = vmatpush1.bf16.msra.mxu0 %v551
  %2775 = vmatprep.subr.bf16.mxu0 0
  %2776 = vmatpush1.bf16.msra.mxu0 0
  %2777 = vmatprep.subr.bf16.mxu0 0
  %2778 = vmatpush1.bf16.msra.mxu0 0
  %2779 = vmatprep.subr.bf16.mxu0 0
  %2780 = vmatpush1.bf16.msra.mxu0 0
  %2781 = vmatprep.subr.bf16.mxu0 0
  %2782 = vmatpush1.bf16.msra.mxu0 0
  %2783 = vmatprep.subr.bf16.mxu0 0
  %2784 = vmatpush1.bf16.msra.mxu0 0
  %2785 = vmatprep.subr.bf16.mxu0 0
  %2786 = vmatpush1.bf16.msra.mxu0 0
  %2787 = vmatprep.subr.bf16.mxu0 0
  %2788 = vmatpush1.bf16.msra.mxu0 0
  %2789 = vmatprep.subr.bf16.mxu0 0
  %2790 = vmatpush1.bf16.msra.mxu0 0
  %2791 = vmatprep.subr.bf16.mxu0 0
  %2792 = vmatpush1.bf16.msra.mxu0 0
  %2793 = vmatprep.subr.bf16.mxu0 0
  %2794 = vmatpush1.bf16.msra.mxu0 0
  %2795 = vmatprep.subr.bf16.mxu0 0
  %2796 = vmatpush1.bf16.msra.mxu0 0
  %2797 = vmatprep.subr.bf16.mxu0 0
  %2798 = vmatpush1.bf16.msra.mxu0 0
  %2799 = vmatprep.subr.bf16.mxu0 0
  %2800 = vmatpush1.bf16.msra.mxu0 0
  %2801 = vmatprep.subr.bf16.mxu0 0
  %2802 = vmatpush1.bf16.msra.mxu0 0
  %2803 = vmatprep.mubr.bf16.mxu0 0
  %2804 = vmatmul.mubr.bf16.gmra.mrb[0].mxu0 %v2769
  %v2805 = vpop.f32.mrb[0].mxu0
  %v2806 = vadd.f32 0.0, %v2805
  %v2807 = vpop.f32.mrb[0].mxu0
  %v2808 = vpop.f32.mrb[0].mxu0
  %v2809 = vpop.f32.mrb[0].mxu0
  %2810 = vdwg.mxu0
  %2812 = vrot.lane.b32.xlu0 %v2766, 96
  %v2813 = vpop.permute.xlu0 %2812
  %v2815 = vsel %vm157, %v2813, 0
  %2817 = vmatprep.subr.bf16.mxu0 0
  %2818 = vmatpush1.bf16.msra.mxu0 %v608
  %2819 = vmatprep.subr.bf16.mxu0 0
  %2820 = vmatpush1.bf16.msra.mxu0 %v609
  %2821 = vmatprep.subr.bf16.mxu0 0
  %2822 = vmatpush1.bf16.msra.mxu0 0
  %2823 = vmatprep.subr.bf16.mxu0 0
  %2824 = vmatpush1.bf16.msra.mxu0 0
  %2825 = vmatprep.subr.bf16.mxu0 0
  %2826 = vmatpush1.bf16.msra.mxu0 0
  %2827 = vmatprep.subr.bf16.mxu0 0
  %2828 = vmatpush1.bf16.msra.mxu0 0
  %2829 = vmatprep.subr.bf16.mxu0 0
  %2830 = vmatpush1.bf16.msra.mxu0 0
  %2831 = vmatprep.subr.bf16.mxu0 0
  %2832 = vmatpush1.bf16.msra.mxu0 0
  %2833 = vmatprep.subr.bf16.mxu0 0
  %2834 = vmatpush1.bf16.msra.mxu0 0
  %2835 = vmatprep.subr.bf16.mxu0 0
  %2836 = vmatpush1.bf16.msra.mxu0 0
  %2837 = vmatprep.subr.bf16.mxu0 0
  %2838 = vmatpush1.bf16.msra.mxu0 0
  %2839 = vmatprep.subr.bf16.mxu0 0
  %2840 = vmatpush1.bf16.msra.mxu0 0
  %2841 = vmatprep.subr.bf16.mxu0 0
  %2842 = vmatpush1.bf16.msra.mxu0 0
  %2843 = vmatprep.subr.bf16.mxu0 0
  %2844 = vmatpush1.bf16.msra.mxu0 0
  %2845 = vmatprep.subr.bf16.mxu0 0
  %2846 = vmatpush1.bf16.msra.mxu0 0
  %2847 = vmatprep.subr.bf16.mxu0 0
  %2848 = vmatpush1.bf16.msra.mxu0 0
  %2849 = vmatprep.mubr.bf16.mxu0 0
  %2850 = vmatmul.mubr.bf16.gmra.mrb[0].mxu0 %v2815
  %v2851 = vpop.f32.mrb[0].mxu0
  %v2852 = vadd.f32 %v2806, %v2851
  %v2853 = vpop.f32.mrb[0].mxu0
  %v2854 = vpop.f32.mrb[0].mxu0
  %v2855 = vpop.f32.mrb[0].mxu0
  %2856 = vdwg.mxu0
  %v2857 = vadd.f32 %v2852, %v659
  %v2858 = vtanh.pop %v2857
  %v2859 = vpack.c.bf16 %v2858, %v2858
  %v2861 = vsel %vm157, %v2859, 0
  %2863 = vmatprep.subr.bf16.mxu0 0
  %2864 = vmatpush1.bf16.msra.mxu0 %v678
  %2865 = vmatprep.subr.bf16.mxu0 0
  %2866 = vmatpush1.bf16.msra.mxu0 %v679
  %2867 = vmatprep.subr.bf16.mxu0 0
  %2868 = vmatpush1.bf16.msra.mxu0 0
  %2869 = vmatprep.subr.bf16.mxu0 0
  %2870 = vmatpush1.bf16.msra.mxu0 0
  %2871 = vmatprep.subr.bf16.mxu0 0
  %2872 = vmatpush1.bf16.msra.mxu0 0
  %2873 = vmatprep.subr.bf16.mxu0 0
  %2874 = vmatpush1.bf16.msra.mxu0 0
  %2875 = vmatprep.subr.bf16.mxu0 0
  %2876 = vmatpush1.bf16.msra.mxu0 0
  %2877 = vmatprep.subr.bf16.mxu0 0
  %2878 = vmatpush1.bf16.msra.mxu0 0
  %2879 = vmatprep.subr.bf16.mxu0 0
  %2880 = vmatpush1.bf16.msra.mxu0 0
  %2881 = vmatprep.subr.bf16.mxu0 0
  %2882 = vmatpush1.bf16.msra.mxu0 0
  %2883 = vmatprep.subr.bf16.mxu0 0
  %2884 = vmatpush1.bf16.msra.mxu0 0
  %2885 = vmatprep.subr.bf16.mxu0 0
  %2886 = vmatpush1.bf16.msra.mxu0 0
  %2887 = vmatprep.subr.bf16.mxu0 0
  %2888 = vmatpush1.bf16.msra.mxu0 0
  %2889 = vmatprep.subr.bf16.mxu0 0
  %2890 = vmatpush1.bf16.msra.mxu0 0
  %2891 = vmatprep.subr.bf16.mxu0 0
  %2892 = vmatpush1.bf16.msra.mxu0 0
  %2893 = vmatprep.subr.bf16.mxu0 0
  %2894 = vmatpush1.bf16.msra.mxu0 0
  %2895 = vmatprep.mubr.bf16.mxu0 0
  %2896 = vmatmul.mubr.bf16.gmra.mrb[0].mxu0 %v2861
  %v2897 = vpop.f32.mrb[0].mxu0
  %v2898 = vadd.f32 %v668, %v2897
  %v2899 = vpop.f32.mrb[0].mxu0
  %v2900 = vpop.f32.mrb[0].mxu0
  %v2901 = vpop.f32.mrb[0].mxu0
  %2902 = vdwg.mxu0
  %v2903 = vsel %vm725, %v2898, -inf
  %2904 = vmax.xlane.f32.xlu0 %v2903
  %v2905 = vpop.xlane.xlu0 %2904
  %v2906 = vsub.f32 %v2898, %v2905
  %v2907 = vmul.f32 %v2906, 1.442695
  %v2908 = vpow.pop %v2907
  %v2909 = vsel %vm725, %v2908, 0.0
  %2910 = vadd.xlane.f32.xlu0 %v2909
  %v2911 = vpop.xlane.xlu0 %2910
  %v2912 = vlog2.pop %v2911
  %v2913 = vmul.f32 %v2912, 0.6931472
  %v2914 = vadd.f32 %v2913, %v2905
  %2915 = vset.pattern.permute.xlu0 5
  %2916 = vperm.xlu0 %2915, %v738
  %v2917 = vpop.permute.xlu0 %2916
  %vm2918 = vcmp.eq.s32.totalorder %v236, %v2917
  %v2919 = vsel %vm2918, %v2898, 0.0
  %v2920 = vsel %vm725, %v2919, 0.0
  %2921 = vadd.xlane.f32.xlu0 %v2920
  %v2922 = vpop.xlane.xlu0 %2921
  %v2923 = vsub.f32 %v2914, %v2922
  %v2924 = vmul.f32 %v2923, %v748
  %2925 = vmatprep.subr.bf16.mxu0 0
  %2926 = vmatpush1.bf16.msra.mxu0 %v253
  %2927 = vmatprep.subr.bf16.mxu0 0
  %2928 = vmatpush1.bf16.msra.mxu0 %v254
  %2929 = vmatprep.subr.bf16.mxu0 0
  %2930 = vmatpush1.bf16.msra.mxu0 0
  %2931 = vmatprep.subr.bf16.mxu0 0
  %2932 = vmatpush1.bf16.msra.mxu0 0
  %2933 = vmatprep.subr.bf16.mxu0 0
  %2934 = vmatpush1.bf16.msra.mxu0 0
  %2935 = vmatprep.subr.bf16.mxu0 0
  %2936 = vmatpush1.bf16.msra.mxu0 0
  %2937 = vmatprep.subr.bf16.mxu0 0
  %2938 = vmatpush1.bf16.msra.mxu0 0
  %2939 = vmatprep.subr.bf16.mxu0 0
  %2940 = vmatpush1.bf16.msra.mxu0 0
  %2941 = vmatprep.subr.bf16.mxu0 0
  %2942 = vmatpush1.bf16.msra.mxu0 0
  %2943 = vmatprep.subr.bf16.mxu0 0
  %2944 = vmatpush1.bf16.msra.mxu0 0
  %2945 = vmatprep.subr.bf16.mxu0 0
  %2946 = vmatpush1.bf16.msra.mxu0 0
  %2947 = vmatprep.subr.bf16.mxu0 0
  %2948 = vmatpush1.bf16.msra.mxu0 0
  %2949 = vmatprep.subr.bf16.mxu0 0
  %2950 = vmatpush1.bf16.msra.mxu0 0
  %2951 = vmatprep.subr.bf16.mxu0 0
  %2952 = vmatpush1.bf16.msra.mxu0 0
  %2953 = vmatprep.subr.bf16.mxu0 0
  %2954 = vmatpush1.bf16.msra.mxu0 0
  %2955 = vmatprep.subr.bf16.mxu0 0
  %2956 = vmatpush1.bf16.msra.mxu0 0
  %2957 = vmatprep.mubr.bf16.mxu0 0
  %2958 = vmatmul.mubr.bf16.gmra.mrb[0].mxu0 %v2815
  %v2959 = vpop.f32.mrb[0].mxu0
  %v2960 = vadd.f32 %v243, %v2959
  %v2961 = vpop.f32.mrb[0].mxu0
  %v2962 = vpop.f32.mrb[0].mxu0
  %v2963 = vpop.f32.mrb[0].mxu0
  %2964 = vdwg.mxu0
  %v2965 = vadd.f32 %v229, %v2960
  %v2966 = vxor.u32 %v2965, 2147483648
  %v2967 = vmul.f32 %v2966, 1.442695
  %v2968 = vpow.pop %v2967
  %v2969 = vadd.f32 %v2968, 1.0
  %v2970 = vrcp.pop %v2969
  %v2971 = vmul.f32 1.0, %v2970
  %2973 = vrot.lane.b32.xlu0 %v2960, 64
  %v2974 = vpop.permute.xlu0 %2973
  %v2976 = vmul.f32 %v2971, %v2974
  %2978 = vrot.lane.b32.xlu0 %v2976, 64
  %v2979 = vpop.permute.xlu0 %2978
  %v2981 = vadd.f32 %v229, %v2979
  %v2982 = vtanh.pop %v2981
  %v2983 = vsub.f32 1.0, %v2971
  %2985 = vrot.lane.b32.xlu0 %v2982, 96
  %v2986 = vpop.permute.xlu0 %2985
  %v2988 = vmul.f32 %v2983, %v2986
  %v2989 = vmul.f32 %v2971, %v2555
  %v2990 = vadd.f32 %v2988, %v2989
  %2992 = vrot.lane.b32.xlu0 %v2990, 96
  %v2993 = vpop.permute.xlu0 %2992
  %v2995 = vmul.f32 %v90, %v2993
  %v2996 = vmul.f32 %v91, %v2993
  %v2997 = vmul.f32 %v92, %v2993
  %v2998 = vmul.f32 %v93, %v2993
  %v2999 = vmul.f32 %v94, %v2993
  %v3000 = vmul.f32 %v95, %v2993
  %v3001 = vmul.f32 %v96, %v2993
  %v3002 = vmul.f32 %v97, %v2993
  %v3003 = vmul.f32 %v98, %v2993
  %v3004 = vmul.f32 %v99, %v2993
  %v3005 = vmul.f32 %v100, %v2993
  %v3006 = vmul.f32 %v101, %v2993
  %v3007 = vmul.f32 %v102, %v2993
  %v3008 = vmul.f32 %v103, %v2993
  %v3009 = vmul.f32 %v104, %v2993
  %v3010 = vmul.f32 %v105, %v2993
  %v3011 = vsel %vm157, %v2995, 0.0
  %3012 = vadd.xlane.f32.xlu0 %v3011
  %v3013 = vpop.xlane.xlu0 %3012
  %v3014 = vsel %vm157, %v2996, 0.0
  %3015 = vadd.xlane.f32.xlu0 %v3014
  %v3016 = vpop.xlane.xlu0 %3015
  %v3017 = vsel %vm157, %v2997, 0.0
  %3018 = vadd.xlane.f32.xlu0 %v3017
  %v3019 = vpop.xlane.xlu0 %3018
  %v3020 = vsel %vm157, %v2998, 0.0
  %3021 = vadd.xlane.f32.xlu0 %v3020
  %v3022 = vpop.xlane.xlu0 %3021
  %v3023 = vsel %vm157, %v2999, 0.0
  %3024 = vadd.xlane.f32.xlu0 %v3023
  %v3025 = vpop.xlane.xlu0 %3024
  %v3026 = vsel %vm157, %v3000, 0.0
  %3027 = vadd.xlane.f32.xlu0 %v3026
  %v3028 = vpop.xlane.xlu0 %3027
  %v3029 = vsel %vm157, %v3001, 0.0
  %3030 = vadd.xlane.f32.xlu0 %v3029
  %v3031 = vpop.xlane.xlu0 %3030
  %v3032 = vsel %vm157, %v3002, 0.0
  %3033 = vadd.xlane.f32.xlu0 %v3032
  %v3034 = vpop.xlane.xlu0 %3033
  %v3035 = vsel %vm157, %v3003, 0.0
  %3036 = vadd.xlane.f32.xlu0 %v3035
  %v3037 = vpop.xlane.xlu0 %3036
  %v3038 = vsel %vm157, %v3004, 0.0
  %3039 = vadd.xlane.f32.xlu0 %v3038
  %v3040 = vpop.xlane.xlu0 %3039
  %v3041 = vsel %vm157, %v3005, 0.0
  %3042 = vadd.xlane.f32.xlu0 %v3041
  %v3043 = vpop.xlane.xlu0 %3042
  %v3044 = vsel %vm157, %v3006, 0.0
  %3045 = vadd.xlane.f32.xlu0 %v3044
  %v3046 = vpop.xlane.xlu0 %3045
  %v3047 = vsel %vm157, %v3007, 0.0
  %3048 = vadd.xlane.f32.xlu0 %v3047
  %v3049 = vpop.xlane.xlu0 %3048
  %v3050 = vsel %vm157, %v3008, 0.0
  %3051 = vadd.xlane.f32.xlu0 %v3050
  %v3052 = vpop.xlane.xlu0 %3051
  %v3053 = vsel %vm157, %v3009, 0.0
  %3054 = vadd.xlane.f32.xlu0 %v3053
  %v3055 = vpop.xlane.xlu0 %3054
  %v3056 = vsel %vm157, %v3010, 0.0
  %3057 = vadd.xlane.f32.xlu0 %v3056
  %v3058 = vpop.xlane.xlu0 %3057
  %v3059 = vmax.f32 %v3013, %v3025
  %v3060 = vmax.f32 %v3016, %v3028
  %v3061 = vmax.f32 %v3019, %v3031
  %v3062 = vmax.f32 %v3022, %v3034
  %v3063 = vmax.f32 %v3059, %v3037
  %v3064 = vmax.f32 %v3060, %v3040
  %v3065 = vmax.f32 %v3061, %v3043
  %v3066 = vmax.f32 %v3062, %v3046
  %v3067 = vmax.f32 %v3063, %v3049
  %v3068 = vmax.f32 %v3064, %v3052
  %v3069 = vmax.f32 %v3065, %v3055
  %v3070 = vmax.f32 %v3066, %v3058
  %v3071 = vmax.f32 %v3067, %v3068
  %v3072 = vmax.f32 %v3069, %v3070
  %v3073 = vmax.f32 %v3071, %v3072
  %v3074 = vsub.f32 %v3013, %v3073
  %v3075 = vsub.f32 %v3016, %v3073
  %v3076 = vsub.f32 %v3019, %v3073
  %v3077 = vsub.f32 %v3022, %v3073
  %v3078 = vsub.f32 %v3025, %v3073
  %v3079 = vsub.f32 %v3028, %v3073
  %v3080 = vsub.f32 %v3031, %v3073
  %v3081 = vsub.f32 %v3034, %v3073
  %v3082 = vsub.f32 %v3037, %v3073
  %v3083 = vsub.f32 %v3040, %v3073
  %v3084 = vsub.f32 %v3043, %v3073
  %v3085 = vsub.f32 %v3046, %v3073
  %v3086 = vsub.f32 %v3049, %v3073
  %v3087 = vsub.f32 %v3052, %v3073
  %v3088 = vsub.f32 %v3055, %v3073
  %v3089 = vsub.f32 %v3058, %v3073
  %v3090 = vmul.f32 %v3074, 1.442695
  %v3091 = vpow.pop %v3090
  %v3092 = vmul.f32 %v3075, 1.442695
  %v3093 = vpow.pop %v3092
  %v3094 = vmul.f32 %v3076, 1.442695
  %v3095 = vpow.pop %v3094
  %v3096 = vmul.f32 %v3077, 1.442695
  %v3097 = vpow.pop %v3096
  %v3098 = vmul.f32 %v3078, 1.442695
  %v3099 = vpow.pop %v3098
  %v3100 = vmul.f32 %v3079, 1.442695
  %v3101 = vpow.pop %v3100
  %v3102 = vmul.f32 %v3080, 1.442695
  %v3103 = vpow.pop %v3102
  %v3104 = vmul.f32 %v3081, 1.442695
  %v3105 = vpow.pop %v3104
  %v3106 = vmul.f32 %v3082, 1.442695
  %v3107 = vpow.pop %v3106
  %v3108 = vmul.f32 %v3083, 1.442695
  %v3109 = vpow.pop %v3108
  %v3110 = vmul.f32 %v3084, 1.442695
  %v3111 = vpow.pop %v3110
  %v3112 = vmul.f32 %v3085, 1.442695
  %v3113 = vpow.pop %v3112
  %v3114 = vmul.f32 %v3086, 1.442695
  %v3115 = vpow.pop %v3114
  %v3116 = vmul.f32 %v3087, 1.442695
  %v3117 = vpow.pop %v3116
  %v3118 = vmul.f32 %v3088, 1.442695
  %v3119 = vpow.pop %v3118
  %v3120 = vmul.f32 %v3089, 1.442695
  %v3121 = vpow.pop %v3120
  %v3122 = vadd.f32 %v3091, %v3093
  %v3123 = vadd.f32 %v3122, %v3095
  %v3124 = vadd.f32 %v3123, %v3097
  %v3125 = vadd.f32 %v3124, %v3099
  %v3126 = vadd.f32 %v3125, %v3101
  %v3127 = vadd.f32 %v3126, %v3103
  %v3128 = vadd.f32 %v3127, %v3105
  %v3129 = vadd.f32 %v3128, %v3107
  %v3130 = vadd.f32 %v3129, %v3109
  %v3131 = vadd.f32 %v3130, %v3111
  %v3132 = vadd.f32 %v3131, %v3113
  %v3133 = vadd.f32 %v3132, %v3115
  %v3134 = vadd.f32 %v3133, %v3117
  %v3135 = vadd.f32 %v3134, %v3119
  %v3136 = vadd.f32 %v3135, %v3121
  %v3137 = vrcp.pop %v3136
  %v3138 = vmul.f32 %v3091, %v3137
  %v3139 = vmul.f32 %v3093, %v3137
  %v3140 = vmul.f32 %v3095, %v3137
  %v3141 = vmul.f32 %v3097, %v3137
  %v3142 = vmul.f32 %v3099, %v3137
  %v3143 = vmul.f32 %v3101, %v3137
  %v3144 = vmul.f32 %v3103, %v3137
  %v3145 = vmul.f32 %v3105, %v3137
  %v3146 = vmul.f32 %v3107, %v3137
  %v3147 = vmul.f32 %v3109, %v3137
  %v3148 = vmul.f32 %v3111, %v3137
  %v3149 = vmul.f32 %v3113, %v3137
  %v3150 = vmul.f32 %v3115, %v3137
  %v3151 = vmul.f32 %v3117, %v3137
  %v3152 = vmul.f32 %v3119, %v3137
  %v3153 = vmul.f32 %v3121, %v3137
  %v3154 = vmul.f32 %v3138, %v90
  %v3155 = vmul.f32 %v3139, %v91
  %v3156 = vmul.f32 %v3140, %v92
  %v3157 = vmul.f32 %v3141, %v93
  %v3158 = vmul.f32 %v3142, %v94
  %v3159 = vmul.f32 %v3143, %v95
  %v3160 = vmul.f32 %v3144, %v96
  %v3161 = vmul.f32 %v3145, %v97
  %v3162 = vmul.f32 %v3146, %v98
  %v3163 = vmul.f32 %v3147, %v99
  %v3164 = vmul.f32 %v3148, %v100
  %v3165 = vmul.f32 %v3149, %v101
  %v3166 = vmul.f32 %v3150, %v102
  %v3167 = vmul.f32 %v3151, %v103
  %v3168 = vmul.f32 %v3152, %v104
  %v3169 = vmul.f32 %v3153, %v105
  %v3170 = vsel %vm157, %v3154, 0.0
  %v3171 = vsel %vm157, %v3155, 0.0
  %v3172 = vadd.f32 %v3170, %v3171
  %v3173 = vsel %vm157, %v3156, 0.0
  %v3174 = vadd.f32 %v3172, %v3173
  %v3175 = vsel %vm157, %v3157, 0.0
  %v3176 = vadd.f32 %v3174, %v3175
  %v3177 = vsel %vm157, %v3158, 0.0
  %v3178 = vadd.f32 %v3176, %v3177
  %v3179 = vsel %vm157, %v3159, 0.0
  %v3180 = vadd.f32 %v3178, %v3179
  %v3181 = vsel %vm157, %v3160, 0.0
  %v3182 = vadd.f32 %v3180, %v3181
  %v3183 = vsel %vm157, %v3161, 0.0
  %v3184 = vadd.f32 %v3182, %v3183
  %v3185 = vsel %vm157, %v3162, 0.0
  %v3186 = vadd.f32 %v3184, %v3185
  %v3187 = vsel %vm157, %v3163, 0.0
  %v3188 = vadd.f32 %v3186, %v3187
  %v3189 = vsel %vm157, %v3164, 0.0
  %v3190 = vadd.f32 %v3188, %v3189
  %v3191 = vsel %vm157, %v3165, 0.0
  %v3192 = vadd.f32 %v3190, %v3191
  %v3193 = vsel %vm157, %v3166, 0.0
  %v3194 = vadd.f32 %v3192, %v3193
  %v3195 = vsel %vm157, %v3167, 0.0
  %v3196 = vadd.f32 %v3194, %v3195
  %v3197 = vsel %vm157, %v3168, 0.0
  %v3198 = vadd.f32 %v3196, %v3197
  %v3199 = vsel %vm157, %v3169, 0.0
  %v3200 = vadd.f32 %v3198, %v3199
  %v3201 = vpack.c.bf16 %v2990, %v2990
  %v3202 = vpack.c.bf16 %v3200, %v3200
  %v3204 = vsel %vm157, %v3202, 0
  %3206 = vmatprep.subr.bf16.mxu0 0
  %3207 = vmatpush1.bf16.msra.mxu0 %v550
  %3208 = vmatprep.subr.bf16.mxu0 0
  %3209 = vmatpush1.bf16.msra.mxu0 %v551
  %3210 = vmatprep.subr.bf16.mxu0 0
  %3211 = vmatpush1.bf16.msra.mxu0 0
  %3212 = vmatprep.subr.bf16.mxu0 0
  %3213 = vmatpush1.bf16.msra.mxu0 0
  %3214 = vmatprep.subr.bf16.mxu0 0
  %3215 = vmatpush1.bf16.msra.mxu0 0
  %3216 = vmatprep.subr.bf16.mxu0 0
  %3217 = vmatpush1.bf16.msra.mxu0 0
  %3218 = vmatprep.subr.bf16.mxu0 0
  %3219 = vmatpush1.bf16.msra.mxu0 0
  %3220 = vmatprep.subr.bf16.mxu0 0
  %3221 = vmatpush1.bf16.msra.mxu0 0
  %3222 = vmatprep.subr.bf16.mxu0 0
  %3223 = vmatpush1.bf16.msra.mxu0 0
  %3224 = vmatprep.subr.bf16.mxu0 0
  %3225 = vmatpush1.bf16.msra.mxu0 0
  %3226 = vmatprep.subr.bf16.mxu0 0
  %3227 = vmatpush1.bf16.msra.mxu0 0
  %3228 = vmatprep.subr.bf16.mxu0 0
  %3229 = vmatpush1.bf16.msra.mxu0 0
  %3230 = vmatprep.subr.bf16.mxu0 0
  %3231 = vmatpush1.bf16.msra.mxu0 0
  %3232 = vmatprep.subr.bf16.mxu0 0
  %3233 = vmatpush1.bf16.msra.mxu0 0
  %3234 = vmatprep.subr.bf16.mxu0 0
  %3235 = vmatpush1.bf16.msra.mxu0 0
  %3236 = vmatprep.subr.bf16.mxu0 0
  %3237 = vmatpush1.bf16.msra.mxu0 0
  %3238 = vmatprep.mubr.bf16.mxu0 0
  %3239 = vmatmul.mubr.bf16.gmra.mrb[0].mxu0 %v3204
  %v3240 = vpop.f32.mrb[0].mxu0
  %v3241 = vadd.f32 0.0, %v3240
  %v3242 = vpop.f32.mrb[0].mxu0
  %v3243 = vpop.f32.mrb[0].mxu0
  %v3244 = vpop.f32.mrb[0].mxu0
  %3245 = vdwg.mxu0
  %3247 = vrot.lane.b32.xlu0 %v3201, 96
  %v3248 = vpop.permute.xlu0 %3247
  %v3250 = vsel %vm157, %v3248, 0
  %3252 = vmatprep.subr.bf16.mxu0 0
  %3253 = vmatpush1.bf16.msra.mxu0 %v608
  %3254 = vmatprep.subr.bf16.mxu0 0
  %3255 = vmatpush1.bf16.msra.mxu0 %v609
  %3256 = vmatprep.subr.bf16.mxu0 0
  %3257 = vmatpush1.bf16.msra.mxu0 0
  %3258 = vmatprep.subr.bf16.mxu0 0
  %3259 = vmatpush1.bf16.msra.mxu0 0
  %3260 = vmatprep.subr.bf16.mxu0 0
  %3261 = vmatpush1.bf16.msra.mxu0 0
  %3262 = vmatprep.subr.bf16.mxu0 0
  %3263 = vmatpush1.bf16.msra.mxu0 0
  %3264 = vmatprep.subr.bf16.mxu0 0
  %3265 = vmatpush1.bf16.msra.mxu0 0
  %3266 = vmatprep.subr.bf16.mxu0 0
  %3267 = vmatpush1.bf16.msra.mxu0 0
  %3268 = vmatprep.subr.bf16.mxu0 0
  %3269 = vmatpush1.bf16.msra.mxu0 0
  %3270 = vmatprep.subr.bf16.mxu0 0
  %3271 = vmatpush1.bf16.msra.mxu0 0
  %3272 = vmatprep.subr.bf16.mxu0 0
  %3273 = vmatpush1.bf16.msra.mxu0 0
  %3274 = vmatprep.subr.bf16.mxu0 0
  %3275 = vmatpush1.bf16.msra.mxu0 0
  %3276 = vmatprep.subr.bf16.mxu0 0
  %3277 = vmatpush1.bf16.msra.mxu0 0
  %3278 = vmatprep.subr.bf16.mxu0 0
  %3279 = vmatpush1.bf16.msra.mxu0 0
  %3280 = vmatprep.subr.bf16.mxu0 0
  %3281 = vmatpush1.bf16.msra.mxu0 0
  %3282 = vmatprep.subr.bf16.mxu0 0
  %3283 = vmatpush1.bf16.msra.mxu0 0
  %3284 = vmatprep.mubr.bf16.mxu0 0
  %3285 = vmatmul.mubr.bf16.gmra.mrb[0].mxu0 %v3250
  %v3286 = vpop.f32.mrb[0].mxu0
  %v3287 = vadd.f32 %v3241, %v3286
  %v3288 = vpop.f32.mrb[0].mxu0
  %v3289 = vpop.f32.mrb[0].mxu0
  %v3290 = vpop.f32.mrb[0].mxu0
  %3291 = vdwg.mxu0
  %v3292 = vadd.f32 %v3287, %v659
  %v3293 = vtanh.pop %v3292
  %v3294 = vpack.c.bf16 %v3293, %v3293
  %v3296 = vsel %vm157, %v3294, 0
  %3298 = vmatprep.subr.bf16.mxu0 0
  %3299 = vmatpush1.bf16.msra.mxu0 %v678
  %3300 = vmatprep.subr.bf16.mxu0 0
  %3301 = vmatpush1.bf16.msra.mxu0 %v679
  %3302 = vmatprep.subr.bf16.mxu0 0
  %3303 = vmatpush1.bf16.msra.mxu0 0
  %3304 = vmatprep.subr.bf16.mxu0 0
  %3305 = vmatpush1.bf16.msra.mxu0 0
  %3306 = vmatprep.subr.bf16.mxu0 0
  %3307 = vmatpush1.bf16.msra.mxu0 0
  %3308 = vmatprep.subr.bf16.mxu0 0
  %3309 = vmatpush1.bf16.msra.mxu0 0
  %3310 = vmatprep.subr.bf16.mxu0 0
  %3311 = vmatpush1.bf16.msra.mxu0 0
  %3312 = vmatprep.subr.bf16.mxu0 0
  %3313 = vmatpush1.bf16.msra.mxu0 0
  %3314 = vmatprep.subr.bf16.mxu0 0
  %3315 = vmatpush1.bf16.msra.mxu0 0
  %3316 = vmatprep.subr.bf16.mxu0 0
  %3317 = vmatpush1.bf16.msra.mxu0 0
  %3318 = vmatprep.subr.bf16.mxu0 0
  %3319 = vmatpush1.bf16.msra.mxu0 0
  %3320 = vmatprep.subr.bf16.mxu0 0
  %3321 = vmatpush1.bf16.msra.mxu0 0
  %3322 = vmatprep.subr.bf16.mxu0 0
  %3323 = vmatpush1.bf16.msra.mxu0 0
  %3324 = vmatprep.subr.bf16.mxu0 0
  %3325 = vmatpush1.bf16.msra.mxu0 0
  %3326 = vmatprep.subr.bf16.mxu0 0
  %3327 = vmatpush1.bf16.msra.mxu0 0
  %3328 = vmatprep.subr.bf16.mxu0 0
  %3329 = vmatpush1.bf16.msra.mxu0 0
  %3330 = vmatprep.mubr.bf16.mxu0 0
  %3331 = vmatmul.mubr.bf16.gmra.mrb[0].mxu0 %v3296
  %v3332 = vpop.f32.mrb[0].mxu0
  %v3333 = vadd.f32 %v668, %v3332
  %v3334 = vpop.f32.mrb[0].mxu0
  %v3335 = vpop.f32.mrb[0].mxu0
  %v3336 = vpop.f32.mrb[0].mxu0
  %3337 = vdwg.mxu0
  %v3338 = vsel %vm725, %v3333, -inf
  %3339 = vmax.xlane.f32.xlu0 %v3338
  %v3340 = vpop.xlane.xlu0 %3339
  %v3341 = vsub.f32 %v3333, %v3340
  %v3342 = vmul.f32 %v3341, 1.442695
  %v3343 = vpow.pop %v3342
  %v3344 = vsel %vm725, %v3343, 0.0
  %3345 = vadd.xlane.f32.xlu0 %v3344
  %v3346 = vpop.xlane.xlu0 %3345
  %v3347 = vlog2.pop %v3346
  %v3348 = vmul.f32 %v3347, 0.6931472
  %v3349 = vadd.f32 %v3348, %v3340
  %3350 = vset.pattern.permute.xlu0 6
  %3351 = vperm.xlu0 %3350, %v738
  %v3352 = vpop.permute.xlu0 %3351
  %vm3353 = vcmp.eq.s32.totalorder %v236, %v3352
  %v3354 = vsel %vm3353, %v3333, 0.0
  %v3355 = vsel %vm725, %v3354, 0.0
  %3356 = vadd.xlane.f32.xlu0 %v3355
  %v3357 = vpop.xlane.xlu0 %3356
  %v3358 = vsub.f32 %v3349, %v3357
  %v3359 = vmul.f32 %v3358, %v748
  %3360 = vmatprep.subr.bf16.mxu0 0
  %3361 = vmatpush1.bf16.msra.mxu0 %v253
  %3362 = vmatprep.subr.bf16.mxu0 0
  %3363 = vmatpush1.bf16.msra.mxu0 %v254
  %3364 = vmatprep.subr.bf16.mxu0 0
  %3365 = vmatpush1.bf16.msra.mxu0 0
  %3366 = vmatprep.subr.bf16.mxu0 0
  %3367 = vmatpush1.bf16.msra.mxu0 0
  %3368 = vmatprep.subr.bf16.mxu0 0
  %3369 = vmatpush1.bf16.msra.mxu0 0
  %3370 = vmatprep.subr.bf16.mxu0 0
  %3371 = vmatpush1.bf16.msra.mxu0 0
  %3372 = vmatprep.subr.bf16.mxu0 0
  %3373 = vmatpush1.bf16.msra.mxu0 0
  %3374 = vmatprep.subr.bf16.mxu0 0
  %3375 = vmatpush1.bf16.msra.mxu0 0
  %3376 = vmatprep.subr.bf16.mxu0 0
  %3377 = vmatpush1.bf16.msra.mxu0 0
  %3378 = vmatprep.subr.bf16.mxu0 0
  %3379 = vmatpush1.bf16.msra.mxu0 0
  %3380 = vmatprep.subr.bf16.mxu0 0
  %3381 = vmatpush1.bf16.msra.mxu0 0
  %3382 = vmatprep.subr.bf16.mxu0 0
  %3383 = vmatpush1.bf16.msra.mxu0 0
  %3384 = vmatprep.subr.bf16.mxu0 0
  %3385 = vmatpush1.bf16.msra.mxu0 0
  %3386 = vmatprep.subr.bf16.mxu0 0
  %3387 = vmatpush1.bf16.msra.mxu0 0
  %3388 = vmatprep.subr.bf16.mxu0 0
  %3389 = vmatpush1.bf16.msra.mxu0 0
  %3390 = vmatprep.subr.bf16.mxu0 0
  %3391 = vmatpush1.bf16.msra.mxu0 0
  %3392 = vmatprep.mubr.bf16.mxu0 0
  %3393 = vmatmul.mubr.bf16.gmra.mrb[0].mxu0 %v3250
  %v3394 = vpop.f32.mrb[0].mxu0
  %v3395 = vadd.f32 %v243, %v3394
  %v3396 = vpop.f32.mrb[0].mxu0
  %v3397 = vpop.f32.mrb[0].mxu0
  %v3398 = vpop.f32.mrb[0].mxu0
  %3399 = vdwg.mxu0
  %v3400 = vadd.f32 %v232, %v3395
  %v3401 = vxor.u32 %v3400, 2147483648
  %v3402 = vmul.f32 %v3401, 1.442695
  %v3403 = vpow.pop %v3402
  %v3404 = vadd.f32 %v3403, 1.0
  %v3405 = vrcp.pop %v3404
  %v3406 = vmul.f32 1.0, %v3405
  %3408 = vrot.lane.b32.xlu0 %v3395, 64
  %v3409 = vpop.permute.xlu0 %3408
  %v3411 = vmul.f32 %v3406, %v3409
  %3413 = vrot.lane.b32.xlu0 %v3411, 64
  %v3414 = vpop.permute.xlu0 %3413
  %v3416 = vadd.f32 %v232, %v3414
  %v3417 = vtanh.pop %v3416
  %v3418 = vsub.f32 1.0, %v3406
  %3420 = vrot.lane.b32.xlu0 %v3417, 96
  %v3421 = vpop.permute.xlu0 %3420
  %v3423 = vmul.f32 %v3418, %v3421
  %v3424 = vmul.f32 %v3406, %v2990
  %v3425 = vadd.f32 %v3423, %v3424
  %3427 = vrot.lane.b32.xlu0 %v3425, 96
  %v3428 = vpop.permute.xlu0 %3427
  %v3430 = vmul.f32 %v90, %v3428
  %v3431 = vmul.f32 %v91, %v3428
  %v3432 = vmul.f32 %v92, %v3428
  %v3433 = vmul.f32 %v93, %v3428
  %v3434 = vmul.f32 %v94, %v3428
  %v3435 = vmul.f32 %v95, %v3428
  %v3436 = vmul.f32 %v96, %v3428
  %v3437 = vmul.f32 %v97, %v3428
  %v3438 = vmul.f32 %v98, %v3428
  %v3439 = vmul.f32 %v99, %v3428
  %v3440 = vmul.f32 %v100, %v3428
  %v3441 = vmul.f32 %v101, %v3428
  %v3442 = vmul.f32 %v102, %v3428
  %v3443 = vmul.f32 %v103, %v3428
  %v3444 = vmul.f32 %v104, %v3428
  %v3445 = vmul.f32 %v105, %v3428
  %v3446 = vsel %vm157, %v3430, 0.0
  %3447 = vadd.xlane.f32.xlu0 %v3446
  %v3448 = vpop.xlane.xlu0 %3447
  %v3449 = vsel %vm157, %v3431, 0.0
  %3450 = vadd.xlane.f32.xlu0 %v3449
  %v3451 = vpop.xlane.xlu0 %3450
  %v3452 = vsel %vm157, %v3432, 0.0
  %3453 = vadd.xlane.f32.xlu0 %v3452
  %v3454 = vpop.xlane.xlu0 %3453
  %v3455 = vsel %vm157, %v3433, 0.0
  %3456 = vadd.xlane.f32.xlu0 %v3455
  %v3457 = vpop.xlane.xlu0 %3456
  %v3458 = vsel %vm157, %v3434, 0.0
  %3459 = vadd.xlane.f32.xlu0 %v3458
  %v3460 = vpop.xlane.xlu0 %3459
  %v3461 = vsel %vm157, %v3435, 0.0
  %3462 = vadd.xlane.f32.xlu0 %v3461
  %v3463 = vpop.xlane.xlu0 %3462
  %v3464 = vsel %vm157, %v3436, 0.0
  %3465 = vadd.xlane.f32.xlu0 %v3464
  %v3466 = vpop.xlane.xlu0 %3465
  %v3467 = vsel %vm157, %v3437, 0.0
  %3468 = vadd.xlane.f32.xlu0 %v3467
  %v3469 = vpop.xlane.xlu0 %3468
  %v3470 = vsel %vm157, %v3438, 0.0
  %3471 = vadd.xlane.f32.xlu0 %v3470
  %v3472 = vpop.xlane.xlu0 %3471
  %v3473 = vsel %vm157, %v3439, 0.0
  %3474 = vadd.xlane.f32.xlu0 %v3473
  %v3475 = vpop.xlane.xlu0 %3474
  %v3476 = vsel %vm157, %v3440, 0.0
  %3477 = vadd.xlane.f32.xlu0 %v3476
  %v3478 = vpop.xlane.xlu0 %3477
  %v3479 = vsel %vm157, %v3441, 0.0
  %3480 = vadd.xlane.f32.xlu0 %v3479
  %v3481 = vpop.xlane.xlu0 %3480
  %v3482 = vsel %vm157, %v3442, 0.0
  %3483 = vadd.xlane.f32.xlu0 %v3482
  %v3484 = vpop.xlane.xlu0 %3483
  %v3485 = vsel %vm157, %v3443, 0.0
  %3486 = vadd.xlane.f32.xlu0 %v3485
  %v3487 = vpop.xlane.xlu0 %3486
  %v3488 = vsel %vm157, %v3444, 0.0
  %3489 = vadd.xlane.f32.xlu0 %v3488
  %v3490 = vpop.xlane.xlu0 %3489
  %v3491 = vsel %vm157, %v3445, 0.0
  %3492 = vadd.xlane.f32.xlu0 %v3491
  %v3493 = vpop.xlane.xlu0 %3492
  %v3494 = vmax.f32 %v3448, %v3460
  %v3495 = vmax.f32 %v3451, %v3463
  %v3496 = vmax.f32 %v3454, %v3466
  %v3497 = vmax.f32 %v3457, %v3469
  %v3498 = vmax.f32 %v3494, %v3472
  %v3499 = vmax.f32 %v3495, %v3475
  %v3500 = vmax.f32 %v3496, %v3478
  %v3501 = vmax.f32 %v3497, %v3481
  %v3502 = vmax.f32 %v3498, %v3484
  %v3503 = vmax.f32 %v3499, %v3487
  %v3504 = vmax.f32 %v3500, %v3490
  %v3505 = vmax.f32 %v3501, %v3493
  %v3506 = vmax.f32 %v3502, %v3503
  %v3507 = vmax.f32 %v3504, %v3505
  %v3508 = vmax.f32 %v3506, %v3507
  %v3509 = vsub.f32 %v3448, %v3508
  %v3510 = vsub.f32 %v3451, %v3508
  %v3511 = vsub.f32 %v3454, %v3508
  %v3512 = vsub.f32 %v3457, %v3508
  %v3513 = vsub.f32 %v3460, %v3508
  %v3514 = vsub.f32 %v3463, %v3508
  %v3515 = vsub.f32 %v3466, %v3508
  %v3516 = vsub.f32 %v3469, %v3508
  %v3517 = vsub.f32 %v3472, %v3508
  %v3518 = vsub.f32 %v3475, %v3508
  %v3519 = vsub.f32 %v3478, %v3508
  %v3520 = vsub.f32 %v3481, %v3508
  %v3521 = vsub.f32 %v3484, %v3508
  %v3522 = vsub.f32 %v3487, %v3508
  %v3523 = vsub.f32 %v3490, %v3508
  %v3524 = vsub.f32 %v3493, %v3508
  %v3525 = vmul.f32 %v3509, 1.442695
  %v3526 = vpow.pop %v3525
  %v3527 = vmul.f32 %v3510, 1.442695
  %v3528 = vpow.pop %v3527
  %v3529 = vmul.f32 %v3511, 1.442695
  %v3530 = vpow.pop %v3529
  %v3531 = vmul.f32 %v3512, 1.442695
  %v3532 = vpow.pop %v3531
  %v3533 = vmul.f32 %v3513, 1.442695
  %v3534 = vpow.pop %v3533
  %v3535 = vmul.f32 %v3514, 1.442695
  %v3536 = vpow.pop %v3535
  %v3537 = vmul.f32 %v3515, 1.442695
  %v3538 = vpow.pop %v3537
  %v3539 = vmul.f32 %v3516, 1.442695
  %v3540 = vpow.pop %v3539
  %v3541 = vmul.f32 %v3517, 1.442695
  %v3542 = vpow.pop %v3541
  %v3543 = vmul.f32 %v3518, 1.442695
  %v3544 = vpow.pop %v3543
  %v3545 = vmul.f32 %v3519, 1.442695
  %v3546 = vpow.pop %v3545
  %v3547 = vmul.f32 %v3520, 1.442695
  %v3548 = vpow.pop %v3547
  %v3549 = vmul.f32 %v3521, 1.442695
  %v3550 = vpow.pop %v3549
  %v3551 = vmul.f32 %v3522, 1.442695
  %v3552 = vpow.pop %v3551
  %v3553 = vmul.f32 %v3523, 1.442695
  %v3554 = vpow.pop %v3553
  %v3555 = vmul.f32 %v3524, 1.442695
  %v3556 = vpow.pop %v3555
  %v3557 = vadd.f32 %v3526, %v3528
  %v3558 = vadd.f32 %v3557, %v3530
  %v3559 = vadd.f32 %v3558, %v3532
  %v3560 = vadd.f32 %v3559, %v3534
  %v3561 = vadd.f32 %v3560, %v3536
  %v3562 = vadd.f32 %v3561, %v3538
  %v3563 = vadd.f32 %v3562, %v3540
  %v3564 = vadd.f32 %v3563, %v3542
  %v3565 = vadd.f32 %v3564, %v3544
  %v3566 = vadd.f32 %v3565, %v3546
  %v3567 = vadd.f32 %v3566, %v3548
  %v3568 = vadd.f32 %v3567, %v3550
  %v3569 = vadd.f32 %v3568, %v3552
  %v3570 = vadd.f32 %v3569, %v3554
  %v3571 = vadd.f32 %v3570, %v3556
  %v3572 = vrcp.pop %v3571
  %v3573 = vmul.f32 %v3526, %v3572
  %v3574 = vmul.f32 %v3528, %v3572
  %v3575 = vmul.f32 %v3530, %v3572
  %v3576 = vmul.f32 %v3532, %v3572
  %v3577 = vmul.f32 %v3534, %v3572
  %v3578 = vmul.f32 %v3536, %v3572
  %v3579 = vmul.f32 %v3538, %v3572
  %v3580 = vmul.f32 %v3540, %v3572
  %v3581 = vmul.f32 %v3542, %v3572
  %v3582 = vmul.f32 %v3544, %v3572
  %v3583 = vmul.f32 %v3546, %v3572
  %v3584 = vmul.f32 %v3548, %v3572
  %v3585 = vmul.f32 %v3550, %v3572
  %v3586 = vmul.f32 %v3552, %v3572
  %v3587 = vmul.f32 %v3554, %v3572
  %v3588 = vmul.f32 %v3556, %v3572
  %v3589 = vmul.f32 %v3573, %v90
  %v3590 = vmul.f32 %v3574, %v91
  %v3591 = vmul.f32 %v3575, %v92
  %v3592 = vmul.f32 %v3576, %v93
  %v3593 = vmul.f32 %v3577, %v94
  %v3594 = vmul.f32 %v3578, %v95
  %v3595 = vmul.f32 %v3579, %v96
  %v3596 = vmul.f32 %v3580, %v97
  %v3597 = vmul.f32 %v3581, %v98
  %v3598 = vmul.f32 %v3582, %v99
  %v3599 = vmul.f32 %v3583, %v100
  %v3600 = vmul.f32 %v3584, %v101
  %v3601 = vmul.f32 %v3585, %v102
  %v3602 = vmul.f32 %v3586, %v103
  %v3603 = vmul.f32 %v3587, %v104
  %v3604 = vmul.f32 %v3588, %v105
  %v3605 = vsel %vm157, %v3589, 0.0
  %v3606 = vsel %vm157, %v3590, 0.0
  %v3607 = vadd.f32 %v3605, %v3606
  %v3608 = vsel %vm157, %v3591, 0.0
  %v3609 = vadd.f32 %v3607, %v3608
  %v3610 = vsel %vm157, %v3592, 0.0
  %v3611 = vadd.f32 %v3609, %v3610
  %v3612 = vsel %vm157, %v3593, 0.0
  %v3613 = vadd.f32 %v3611, %v3612
  %v3614 = vsel %vm157, %v3594, 0.0
  %v3615 = vadd.f32 %v3613, %v3614
  %v3616 = vsel %vm157, %v3595, 0.0
  %v3617 = vadd.f32 %v3615, %v3616
  %v3618 = vsel %vm157, %v3596, 0.0
  %v3619 = vadd.f32 %v3617, %v3618
  %v3620 = vsel %vm157, %v3597, 0.0
  %v3621 = vadd.f32 %v3619, %v3620
  %v3622 = vsel %vm157, %v3598, 0.0
  %v3623 = vadd.f32 %v3621, %v3622
  %v3624 = vsel %vm157, %v3599, 0.0
  %v3625 = vadd.f32 %v3623, %v3624
  %v3626 = vsel %vm157, %v3600, 0.0
  %v3627 = vadd.f32 %v3625, %v3626
  %v3628 = vsel %vm157, %v3601, 0.0
  %v3629 = vadd.f32 %v3627, %v3628
  %v3630 = vsel %vm157, %v3602, 0.0
  %v3631 = vadd.f32 %v3629, %v3630
  %v3632 = vsel %vm157, %v3603, 0.0
  %v3633 = vadd.f32 %v3631, %v3632
  %v3634 = vsel %vm157, %v3604, 0.0
  %v3635 = vadd.f32 %v3633, %v3634
  %v3636 = vpack.c.bf16 %v3425, %v3425
  %v3637 = vpack.c.bf16 %v3635, %v3635
  %v3639 = vsel %vm157, %v3637, 0
  %3641 = vmatprep.subr.bf16.mxu0 0
  %3642 = vmatpush1.bf16.msra.mxu0 %v550
  %3643 = vmatprep.subr.bf16.mxu0 0
  %3644 = vmatpush1.bf16.msra.mxu0 %v551
  %3645 = vmatprep.subr.bf16.mxu0 0
  %3646 = vmatpush1.bf16.msra.mxu0 0
  %3647 = vmatprep.subr.bf16.mxu0 0
  %3648 = vmatpush1.bf16.msra.mxu0 0
  %3649 = vmatprep.subr.bf16.mxu0 0
  %3650 = vmatpush1.bf16.msra.mxu0 0
  %3651 = vmatprep.subr.bf16.mxu0 0
  %3652 = vmatpush1.bf16.msra.mxu0 0
  %3653 = vmatprep.subr.bf16.mxu0 0
  %3654 = vmatpush1.bf16.msra.mxu0 0
  %3655 = vmatprep.subr.bf16.mxu0 0
  %3656 = vmatpush1.bf16.msra.mxu0 0
  %3657 = vmatprep.subr.bf16.mxu0 0
  %3658 = vmatpush1.bf16.msra.mxu0 0
  %3659 = vmatprep.subr.bf16.mxu0 0
  %3660 = vmatpush1.bf16.msra.mxu0 0
  %3661 = vmatprep.subr.bf16.mxu0 0
  %3662 = vmatpush1.bf16.msra.mxu0 0
  %3663 = vmatprep.subr.bf16.mxu0 0
  %3664 = vmatpush1.bf16.msra.mxu0 0
  %3665 = vmatprep.subr.bf16.mxu0 0
  %3666 = vmatpush1.bf16.msra.mxu0 0
  %3667 = vmatprep.subr.bf16.mxu0 0
  %3668 = vmatpush1.bf16.msra.mxu0 0
  %3669 = vmatprep.subr.bf16.mxu0 0
  %3670 = vmatpush1.bf16.msra.mxu0 0
  %3671 = vmatprep.subr.bf16.mxu0 0
  %3672 = vmatpush1.bf16.msra.mxu0 0
  %3673 = vmatprep.mubr.bf16.mxu0 0
  %3674 = vmatmul.mubr.bf16.gmra.mrb[0].mxu0 %v3639
  %v3675 = vpop.f32.mrb[0].mxu0
  %v3676 = vadd.f32 0.0, %v3675
  %v3677 = vpop.f32.mrb[0].mxu0
  %v3678 = vpop.f32.mrb[0].mxu0
  %v3679 = vpop.f32.mrb[0].mxu0
  %3680 = vdwg.mxu0
  %3682 = vrot.lane.b32.xlu0 %v3636, 96
  %v3683 = vpop.permute.xlu0 %3682
  %v3685 = vsel %vm157, %v3683, 0
  %3687 = vmatprep.subr.bf16.mxu0 0
  %3688 = vmatpush1.bf16.msra.mxu0 %v608
  %3689 = vmatprep.subr.bf16.mxu0 0
  %3690 = vmatpush1.bf16.msra.mxu0 %v609
  %3691 = vmatprep.subr.bf16.mxu0 0
  %3692 = vmatpush1.bf16.msra.mxu0 0
  %3693 = vmatprep.subr.bf16.mxu0 0
  %3694 = vmatpush1.bf16.msra.mxu0 0
  %3695 = vmatprep.subr.bf16.mxu0 0
  %3696 = vmatpush1.bf16.msra.mxu0 0
  %3697 = vmatprep.subr.bf16.mxu0 0
  %3698 = vmatpush1.bf16.msra.mxu0 0
  %3699 = vmatprep.subr.bf16.mxu0 0
  %3700 = vmatpush1.bf16.msra.mxu0 0
  %3701 = vmatprep.subr.bf16.mxu0 0
  %3702 = vmatpush1.bf16.msra.mxu0 0
  %3703 = vmatprep.subr.bf16.mxu0 0
  %3704 = vmatpush1.bf16.msra.mxu0 0
  %3705 = vmatprep.subr.bf16.mxu0 0
  %3706 = vmatpush1.bf16.msra.mxu0 0
  %3707 = vmatprep.subr.bf16.mxu0 0
  %3708 = vmatpush1.bf16.msra.mxu0 0
  %3709 = vmatprep.subr.bf16.mxu0 0
  %3710 = vmatpush1.bf16.msra.mxu0 0
  %3711 = vmatprep.subr.bf16.mxu0 0
  %3712 = vmatpush1.bf16.msra.mxu0 0
  %3713 = vmatprep.subr.bf16.mxu0 0
  %3714 = vmatpush1.bf16.msra.mxu0 0
  %3715 = vmatprep.subr.bf16.mxu0 0
  %3716 = vmatpush1.bf16.msra.mxu0 0
  %3717 = vmatprep.subr.bf16.mxu0 0
  %3718 = vmatpush1.bf16.msra.mxu0 0
  %3719 = vmatprep.mubr.bf16.mxu0 0
  %3720 = vmatmul.mubr.bf16.gmra.mrb[0].mxu0 %v3685
  %v3721 = vpop.f32.mrb[0].mxu0
  %v3722 = vadd.f32 %v3676, %v3721
  %v3723 = vpop.f32.mrb[0].mxu0
  %v3724 = vpop.f32.mrb[0].mxu0
  %v3725 = vpop.f32.mrb[0].mxu0
  %3726 = vdwg.mxu0
  %v3727 = vadd.f32 %v3722, %v659
  %v3728 = vtanh.pop %v3727
  %v3729 = vpack.c.bf16 %v3728, %v3728
  %v3731 = vsel %vm157, %v3729, 0
  %3733 = vmatprep.subr.bf16.mxu0 0
  %3734 = vmatpush1.bf16.msra.mxu0 %v678
  %3735 = vmatprep.subr.bf16.mxu0 0
  %3736 = vmatpush1.bf16.msra.mxu0 %v679
  %3737 = vmatprep.subr.bf16.mxu0 0
  %3738 = vmatpush1.bf16.msra.mxu0 0
  %3739 = vmatprep.subr.bf16.mxu0 0
  %3740 = vmatpush1.bf16.msra.mxu0 0
  %3741 = vmatprep.subr.bf16.mxu0 0
  %3742 = vmatpush1.bf16.msra.mxu0 0
  %3743 = vmatprep.subr.bf16.mxu0 0
  %3744 = vmatpush1.bf16.msra.mxu0 0
  %3745 = vmatprep.subr.bf16.mxu0 0
  %3746 = vmatpush1.bf16.msra.mxu0 0
  %3747 = vmatprep.subr.bf16.mxu0 0
  %3748 = vmatpush1.bf16.msra.mxu0 0
  %3749 = vmatprep.subr.bf16.mxu0 0
  %3750 = vmatpush1.bf16.msra.mxu0 0
  %3751 = vmatprep.subr.bf16.mxu0 0
  %3752 = vmatpush1.bf16.msra.mxu0 0
  %3753 = vmatprep.subr.bf16.mxu0 0
  %3754 = vmatpush1.bf16.msra.mxu0 0
  %3755 = vmatprep.subr.bf16.mxu0 0
  %3756 = vmatpush1.bf16.msra.mxu0 0
  %3757 = vmatprep.subr.bf16.mxu0 0
  %3758 = vmatpush1.bf16.msra.mxu0 0
  %3759 = vmatprep.subr.bf16.mxu0 0
  %3760 = vmatpush1.bf16.msra.mxu0 0
  %3761 = vmatprep.subr.bf16.mxu0 0
  %3762 = vmatpush1.bf16.msra.mxu0 0
  %3763 = vmatprep.subr.bf16.mxu0 0
  %3764 = vmatpush1.bf16.msra.mxu0 0
  %3765 = vmatprep.mubr.bf16.mxu0 0
  %3766 = vmatmul.mubr.bf16.gmra.mrb[0].mxu0 %v3731
  %v3767 = vpop.f32.mrb[0].mxu0
  %v3768 = vadd.f32 %v668, %v3767
  %v3769 = vpop.f32.mrb[0].mxu0
  %v3770 = vpop.f32.mrb[0].mxu0
  %v3771 = vpop.f32.mrb[0].mxu0
  %3772 = vdwg.mxu0
  %v3773 = vsel %vm725, %v3768, -inf
  %3774 = vmax.xlane.f32.xlu0 %v3773
  %v3775 = vpop.xlane.xlu0 %3774
  %v3776 = vsub.f32 %v3768, %v3775
  %v3777 = vmul.f32 %v3776, 1.442695
  %v3778 = vpow.pop %v3777
  %v3779 = vsel %vm725, %v3778, 0.0
  %3780 = vadd.xlane.f32.xlu0 %v3779
  %v3781 = vpop.xlane.xlu0 %3780
  %v3782 = vlog2.pop %v3781
  %v3783 = vmul.f32 %v3782, 0.6931472
  %v3784 = vadd.f32 %v3783, %v3775
  %3785 = vset.pattern.permute.xlu0 7
  %3786 = vperm.xlu0 %3785, %v738
  %v3787 = vpop.permute.xlu0 %3786
  %vm3788 = vcmp.eq.s32.totalorder %v236, %v3787
  %v3789 = vsel %vm3788, %v3768, 0.0
  %v3790 = vsel %vm725, %v3789, 0.0
  %3791 = vadd.xlane.f32.xlu0 %v3790
  %v3792 = vpop.xlane.xlu0 %3791
  %v3793 = vsub.f32 %v3784, %v3792
  %v3794 = vmul.f32 %v3793, %v748
  %3795 = vst.msk [vmem:[#allocation2] sm:$0xff] %vm157, %v3428
  %vm3796 = vcmask 7168
  %v3797 = vsel %vm3796, %v749, %v1184
  %vm3798 = vcmask 15360
  %v3799 = vsel %vm3798, %v3797, %v1619
  %vm3800 = vcmask 23552
  %v3801 = vsel %vm3800, %v3799, %v2054
  %vm3802 = vcmask 31744
  %v3803 = vsel %vm3802, %v3801, %v2489
  %vm3804 = vcmask 39936
  %v3805 = vsel %vm3804, %v3803, %v2924
  %vm3806 = vcmask 48128
  %v3807 = vsel %vm3806, %v3805, %v3359
  %vm3808 = vcmask 56320
  %v3809 = vsel %vm3808, %v3807, %v3794
  %vm3810 = vcmask 64512
  %3811 = vst.msk [vmem:[%s14] sm:$0xff] %vm3810, %v3809
  // Predicated region
  $region62: #{_forward_device.5} parent=0 // pred_check
    _
  $region63: #{_forward_device.5} parent=0 // pred_check_branch
    %3813 = sbr.rel (0) target = $region65
  $region64: #{_forward_device.5} parent=0 // pred_region
    _
  $region65: #{_forward_device.5} parent=0 // pred_fallthru
    _
  // Predicated region
  $region66: #{_forward_device.5} parent=0 // pred_check
    _
  $region67: #{_forward_device.5} parent=0 // pred_check_branch
    %3815 = sbr.rel (0) target = $region69
  $region68: #{_forward_device.5} parent=0 // pred_region
    _
  $region69: #{_forward_device.5} parent=0 // pred_fallthru
    _

</llo_original>
